<compile_context>
chip_gen: v7x
topology: tpu7x:2x2x1
jax: 0.10.0
libtpu: 0.0.40
codegen_flags: <defaults>
</compile_context>

<pallas_src>
import math
from functools import partial

import jax
import jax.numpy as jnp
from jax import lax
from jax.experimental import pallas as pl
from jax.experimental.pallas import tpu as pltpu


# ----------------------------------------------------------------------------
# Fused Pallas kernel: all GRU layers (both directions) + MLP head
# ----------------------------------------------------------------------------
def _fused_gru_mlp_kernel(x_ref, wih_ref, bgx_ref, whh_ref, bghn_ref,
                          w1_ref, b1_ref, w2_ref, b2_ref,
                          o_ref, y_buf, gx_buf, *, T, B, H, L):
    """Fused forward pass.

    x_ref:    (T*B, 2H)   time-major flattened input, zero-padded to 2H (layer 0)
    wih_ref:  (L, 2H, 6H) input weights, gate-major columns [r_f,r_b,z_f,z_b,n_f,n_b]
    bgx_ref:  (L, 1, 6H)  b_ih (+ b_hh for r,z gates) folded into the projection
    whh_ref:  (L, 2H, 6H) block-diagonal hidden weights (fwd rows 0:H, bwd rows H:2H)
    bghn_ref: (L, 1, 6H)  b_hh for the n gate only (zeros on r,z columns)
    w1/b1/w2/b2: MLP head (Dropout is identity at inference)
    o_ref:    (B, out_size)
    y_buf:    VMEM scratch (T*B, 2H)  -- current layer output [fwd | bwd]
    gx_buf:   VMEM scratch (T*B, 6H)  -- hoisted input projection of current layer
    """
    H2, H4, H6 = 2 * H, 4 * H, 6 * H

    # Lane mask: within each gate's 2H column block, lanes [0:H) belong to the
    # forward direction and [H:2H) to the backward direction.
    col = lax.broadcasted_iota(jnp.int32, (B, H6), 1)
    fwd_mask = ((col < H)
                | ((col >= H2) & (col < H2 + H))
                | ((col >= H4) & (col < H4 + H)))

    for l in range(L):
        # ---- hoisted input projection for the whole sequence (one matmul) ----
        xin = x_ref[...] if l == 0 else y_buf[...]                    # (T*B, 2H)
        gx_buf[...] = (jnp.dot(xin, wih_ref[l],
                               preferred_element_type=jnp.float32)
                       + bgx_ref[l])                                  # (T*B, 6H)

        whh = whh_ref[l]                                              # (2H, 6H)
        bghn = bghn_ref[l]                                            # (1, 6H)

        # ---- joint fwd/bwd recurrence, fully unrolled over time ----
        h = jnp.zeros((B, H2), jnp.float32)                           # [h_fwd | h_bwd]
        for t in range(T):
            gx_fwd = gx_buf[t * B:(t + 1) * B, :]                     # x_t projection
            gx_bwd = gx_buf[(T - 1 - t) * B:(T - t) * B, :]           # x_{T-1-t} projection
            gx = jnp.where(fwd_mask, gx_fwd, gx_bwd)                  # (B, 6H)

            gh = jnp.dot(h, whh, preferred_element_type=jnp.float32) + bghn

            rz = jax.nn.sigmoid(gx[:, :H4] + gh[:, :H4])              # (B, 4H)
            r = rz[:, :H2]
            z = rz[:, H2:]
            n = jnp.tanh(gx[:, H4:] + r * gh[:, H4:])                 # (B, 2H)
            h = n + z * (h - n)                                       # (1-z)*n + z*h

            # fwd output at time t, bwd output at time T-1-t
            y_buf[t * B:(t + 1) * B, 0:H] = h[:, 0:H]
            y_buf[(T - 1 - t) * B:(T - t) * B, H:H2] = h[:, H:H2]

    # ---- MLP head on output[:, -1, :]  (Dropout(0.5) is identity at eval) ----
    last = y_buf[(T - 1) * B:T * B, :]                                # (B, 2H)
    z1 = jnp.dot(last, w1_ref[...], preferred_element_type=jnp.float32) + b1_ref[...]
    z1 = jnp.where(z1 >= 0.0, z1, 0.2 * z1)                           # LeakyReLU(0.2)
    o_ref[...] = jnp.dot(z1, w2_ref[...],
                         preferred_element_type=jnp.float32) + b2_ref[...]


# ----------------------------------------------------------------------------
# Wrapper: repack per-direction PyTorch-style params into the fused layout
# ----------------------------------------------------------------------------
_VMEM = pl.BlockSpec(memory_space=pltpu.MemorySpace.VMEM)


def _prepare_fused_params(params, H, layers):
    wih_l, bgx_l, whh_l, bghn_l = [], [], [], []
    zblk = jnp.zeros((H, H), jnp.float32)
    for l in range(layers):
        pf, pb = params["gru"][l]["fwd"], params["gru"][l]["bwd"]
        w_ih_f, w_ih_b = pf["w_ih"], pb["w_ih"]                       # (D_in, 3H)
        if l == 0:                                                    # pad rows H:2H with zeros
            pad = jnp.zeros((H, 3 * H), jnp.float32)
            w_ih_f = jnp.concatenate([w_ih_f, pad], axis=0)
            w_ih_b = jnp.concatenate([w_ih_b, pad], axis=0)

        # gate-major, direction-interleaved columns: [r_f,r_b,z_f,z_b,n_f,n_b]
        cols = []
        for g in range(3):
            cols += [w_ih_f[:, g * H:(g + 1) * H], w_ih_b[:, g * H:(g + 1) * H]]
        wih_l.append(jnp.concatenate(cols, axis=1))                   # (2H, 6H)

        w_hh_f, w_hh_b = pf["w_hh"], pb["w_hh"]                       # (H, 3H)
        cols = []
        for g in range(3):
            cols.append(jnp.concatenate([w_hh_f[:, g * H:(g + 1) * H], zblk], axis=0))
            cols.append(jnp.concatenate([zblk, w_hh_b[:, g * H:(g + 1) * H]], axis=0))
        whh_l.append(jnp.concatenate(cols, axis=1))                   # (2H, 6H) block-diag

        b_ih_f, b_ih_b = pf["b_ih"], pb["b_ih"]                       # (1, 3H)
        b_hh_f, b_hh_b = pf["b_hh"], pb["b_hh"]
        bgx_cols, bghn_cols = [], []
        for g in range(3):
            bif, bib = b_ih_f[:, g * H:(g + 1) * H], b_ih_b[:, g * H:(g + 1) * H]
            bhf, bhb = b_hh_f[:, g * H:(g + 1) * H], b_hh_b[:, g * H:(g + 1) * H]
            if g < 2:   # r, z gates: fold b_ih + b_hh into the hoisted projection
                bgx_cols += [bif + bhf, bib + bhb]
                bghn_cols += [jnp.zeros_like(bhf), jnp.zeros_like(bhb)]
            else:       # n gate: b_ih into projection; b_hh stays with gh (scaled by r)
                bgx_cols += [bif, bib]
                bghn_cols += [bhf, bhb]
        bgx_l.append(jnp.concatenate(bgx_cols, axis=1))               # (1, 6H)
        bghn_l.append(jnp.concatenate(bghn_cols, axis=1))             # (1, 6H)

    return (jnp.stack(wih_l), jnp.stack(bgx_l),
            jnp.stack(whh_l), jnp.stack(bghn_l))


def gru_k_region_forward(raw, params, kernel_size, layers, out_size):
    """Matches GruKRegion.forward (inference mode: Dropout is identity)."""
    b, k, d = raw.shape
    H = kernel_size
    T = d // H
    B = b * k

    # (b, k, d) -> time-major flat (T*B, H), then zero-pad feature dim to 2H so
    # the layer-0 projection uses the same (2H, 6H) weight shape as layers > 0.
    x = jnp.transpose(raw.reshape(B, T, H), (1, 0, 2)).reshape(T * B, H)
    x = jnp.concatenate([x, jnp.zeros((T * B, H), jnp.float32)], axis=1)

    wih, bgx, whh, bghn = _prepare_fused_params(params, H, layers)
    mlp = params["mlp"]

    out = pl.pallas_call(
        partial(_fused_gru_mlp_kernel, T=T, B=B, H=H, L=layers),
        out_shape=jax.ShapeDtypeStruct((B, out_size), jnp.float32),
        in_specs=[_VMEM] * 9,
        out_specs=_VMEM,
        scratch_shapes=[
            pltpu.VMEM((T * B, 2 * H), jnp.float32),   # y_buf  (layer output)
            pltpu.VMEM((T * B, 6 * H), jnp.float32),   # gx_buf (hoisted projection)
        ],
    )(x, wih, bgx, whh, bghn, mlp["w1"], mlp["b1"], mlp["w2"], mlp["b2"])
    return out.reshape(b, k, out_size)


# ----------------------------------------------------------------------------
# Deterministic parameter init (shapes follow the PyTorch module's __init__)
# ----------------------------------------------------------------------------
def init_params(key, kernel_size, layers, out_size):
    H = kernel_size
    n_keys = layers * 2 * 4 + 4
    keys = iter(jax.random.split(key, n_keys))

    def u(shape, bound):
        return jax.random.uniform(next(keys), shape, jnp.float32, -bound, bound)

    gru_bound = 1.0 / math.sqrt(H)
    gru = []
    for l in range(layers):
        d_in = H if l == 0 else 2 * H
        layer = {}
        for direction in ("fwd", "bwd"):
            layer[direction] = dict(
                w_ih=u((d_in, 3 * H), gru_bound),     # == weight_ih_l{l}.T
                w_hh=u((H, 3 * H), gru_bound),        # == weight_hh_l{l}.T
                b_ih=u((1, 3 * H), gru_bound),
                b_hh=u((1, 3 * H), gru_bound),
            )
        gru.append(layer)

    b1 = 1.0 / math.sqrt(2 * H)
    b2 = 1.0 / math.sqrt(H)
    mlp = dict(
        w1=u((2 * H, H), b1), b1=u((1, H), b1),             # Linear(2H -> H)
        w2=u((H, out_size), b2), b2=u((1, out_size), b2),   # Linear(H -> out)
    )
    return {"gru": gru, "mlp": mlp}


# ----------------------------------------------------------------------------
# Pure-JAX reference (independent of the fused weight re-layout)
# ----------------------------------------------------------------------------
def _ref_gru_dir(x_tbd, p, H):
    def step(h, x_t):
        gx = x_t @ p["w_ih"] + p["b_ih"]
        gh = h @ p["w_hh"] + p["b_hh"]
        r = jax.nn.sigmoid(gx[:, :H] + gh[:, :H])
        z = jax.nn.sigmoid(gx[:, H:2 * H] + gh[:, H:2 * H])
        n = jnp.tanh(gx[:, 2 * H:] + r * gh[:, 2 * H:])
        h_new = (1.0 - z) * n + z * h
        return h_new, h_new

    B = x_tbd.shape[1]
    _, ys = lax.scan(step, jnp.zeros((B, H), jnp.float32), x_tbd)
    return ys


def reference_forward(raw, params, kernel_size, layers, out_size):
    b, k, d = raw.shape
    H = kernel_size
    T = d // H
    x = jnp.transpose(raw.reshape(b * k, T, H), (1, 0, 2))
    inp = x
    for l in range(layers):
        y_f = _ref_gru_dir(inp, params["gru"][l]["fwd"], H)
        y_b = jnp.flip(_ref_gru_dir(jnp.flip(inp, 0), params["gru"][l]["bwd"], H), 0)
        inp = jnp.concatenate([y_f, y_b], axis=-1)
    last = inp[-1]
    p = params["mlp"]
    z = last @ p["w1"] + p["b1"]
    z = jnp.where(z >= 0.0, z, 0.2 * z)
    out = z @ p["w2"] + p["b2"]
    return out.reshape(b, k, out_size)


# ----------------------------------------------------------------------------
if __name__ == "__main__":
    kernel_size, layers, out_size = 8, 4, 8
    b, k, T = 2, 4, 8
    d = T * kernel_size                          # raw: (b, k, d) with d = T * kernel_size

    key = jax.random.PRNGKey(0)
    pkey, xkey = jax.random.split(key)
    params = init_params(pkey, kernel_size, layers, out_size)
    raw = jax.random.normal(xkey, (b, k, d), dtype=jnp.float32)

    fwd = jax.jit(gru_k_region_forward,
                  static_argnames=("kernel_size", "layers", "out_size"))
    out = fwd(raw, params, kernel_size=kernel_size, layers=layers, out_size=out_size)
    out = jax.block_until_ready(out)

    ref = reference_forward(raw, params, kernel_size, layers, out_size)
    assert out.shape == (b, k, out_size), out.shape
    assert jnp.allclose(out, ref, atol=1e-4, rtol=1e-4), float(jnp.abs(out - ref).max())

    print("KERNEL_OK")
</pallas_src>

<mosaic_0001>
module attributes {stable_mosaic.version = 11 : i64} {
  func.func @_fused_gru_mlp_kernel(%arg0: memref<64x16xf32, #tpu.memory_space<vmem>>, %arg1: memref<4x16x48xf32, #tpu.memory_space<vmem>>, %arg2: memref<4x1x48xf32, #tpu.memory_space<vmem>>, %arg3: memref<4x16x48xf32, #tpu.memory_space<vmem>>, %arg4: memref<4x1x48xf32, #tpu.memory_space<vmem>>, %arg5: memref<16x8xf32, #tpu.memory_space<vmem>>, %arg6: memref<1x8xf32, #tpu.memory_space<vmem>>, %arg7: memref<8x8xf32, #tpu.memory_space<vmem>>, %arg8: memref<1x8xf32, #tpu.memory_space<vmem>>, %arg9: memref<8x8xf32, #tpu.memory_space<vmem>>, %arg10: memref<64x16xf32, #tpu.memory_space<vmem>>, %arg11: memref<64x48xf32, #tpu.memory_space<vmem>>) attributes {dimension_semantics = [], scalar_prefetch = 0 : i64, scratch_operands = 2 : i64, tpu.core_type = #tpu.core_type<tc>} {
    %0 = tpu.iota {dimensions = array<i32: 1>} : vector<8x48xi32>
    %c8_i32 = arith.constant 8 : i32
    %1 = vector.broadcast %c8_i32 : i32 to vector<8x48xi32>
    %2 = arith.cmpi slt, %0, %1 : vector<8x48xi32>
    %c16_i32 = arith.constant 16 : i32
    %3 = vector.broadcast %c16_i32 : i32 to vector<8x48xi32>
    %4 = arith.cmpi sge, %0, %3 : vector<8x48xi32>
    %c24_i32 = arith.constant 24 : i32
    %5 = vector.broadcast %c24_i32 : i32 to vector<8x48xi32>
    %6 = arith.cmpi slt, %0, %5 : vector<8x48xi32>
    %7 = arith.andi %4, %6 : vector<8x48xi1>
    %8 = arith.ori %2, %7 : vector<8x48xi1>
    %c32_i32 = arith.constant 32 : i32
    %9 = vector.broadcast %c32_i32 : i32 to vector<8x48xi32>
    %10 = arith.cmpi sge, %0, %9 : vector<8x48xi32>
    %c40_i32 = arith.constant 40 : i32
    %11 = vector.broadcast %c40_i32 : i32 to vector<8x48xi32>
    %12 = arith.cmpi slt, %0, %11 : vector<8x48xi32>
    %13 = arith.andi %10, %12 : vector<8x48xi1>
    %14 = arith.ori %8, %13 : vector<8x48xi1>
    %c0 = arith.constant 0 : index
    %c0_0 = arith.constant 0 : index
    %15 = vector.load %arg0[%c0, %c0_0] : memref<64x16xf32, #tpu.memory_space<vmem>>, vector<64x16xf32>
    %c0_1 = arith.constant 0 : index
    %c0_2 = arith.constant 0 : index
    %c0_3 = arith.constant 0 : index
    %16 = vector.load %arg1[%c0_1, %c0_2, %c0_3] : memref<4x16x48xf32, #tpu.memory_space<vmem>>, vector<1x16x48xf32>
    %17 = vector.shape_cast %16 : vector<1x16x48xf32> to vector<16x48xf32>
    %cst = arith.constant dense<0.000000e+00> : vector<64x48xf32>
    %18 = tpu.matmul %15, %17, %cst {dimension_numbers = #tpu.dot_dimension_numbers<[1], [0], [0], [1], [0, 0, 1, 1], [], []>} : vector<64x16xf32>, vector<16x48xf32>, vector<64x48xf32> -> vector<64x48xf32>
    %c0_4 = arith.constant 0 : index
    %c0_5 = arith.constant 0 : index
    %c0_6 = arith.constant 0 : index
    %19 = vector.load %arg2[%c0_4, %c0_5, %c0_6] : memref<4x1x48xf32, #tpu.memory_space<vmem>>, vector<1x1x48xf32>
    %20 = vector.shape_cast %19 : vector<1x1x48xf32> to vector<1x48xf32>
    %21 = vector.broadcast %20 : vector<1x48xf32> to vector<64x48xf32>
    %22 = arith.addf %18, %21 : vector<64x48xf32>
    %c0_7 = arith.constant 0 : index
    %c0_8 = arith.constant 0 : index
    %23 = vector.load %arg11[%c0_7, %c0_8] : memref<64x48xf32, #tpu.memory_space<vmem>>, vector<64x48xf32>
    tpu.vector_store %arg11[%c0_7, %c0_8], %22 {strides = array<i32>} : memref<64x48xf32, #tpu.memory_space<vmem>>, vector<64x48xf32>,
    %c0_9 = arith.constant 0 : index
    %c0_10 = arith.constant 0 : index
    %c0_11 = arith.constant 0 : index
    %24 = vector.load %arg3[%c0_9, %c0_10, %c0_11] : memref<4x16x48xf32, #tpu.memory_space<vmem>>, vector<1x16x48xf32>
    %25 = vector.shape_cast %24 : vector<1x16x48xf32> to vector<16x48xf32>
    %c0_12 = arith.constant 0 : index
    %c0_13 = arith.constant 0 : index
    %c0_14 = arith.constant 0 : index
    %26 = vector.load %arg4[%c0_12, %c0_13, %c0_14] : memref<4x1x48xf32, #tpu.memory_space<vmem>>, vector<1x1x48xf32>
    %27 = vector.shape_cast %26 : vector<1x1x48xf32> to vector<1x48xf32>
    %cst_15 = arith.constant 0.000000e+00 : f32
    %28 = vector.broadcast %cst_15 : f32 to vector<8x16xf32>
    %c0_16 = arith.constant 0 : index
    %c0_17 = arith.constant 0 : index
    %29 = vector.load %arg11[%c0_16, %c0_17] : memref<64x48xf32, #tpu.memory_space<vmem>>, vector<8x48xf32>
    %c56 = arith.constant 56 : index
    %c0_18 = arith.constant 0 : index
    %30 = vector.load %arg11[%c56, %c0_18] : memref<64x48xf32, #tpu.memory_space<vmem>>, vector<8x48xf32>
    %31 = arith.select %14, %29, %30 : vector<8x48xi1>, vector<8x48xf32>
    %cst_19 = arith.constant dense<0.000000e+00> : vector<8x48xf32>
    %32 = tpu.matmul %28, %25, %cst_19 {dimension_numbers = #tpu.dot_dimension_numbers<[1], [0], [0], [1], [0, 0, 1, 1], [], []>} : vector<8x16xf32>, vector<16x48xf32>, vector<8x48xf32> -> vector<8x48xf32>
    %33 = vector.broadcast %27 : vector<1x48xf32> to vector<8x48xf32>
    %34 = arith.addf %32, %33 : vector<8x48xf32>
    %35 = vector.extract_strided_slice %31 {offsets = [0, 0], sizes = [8, 32], strides = [1, 1]} : vector<8x48xf32> to vector<8x32xf32>
    %36 = vector.extract_strided_slice %34 {offsets = [0, 0], sizes = [8, 32], strides = [1, 1]} : vector<8x48xf32> to vector<8x32xf32>
    %37 = arith.addf %35, %36 : vector<8x32xf32>
    %38 = arith.negf %37 : vector<8x32xf32>
    %39 = math.exp %38 : vector<8x32xf32>
    %cst_20 = arith.constant 1.000000e+00 : f32
    %40 = vector.broadcast %cst_20 : f32 to vector<8x32xf32>
    %41 = arith.addf %40, %39 : vector<8x32xf32>
    %42 = arith.divf %40, %41 : vector<8x32xf32>
    %43 = vector.extract_strided_slice %42 {offsets = [0, 0], sizes = [8, 16], strides = [1, 1]} : vector<8x32xf32> to vector<8x16xf32>
    %44 = vector.extract_strided_slice %42 {offsets = [0, 16], sizes = [8, 16], strides = [1, 1]} : vector<8x32xf32> to vector<8x16xf32>
    %45 = vector.extract_strided_slice %31 {offsets = [0, 32], sizes = [8, 16], strides = [1, 1]} : vector<8x48xf32> to vector<8x16xf32>
    %46 = vector.extract_strided_slice %34 {offsets = [0, 32], sizes = [8, 16], strides = [1, 1]} : vector<8x48xf32> to vector<8x16xf32>
    %47 = arith.mulf %43, %46 : vector<8x16xf32>
    %48 = arith.addf %45, %47 : vector<8x16xf32>
    %49 = math.tanh %48 : vector<8x16xf32>
    %50 = arith.subf %28, %49 : vector<8x16xf32>
    %51 = arith.mulf %44, %50 : vector<8x16xf32>
    %52 = arith.addf %49, %51 : vector<8x16xf32>
    %53 = vector.extract_strided_slice %52 {offsets = [0, 0], sizes = [8, 8], strides = [1, 1]} : vector<8x16xf32> to vector<8x8xf32>
    %c0_21 = arith.constant 0 : index
    %c0_22 = arith.constant 0 : index
    %54 = vector.load %arg10[%c0_21, %c0_22] : memref<64x16xf32, #tpu.memory_space<vmem>>, vector<8x8xf32>
    tpu.vector_store %arg10[%c0_21, %c0_22], %53 {strides = array<i32>} : memref<64x16xf32, #tpu.memory_space<vmem>>, vector<8x8xf32>,
    %55 = vector.extract_strided_slice %52 {offsets = [0, 8], sizes = [8, 8], strides = [1, 1]} : vector<8x16xf32> to vector<8x8xf32>
    %c56_23 = arith.constant 56 : index
    %c8 = arith.constant 8 : index
    %56 = vector.load %arg10[%c56_23, %c8] : memref<64x16xf32, #tpu.memory_space<vmem>>, vector<8x8xf32>
    tpu.vector_store %arg10[%c56_23, %c8], %55 {strides = array<i32>} : memref<64x16xf32, #tpu.memory_space<vmem>>, vector<8x8xf32>,
    %c8_24 = arith.constant 8 : index
    %c0_25 = arith.constant 0 : index
    %57 = vector.load %arg11[%c8_24, %c0_25] : memref<64x48xf32, #tpu.memory_space<vmem>>, vector<8x48xf32>
    %c48 = arith.constant 48 : index
    %c0_26 = arith.constant 0 : index
    %58 = vector.load %arg11[%c48, %c0_26] : memref<64x48xf32, #tpu.memory_space<vmem>>, vector<8x48xf32>
    %59 = arith.select %14, %57, %58 : vector<8x48xi1>, vector<8x48xf32>
    %cst_27 = arith.constant dense<0.000000e+00> : vector<8x48xf32>
    %60 = tpu.matmul %52, %25, %cst_27 {dimension_numbers = #tpu.dot_dimension_numbers<[1], [0], [0], [1], [0, 0, 1, 1], [], []>} : vector<8x16xf32>, vector<16x48xf32>, vector<8x48xf32> -> vector<8x48xf32>
    %61 = vector.broadcast %27 : vector<1x48xf32> to vector<8x48xf32>
    %62 = arith.addf %60, %61 : vector<8x48xf32>
    %63 = vector.extract_strided_slice %59 {offsets = [0, 0], sizes = [8, 32], strides = [1, 1]} : vector<8x48xf32> to vector<8x32xf32>
    %64 = vector.extract_strided_slice %62 {offsets = [0, 0], sizes = [8, 32], strides = [1, 1]} : vector<8x48xf32> to vector<8x32xf32>
    %65 = arith.addf %63, %64 : vector<8x32xf32>
    %66 = arith.negf %65 : vector<8x32xf32>
    %67 = math.exp %66 : vector<8x32xf32>
    %cst_28 = arith.constant 1.000000e+00 : f32
    %68 = vector.broadcast %cst_28 : f32 to vector<8x32xf32>
    %69 = arith.addf %68, %67 : vector<8x32xf32>
    %70 = arith.divf %68, %69 : vector<8x32xf32>
    %71 = vector.extract_strided_slice %70 {offsets = [0, 0], sizes = [8, 16], strides = [1, 1]} : vector<8x32xf32> to vector<8x16xf32>
    %72 = vector.extract_strided_slice %70 {offsets = [0, 16], sizes = [8, 16], strides = [1, 1]} : vector<8x32xf32> to vector<8x16xf32>
    %73 = vector.extract_strided_slice %59 {offsets = [0, 32], sizes = [8, 16], strides = [1, 1]} : vector<8x48xf32> to vector<8x16xf32>
    %74 = vector.extract_strided_slice %62 {offsets = [0, 32], sizes = [8, 16], strides = [1, 1]} : vector<8x48xf32> to vector<8x16xf32>
    %75 = arith.mulf %71, %74 : vector<8x16xf32>
    %76 = arith.addf %73, %75 : vector<8x16xf32>
    %77 = math.tanh %76 : vector<8x16xf32>
    %78 = arith.subf %52, %77 : vector<8x16xf32>
    %79 = arith.mulf %72, %78 : vector<8x16xf32>
    %80 = arith.addf %77, %79 : vector<8x16xf32>
    %81 = vector.extract_strided_slice %80 {offsets = [0, 0], sizes = [8, 8], strides = [1, 1]} : vector<8x16xf32> to vector<8x8xf32>
    %c8_29 = arith.constant 8 : index
    %c0_30 = arith.constant 0 : index
    %82 = vector.load %arg10[%c8_29, %c0_30] : memref<64x16xf32, #tpu.memory_space<vmem>>, vector<8x8xf32>
    tpu.vector_store %arg10[%c8_29, %c0_30], %81 {strides = array<i32>} : memref<64x16xf32, #tpu.memory_space<vmem>>, vector<8x8xf32>,
    %83 = vector.extract_strided_slice %80 {offsets = [0, 8], sizes = [8, 8], strides = [1, 1]} : vector<8x16xf32> to vector<8x8xf32>
    %c48_31 = arith.constant 48 : index
    %c8_32 = arith.constant 8 : index
    %84 = vector.load %arg10[%c48_31, %c8_32] : memref<64x16xf32, #tpu.memory_space<vmem>>, vector<8x8xf32>
    tpu.vector_store %arg10[%c48_31, %c8_32], %83 {strides = array<i32>} : memref<64x16xf32, #tpu.memory_space<vmem>>, vector<8x8xf32>,
    %c16 = arith.constant 16 : index
    %c0_33 = arith.constant 0 : index
    %85 = vector.load %arg11[%c16, %c0_33] : memref<64x48xf32, #tpu.memory_space<vmem>>, vector<8x48xf32>
    %c40 = arith.constant 40 : index
    %c0_34 = arith.constant 0 : index
    %86 = vector.load %arg11[%c40, %c0_34] : memref<64x48xf32, #tpu.memory_space<vmem>>, vector<8x48xf32>
    %87 = arith.select %14, %85, %86 : vector<8x48xi1>, vector<8x48xf32>
    %cst_35 = arith.constant dense<0.000000e+00> : vector<8x48xf32>
    %88 = tpu.matmul %80, %25, %cst_35 {dimension_numbers = #tpu.dot_dimension_numbers<[1], [0], [0], [1], [0, 0, 1, 1], [], []>} : vector<8x16xf32>, vector<16x48xf32>, vector<8x48xf32> -> vector<8x48xf32>
    %89 = vector.broadcast %27 : vector<1x48xf32> to vector<8x48xf32>
    %90 = arith.addf %88, %89 : vector<8x48xf32>
    %91 = vector.extract_strided_slice %87 {offsets = [0, 0], sizes = [8, 32], strides = [1, 1]} : vector<8x48xf32> to vector<8x32xf32>
    %92 = vector.extract_strided_slice %90 {offsets = [0, 0], sizes = [8, 32], strides = [1, 1]} : vector<8x48xf32> to vector<8x32xf32>
    %93 = arith.addf %91, %92 : vector<8x32xf32>
    %94 = arith.negf %93 : vector<8x32xf32>
    %95 = math.exp %94 : vector<8x32xf32>
    %cst_36 = arith.constant 1.000000e+00 : f32
    %96 = vector.broadcast %cst_36 : f32 to vector<8x32xf32>
    %97 = arith.addf %96, %95 : vector<8x32xf32>
    %98 = arith.divf %96, %97 : vector<8x32xf32>
    %99 = vector.extract_strided_slice %98 {offsets = [0, 0], sizes = [8, 16], strides = [1, 1]} : vector<8x32xf32> to vector<8x16xf32>
    %100 = vector.extract_strided_slice %98 {offsets = [0, 16], sizes = [8, 16], strides = [1, 1]} : vector<8x32xf32> to vector<8x16xf32>
    %101 = vector.extract_strided_slice %87 {offsets = [0, 32], sizes = [8, 16], strides = [1, 1]} : vector<8x48xf32> to vector<8x16xf32>
    %102 = vector.extract_strided_slice %90 {offsets = [0, 32], sizes = [8, 16], strides = [1, 1]} : vector<8x48xf32> to vector<8x16xf32>
    %103 = arith.mulf %99, %102 : vector<8x16xf32>
    %104 = arith.addf %101, %103 : vector<8x16xf32>
    %105 = math.tanh %104 : vector<8x16xf32>
    %106 = arith.subf %80, %105 : vector<8x16xf32>
    %107 = arith.mulf %100, %106 : vector<8x16xf32>
    %108 = arith.addf %105, %107 : vector<8x16xf32>
    %109 = vector.extract_strided_slice %108 {offsets = [0, 0], sizes = [8, 8], strides = [1, 1]} : vector<8x16xf32> to vector<8x8xf32>
    %c16_37 = arith.constant 16 : index
    %c0_38 = arith.constant 0 : index
    %110 = vector.load %arg10[%c16_37, %c0_38] : memref<64x16xf32, #tpu.memory_space<vmem>>, vector<8x8xf32>
    tpu.vector_store %arg10[%c16_37, %c0_38], %109 {strides = array<i32>} : memref<64x16xf32, #tpu.memory_space<vmem>>, vector<8x8xf32>,
    %111 = vector.extract_strided_slice %108 {offsets = [0, 8], sizes = [8, 8], strides = [1, 1]} : vector<8x16xf32> to vector<8x8xf32>
    %c40_39 = arith.constant 40 : index
    %c8_40 = arith.constant 8 : index
    %112 = vector.load %arg10[%c40_39, %c8_40] : memref<64x16xf32, #tpu.memory_space<vmem>>, vector<8x8xf32>
    tpu.vector_store %arg10[%c40_39, %c8_40], %111 {strides = array<i32>} : memref<64x16xf32, #tpu.memory_space<vmem>>, vector<8x8xf32>,
    %c24 = arith.constant 24 : index
    %c0_41 = arith.constant 0 : index
    %113 = vector.load %arg11[%c24, %c0_41] : memref<64x48xf32, #tpu.memory_space<vmem>>, vector<8x48xf32>
    %c32 = arith.constant 32 : index
    %c0_42 = arith.constant 0 : index
    %114 = vector.load %arg11[%c32, %c0_42] : memref<64x48xf32, #tpu.memory_space<vmem>>, vector<8x48xf32>
    %115 = arith.select %14, %113, %114 : vector<8x48xi1>, vector<8x48xf32>
    %cst_43 = arith.constant dense<0.000000e+00> : vector<8x48xf32>
    %116 = tpu.matmul %108, %25, %cst_43 {dimension_numbers = #tpu.dot_dimension_numbers<[1], [0], [0], [1], [0, 0, 1, 1], [], []>} : vector<8x16xf32>, vector<16x48xf32>, vector<8x48xf32> -> vector<8x48xf32>
    %117 = vector.broadcast %27 : vector<1x48xf32> to vector<8x48xf32>
    %118 = arith.addf %116, %117 : vector<8x48xf32>
    %119 = vector.extract_strided_slice %115 {offsets = [0, 0], sizes = [8, 32], strides = [1, 1]} : vector<8x48xf32> to vector<8x32xf32>
    %120 = vector.extract_strided_slice %118 {offsets = [0, 0], sizes = [8, 32], strides = [1, 1]} : vector<8x48xf32> to vector<8x32xf32>
    %121 = arith.addf %119, %120 : vector<8x32xf32>
    %122 = arith.negf %121 : vector<8x32xf32>
    %123 = math.exp %122 : vector<8x32xf32>
    %cst_44 = arith.constant 1.000000e+00 : f32
    %124 = vector.broadcast %cst_44 : f32 to vector<8x32xf32>
    %125 = arith.addf %124, %123 : vector<8x32xf32>
    %126 = arith.divf %124, %125 : vector<8x32xf32>
    %127 = vector.extract_strided_slice %126 {offsets = [0, 0], sizes = [8, 16], strides = [1, 1]} : vector<8x32xf32> to vector<8x16xf32>
    %128 = vector.extract_strided_slice %126 {offsets = [0, 16], sizes = [8, 16], strides = [1, 1]} : vector<8x32xf32> to vector<8x16xf32>
    %129 = vector.extract_strided_slice %115 {offsets = [0, 32], sizes = [8, 16], strides = [1, 1]} : vector<8x48xf32> to vector<8x16xf32>
    %130 = vector.extract_strided_slice %118 {offsets = [0, 32], sizes = [8, 16], strides = [1, 1]} : vector<8x48xf32> to vector<8x16xf32>
    %131 = arith.mulf %127, %130 : vector<8x16xf32>
    %132 = arith.addf %129, %131 : vector<8x16xf32>
    %133 = math.tanh %132 : vector<8x16xf32>
    %134 = arith.subf %108, %133 : vector<8x16xf32>
    %135 = arith.mulf %128, %134 : vector<8x16xf32>
    %136 = arith.addf %133, %135 : vector<8x16xf32>
    %137 = vector.extract_strided_slice %136 {offsets = [0, 0], sizes = [8, 8], strides = [1, 1]} : vector<8x16xf32> to vector<8x8xf32>
    %c24_45 = arith.constant 24 : index
    %c0_46 = arith.constant 0 : index
    %138 = vector.load %arg10[%c24_45, %c0_46] : memref<64x16xf32, #tpu.memory_space<vmem>>, vector<8x8xf32>
    tpu.vector_store %arg10[%c24_45, %c0_46], %137 {strides = array<i32>} : memref<64x16xf32, #tpu.memory_space<vmem>>, vector<8x8xf32>,
    %139 = vector.extract_strided_slice %136 {offsets = [0, 8], sizes = [8, 8], strides = [1, 1]} : vector<8x16xf32> to vector<8x8xf32>
    %c32_47 = arith.constant 32 : index
    %c8_48 = arith.constant 8 : index
    %140 = vector.load %arg10[%c32_47, %c8_48] : memref<64x16xf32, #tpu.memory_space<vmem>>, vector<8x8xf32>
    tpu.vector_store %arg10[%c32_47, %c8_48], %139 {strides = array<i32>} : memref<64x16xf32, #tpu.memory_space<vmem>>, vector<8x8xf32>,
    %c32_49 = arith.constant 32 : index
    %c0_50 = arith.constant 0 : index
    %141 = vector.load %arg11[%c32_49, %c0_50] : memref<64x48xf32, #tpu.memory_space<vmem>>, vector<8x48xf32>
    %c24_51 = arith.constant 24 : index
    %c0_52 = arith.constant 0 : index
    %142 = vector.load %arg11[%c24_51, %c0_52] : memref<64x48xf32, #tpu.memory_space<vmem>>, vector<8x48xf32>
    %143 = arith.select %14, %141, %142 : vector<8x48xi1>, vector<8x48xf32>
    %cst_53 = arith.constant dense<0.000000e+00> : vector<8x48xf32>
    %144 = tpu.matmul %136, %25, %cst_53 {dimension_numbers = #tpu.dot_dimension_numbers<[1], [0], [0], [1], [0, 0, 1, 1], [], []>} : vector<8x16xf32>, vector<16x48xf32>, vector<8x48xf32> -> vector<8x48xf32>
    %145 = vector.broadcast %27 : vector<1x48xf32> to vector<8x48xf32>
    %146 = arith.addf %144, %145 : vector<8x48xf32>
    %147 = vector.extract_strided_slice %143 {offsets = [0, 0], sizes = [8, 32], strides = [1, 1]} : vector<8x48xf32> to vector<8x32xf32>
    %148 = vector.extract_strided_slice %146 {offsets = [0, 0], sizes = [8, 32], strides = [1, 1]} : vector<8x48xf32> to vector<8x32xf32>
    %149 = arith.addf %147, %148 : vector<8x32xf32>
    %150 = arith.negf %149 : vector<8x32xf32>
    %151 = math.exp %150 : vector<8x32xf32>
    %cst_54 = arith.constant 1.000000e+00 : f32
    %152 = vector.broadcast %cst_54 : f32 to vector<8x32xf32>
    %153 = arith.addf %152, %151 : vector<8x32xf32>
    %154 = arith.divf %152, %153 : vector<8x32xf32>
    %155 = vector.extract_strided_slice %154 {offsets = [0, 0], sizes = [8, 16], strides = [1, 1]} : vector<8x32xf32> to vector<8x16xf32>
    %156 = vector.extract_strided_slice %154 {offsets = [0, 16], sizes = [8, 16], strides = [1, 1]} : vector<8x32xf32> to vector<8x16xf32>
    %157 = vector.extract_strided_slice %143 {offsets = [0, 32], sizes = [8, 16], strides = [1, 1]} : vector<8x48xf32> to vector<8x16xf32>
    %158 = vector.extract_strided_slice %146 {offsets = [0, 32], sizes = [8, 16], strides = [1, 1]} : vector<8x48xf32> to vector<8x16xf32>
    %159 = arith.mulf %155, %158 : vector<8x16xf32>
    %160 = arith.addf %157, %159 : vector<8x16xf32>
    %161 = math.tanh %160 : vector<8x16xf32>
    %162 = arith.subf %136, %161 : vector<8x16xf32>
    %163 = arith.mulf %156, %162 : vector<8x16xf32>
    %164 = arith.addf %161, %163 : vector<8x16xf32>
    %165 = vector.extract_strided_slice %164 {offsets = [0, 0], sizes = [8, 8], strides = [1, 1]} : vector<8x16xf32> to vector<8x8xf32>
    %c32_55 = arith.constant 32 : index
    %c0_56 = arith.constant 0 : index
    %166 = vector.load %arg10[%c32_55, %c0_56] : memref<64x16xf32, #tpu.memory_space<vmem>>, vector<8x8xf32>
    tpu.vector_store %arg10[%c32_55, %c0_56], %165 {strides = array<i32>} : memref<64x16xf32, #tpu.memory_space<vmem>>, vector<8x8xf32>,
    %167 = vector.extract_strided_slice %164 {offsets = [0, 8], sizes = [8, 8], strides = [1, 1]} : vector<8x16xf32> to vector<8x8xf32>
    %c24_57 = arith.constant 24 : index
    %c8_58 = arith.constant 8 : index
    %168 = vector.load %arg10[%c24_57, %c8_58] : memref<64x16xf32, #tpu.memory_space<vmem>>, vector<8x8xf32>
    tpu.vector_store %arg10[%c24_57, %c8_58], %167 {strides = array<i32>} : memref<64x16xf32, #tpu.memory_space<vmem>>, vector<8x8xf32>,
    %c40_59 = arith.constant 40 : index
    %c0_60 = arith.constant 0 : index
    %169 = vector.load %arg11[%c40_59, %c0_60] : memref<64x48xf32, #tpu.memory_space<vmem>>, vector<8x48xf32>
    %c16_61 = arith.constant 16 : index
    %c0_62 = arith.constant 0 : index
    %170 = vector.load %arg11[%c16_61, %c0_62] : memref<64x48xf32, #tpu.memory_space<vmem>>, vector<8x48xf32>
    %171 = arith.select %14, %169, %170 : vector<8x48xi1>, vector<8x48xf32>
    %cst_63 = arith.constant dense<0.000000e+00> : vector<8x48xf32>
    %172 = tpu.matmul %164, %25, %cst_63 {dimension_numbers = #tpu.dot_dimension_numbers<[1], [0], [0], [1], [0, 0, 1, 1], [], []>} : vector<8x16xf32>, vector<16x48xf32>, vector<8x48xf32> -> vector<8x48xf32>
    %173 = vector.broadcast %27 : vector<1x48xf32> to vector<8x48xf32>
    %174 = arith.addf %172, %173 : vector<8x48xf32>
    %175 = vector.extract_strided_slice %171 {offsets = [0, 0], sizes = [8, 32], strides = [1, 1]} : vector<8x48xf32> to vector<8x32xf32>
    %176 = vector.extract_strided_slice %174 {offsets = [0, 0], sizes = [8, 32], strides = [1, 1]} : vector<8x48xf32> to vector<8x32xf32>
    %177 = arith.addf %175, %176 : vector<8x32xf32>
    %178 = arith.negf %177 : vector<8x32xf32>
    %179 = math.exp %178 : vector<8x32xf32>
    %cst_64 = arith.constant 1.000000e+00 : f32
    %180 = vector.broadcast %cst_64 : f32 to vector<8x32xf32>
    %181 = arith.addf %180, %179 : vector<8x32xf32>
    %182 = arith.divf %180, %181 : vector<8x32xf32>
    %183 = vector.extract_strided_slice %182 {offsets = [0, 0], sizes = [8, 16], strides = [1, 1]} : vector<8x32xf32> to vector<8x16xf32>
    %184 = vector.extract_strided_slice %182 {offsets = [0, 16], sizes = [8, 16], strides = [1, 1]} : vector<8x32xf32> to vector<8x16xf32>
    %185 = vector.extract_strided_slice %171 {offsets = [0, 32], sizes = [8, 16], strides = [1, 1]} : vector<8x48xf32> to vector<8x16xf32>
    %186 = vector.extract_strided_slice %174 {offsets = [0, 32], sizes = [8, 16], strides = [1, 1]} : vector<8x48xf32> to vector<8x16xf32>
    %187 = arith.mulf %183, %186 : vector<8x16xf32>
    %188 = arith.addf %185, %187 : vector<8x16xf32>
    %189 = math.tanh %188 : vector<8x16xf32>
    %190 = arith.subf %164, %189 : vector<8x16xf32>
    %191 = arith.mulf %184, %190 : vector<8x16xf32>
    %192 = arith.addf %189, %191 : vector<8x16xf32>
    %193 = vector.extract_strided_slice %192 {offsets = [0, 0], sizes = [8, 8], strides = [1, 1]} : vector<8x16xf32> to vector<8x8xf32>
    %c40_65 = arith.constant 40 : index
    %c0_66 = arith.constant 0 : index
    %194 = vector.load %arg10[%c40_65, %c0_66] : memref<64x16xf32, #tpu.memory_space<vmem>>, vector<8x8xf32>
    tpu.vector_store %arg10[%c40_65, %c0_66], %193 {strides = array<i32>} : memref<64x16xf32, #tpu.memory_space<vmem>>, vector<8x8xf32>,
    %195 = vector.extract_strided_slice %192 {offsets = [0, 8], sizes = [8, 8], strides = [1, 1]} : vector<8x16xf32> to vector<8x8xf32>
    %c16_67 = arith.constant 16 : index
    %c8_68 = arith.constant 8 : index
    %196 = vector.load %arg10[%c16_67, %c8_68] : memref<64x16xf32, #tpu.memory_space<vmem>>, vector<8x8xf32>
    tpu.vector_store %arg10[%c16_67, %c8_68], %195 {strides = array<i32>} : memref<64x16xf32, #tpu.memory_space<vmem>>, vector<8x8xf32>,
    %c48_69 = arith.constant 48 : index
    %c0_70 = arith.constant 0 : index
    %197 = vector.load %arg11[%c48_69, %c0_70] : memref<64x48xf32, #tpu.memory_space<vmem>>, vector<8x48xf32>
    %c8_71 = arith.constant 8 : index
    %c0_72 = arith.constant 0 : index
    %198 = vector.load %arg11[%c8_71, %c0_72] : memref<64x48xf32, #tpu.memory_space<vmem>>, vector<8x48xf32>
    %199 = arith.select %14, %197, %198 : vector<8x48xi1>, vector<8x48xf32>
    %cst_73 = arith.constant dense<0.000000e+00> : vector<8x48xf32>
    %200 = tpu.matmul %192, %25, %cst_73 {dimension_numbers = #tpu.dot_dimension_numbers<[1], [0], [0], [1], [0, 0, 1, 1], [], []>} : vector<8x16xf32>, vector<16x48xf32>, vector<8x48xf32> -> vector<8x48xf32>
    %201 = vector.broadcast %27 : vector<1x48xf32> to vector<8x48xf32>
    %202 = arith.addf %200, %201 : vector<8x48xf32>
    %203 = vector.extract_strided_slice %199 {offsets = [0, 0], sizes = [8, 32], strides = [1, 1]} : vector<8x48xf32> to vector<8x32xf32>
    %204 = vector.extract_strided_slice %202 {offsets = [0, 0], sizes = [8, 32], strides = [1, 1]} : vector<8x48xf32> to vector<8x32xf32>
    %205 = arith.addf %203, %204 : vector<8x32xf32>
    %206 = arith.negf %205 : vector<8x32xf32>
    %207 = math.exp %206 : vector<8x32xf32>
    %cst_74 = arith.constant 1.000000e+00 : f32
    %208 = vector.broadcast %cst_74 : f32 to vector<8x32xf32>
    %209 = arith.addf %208, %207 : vector<8x32xf32>
    %210 = arith.divf %208, %209 : vector<8x32xf32>
    %211 = vector.extract_strided_slice %210 {offsets = [0, 0], sizes = [8, 16], strides = [1, 1]} : vector<8x32xf32> to vector<8x16xf32>
    %212 = vector.extract_strided_slice %210 {offsets = [0, 16], sizes = [8, 16], strides = [1, 1]} : vector<8x32xf32> to vector<8x16xf32>
    %213 = vector.extract_strided_slice %199 {offsets = [0, 32], sizes = [8, 16], strides = [1, 1]} : vector<8x48xf32> to vector<8x16xf32>
    %214 = vector.extract_strided_slice %202 {offsets = [0, 32], sizes = [8, 16], strides = [1, 1]} : vector<8x48xf32> to vector<8x16xf32>
    %215 = arith.mulf %211, %214 : vector<8x16xf32>
    %216 = arith.addf %213, %215 : vector<8x16xf32>
    %217 = math.tanh %216 : vector<8x16xf32>
    %218 = arith.subf %192, %217 : vector<8x16xf32>
    %219 = arith.mulf %212, %218 : vector<8x16xf32>
    %220 = arith.addf %217, %219 : vector<8x16xf32>
    %221 = vector.extract_strided_slice %220 {offsets = [0, 0], sizes = [8, 8], strides = [1, 1]} : vector<8x16xf32> to vector<8x8xf32>
    %c48_75 = arith.constant 48 : index
    %c0_76 = arith.constant 0 : index
    %222 = vector.load %arg10[%c48_75, %c0_76] : memref<64x16xf32, #tpu.memory_space<vmem>>, vector<8x8xf32>
    tpu.vector_store %arg10[%c48_75, %c0_76], %221 {strides = array<i32>} : memref<64x16xf32, #tpu.memory_space<vmem>>, vector<8x8xf32>,
    %223 = vector.extract_strided_slice %220 {offsets = [0, 8], sizes = [8, 8], strides = [1, 1]} : vector<8x16xf32> to vector<8x8xf32>
    %c8_77 = arith.constant 8 : index
    %c8_78 = arith.constant 8 : index
    %224 = vector.load %arg10[%c8_77, %c8_78] : memref<64x16xf32, #tpu.memory_space<vmem>>, vector<8x8xf32>
    tpu.vector_store %arg10[%c8_77, %c8_78], %223 {strides = array<i32>} : memref<64x16xf32, #tpu.memory_space<vmem>>, vector<8x8xf32>,
    %c56_79 = arith.constant 56 : index
    %c0_80 = arith.constant 0 : index
    %225 = vector.load %arg11[%c56_79, %c0_80] : memref<64x48xf32, #tpu.memory_space<vmem>>, vector<8x48xf32>
    %c0_81 = arith.constant 0 : index
    %c0_82 = arith.constant 0 : index
    %226 = vector.load %arg11[%c0_81, %c0_82] : memref<64x48xf32, #tpu.memory_space<vmem>>, vector<8x48xf32>
    %227 = arith.select %14, %225, %226 : vector<8x48xi1>, vector<8x48xf32>
    %cst_83 = arith.constant dense<0.000000e+00> : vector<8x48xf32>
    %228 = tpu.matmul %220, %25, %cst_83 {dimension_numbers = #tpu.dot_dimension_numbers<[1], [0], [0], [1], [0, 0, 1, 1], [], []>} : vector<8x16xf32>, vector<16x48xf32>, vector<8x48xf32> -> vector<8x48xf32>
    %229 = vector.broadcast %27 : vector<1x48xf32> to vector<8x48xf32>
    %230 = arith.addf %228, %229 : vector<8x48xf32>
    %231 = vector.extract_strided_slice %227 {offsets = [0, 0], sizes = [8, 32], strides = [1, 1]} : vector<8x48xf32> to vector<8x32xf32>
    %232 = vector.extract_strided_slice %230 {offsets = [0, 0], sizes = [8, 32], strides = [1, 1]} : vector<8x48xf32> to vector<8x32xf32>
    %233 = arith.addf %231, %232 : vector<8x32xf32>
    %234 = arith.negf %233 : vector<8x32xf32>
    %235 = math.exp %234 : vector<8x32xf32>
    %cst_84 = arith.constant 1.000000e+00 : f32
    %236 = vector.broadcast %cst_84 : f32 to vector<8x32xf32>
    %237 = arith.addf %236, %235 : vector<8x32xf32>
    %238 = arith.divf %236, %237 : vector<8x32xf32>
    %239 = vector.extract_strided_slice %238 {offsets = [0, 0], sizes = [8, 16], strides = [1, 1]} : vector<8x32xf32> to vector<8x16xf32>
    %240 = vector.extract_strided_slice %238 {offsets = [0, 16], sizes = [8, 16], strides = [1, 1]} : vector<8x32xf32> to vector<8x16xf32>
    %241 = vector.extract_strided_slice %227 {offsets = [0, 32], sizes = [8, 16], strides = [1, 1]} : vector<8x48xf32> to vector<8x16xf32>
    %242 = vector.extract_strided_slice %230 {offsets = [0, 32], sizes = [8, 16], strides = [1, 1]} : vector<8x48xf32> to vector<8x16xf32>
    %243 = arith.mulf %239, %242 : vector<8x16xf32>
    %244 = arith.addf %241, %243 : vector<8x16xf32>
    %245 = math.tanh %244 : vector<8x16xf32>
    %246 = arith.subf %220, %245 : vector<8x16xf32>
    %247 = arith.mulf %240, %246 : vector<8x16xf32>
    %248 = arith.addf %245, %247 : vector<8x16xf32>
    %249 = vector.extract_strided_slice %248 {offsets = [0, 0], sizes = [8, 8], strides = [1, 1]} : vector<8x16xf32> to vector<8x8xf32>
    %c56_85 = arith.constant 56 : index
    %c0_86 = arith.constant 0 : index
    %250 = vector.load %arg10[%c56_85, %c0_86] : memref<64x16xf32, #tpu.memory_space<vmem>>, vector<8x8xf32>
    tpu.vector_store %arg10[%c56_85, %c0_86], %249 {strides = array<i32>} : memref<64x16xf32, #tpu.memory_space<vmem>>, vector<8x8xf32>,
    %251 = vector.extract_strided_slice %248 {offsets = [0, 8], sizes = [8, 8], strides = [1, 1]} : vector<8x16xf32> to vector<8x8xf32>
    %c0_87 = arith.constant 0 : index
    %c8_88 = arith.constant 8 : index
    %252 = vector.load %arg10[%c0_87, %c8_88] : memref<64x16xf32, #tpu.memory_space<vmem>>, vector<8x8xf32>
    tpu.vector_store %arg10[%c0_87, %c8_88], %251 {strides = array<i32>} : memref<64x16xf32, #tpu.memory_space<vmem>>, vector<8x8xf32>,
    %c0_89 = arith.constant 0 : index
    %c0_90 = arith.constant 0 : index
    %253 = vector.load %arg10[%c0_89, %c0_90] : memref<64x16xf32, #tpu.memory_space<vmem>>, vector<64x16xf32>
    %c1 = arith.constant 1 : index
    %c0_91 = arith.constant 0 : index
    %c0_92 = arith.constant 0 : index
    %254 = vector.load %arg1[%c1, %c0_91, %c0_92] : memref<4x16x48xf32, #tpu.memory_space<vmem>>, vector<1x16x48xf32>
    %255 = vector.shape_cast %254 : vector<1x16x48xf32> to vector<16x48xf32>
    %cst_93 = arith.constant dense<0.000000e+00> : vector<64x48xf32>
    %256 = tpu.matmul %253, %255, %cst_93 {dimension_numbers = #tpu.dot_dimension_numbers<[1], [0], [0], [1], [0, 0, 1, 1], [], []>} : vector<64x16xf32>, vector<16x48xf32>, vector<64x48xf32> -> vector<64x48xf32>
    %c1_94 = arith.constant 1 : index
    %c0_95 = arith.constant 0 : index
    %c0_96 = arith.constant 0 : index
    %257 = vector.load %arg2[%c1_94, %c0_95, %c0_96] : memref<4x1x48xf32, #tpu.memory_space<vmem>>, vector<1x1x48xf32>
    %258 = vector.shape_cast %257 : vector<1x1x48xf32> to vector<1x48xf32>
    %259 = vector.broadcast %258 : vector<1x48xf32> to vector<64x48xf32>
    %260 = arith.addf %256, %259 : vector<64x48xf32>
    %c0_97 = arith.constant 0 : index
    %c0_98 = arith.constant 0 : index
    %261 = vector.load %arg11[%c0_97, %c0_98] : memref<64x48xf32, #tpu.memory_space<vmem>>, vector<64x48xf32>
    tpu.vector_store %arg11[%c0_97, %c0_98], %260 {strides = array<i32>} : memref<64x48xf32, #tpu.memory_space<vmem>>, vector<64x48xf32>,
    %c1_99 = arith.constant 1 : index
    %c0_100 = arith.constant 0 : index
    %c0_101 = arith.constant 0 : index
    %262 = vector.load %arg3[%c1_99, %c0_100, %c0_101] : memref<4x16x48xf32, #tpu.memory_space<vmem>>, vector<1x16x48xf32>
    %263 = vector.shape_cast %262 : vector<1x16x48xf32> to vector<16x48xf32>
    %c1_102 = arith.constant 1 : index
    %c0_103 = arith.constant 0 : index
    %c0_104 = arith.constant 0 : index
    %264 = vector.load %arg4[%c1_102, %c0_103, %c0_104] : memref<4x1x48xf32, #tpu.memory_space<vmem>>, vector<1x1x48xf32>
    %265 = vector.shape_cast %264 : vector<1x1x48xf32> to vector<1x48xf32>
    %cst_105 = arith.constant 0.000000e+00 : f32
    %266 = vector.broadcast %cst_105 : f32 to vector<8x16xf32>
    %c0_106 = arith.constant 0 : index
    %c0_107 = arith.constant 0 : index
    %267 = vector.load %arg11[%c0_106, %c0_107] : memref<64x48xf32, #tpu.memory_space<vmem>>, vector<8x48xf32>
    %c56_108 = arith.constant 56 : index
    %c0_109 = arith.constant 0 : index
    %268 = vector.load %arg11[%c56_108, %c0_109] : memref<64x48xf32, #tpu.memory_space<vmem>>, vector<8x48xf32>
    %269 = arith.select %14, %267, %268 : vector<8x48xi1>, vector<8x48xf32>
    %cst_110 = arith.constant dense<0.000000e+00> : vector<8x48xf32>
    %270 = tpu.matmul %266, %263, %cst_110 {dimension_numbers = #tpu.dot_dimension_numbers<[1], [0], [0], [1], [0, 0, 1, 1], [], []>} : vector<8x16xf32>, vector<16x48xf32>, vector<8x48xf32> -> vector<8x48xf32>
    %271 = vector.broadcast %265 : vector<1x48xf32> to vector<8x48xf32>
    %272 = arith.addf %270, %271 : vector<8x48xf32>
    %273 = vector.extract_strided_slice %269 {offsets = [0, 0], sizes = [8, 32], strides = [1, 1]} : vector<8x48xf32> to vector<8x32xf32>
    %274 = vector.extract_strided_slice %272 {offsets = [0, 0], sizes = [8, 32], strides = [1, 1]} : vector<8x48xf32> to vector<8x32xf32>
    %275 = arith.addf %273, %274 : vector<8x32xf32>
    %276 = arith.negf %275 : vector<8x32xf32>
    %277 = math.exp %276 : vector<8x32xf32>
    %cst_111 = arith.constant 1.000000e+00 : f32
    %278 = vector.broadcast %cst_111 : f32 to vector<8x32xf32>
    %279 = arith.addf %278, %277 : vector<8x32xf32>
    %280 = arith.divf %278, %279 : vector<8x32xf32>
    %281 = vector.extract_strided_slice %280 {offsets = [0, 0], sizes = [8, 16], strides = [1, 1]} : vector<8x32xf32> to vector<8x16xf32>
    %282 = vector.extract_strided_slice %280 {offsets = [0, 16], sizes = [8, 16], strides = [1, 1]} : vector<8x32xf32> to vector<8x16xf32>
    %283 = vector.extract_strided_slice %269 {offsets = [0, 32], sizes = [8, 16], strides = [1, 1]} : vector<8x48xf32> to vector<8x16xf32>
    %284 = vector.extract_strided_slice %272 {offsets = [0, 32], sizes = [8, 16], strides = [1, 1]} : vector<8x48xf32> to vector<8x16xf32>
    %285 = arith.mulf %281, %284 : vector<8x16xf32>
    %286 = arith.addf %283, %285 : vector<8x16xf32>
    %287 = math.tanh %286 : vector<8x16xf32>
    %288 = arith.subf %266, %287 : vector<8x16xf32>
    %289 = arith.mulf %282, %288 : vector<8x16xf32>
    %290 = arith.addf %287, %289 : vector<8x16xf32>
    %291 = vector.extract_strided_slice %290 {offsets = [0, 0], sizes = [8, 8], strides = [1, 1]} : vector<8x16xf32> to vector<8x8xf32>
    %c0_112 = arith.constant 0 : index
    %c0_113 = arith.constant 0 : index
    %292 = vector.load %arg10[%c0_112, %c0_113] : memref<64x16xf32, #tpu.memory_space<vmem>>, vector<8x8xf32>
    tpu.vector_store %arg10[%c0_112, %c0_113], %291 {strides = array<i32>} : memref<64x16xf32, #tpu.memory_space<vmem>>, vector<8x8xf32>,
    %293 = vector.extract_strided_slice %290 {offsets = [0, 8], sizes = [8, 8], strides = [1, 1]} : vector<8x16xf32> to vector<8x8xf32>
    %c56_114 = arith.constant 56 : index
    %c8_115 = arith.constant 8 : index
    %294 = vector.load %arg10[%c56_114, %c8_115] : memref<64x16xf32, #tpu.memory_space<vmem>>, vector<8x8xf32>
    tpu.vector_store %arg10[%c56_114, %c8_115], %293 {strides = array<i32>} : memref<64x16xf32, #tpu.memory_space<vmem>>, vector<8x8xf32>,
    %c8_116 = arith.constant 8 : index
    %c0_117 = arith.constant 0 : index
    %295 = vector.load %arg11[%c8_116, %c0_117] : memref<64x48xf32, #tpu.memory_space<vmem>>, vector<8x48xf32>
    %c48_118 = arith.constant 48 : index
    %c0_119 = arith.constant 0 : index
    %296 = vector.load %arg11[%c48_118, %c0_119] : memref<64x48xf32, #tpu.memory_space<vmem>>, vector<8x48xf32>
    %297 = arith.select %14, %295, %296 : vector<8x48xi1>, vector<8x48xf32>
    %cst_120 = arith.constant dense<0.000000e+00> : vector<8x48xf32>
    %298 = tpu.matmul %290, %263, %cst_120 {dimension_numbers = #tpu.dot_dimension_numbers<[1], [0], [0], [1], [0, 0, 1, 1], [], []>} : vector<8x16xf32>, vector<16x48xf32>, vector<8x48xf32> -> vector<8x48xf32>
    %299 = vector.broadcast %265 : vector<1x48xf32> to vector<8x48xf32>
    %300 = arith.addf %298, %299 : vector<8x48xf32>
    %301 = vector.extract_strided_slice %297 {offsets = [0, 0], sizes = [8, 32], strides = [1, 1]} : vector<8x48xf32> to vector<8x32xf32>
    %302 = vector.extract_strided_slice %300 {offsets = [0, 0], sizes = [8, 32], strides = [1, 1]} : vector<8x48xf32> to vector<8x32xf32>
    %303 = arith.addf %301, %302 : vector<8x32xf32>
    %304 = arith.negf %303 : vector<8x32xf32>
    %305 = math.exp %304 : vector<8x32xf32>
    %cst_121 = arith.constant 1.000000e+00 : f32
    %306 = vector.broadcast %cst_121 : f32 to vector<8x32xf32>
    %307 = arith.addf %306, %305 : vector<8x32xf32>
    %308 = arith.divf %306, %307 : vector<8x32xf32>
    %309 = vector.extract_strided_slice %308 {offsets = [0, 0], sizes = [8, 16], strides = [1, 1]} : vector<8x32xf32> to vector<8x16xf32>
    %310 = vector.extract_strided_slice %308 {offsets = [0, 16], sizes = [8, 16], strides = [1, 1]} : vector<8x32xf32> to vector<8x16xf32>
    %311 = vector.extract_strided_slice %297 {offsets = [0, 32], sizes = [8, 16], strides = [1, 1]} : vector<8x48xf32> to vector<8x16xf32>
    %312 = vector.extract_strided_slice %300 {offsets = [0, 32], sizes = [8, 16], strides = [1, 1]} : vector<8x48xf32> to vector<8x16xf32>
    %313 = arith.mulf %309, %312 : vector<8x16xf32>
    %314 = arith.addf %311, %313 : vector<8x16xf32>
    %315 = math.tanh %314 : vector<8x16xf32>
    %316 = arith.subf %290, %315 : vector<8x16xf32>
    %317 = arith.mulf %310, %316 : vector<8x16xf32>
    %318 = arith.addf %315, %317 : vector<8x16xf32>
    %319 = vector.extract_strided_slice %318 {offsets = [0, 0], sizes = [8, 8], strides = [1, 1]} : vector<8x16xf32> to vector<8x8xf32>
    %c8_122 = arith.constant 8 : index
    %c0_123 = arith.constant 0 : index
    %320 = vector.load %arg10[%c8_122, %c0_123] : memref<64x16xf32, #tpu.memory_space<vmem>>, vector<8x8xf32>
    tpu.vector_store %arg10[%c8_122, %c0_123], %319 {strides = array<i32>} : memref<64x16xf32, #tpu.memory_space<vmem>>, vector<8x8xf32>,
    %321 = vector.extract_strided_slice %318 {offsets = [0, 8], sizes = [8, 8], strides = [1, 1]} : vector<8x16xf32> to vector<8x8xf32>
    %c48_124 = arith.constant 48 : index
    %c8_125 = arith.constant 8 : index
    %322 = vector.load %arg10[%c48_124, %c8_125] : memref<64x16xf32, #tpu.memory_space<vmem>>, vector<8x8xf32>
    tpu.vector_store %arg10[%c48_124, %c8_125], %321 {strides = array<i32>} : memref<64x16xf32, #tpu.memory_space<vmem>>, vector<8x8xf32>,
    %c16_126 = arith.constant 16 : index
    %c0_127 = arith.constant 0 : index
    %323 = vector.load %arg11[%c16_126, %c0_127] : memref<64x48xf32, #tpu.memory_space<vmem>>, vector<8x48xf32>
    %c40_128 = arith.constant 40 : index
    %c0_129 = arith.constant 0 : index
    %324 = vector.load %arg11[%c40_128, %c0_129] : memref<64x48xf32, #tpu.memory_space<vmem>>, vector<8x48xf32>
    %325 = arith.select %14, %323, %324 : vector<8x48xi1>, vector<8x48xf32>
    %cst_130 = arith.constant dense<0.000000e+00> : vector<8x48xf32>
    %326 = tpu.matmul %318, %263, %cst_130 {dimension_numbers = #tpu.dot_dimension_numbers<[1], [0], [0], [1], [0, 0, 1, 1], [], []>} : vector<8x16xf32>, vector<16x48xf32>, vector<8x48xf32> -> vector<8x48xf32>
    %327 = vector.broadcast %265 : vector<1x48xf32> to vector<8x48xf32>
    %328 = arith.addf %326, %327 : vector<8x48xf32>
    %329 = vector.extract_strided_slice %325 {offsets = [0, 0], sizes = [8, 32], strides = [1, 1]} : vector<8x48xf32> to vector<8x32xf32>
    %330 = vector.extract_strided_slice %328 {offsets = [0, 0], sizes = [8, 32], strides = [1, 1]} : vector<8x48xf32> to vector<8x32xf32>
    %331 = arith.addf %329, %330 : vector<8x32xf32>
    %332 = arith.negf %331 : vector<8x32xf32>
    %333 = math.exp %332 : vector<8x32xf32>
    %cst_131 = arith.constant 1.000000e+00 : f32
    %334 = vector.broadcast %cst_131 : f32 to vector<8x32xf32>
    %335 = arith.addf %334, %333 : vector<8x32xf32>
    %336 = arith.divf %334, %335 : vector<8x32xf32>
    %337 = vector.extract_strided_slice %336 {offsets = [0, 0], sizes = [8, 16], strides = [1, 1]} : vector<8x32xf32> to vector<8x16xf32>
    %338 = vector.extract_strided_slice %336 {offsets = [0, 16], sizes = [8, 16], strides = [1, 1]} : vector<8x32xf32> to vector<8x16xf32>
    %339 = vector.extract_strided_slice %325 {offsets = [0, 32], sizes = [8, 16], strides = [1, 1]} : vector<8x48xf32> to vector<8x16xf32>
    %340 = vector.extract_strided_slice %328 {offsets = [0, 32], sizes = [8, 16], strides = [1, 1]} : vector<8x48xf32> to vector<8x16xf32>
    %341 = arith.mulf %337, %340 : vector<8x16xf32>
    %342 = arith.addf %339, %341 : vector<8x16xf32>
    %343 = math.tanh %342 : vector<8x16xf32>
    %344 = arith.subf %318, %343 : vector<8x16xf32>
    %345 = arith.mulf %338, %344 : vector<8x16xf32>
    %346 = arith.addf %343, %345 : vector<8x16xf32>
    %347 = vector.extract_strided_slice %346 {offsets = [0, 0], sizes = [8, 8], strides = [1, 1]} : vector<8x16xf32> to vector<8x8xf32>
    %c16_132 = arith.constant 16 : index
    %c0_133 = arith.constant 0 : index
    %348 = vector.load %arg10[%c16_132, %c0_133] : memref<64x16xf32, #tpu.memory_space<vmem>>, vector<8x8xf32>
    tpu.vector_store %arg10[%c16_132, %c0_133], %347 {strides = array<i32>} : memref<64x16xf32, #tpu.memory_space<vmem>>, vector<8x8xf32>,
    %349 = vector.extract_strided_slice %346 {offsets = [0, 8], sizes = [8, 8], strides = [1, 1]} : vector<8x16xf32> to vector<8x8xf32>
    %c40_134 = arith.constant 40 : index
    %c8_135 = arith.constant 8 : index
    %350 = vector.load %arg10[%c40_134, %c8_135] : memref<64x16xf32, #tpu.memory_space<vmem>>, vector<8x8xf32>
    tpu.vector_store %arg10[%c40_134, %c8_135], %349 {strides = array<i32>} : memref<64x16xf32, #tpu.memory_space<vmem>>, vector<8x8xf32>,
    %c24_136 = arith.constant 24 : index
    %c0_137 = arith.constant 0 : index
    %351 = vector.load %arg11[%c24_136, %c0_137] : memref<64x48xf32, #tpu.memory_space<vmem>>, vector<8x48xf32>
    %c32_138 = arith.constant 32 : index
    %c0_139 = arith.constant 0 : index
    %352 = vector.load %arg11[%c32_138, %c0_139] : memref<64x48xf32, #tpu.memory_space<vmem>>, vector<8x48xf32>
    %353 = arith.select %14, %351, %352 : vector<8x48xi1>, vector<8x48xf32>
    %cst_140 = arith.constant dense<0.000000e+00> : vector<8x48xf32>
    %354 = tpu.matmul %346, %263, %cst_140 {dimension_numbers = #tpu.dot_dimension_numbers<[1], [0], [0], [1], [0, 0, 1, 1], [], []>} : vector<8x16xf32>, vector<16x48xf32>, vector<8x48xf32> -> vector<8x48xf32>
    %355 = vector.broadcast %265 : vector<1x48xf32> to vector<8x48xf32>
    %356 = arith.addf %354, %355 : vector<8x48xf32>
    %357 = vector.extract_strided_slice %353 {offsets = [0, 0], sizes = [8, 32], strides = [1, 1]} : vector<8x48xf32> to vector<8x32xf32>
    %358 = vector.extract_strided_slice %356 {offsets = [0, 0], sizes = [8, 32], strides = [1, 1]} : vector<8x48xf32> to vector<8x32xf32>
    %359 = arith.addf %357, %358 : vector<8x32xf32>
    %360 = arith.negf %359 : vector<8x32xf32>
    %361 = math.exp %360 : vector<8x32xf32>
    %cst_141 = arith.constant 1.000000e+00 : f32
    %362 = vector.broadcast %cst_141 : f32 to vector<8x32xf32>
    %363 = arith.addf %362, %361 : vector<8x32xf32>
    %364 = arith.divf %362, %363 : vector<8x32xf32>
    %365 = vector.extract_strided_slice %364 {offsets = [0, 0], sizes = [8, 16], strides = [1, 1]} : vector<8x32xf32> to vector<8x16xf32>
    %366 = vector.extract_strided_slice %364 {offsets = [0, 16], sizes = [8, 16], strides = [1, 1]} : vector<8x32xf32> to vector<8x16xf32>
    %367 = vector.extract_strided_slice %353 {offsets = [0, 32], sizes = [8, 16], strides = [1, 1]} : vector<8x48xf32> to vector<8x16xf32>
    %368 = vector.extract_strided_slice %356 {offsets = [0, 32], sizes = [8, 16], strides = [1, 1]} : vector<8x48xf32> to vector<8x16xf32>
    %369 = arith.mulf %365, %368 : vector<8x16xf32>
    %370 = arith.addf %367, %369 : vector<8x16xf32>
    %371 = math.tanh %370 : vector<8x16xf32>
    %372 = arith.subf %346, %371 : vector<8x16xf32>
    %373 = arith.mulf %366, %372 : vector<8x16xf32>
    %374 = arith.addf %371, %373 : vector<8x16xf32>
    %375 = vector.extract_strided_slice %374 {offsets = [0, 0], sizes = [8, 8], strides = [1, 1]} : vector<8x16xf32> to vector<8x8xf32>
    %c24_142 = arith.constant 24 : index
    %c0_143 = arith.constant 0 : index
    %376 = vector.load %arg10[%c24_142, %c0_143] : memref<64x16xf32, #tpu.memory_space<vmem>>, vector<8x8xf32>
    tpu.vector_store %arg10[%c24_142, %c0_143], %375 {strides = array<i32>} : memref<64x16xf32, #tpu.memory_space<vmem>>, vector<8x8xf32>,
    %377 = vector.extract_strided_slice %374 {offsets = [0, 8], sizes = [8, 8], strides = [1, 1]} : vector<8x16xf32> to vector<8x8xf32>
    %c32_144 = arith.constant 32 : index
    %c8_145 = arith.constant 8 : index
    %378 = vector.load %arg10[%c32_144, %c8_145] : memref<64x16xf32, #tpu.memory_space<vmem>>, vector<8x8xf32>
    tpu.vector_store %arg10[%c32_144, %c8_145], %377 {strides = array<i32>} : memref<64x16xf32, #tpu.memory_space<vmem>>, vector<8x8xf32>,
    %c32_146 = arith.constant 32 : index
    %c0_147 = arith.constant 0 : index
    %379 = vector.load %arg11[%c32_146, %c0_147] : memref<64x48xf32, #tpu.memory_space<vmem>>, vector<8x48xf32>
    %c24_148 = arith.constant 24 : index
    %c0_149 = arith.constant 0 : index
    %380 = vector.load %arg11[%c24_148, %c0_149] : memref<64x48xf32, #tpu.memory_space<vmem>>, vector<8x48xf32>
    %381 = arith.select %14, %379, %380 : vector<8x48xi1>, vector<8x48xf32>
    %cst_150 = arith.constant dense<0.000000e+00> : vector<8x48xf32>
    %382 = tpu.matmul %374, %263, %cst_150 {dimension_numbers = #tpu.dot_dimension_numbers<[1], [0], [0], [1], [0, 0, 1, 1], [], []>} : vector<8x16xf32>, vector<16x48xf32>, vector<8x48xf32> -> vector<8x48xf32>
    %383 = vector.broadcast %265 : vector<1x48xf32> to vector<8x48xf32>
    %384 = arith.addf %382, %383 : vector<8x48xf32>
    %385 = vector.extract_strided_slice %381 {offsets = [0, 0], sizes = [8, 32], strides = [1, 1]} : vector<8x48xf32> to vector<8x32xf32>
    %386 = vector.extract_strided_slice %384 {offsets = [0, 0], sizes = [8, 32], strides = [1, 1]} : vector<8x48xf32> to vector<8x32xf32>
    %387 = arith.addf %385, %386 : vector<8x32xf32>
    %388 = arith.negf %387 : vector<8x32xf32>
    %389 = math.exp %388 : vector<8x32xf32>
    %cst_151 = arith.constant 1.000000e+00 : f32
    %390 = vector.broadcast %cst_151 : f32 to vector<8x32xf32>
    %391 = arith.addf %390, %389 : vector<8x32xf32>
    %392 = arith.divf %390, %391 : vector<8x32xf32>
    %393 = vector.extract_strided_slice %392 {offsets = [0, 0], sizes = [8, 16], strides = [1, 1]} : vector<8x32xf32> to vector<8x16xf32>
    %394 = vector.extract_strided_slice %392 {offsets = [0, 16], sizes = [8, 16], strides = [1, 1]} : vector<8x32xf32> to vector<8x16xf32>
    %395 = vector.extract_strided_slice %381 {offsets = [0, 32], sizes = [8, 16], strides = [1, 1]} : vector<8x48xf32> to vector<8x16xf32>
    %396 = vector.extract_strided_slice %384 {offsets = [0, 32], sizes = [8, 16], strides = [1, 1]} : vector<8x48xf32> to vector<8x16xf32>
    %397 = arith.mulf %393, %396 : vector<8x16xf32>
    %398 = arith.addf %395, %397 : vector<8x16xf32>
    %399 = math.tanh %398 : vector<8x16xf32>
    %400 = arith.subf %374, %399 : vector<8x16xf32>
    %401 = arith.mulf %394, %400 : vector<8x16xf32>
    %402 = arith.addf %399, %401 : vector<8x16xf32>
    %403 = vector.extract_strided_slice %402 {offsets = [0, 0], sizes = [8, 8], strides = [1, 1]} : vector<8x16xf32> to vector<8x8xf32>
    %c32_152 = arith.constant 32 : index
    %c0_153 = arith.constant 0 : index
    %404 = vector.load %arg10[%c32_152, %c0_153] : memref<64x16xf32, #tpu.memory_space<vmem>>, vector<8x8xf32>
    tpu.vector_store %arg10[%c32_152, %c0_153], %403 {strides = array<i32>} : memref<64x16xf32, #tpu.memory_space<vmem>>, vector<8x8xf32>,
    %405 = vector.extract_strided_slice %402 {offsets = [0, 8], sizes = [8, 8], strides = [1, 1]} : vector<8x16xf32> to vector<8x8xf32>
    %c24_154 = arith.constant 24 : index
    %c8_155 = arith.constant 8 : index
    %406 = vector.load %arg10[%c24_154, %c8_155] : memref<64x16xf32, #tpu.memory_space<vmem>>, vector<8x8xf32>
    tpu.vector_store %arg10[%c24_154, %c8_155], %405 {strides = array<i32>} : memref<64x16xf32, #tpu.memory_space<vmem>>, vector<8x8xf32>,
    %c40_156 = arith.constant 40 : index
    %c0_157 = arith.constant 0 : index
    %407 = vector.load %arg11[%c40_156, %c0_157] : memref<64x48xf32, #tpu.memory_space<vmem>>, vector<8x48xf32>
    %c16_158 = arith.constant 16 : index
    %c0_159 = arith.constant 0 : index
    %408 = vector.load %arg11[%c16_158, %c0_159] : memref<64x48xf32, #tpu.memory_space<vmem>>, vector<8x48xf32>
    %409 = arith.select %14, %407, %408 : vector<8x48xi1>, vector<8x48xf32>
    %cst_160 = arith.constant dense<0.000000e+00> : vector<8x48xf32>
    %410 = tpu.matmul %402, %263, %cst_160 {dimension_numbers = #tpu.dot_dimension_numbers<[1], [0], [0], [1], [0, 0, 1, 1], [], []>} : vector<8x16xf32>, vector<16x48xf32>, vector<8x48xf32> -> vector<8x48xf32>
    %411 = vector.broadcast %265 : vector<1x48xf32> to vector<8x48xf32>
    %412 = arith.addf %410, %411 : vector<8x48xf32>
    %413 = vector.extract_strided_slice %409 {offsets = [0, 0], sizes = [8, 32], strides = [1, 1]} : vector<8x48xf32> to vector<8x32xf32>
    %414 = vector.extract_strided_slice %412 {offsets = [0, 0], sizes = [8, 32], strides = [1, 1]} : vector<8x48xf32> to vector<8x32xf32>
    %415 = arith.addf %413, %414 : vector<8x32xf32>
    %416 = arith.negf %415 : vector<8x32xf32>
    %417 = math.exp %416 : vector<8x32xf32>
    %cst_161 = arith.constant 1.000000e+00 : f32
    %418 = vector.broadcast %cst_161 : f32 to vector<8x32xf32>
    %419 = arith.addf %418, %417 : vector<8x32xf32>
    %420 = arith.divf %418, %419 : vector<8x32xf32>
    %421 = vector.extract_strided_slice %420 {offsets = [0, 0], sizes = [8, 16], strides = [1, 1]} : vector<8x32xf32> to vector<8x16xf32>
    %422 = vector.extract_strided_slice %420 {offsets = [0, 16], sizes = [8, 16], strides = [1, 1]} : vector<8x32xf32> to vector<8x16xf32>
    %423 = vector.extract_strided_slice %409 {offsets = [0, 32], sizes = [8, 16], strides = [1, 1]} : vector<8x48xf32> to vector<8x16xf32>
    %424 = vector.extract_strided_slice %412 {offsets = [0, 32], sizes = [8, 16], strides = [1, 1]} : vector<8x48xf32> to vector<8x16xf32>
    %425 = arith.mulf %421, %424 : vector<8x16xf32>
    %426 = arith.addf %423, %425 : vector<8x16xf32>
    %427 = math.tanh %426 : vector<8x16xf32>
    %428 = arith.subf %402, %427 : vector<8x16xf32>
    %429 = arith.mulf %422, %428 : vector<8x16xf32>
    %430 = arith.addf %427, %429 : vector<8x16xf32>
    %431 = vector.extract_strided_slice %430 {offsets = [0, 0], sizes = [8, 8], strides = [1, 1]} : vector<8x16xf32> to vector<8x8xf32>
    %c40_162 = arith.constant 40 : index
    %c0_163 = arith.constant 0 : index
    %432 = vector.load %arg10[%c40_162, %c0_163] : memref<64x16xf32, #tpu.memory_space<vmem>>, vector<8x8xf32>
    tpu.vector_store %arg10[%c40_162, %c0_163], %431 {strides = array<i32>} : memref<64x16xf32, #tpu.memory_space<vmem>>, vector<8x8xf32>,
    %433 = vector.extract_strided_slice %430 {offsets = [0, 8], sizes = [8, 8], strides = [1, 1]} : vector<8x16xf32> to vector<8x8xf32>
    %c16_164 = arith.constant 16 : index
    %c8_165 = arith.constant 8 : index
    %434 = vector.load %arg10[%c16_164, %c8_165] : memref<64x16xf32, #tpu.memory_space<vmem>>, vector<8x8xf32>
    tpu.vector_store %arg10[%c16_164, %c8_165], %433 {strides = array<i32>} : memref<64x16xf32, #tpu.memory_space<vmem>>, vector<8x8xf32>,
    %c48_166 = arith.constant 48 : index
    %c0_167 = arith.constant 0 : index
    %435 = vector.load %arg11[%c48_166, %c0_167] : memref<64x48xf32, #tpu.memory_space<vmem>>, vector<8x48xf32>
    %c8_168 = arith.constant 8 : index
    %c0_169 = arith.constant 0 : index
    %436 = vector.load %arg11[%c8_168, %c0_169] : memref<64x48xf32, #tpu.memory_space<vmem>>, vector<8x48xf32>
    %437 = arith.select %14, %435, %436 : vector<8x48xi1>, vector<8x48xf32>
    %cst_170 = arith.constant dense<0.000000e+00> : vector<8x48xf32>
    %438 = tpu.matmul %430, %263, %cst_170 {dimension_numbers = #tpu.dot_dimension_numbers<[1], [0], [0], [1], [0, 0, 1, 1], [], []>} : vector<8x16xf32>, vector<16x48xf32>, vector<8x48xf32> -> vector<8x48xf32>
    %439 = vector.broadcast %265 : vector<1x48xf32> to vector<8x48xf32>
    %440 = arith.addf %438, %439 : vector<8x48xf32>
    %441 = vector.extract_strided_slice %437 {offsets = [0, 0], sizes = [8, 32], strides = [1, 1]} : vector<8x48xf32> to vector<8x32xf32>
    %442 = vector.extract_strided_slice %440 {offsets = [0, 0], sizes = [8, 32], strides = [1, 1]} : vector<8x48xf32> to vector<8x32xf32>
    %443 = arith.addf %441, %442 : vector<8x32xf32>
    %444 = arith.negf %443 : vector<8x32xf32>
    %445 = math.exp %444 : vector<8x32xf32>
    %cst_171 = arith.constant 1.000000e+00 : f32
    %446 = vector.broadcast %cst_171 : f32 to vector<8x32xf32>
    %447 = arith.addf %446, %445 : vector<8x32xf32>
    %448 = arith.divf %446, %447 : vector<8x32xf32>
    %449 = vector.extract_strided_slice %448 {offsets = [0, 0], sizes = [8, 16], strides = [1, 1]} : vector<8x32xf32> to vector<8x16xf32>
    %450 = vector.extract_strided_slice %448 {offsets = [0, 16], sizes = [8, 16], strides = [1, 1]} : vector<8x32xf32> to vector<8x16xf32>
    %451 = vector.extract_strided_slice %437 {offsets = [0, 32], sizes = [8, 16], strides = [1, 1]} : vector<8x48xf32> to vector<8x16xf32>
    %452 = vector.extract_strided_slice %440 {offsets = [0, 32], sizes = [8, 16], strides = [1, 1]} : vector<8x48xf32> to vector<8x16xf32>
    %453 = arith.mulf %449, %452 : vector<8x16xf32>
    %454 = arith.addf %451, %453 : vector<8x16xf32>
    %455 = math.tanh %454 : vector<8x16xf32>
    %456 = arith.subf %430, %455 : vector<8x16xf32>
    %457 = arith.mulf %450, %456 : vector<8x16xf32>
    %458 = arith.addf %455, %457 : vector<8x16xf32>
    %459 = vector.extract_strided_slice %458 {offsets = [0, 0], sizes = [8, 8], strides = [1, 1]} : vector<8x16xf32> to vector<8x8xf32>
    %c48_172 = arith.constant 48 : index
    %c0_173 = arith.constant 0 : index
    %460 = vector.load %arg10[%c48_172, %c0_173] : memref<64x16xf32, #tpu.memory_space<vmem>>, vector<8x8xf32>
    tpu.vector_store %arg10[%c48_172, %c0_173], %459 {strides = array<i32>} : memref<64x16xf32, #tpu.memory_space<vmem>>, vector<8x8xf32>,
    %461 = vector.extract_strided_slice %458 {offsets = [0, 8], sizes = [8, 8], strides = [1, 1]} : vector<8x16xf32> to vector<8x8xf32>
    %c8_174 = arith.constant 8 : index
    %c8_175 = arith.constant 8 : index
    %462 = vector.load %arg10[%c8_174, %c8_175] : memref<64x16xf32, #tpu.memory_space<vmem>>, vector<8x8xf32>
    tpu.vector_store %arg10[%c8_174, %c8_175], %461 {strides = array<i32>} : memref<64x16xf32, #tpu.memory_space<vmem>>, vector<8x8xf32>,
    %c56_176 = arith.constant 56 : index
    %c0_177 = arith.constant 0 : index
    %463 = vector.load %arg11[%c56_176, %c0_177] : memref<64x48xf32, #tpu.memory_space<vmem>>, vector<8x48xf32>
    %c0_178 = arith.constant 0 : index
    %c0_179 = arith.constant 0 : index
    %464 = vector.load %arg11[%c0_178, %c0_179] : memref<64x48xf32, #tpu.memory_space<vmem>>, vector<8x48xf32>
    %465 = arith.select %14, %463, %464 : vector<8x48xi1>, vector<8x48xf32>
    %cst_180 = arith.constant dense<0.000000e+00> : vector<8x48xf32>
    %466 = tpu.matmul %458, %263, %cst_180 {dimension_numbers = #tpu.dot_dimension_numbers<[1], [0], [0], [1], [0, 0, 1, 1], [], []>} : vector<8x16xf32>, vector<16x48xf32>, vector<8x48xf32> -> vector<8x48xf32>
    %467 = vector.broadcast %265 : vector<1x48xf32> to vector<8x48xf32>
    %468 = arith.addf %466, %467 : vector<8x48xf32>
    %469 = vector.extract_strided_slice %465 {offsets = [0, 0], sizes = [8, 32], strides = [1, 1]} : vector<8x48xf32> to vector<8x32xf32>
    %470 = vector.extract_strided_slice %468 {offsets = [0, 0], sizes = [8, 32], strides = [1, 1]} : vector<8x48xf32> to vector<8x32xf32>
    %471 = arith.addf %469, %470 : vector<8x32xf32>
    %472 = arith.negf %471 : vector<8x32xf32>
    %473 = math.exp %472 : vector<8x32xf32>
    %cst_181 = arith.constant 1.000000e+00 : f32
    %474 = vector.broadcast %cst_181 : f32 to vector<8x32xf32>
    %475 = arith.addf %474, %473 : vector<8x32xf32>
    %476 = arith.divf %474, %475 : vector<8x32xf32>
    %477 = vector.extract_strided_slice %476 {offsets = [0, 0], sizes = [8, 16], strides = [1, 1]} : vector<8x32xf32> to vector<8x16xf32>
    %478 = vector.extract_strided_slice %476 {offsets = [0, 16], sizes = [8, 16], strides = [1, 1]} : vector<8x32xf32> to vector<8x16xf32>
    %479 = vector.extract_strided_slice %465 {offsets = [0, 32], sizes = [8, 16], strides = [1, 1]} : vector<8x48xf32> to vector<8x16xf32>
    %480 = vector.extract_strided_slice %468 {offsets = [0, 32], sizes = [8, 16], strides = [1, 1]} : vector<8x48xf32> to vector<8x16xf32>
    %481 = arith.mulf %477, %480 : vector<8x16xf32>
    %482 = arith.addf %479, %481 : vector<8x16xf32>
    %483 = math.tanh %482 : vector<8x16xf32>
    %484 = arith.subf %458, %483 : vector<8x16xf32>
    %485 = arith.mulf %478, %484 : vector<8x16xf32>
    %486 = arith.addf %483, %485 : vector<8x16xf32>
    %487 = vector.extract_strided_slice %486 {offsets = [0, 0], sizes = [8, 8], strides = [1, 1]} : vector<8x16xf32> to vector<8x8xf32>
    %c56_182 = arith.constant 56 : index
    %c0_183 = arith.constant 0 : index
    %488 = vector.load %arg10[%c56_182, %c0_183] : memref<64x16xf32, #tpu.memory_space<vmem>>, vector<8x8xf32>
    tpu.vector_store %arg10[%c56_182, %c0_183], %487 {strides = array<i32>} : memref<64x16xf32, #tpu.memory_space<vmem>>, vector<8x8xf32>,
    %489 = vector.extract_strided_slice %486 {offsets = [0, 8], sizes = [8, 8], strides = [1, 1]} : vector<8x16xf32> to vector<8x8xf32>
    %c0_184 = arith.constant 0 : index
    %c8_185 = arith.constant 8 : index
    %490 = vector.load %arg10[%c0_184, %c8_185] : memref<64x16xf32, #tpu.memory_space<vmem>>, vector<8x8xf32>
    tpu.vector_store %arg10[%c0_184, %c8_185], %489 {strides = array<i32>} : memref<64x16xf32, #tpu.memory_space<vmem>>, vector<8x8xf32>,
    %c0_186 = arith.constant 0 : index
    %c0_187 = arith.constant 0 : index
    %491 = vector.load %arg10[%c0_186, %c0_187] : memref<64x16xf32, #tpu.memory_space<vmem>>, vector<64x16xf32>
    %c2 = arith.constant 2 : index
    %c0_188 = arith.constant 0 : index
    %c0_189 = arith.constant 0 : index
    %492 = vector.load %arg1[%c2, %c0_188, %c0_189] : memref<4x16x48xf32, #tpu.memory_space<vmem>>, vector<1x16x48xf32>
    %493 = vector.shape_cast %492 : vector<1x16x48xf32> to vector<16x48xf32>
    %cst_190 = arith.constant dense<0.000000e+00> : vector<64x48xf32>
    %494 = tpu.matmul %491, %493, %cst_190 {dimension_numbers = #tpu.dot_dimension_numbers<[1], [0], [0], [1], [0, 0, 1, 1], [], []>} : vector<64x16xf32>, vector<16x48xf32>, vector<64x48xf32> -> vector<64x48xf32>
    %c2_191 = arith.constant 2 : index
    %c0_192 = arith.constant 0 : index
    %c0_193 = arith.constant 0 : index
    %495 = vector.load %arg2[%c2_191, %c0_192, %c0_193] : memref<4x1x48xf32, #tpu.memory_space<vmem>>, vector<1x1x48xf32>
    %496 = vector.shape_cast %495 : vector<1x1x48xf32> to vector<1x48xf32>
    %497 = vector.broadcast %496 : vector<1x48xf32> to vector<64x48xf32>
    %498 = arith.addf %494, %497 : vector<64x48xf32>
    %c0_194 = arith.constant 0 : index
    %c0_195 = arith.constant 0 : index
    %499 = vector.load %arg11[%c0_194, %c0_195] : memref<64x48xf32, #tpu.memory_space<vmem>>, vector<64x48xf32>
    tpu.vector_store %arg11[%c0_194, %c0_195], %498 {strides = array<i32>} : memref<64x48xf32, #tpu.memory_space<vmem>>, vector<64x48xf32>,
    %c2_196 = arith.constant 2 : index
    %c0_197 = arith.constant 0 : index
    %c0_198 = arith.constant 0 : index
    %500 = vector.load %arg3[%c2_196, %c0_197, %c0_198] : memref<4x16x48xf32, #tpu.memory_space<vmem>>, vector<1x16x48xf32>
    %501 = vector.shape_cast %500 : vector<1x16x48xf32> to vector<16x48xf32>
    %c2_199 = arith.constant 2 : index
    %c0_200 = arith.constant 0 : index
    %c0_201 = arith.constant 0 : index
    %502 = vector.load %arg4[%c2_199, %c0_200, %c0_201] : memref<4x1x48xf32, #tpu.memory_space<vmem>>, vector<1x1x48xf32>
    %503 = vector.shape_cast %502 : vector<1x1x48xf32> to vector<1x48xf32>
    %cst_202 = arith.constant 0.000000e+00 : f32
    %504 = vector.broadcast %cst_202 : f32 to vector<8x16xf32>
    %c0_203 = arith.constant 0 : index
    %c0_204 = arith.constant 0 : index
    %505 = vector.load %arg11[%c0_203, %c0_204] : memref<64x48xf32, #tpu.memory_space<vmem>>, vector<8x48xf32>
    %c56_205 = arith.constant 56 : index
    %c0_206 = arith.constant 0 : index
    %506 = vector.load %arg11[%c56_205, %c0_206] : memref<64x48xf32, #tpu.memory_space<vmem>>, vector<8x48xf32>
    %507 = arith.select %14, %505, %506 : vector<8x48xi1>, vector<8x48xf32>
    %cst_207 = arith.constant dense<0.000000e+00> : vector<8x48xf32>
    %508 = tpu.matmul %504, %501, %cst_207 {dimension_numbers = #tpu.dot_dimension_numbers<[1], [0], [0], [1], [0, 0, 1, 1], [], []>} : vector<8x16xf32>, vector<16x48xf32>, vector<8x48xf32> -> vector<8x48xf32>
    %509 = vector.broadcast %503 : vector<1x48xf32> to vector<8x48xf32>
    %510 = arith.addf %508, %509 : vector<8x48xf32>
    %511 = vector.extract_strided_slice %507 {offsets = [0, 0], sizes = [8, 32], strides = [1, 1]} : vector<8x48xf32> to vector<8x32xf32>
    %512 = vector.extract_strided_slice %510 {offsets = [0, 0], sizes = [8, 32], strides = [1, 1]} : vector<8x48xf32> to vector<8x32xf32>
    %513 = arith.addf %511, %512 : vector<8x32xf32>
    %514 = arith.negf %513 : vector<8x32xf32>
    %515 = math.exp %514 : vector<8x32xf32>
    %cst_208 = arith.constant 1.000000e+00 : f32
    %516 = vector.broadcast %cst_208 : f32 to vector<8x32xf32>
    %517 = arith.addf %516, %515 : vector<8x32xf32>
    %518 = arith.divf %516, %517 : vector<8x32xf32>
    %519 = vector.extract_strided_slice %518 {offsets = [0, 0], sizes = [8, 16], strides = [1, 1]} : vector<8x32xf32> to vector<8x16xf32>
    %520 = vector.extract_strided_slice %518 {offsets = [0, 16], sizes = [8, 16], strides = [1, 1]} : vector<8x32xf32> to vector<8x16xf32>
    %521 = vector.extract_strided_slice %507 {offsets = [0, 32], sizes = [8, 16], strides = [1, 1]} : vector<8x48xf32> to vector<8x16xf32>
    %522 = vector.extract_strided_slice %510 {offsets = [0, 32], sizes = [8, 16], strides = [1, 1]} : vector<8x48xf32> to vector<8x16xf32>
    %523 = arith.mulf %519, %522 : vector<8x16xf32>
    %524 = arith.addf %521, %523 : vector<8x16xf32>
    %525 = math.tanh %524 : vector<8x16xf32>
    %526 = arith.subf %504, %525 : vector<8x16xf32>
    %527 = arith.mulf %520, %526 : vector<8x16xf32>
    %528 = arith.addf %525, %527 : vector<8x16xf32>
    %529 = vector.extract_strided_slice %528 {offsets = [0, 0], sizes = [8, 8], strides = [1, 1]} : vector<8x16xf32> to vector<8x8xf32>
    %c0_209 = arith.constant 0 : index
    %c0_210 = arith.constant 0 : index
    %530 = vector.load %arg10[%c0_209, %c0_210] : memref<64x16xf32, #tpu.memory_space<vmem>>, vector<8x8xf32>
    tpu.vector_store %arg10[%c0_209, %c0_210], %529 {strides = array<i32>} : memref<64x16xf32, #tpu.memory_space<vmem>>, vector<8x8xf32>,
    %531 = vector.extract_strided_slice %528 {offsets = [0, 8], sizes = [8, 8], strides = [1, 1]} : vector<8x16xf32> to vector<8x8xf32>
    %c56_211 = arith.constant 56 : index
    %c8_212 = arith.constant 8 : index
    %532 = vector.load %arg10[%c56_211, %c8_212] : memref<64x16xf32, #tpu.memory_space<vmem>>, vector<8x8xf32>
    tpu.vector_store %arg10[%c56_211, %c8_212], %531 {strides = array<i32>} : memref<64x16xf32, #tpu.memory_space<vmem>>, vector<8x8xf32>,
    %c8_213 = arith.constant 8 : index
    %c0_214 = arith.constant 0 : index
    %533 = vector.load %arg11[%c8_213, %c0_214] : memref<64x48xf32, #tpu.memory_space<vmem>>, vector<8x48xf32>
    %c48_215 = arith.constant 48 : index
    %c0_216 = arith.constant 0 : index
    %534 = vector.load %arg11[%c48_215, %c0_216] : memref<64x48xf32, #tpu.memory_space<vmem>>, vector<8x48xf32>
    %535 = arith.select %14, %533, %534 : vector<8x48xi1>, vector<8x48xf32>
    %cst_217 = arith.constant dense<0.000000e+00> : vector<8x48xf32>
    %536 = tpu.matmul %528, %501, %cst_217 {dimension_numbers = #tpu.dot_dimension_numbers<[1], [0], [0], [1], [0, 0, 1, 1], [], []>} : vector<8x16xf32>, vector<16x48xf32>, vector<8x48xf32> -> vector<8x48xf32>
    %537 = vector.broadcast %503 : vector<1x48xf32> to vector<8x48xf32>
    %538 = arith.addf %536, %537 : vector<8x48xf32>
    %539 = vector.extract_strided_slice %535 {offsets = [0, 0], sizes = [8, 32], strides = [1, 1]} : vector<8x48xf32> to vector<8x32xf32>
    %540 = vector.extract_strided_slice %538 {offsets = [0, 0], sizes = [8, 32], strides = [1, 1]} : vector<8x48xf32> to vector<8x32xf32>
    %541 = arith.addf %539, %540 : vector<8x32xf32>
    %542 = arith.negf %541 : vector<8x32xf32>
    %543 = math.exp %542 : vector<8x32xf32>
    %cst_218 = arith.constant 1.000000e+00 : f32
    %544 = vector.broadcast %cst_218 : f32 to vector<8x32xf32>
    %545 = arith.addf %544, %543 : vector<8x32xf32>
    %546 = arith.divf %544, %545 : vector<8x32xf32>
    %547 = vector.extract_strided_slice %546 {offsets = [0, 0], sizes = [8, 16], strides = [1, 1]} : vector<8x32xf32> to vector<8x16xf32>
    %548 = vector.extract_strided_slice %546 {offsets = [0, 16], sizes = [8, 16], strides = [1, 1]} : vector<8x32xf32> to vector<8x16xf32>
    %549 = vector.extract_strided_slice %535 {offsets = [0, 32], sizes = [8, 16], strides = [1, 1]} : vector<8x48xf32> to vector<8x16xf32>
    %550 = vector.extract_strided_slice %538 {offsets = [0, 32], sizes = [8, 16], strides = [1, 1]} : vector<8x48xf32> to vector<8x16xf32>
    %551 = arith.mulf %547, %550 : vector<8x16xf32>
    %552 = arith.addf %549, %551 : vector<8x16xf32>
    %553 = math.tanh %552 : vector<8x16xf32>
    %554 = arith.subf %528, %553 : vector<8x16xf32>
    %555 = arith.mulf %548, %554 : vector<8x16xf32>
    %556 = arith.addf %553, %555 : vector<8x16xf32>
    %557 = vector.extract_strided_slice %556 {offsets = [0, 0], sizes = [8, 8], strides = [1, 1]} : vector<8x16xf32> to vector<8x8xf32>
    %c8_219 = arith.constant 8 : index
    %c0_220 = arith.constant 0 : index
    %558 = vector.load %arg10[%c8_219, %c0_220] : memref<64x16xf32, #tpu.memory_space<vmem>>, vector<8x8xf32>
    tpu.vector_store %arg10[%c8_219, %c0_220], %557 {strides = array<i32>} : memref<64x16xf32, #tpu.memory_space<vmem>>, vector<8x8xf32>,
    %559 = vector.extract_strided_slice %556 {offsets = [0, 8], sizes = [8, 8], strides = [1, 1]} : vector<8x16xf32> to vector<8x8xf32>
    %c48_221 = arith.constant 48 : index
    %c8_222 = arith.constant 8 : index
    %560 = vector.load %arg10[%c48_221, %c8_222] : memref<64x16xf32, #tpu.memory_space<vmem>>, vector<8x8xf32>
    tpu.vector_store %arg10[%c48_221, %c8_222], %559 {strides = array<i32>} : memref<64x16xf32, #tpu.memory_space<vmem>>, vector<8x8xf32>,
    %c16_223 = arith.constant 16 : index
    %c0_224 = arith.constant 0 : index
    %561 = vector.load %arg11[%c16_223, %c0_224] : memref<64x48xf32, #tpu.memory_space<vmem>>, vector<8x48xf32>
    %c40_225 = arith.constant 40 : index
    %c0_226 = arith.constant 0 : index
    %562 = vector.load %arg11[%c40_225, %c0_226] : memref<64x48xf32, #tpu.memory_space<vmem>>, vector<8x48xf32>
    %563 = arith.select %14, %561, %562 : vector<8x48xi1>, vector<8x48xf32>
    %cst_227 = arith.constant dense<0.000000e+00> : vector<8x48xf32>
    %564 = tpu.matmul %556, %501, %cst_227 {dimension_numbers = #tpu.dot_dimension_numbers<[1], [0], [0], [1], [0, 0, 1, 1], [], []>} : vector<8x16xf32>, vector<16x48xf32>, vector<8x48xf32> -> vector<8x48xf32>
    %565 = vector.broadcast %503 : vector<1x48xf32> to vector<8x48xf32>
    %566 = arith.addf %564, %565 : vector<8x48xf32>
    %567 = vector.extract_strided_slice %563 {offsets = [0, 0], sizes = [8, 32], strides = [1, 1]} : vector<8x48xf32> to vector<8x32xf32>
    %568 = vector.extract_strided_slice %566 {offsets = [0, 0], sizes = [8, 32], strides = [1, 1]} : vector<8x48xf32> to vector<8x32xf32>
    %569 = arith.addf %567, %568 : vector<8x32xf32>
    %570 = arith.negf %569 : vector<8x32xf32>
    %571 = math.exp %570 : vector<8x32xf32>
    %cst_228 = arith.constant 1.000000e+00 : f32
    %572 = vector.broadcast %cst_228 : f32 to vector<8x32xf32>
    %573 = arith.addf %572, %571 : vector<8x32xf32>
    %574 = arith.divf %572, %573 : vector<8x32xf32>
    %575 = vector.extract_strided_slice %574 {offsets = [0, 0], sizes = [8, 16], strides = [1, 1]} : vector<8x32xf32> to vector<8x16xf32>
    %576 = vector.extract_strided_slice %574 {offsets = [0, 16], sizes = [8, 16], strides = [1, 1]} : vector<8x32xf32> to vector<8x16xf32>
    %577 = vector.extract_strided_slice %563 {offsets = [0, 32], sizes = [8, 16], strides = [1, 1]} : vector<8x48xf32> to vector<8x16xf32>
    %578 = vector.extract_strided_slice %566 {offsets = [0, 32], sizes = [8, 16], strides = [1, 1]} : vector<8x48xf32> to vector<8x16xf32>
    %579 = arith.mulf %575, %578 : vector<8x16xf32>
    %580 = arith.addf %577, %579 : vector<8x16xf32>
    %581 = math.tanh %580 : vector<8x16xf32>
    %582 = arith.subf %556, %581 : vector<8x16xf32>
    %583 = arith.mulf %576, %582 : vector<8x16xf32>
    %584 = arith.addf %581, %583 : vector<8x16xf32>
    %585 = vector.extract_strided_slice %584 {offsets = [0, 0], sizes = [8, 8], strides = [1, 1]} : vector<8x16xf32> to vector<8x8xf32>
    %c16_229 = arith.constant 16 : index
    %c0_230 = arith.constant 0 : index
    %586 = vector.load %arg10[%c16_229, %c0_230] : memref<64x16xf32, #tpu.memory_space<vmem>>, vector<8x8xf32>
    tpu.vector_store %arg10[%c16_229, %c0_230], %585 {strides = array<i32>} : memref<64x16xf32, #tpu.memory_space<vmem>>, vector<8x8xf32>,
    %587 = vector.extract_strided_slice %584 {offsets = [0, 8], sizes = [8, 8], strides = [1, 1]} : vector<8x16xf32> to vector<8x8xf32>
    %c40_231 = arith.constant 40 : index
    %c8_232 = arith.constant 8 : index
    %588 = vector.load %arg10[%c40_231, %c8_232] : memref<64x16xf32, #tpu.memory_space<vmem>>, vector<8x8xf32>
    tpu.vector_store %arg10[%c40_231, %c8_232], %587 {strides = array<i32>} : memref<64x16xf32, #tpu.memory_space<vmem>>, vector<8x8xf32>,
    %c24_233 = arith.constant 24 : index
    %c0_234 = arith.constant 0 : index
    %589 = vector.load %arg11[%c24_233, %c0_234] : memref<64x48xf32, #tpu.memory_space<vmem>>, vector<8x48xf32>
    %c32_235 = arith.constant 32 : index
    %c0_236 = arith.constant 0 : index
    %590 = vector.load %arg11[%c32_235, %c0_236] : memref<64x48xf32, #tpu.memory_space<vmem>>, vector<8x48xf32>
    %591 = arith.select %14, %589, %590 : vector<8x48xi1>, vector<8x48xf32>
    %cst_237 = arith.constant dense<0.000000e+00> : vector<8x48xf32>
    %592 = tpu.matmul %584, %501, %cst_237 {dimension_numbers = #tpu.dot_dimension_numbers<[1], [0], [0], [1], [0, 0, 1, 1], [], []>} : vector<8x16xf32>, vector<16x48xf32>, vector<8x48xf32> -> vector<8x48xf32>
    %593 = vector.broadcast %503 : vector<1x48xf32> to vector<8x48xf32>
    %594 = arith.addf %592, %593 : vector<8x48xf32>
    %595 = vector.extract_strided_slice %591 {offsets = [0, 0], sizes = [8, 32], strides = [1, 1]} : vector<8x48xf32> to vector<8x32xf32>
    %596 = vector.extract_strided_slice %594 {offsets = [0, 0], sizes = [8, 32], strides = [1, 1]} : vector<8x48xf32> to vector<8x32xf32>
    %597 = arith.addf %595, %596 : vector<8x32xf32>
    %598 = arith.negf %597 : vector<8x32xf32>
    %599 = math.exp %598 : vector<8x32xf32>
    %cst_238 = arith.constant 1.000000e+00 : f32
    %600 = vector.broadcast %cst_238 : f32 to vector<8x32xf32>
    %601 = arith.addf %600, %599 : vector<8x32xf32>
    %602 = arith.divf %600, %601 : vector<8x32xf32>
    %603 = vector.extract_strided_slice %602 {offsets = [0, 0], sizes = [8, 16], strides = [1, 1]} : vector<8x32xf32> to vector<8x16xf32>
    %604 = vector.extract_strided_slice %602 {offsets = [0, 16], sizes = [8, 16], strides = [1, 1]} : vector<8x32xf32> to vector<8x16xf32>
    %605 = vector.extract_strided_slice %591 {offsets = [0, 32], sizes = [8, 16], strides = [1, 1]} : vector<8x48xf32> to vector<8x16xf32>
    %606 = vector.extract_strided_slice %594 {offsets = [0, 32], sizes = [8, 16], strides = [1, 1]} : vector<8x48xf32> to vector<8x16xf32>
    %607 = arith.mulf %603, %606 : vector<8x16xf32>
    %608 = arith.addf %605, %607 : vector<8x16xf32>
    %609 = math.tanh %608 : vector<8x16xf32>
    %610 = arith.subf %584, %609 : vector<8x16xf32>
    %611 = arith.mulf %604, %610 : vector<8x16xf32>
    %612 = arith.addf %609, %611 : vector<8x16xf32>
    %613 = vector.extract_strided_slice %612 {offsets = [0, 0], sizes = [8, 8], strides = [1, 1]} : vector<8x16xf32> to vector<8x8xf32>
    %c24_239 = arith.constant 24 : index
    %c0_240 = arith.constant 0 : index
    %614 = vector.load %arg10[%c24_239, %c0_240] : memref<64x16xf32, #tpu.memory_space<vmem>>, vector<8x8xf32>
    tpu.vector_store %arg10[%c24_239, %c0_240], %613 {strides = array<i32>} : memref<64x16xf32, #tpu.memory_space<vmem>>, vector<8x8xf32>,
    %615 = vector.extract_strided_slice %612 {offsets = [0, 8], sizes = [8, 8], strides = [1, 1]} : vector<8x16xf32> to vector<8x8xf32>
    %c32_241 = arith.constant 32 : index
    %c8_242 = arith.constant 8 : index
    %616 = vector.load %arg10[%c32_241, %c8_242] : memref<64x16xf32, #tpu.memory_space<vmem>>, vector<8x8xf32>
    tpu.vector_store %arg10[%c32_241, %c8_242], %615 {strides = array<i32>} : memref<64x16xf32, #tpu.memory_space<vmem>>, vector<8x8xf32>,
    %c32_243 = arith.constant 32 : index
    %c0_244 = arith.constant 0 : index
    %617 = vector.load %arg11[%c32_243, %c0_244] : memref<64x48xf32, #tpu.memory_space<vmem>>, vector<8x48xf32>
    %c24_245 = arith.constant 24 : index
    %c0_246 = arith.constant 0 : index
    %618 = vector.load %arg11[%c24_245, %c0_246] : memref<64x48xf32, #tpu.memory_space<vmem>>, vector<8x48xf32>
    %619 = arith.select %14, %617, %618 : vector<8x48xi1>, vector<8x48xf32>
    %cst_247 = arith.constant dense<0.000000e+00> : vector<8x48xf32>
    %620 = tpu.matmul %612, %501, %cst_247 {dimension_numbers = #tpu.dot_dimension_numbers<[1], [0], [0], [1], [0, 0, 1, 1], [], []>} : vector<8x16xf32>, vector<16x48xf32>, vector<8x48xf32> -> vector<8x48xf32>
    %621 = vector.broadcast %503 : vector<1x48xf32> to vector<8x48xf32>
    %622 = arith.addf %620, %621 : vector<8x48xf32>
    %623 = vector.extract_strided_slice %619 {offsets = [0, 0], sizes = [8, 32], strides = [1, 1]} : vector<8x48xf32> to vector<8x32xf32>
    %624 = vector.extract_strided_slice %622 {offsets = [0, 0], sizes = [8, 32], strides = [1, 1]} : vector<8x48xf32> to vector<8x32xf32>
    %625 = arith.addf %623, %624 : vector<8x32xf32>
    %626 = arith.negf %625 : vector<8x32xf32>
    %627 = math.exp %626 : vector<8x32xf32>
    %cst_248 = arith.constant 1.000000e+00 : f32
    %628 = vector.broadcast %cst_248 : f32 to vector<8x32xf32>
    %629 = arith.addf %628, %627 : vector<8x32xf32>
    %630 = arith.divf %628, %629 : vector<8x32xf32>
    %631 = vector.extract_strided_slice %630 {offsets = [0, 0], sizes = [8, 16], strides = [1, 1]} : vector<8x32xf32> to vector<8x16xf32>
    %632 = vector.extract_strided_slice %630 {offsets = [0, 16], sizes = [8, 16], strides = [1, 1]} : vector<8x32xf32> to vector<8x16xf32>
    %633 = vector.extract_strided_slice %619 {offsets = [0, 32], sizes = [8, 16], strides = [1, 1]} : vector<8x48xf32> to vector<8x16xf32>
    %634 = vector.extract_strided_slice %622 {offsets = [0, 32], sizes = [8, 16], strides = [1, 1]} : vector<8x48xf32> to vector<8x16xf32>
    %635 = arith.mulf %631, %634 : vector<8x16xf32>
    %636 = arith.addf %633, %635 : vector<8x16xf32>
    %637 = math.tanh %636 : vector<8x16xf32>
    %638 = arith.subf %612, %637 : vector<8x16xf32>
    %639 = arith.mulf %632, %638 : vector<8x16xf32>
    %640 = arith.addf %637, %639 : vector<8x16xf32>
    %641 = vector.extract_strided_slice %640 {offsets = [0, 0], sizes = [8, 8], strides = [1, 1]} : vector<8x16xf32> to vector<8x8xf32>
    %c32_249 = arith.constant 32 : index
    %c0_250 = arith.constant 0 : index
    %642 = vector.load %arg10[%c32_249, %c0_250] : memref<64x16xf32, #tpu.memory_space<vmem>>, vector<8x8xf32>
    tpu.vector_store %arg10[%c32_249, %c0_250], %641 {strides = array<i32>} : memref<64x16xf32, #tpu.memory_space<vmem>>, vector<8x8xf32>,
    %643 = vector.extract_strided_slice %640 {offsets = [0, 8], sizes = [8, 8], strides = [1, 1]} : vector<8x16xf32> to vector<8x8xf32>
    %c24_251 = arith.constant 24 : index
    %c8_252 = arith.constant 8 : index
    %644 = vector.load %arg10[%c24_251, %c8_252] : memref<64x16xf32, #tpu.memory_space<vmem>>, vector<8x8xf32>
    tpu.vector_store %arg10[%c24_251, %c8_252], %643 {strides = array<i32>} : memref<64x16xf32, #tpu.memory_space<vmem>>, vector<8x8xf32>,
    %c40_253 = arith.constant 40 : index
    %c0_254 = arith.constant 0 : index
    %645 = vector.load %arg11[%c40_253, %c0_254] : memref<64x48xf32, #tpu.memory_space<vmem>>, vector<8x48xf32>
    %c16_255 = arith.constant 16 : index
    %c0_256 = arith.constant 0 : index
    %646 = vector.load %arg11[%c16_255, %c0_256] : memref<64x48xf32, #tpu.memory_space<vmem>>, vector<8x48xf32>
    %647 = arith.select %14, %645, %646 : vector<8x48xi1>, vector<8x48xf32>
    %cst_257 = arith.constant dense<0.000000e+00> : vector<8x48xf32>
    %648 = tpu.matmul %640, %501, %cst_257 {dimension_numbers = #tpu.dot_dimension_numbers<[1], [0], [0], [1], [0, 0, 1, 1], [], []>} : vector<8x16xf32>, vector<16x48xf32>, vector<8x48xf32> -> vector<8x48xf32>
    %649 = vector.broadcast %503 : vector<1x48xf32> to vector<8x48xf32>
    %650 = arith.addf %648, %649 : vector<8x48xf32>
    %651 = vector.extract_strided_slice %647 {offsets = [0, 0], sizes = [8, 32], strides = [1, 1]} : vector<8x48xf32> to vector<8x32xf32>
    %652 = vector.extract_strided_slice %650 {offsets = [0, 0], sizes = [8, 32], strides = [1, 1]} : vector<8x48xf32> to vector<8x32xf32>
    %653 = arith.addf %651, %652 : vector<8x32xf32>
    %654 = arith.negf %653 : vector<8x32xf32>
    %655 = math.exp %654 : vector<8x32xf32>
    %cst_258 = arith.constant 1.000000e+00 : f32
    %656 = vector.broadcast %cst_258 : f32 to vector<8x32xf32>
    %657 = arith.addf %656, %655 : vector<8x32xf32>
    %658 = arith.divf %656, %657 : vector<8x32xf32>
    %659 = vector.extract_strided_slice %658 {offsets = [0, 0], sizes = [8, 16], strides = [1, 1]} : vector<8x32xf32> to vector<8x16xf32>
    %660 = vector.extract_strided_slice %658 {offsets = [0, 16], sizes = [8, 16], strides = [1, 1]} : vector<8x32xf32> to vector<8x16xf32>
    %661 = vector.extract_strided_slice %647 {offsets = [0, 32], sizes = [8, 16], strides = [1, 1]} : vector<8x48xf32> to vector<8x16xf32>
    %662 = vector.extract_strided_slice %650 {offsets = [0, 32], sizes = [8, 16], strides = [1, 1]} : vector<8x48xf32> to vector<8x16xf32>
    %663 = arith.mulf %659, %662 : vector<8x16xf32>
    %664 = arith.addf %661, %663 : vector<8x16xf32>
    %665 = math.tanh %664 : vector<8x16xf32>
    %666 = arith.subf %640, %665 : vector<8x16xf32>
    %667 = arith.mulf %660, %666 : vector<8x16xf32>
    %668 = arith.addf %665, %667 : vector<8x16xf32>
    %669 = vector.extract_strided_slice %668 {offsets = [0, 0], sizes = [8, 8], strides = [1, 1]} : vector<8x16xf32> to vector<8x8xf32>
    %c40_259 = arith.constant 40 : index
    %c0_260 = arith.constant 0 : index
    %670 = vector.load %arg10[%c40_259, %c0_260] : memref<64x16xf32, #tpu.memory_space<vmem>>, vector<8x8xf32>
    tpu.vector_store %arg10[%c40_259, %c0_260], %669 {strides = array<i32>} : memref<64x16xf32, #tpu.memory_space<vmem>>, vector<8x8xf32>,
    %671 = vector.extract_strided_slice %668 {offsets = [0, 8], sizes = [8, 8], strides = [1, 1]} : vector<8x16xf32> to vector<8x8xf32>
    %c16_261 = arith.constant 16 : index
    %c8_262 = arith.constant 8 : index
    %672 = vector.load %arg10[%c16_261, %c8_262] : memref<64x16xf32, #tpu.memory_space<vmem>>, vector<8x8xf32>
    tpu.vector_store %arg10[%c16_261, %c8_262], %671 {strides = array<i32>} : memref<64x16xf32, #tpu.memory_space<vmem>>, vector<8x8xf32>,
    %c48_263 = arith.constant 48 : index
    %c0_264 = arith.constant 0 : index
    %673 = vector.load %arg11[%c48_263, %c0_264] : memref<64x48xf32, #tpu.memory_space<vmem>>, vector<8x48xf32>
    %c8_265 = arith.constant 8 : index
    %c0_266 = arith.constant 0 : index
    %674 = vector.load %arg11[%c8_265, %c0_266] : memref<64x48xf32, #tpu.memory_space<vmem>>, vector<8x48xf32>
    %675 = arith.select %14, %673, %674 : vector<8x48xi1>, vector<8x48xf32>
    %cst_267 = arith.constant dense<0.000000e+00> : vector<8x48xf32>
    %676 = tpu.matmul %668, %501, %cst_267 {dimension_numbers = #tpu.dot_dimension_numbers<[1], [0], [0], [1], [0, 0, 1, 1], [], []>} : vector<8x16xf32>, vector<16x48xf32>, vector<8x48xf32> -> vector<8x48xf32>
    %677 = vector.broadcast %503 : vector<1x48xf32> to vector<8x48xf32>
    %678 = arith.addf %676, %677 : vector<8x48xf32>
    %679 = vector.extract_strided_slice %675 {offsets = [0, 0], sizes = [8, 32], strides = [1, 1]} : vector<8x48xf32> to vector<8x32xf32>
    %680 = vector.extract_strided_slice %678 {offsets = [0, 0], sizes = [8, 32], strides = [1, 1]} : vector<8x48xf32> to vector<8x32xf32>
    %681 = arith.addf %679, %680 : vector<8x32xf32>
    %682 = arith.negf %681 : vector<8x32xf32>
    %683 = math.exp %682 : vector<8x32xf32>
    %cst_268 = arith.constant 1.000000e+00 : f32
    %684 = vector.broadcast %cst_268 : f32 to vector<8x32xf32>
    %685 = arith.addf %684, %683 : vector<8x32xf32>
    %686 = arith.divf %684, %685 : vector<8x32xf32>
    %687 = vector.extract_strided_slice %686 {offsets = [0, 0], sizes = [8, 16], strides = [1, 1]} : vector<8x32xf32> to vector<8x16xf32>
    %688 = vector.extract_strided_slice %686 {offsets = [0, 16], sizes = [8, 16], strides = [1, 1]} : vector<8x32xf32> to vector<8x16xf32>
    %689 = vector.extract_strided_slice %675 {offsets = [0, 32], sizes = [8, 16], strides = [1, 1]} : vector<8x48xf32> to vector<8x16xf32>
    %690 = vector.extract_strided_slice %678 {offsets = [0, 32], sizes = [8, 16], strides = [1, 1]} : vector<8x48xf32> to vector<8x16xf32>
    %691 = arith.mulf %687, %690 : vector<8x16xf32>
    %692 = arith.addf %689, %691 : vector<8x16xf32>
    %693 = math.tanh %692 : vector<8x16xf32>
    %694 = arith.subf %668, %693 : vector<8x16xf32>
    %695 = arith.mulf %688, %694 : vector<8x16xf32>
    %696 = arith.addf %693, %695 : vector<8x16xf32>
    %697 = vector.extract_strided_slice %696 {offsets = [0, 0], sizes = [8, 8], strides = [1, 1]} : vector<8x16xf32> to vector<8x8xf32>
    %c48_269 = arith.constant 48 : index
    %c0_270 = arith.constant 0 : index
    %698 = vector.load %arg10[%c48_269, %c0_270] : memref<64x16xf32, #tpu.memory_space<vmem>>, vector<8x8xf32>
    tpu.vector_store %arg10[%c48_269, %c0_270], %697 {strides = array<i32>} : memref<64x16xf32, #tpu.memory_space<vmem>>, vector<8x8xf32>,
    %699 = vector.extract_strided_slice %696 {offsets = [0, 8], sizes = [8, 8], strides = [1, 1]} : vector<8x16xf32> to vector<8x8xf32>
    %c8_271 = arith.constant 8 : index
    %c8_272 = arith.constant 8 : index
    %700 = vector.load %arg10[%c8_271, %c8_272] : memref<64x16xf32, #tpu.memory_space<vmem>>, vector<8x8xf32>
    tpu.vector_store %arg10[%c8_271, %c8_272], %699 {strides = array<i32>} : memref<64x16xf32, #tpu.memory_space<vmem>>, vector<8x8xf32>,
    %c56_273 = arith.constant 56 : index
    %c0_274 = arith.constant 0 : index
    %701 = vector.load %arg11[%c56_273, %c0_274] : memref<64x48xf32, #tpu.memory_space<vmem>>, vector<8x48xf32>
    %c0_275 = arith.constant 0 : index
    %c0_276 = arith.constant 0 : index
    %702 = vector.load %arg11[%c0_275, %c0_276] : memref<64x48xf32, #tpu.memory_space<vmem>>, vector<8x48xf32>
    %703 = arith.select %14, %701, %702 : vector<8x48xi1>, vector<8x48xf32>
    %cst_277 = arith.constant dense<0.000000e+00> : vector<8x48xf32>
    %704 = tpu.matmul %696, %501, %cst_277 {dimension_numbers = #tpu.dot_dimension_numbers<[1], [0], [0], [1], [0, 0, 1, 1], [], []>} : vector<8x16xf32>, vector<16x48xf32>, vector<8x48xf32> -> vector<8x48xf32>
    %705 = vector.broadcast %503 : vector<1x48xf32> to vector<8x48xf32>
    %706 = arith.addf %704, %705 : vector<8x48xf32>
    %707 = vector.extract_strided_slice %703 {offsets = [0, 0], sizes = [8, 32], strides = [1, 1]} : vector<8x48xf32> to vector<8x32xf32>
    %708 = vector.extract_strided_slice %706 {offsets = [0, 0], sizes = [8, 32], strides = [1, 1]} : vector<8x48xf32> to vector<8x32xf32>
    %709 = arith.addf %707, %708 : vector<8x32xf32>
    %710 = arith.negf %709 : vector<8x32xf32>
    %711 = math.exp %710 : vector<8x32xf32>
    %cst_278 = arith.constant 1.000000e+00 : f32
    %712 = vector.broadcast %cst_278 : f32 to vector<8x32xf32>
    %713 = arith.addf %712, %711 : vector<8x32xf32>
    %714 = arith.divf %712, %713 : vector<8x32xf32>
    %715 = vector.extract_strided_slice %714 {offsets = [0, 0], sizes = [8, 16], strides = [1, 1]} : vector<8x32xf32> to vector<8x16xf32>
    %716 = vector.extract_strided_slice %714 {offsets = [0, 16], sizes = [8, 16], strides = [1, 1]} : vector<8x32xf32> to vector<8x16xf32>
    %717 = vector.extract_strided_slice %703 {offsets = [0, 32], sizes = [8, 16], strides = [1, 1]} : vector<8x48xf32> to vector<8x16xf32>
    %718 = vector.extract_strided_slice %706 {offsets = [0, 32], sizes = [8, 16], strides = [1, 1]} : vector<8x48xf32> to vector<8x16xf32>
    %719 = arith.mulf %715, %718 : vector<8x16xf32>
    %720 = arith.addf %717, %719 : vector<8x16xf32>
    %721 = math.tanh %720 : vector<8x16xf32>
    %722 = arith.subf %696, %721 : vector<8x16xf32>
    %723 = arith.mulf %716, %722 : vector<8x16xf32>
    %724 = arith.addf %721, %723 : vector<8x16xf32>
    %725 = vector.extract_strided_slice %724 {offsets = [0, 0], sizes = [8, 8], strides = [1, 1]} : vector<8x16xf32> to vector<8x8xf32>
    %c56_279 = arith.constant 56 : index
    %c0_280 = arith.constant 0 : index
    %726 = vector.load %arg10[%c56_279, %c0_280] : memref<64x16xf32, #tpu.memory_space<vmem>>, vector<8x8xf32>
    tpu.vector_store %arg10[%c56_279, %c0_280], %725 {strides = array<i32>} : memref<64x16xf32, #tpu.memory_space<vmem>>, vector<8x8xf32>,
    %727 = vector.extract_strided_slice %724 {offsets = [0, 8], sizes = [8, 8], strides = [1, 1]} : vector<8x16xf32> to vector<8x8xf32>
    %c0_281 = arith.constant 0 : index
    %c8_282 = arith.constant 8 : index
    %728 = vector.load %arg10[%c0_281, %c8_282] : memref<64x16xf32, #tpu.memory_space<vmem>>, vector<8x8xf32>
    tpu.vector_store %arg10[%c0_281, %c8_282], %727 {strides = array<i32>} : memref<64x16xf32, #tpu.memory_space<vmem>>, vector<8x8xf32>,
    %c0_283 = arith.constant 0 : index
    %c0_284 = arith.constant 0 : index
    %729 = vector.load %arg10[%c0_283, %c0_284] : memref<64x16xf32, #tpu.memory_space<vmem>>, vector<64x16xf32>
    %c3 = arith.constant 3 : index
    %c0_285 = arith.constant 0 : index
    %c0_286 = arith.constant 0 : index
    %730 = vector.load %arg1[%c3, %c0_285, %c0_286] : memref<4x16x48xf32, #tpu.memory_space<vmem>>, vector<1x16x48xf32>
    %731 = vector.shape_cast %730 : vector<1x16x48xf32> to vector<16x48xf32>
    %cst_287 = arith.constant dense<0.000000e+00> : vector<64x48xf32>
    %732 = tpu.matmul %729, %731, %cst_287 {dimension_numbers = #tpu.dot_dimension_numbers<[1], [0], [0], [1], [0, 0, 1, 1], [], []>} : vector<64x16xf32>, vector<16x48xf32>, vector<64x48xf32> -> vector<64x48xf32>
    %c3_288 = arith.constant 3 : index
    %c0_289 = arith.constant 0 : index
    %c0_290 = arith.constant 0 : index
    %733 = vector.load %arg2[%c3_288, %c0_289, %c0_290] : memref<4x1x48xf32, #tpu.memory_space<vmem>>, vector<1x1x48xf32>
    %734 = vector.shape_cast %733 : vector<1x1x48xf32> to vector<1x48xf32>
    %735 = vector.broadcast %734 : vector<1x48xf32> to vector<64x48xf32>
    %736 = arith.addf %732, %735 : vector<64x48xf32>
    %c0_291 = arith.constant 0 : index
    %c0_292 = arith.constant 0 : index
    %737 = vector.load %arg11[%c0_291, %c0_292] : memref<64x48xf32, #tpu.memory_space<vmem>>, vector<64x48xf32>
    tpu.vector_store %arg11[%c0_291, %c0_292], %736 {strides = array<i32>} : memref<64x48xf32, #tpu.memory_space<vmem>>, vector<64x48xf32>,
    %c3_293 = arith.constant 3 : index
    %c0_294 = arith.constant 0 : index
    %c0_295 = arith.constant 0 : index
    %738 = vector.load %arg3[%c3_293, %c0_294, %c0_295] : memref<4x16x48xf32, #tpu.memory_space<vmem>>, vector<1x16x48xf32>
    %739 = vector.shape_cast %738 : vector<1x16x48xf32> to vector<16x48xf32>
    %c3_296 = arith.constant 3 : index
    %c0_297 = arith.constant 0 : index
    %c0_298 = arith.constant 0 : index
    %740 = vector.load %arg4[%c3_296, %c0_297, %c0_298] : memref<4x1x48xf32, #tpu.memory_space<vmem>>, vector<1x1x48xf32>
    %741 = vector.shape_cast %740 : vector<1x1x48xf32> to vector<1x48xf32>
    %cst_299 = arith.constant 0.000000e+00 : f32
    %742 = vector.broadcast %cst_299 : f32 to vector<8x16xf32>
    %c0_300 = arith.constant 0 : index
    %c0_301 = arith.constant 0 : index
    %743 = vector.load %arg11[%c0_300, %c0_301] : memref<64x48xf32, #tpu.memory_space<vmem>>, vector<8x48xf32>
    %c56_302 = arith.constant 56 : index
    %c0_303 = arith.constant 0 : index
    %744 = vector.load %arg11[%c56_302, %c0_303] : memref<64x48xf32, #tpu.memory_space<vmem>>, vector<8x48xf32>
    %745 = arith.select %14, %743, %744 : vector<8x48xi1>, vector<8x48xf32>
    %cst_304 = arith.constant dense<0.000000e+00> : vector<8x48xf32>
    %746 = tpu.matmul %742, %739, %cst_304 {dimension_numbers = #tpu.dot_dimension_numbers<[1], [0], [0], [1], [0, 0, 1, 1], [], []>} : vector<8x16xf32>, vector<16x48xf32>, vector<8x48xf32> -> vector<8x48xf32>
    %747 = vector.broadcast %741 : vector<1x48xf32> to vector<8x48xf32>
    %748 = arith.addf %746, %747 : vector<8x48xf32>
    %749 = vector.extract_strided_slice %745 {offsets = [0, 0], sizes = [8, 32], strides = [1, 1]} : vector<8x48xf32> to vector<8x32xf32>
    %750 = vector.extract_strided_slice %748 {offsets = [0, 0], sizes = [8, 32], strides = [1, 1]} : vector<8x48xf32> to vector<8x32xf32>
    %751 = arith.addf %749, %750 : vector<8x32xf32>
    %752 = arith.negf %751 : vector<8x32xf32>
    %753 = math.exp %752 : vector<8x32xf32>
    %cst_305 = arith.constant 1.000000e+00 : f32
    %754 = vector.broadcast %cst_305 : f32 to vector<8x32xf32>
    %755 = arith.addf %754, %753 : vector<8x32xf32>
    %756 = arith.divf %754, %755 : vector<8x32xf32>
    %757 = vector.extract_strided_slice %756 {offsets = [0, 0], sizes = [8, 16], strides = [1, 1]} : vector<8x32xf32> to vector<8x16xf32>
    %758 = vector.extract_strided_slice %756 {offsets = [0, 16], sizes = [8, 16], strides = [1, 1]} : vector<8x32xf32> to vector<8x16xf32>
    %759 = vector.extract_strided_slice %745 {offsets = [0, 32], sizes = [8, 16], strides = [1, 1]} : vector<8x48xf32> to vector<8x16xf32>
    %760 = vector.extract_strided_slice %748 {offsets = [0, 32], sizes = [8, 16], strides = [1, 1]} : vector<8x48xf32> to vector<8x16xf32>
    %761 = arith.mulf %757, %760 : vector<8x16xf32>
    %762 = arith.addf %759, %761 : vector<8x16xf32>
    %763 = math.tanh %762 : vector<8x16xf32>
    %764 = arith.subf %742, %763 : vector<8x16xf32>
    %765 = arith.mulf %758, %764 : vector<8x16xf32>
    %766 = arith.addf %763, %765 : vector<8x16xf32>
    %767 = vector.extract_strided_slice %766 {offsets = [0, 0], sizes = [8, 8], strides = [1, 1]} : vector<8x16xf32> to vector<8x8xf32>
    %c0_306 = arith.constant 0 : index
    %c0_307 = arith.constant 0 : index
    %768 = vector.load %arg10[%c0_306, %c0_307] : memref<64x16xf32, #tpu.memory_space<vmem>>, vector<8x8xf32>
    tpu.vector_store %arg10[%c0_306, %c0_307], %767 {strides = array<i32>} : memref<64x16xf32, #tpu.memory_space<vmem>>, vector<8x8xf32>,
    %769 = vector.extract_strided_slice %766 {offsets = [0, 8], sizes = [8, 8], strides = [1, 1]} : vector<8x16xf32> to vector<8x8xf32>
    %c56_308 = arith.constant 56 : index
    %c8_309 = arith.constant 8 : index
    %770 = vector.load %arg10[%c56_308, %c8_309] : memref<64x16xf32, #tpu.memory_space<vmem>>, vector<8x8xf32>
    tpu.vector_store %arg10[%c56_308, %c8_309], %769 {strides = array<i32>} : memref<64x16xf32, #tpu.memory_space<vmem>>, vector<8x8xf32>,
    %c8_310 = arith.constant 8 : index
    %c0_311 = arith.constant 0 : index
    %771 = vector.load %arg11[%c8_310, %c0_311] : memref<64x48xf32, #tpu.memory_space<vmem>>, vector<8x48xf32>
    %c48_312 = arith.constant 48 : index
    %c0_313 = arith.constant 0 : index
    %772 = vector.load %arg11[%c48_312, %c0_313] : memref<64x48xf32, #tpu.memory_space<vmem>>, vector<8x48xf32>
    %773 = arith.select %14, %771, %772 : vector<8x48xi1>, vector<8x48xf32>
    %cst_314 = arith.constant dense<0.000000e+00> : vector<8x48xf32>
    %774 = tpu.matmul %766, %739, %cst_314 {dimension_numbers = #tpu.dot_dimension_numbers<[1], [0], [0], [1], [0, 0, 1, 1], [], []>} : vector<8x16xf32>, vector<16x48xf32>, vector<8x48xf32> -> vector<8x48xf32>
    %775 = vector.broadcast %741 : vector<1x48xf32> to vector<8x48xf32>
    %776 = arith.addf %774, %775 : vector<8x48xf32>
    %777 = vector.extract_strided_slice %773 {offsets = [0, 0], sizes = [8, 32], strides = [1, 1]} : vector<8x48xf32> to vector<8x32xf32>
    %778 = vector.extract_strided_slice %776 {offsets = [0, 0], sizes = [8, 32], strides = [1, 1]} : vector<8x48xf32> to vector<8x32xf32>
    %779 = arith.addf %777, %778 : vector<8x32xf32>
    %780 = arith.negf %779 : vector<8x32xf32>
    %781 = math.exp %780 : vector<8x32xf32>
    %cst_315 = arith.constant 1.000000e+00 : f32
    %782 = vector.broadcast %cst_315 : f32 to vector<8x32xf32>
    %783 = arith.addf %782, %781 : vector<8x32xf32>
    %784 = arith.divf %782, %783 : vector<8x32xf32>
    %785 = vector.extract_strided_slice %784 {offsets = [0, 0], sizes = [8, 16], strides = [1, 1]} : vector<8x32xf32> to vector<8x16xf32>
    %786 = vector.extract_strided_slice %784 {offsets = [0, 16], sizes = [8, 16], strides = [1, 1]} : vector<8x32xf32> to vector<8x16xf32>
    %787 = vector.extract_strided_slice %773 {offsets = [0, 32], sizes = [8, 16], strides = [1, 1]} : vector<8x48xf32> to vector<8x16xf32>
    %788 = vector.extract_strided_slice %776 {offsets = [0, 32], sizes = [8, 16], strides = [1, 1]} : vector<8x48xf32> to vector<8x16xf32>
    %789 = arith.mulf %785, %788 : vector<8x16xf32>
    %790 = arith.addf %787, %789 : vector<8x16xf32>
    %791 = math.tanh %790 : vector<8x16xf32>
    %792 = arith.subf %766, %791 : vector<8x16xf32>
    %793 = arith.mulf %786, %792 : vector<8x16xf32>
    %794 = arith.addf %791, %793 : vector<8x16xf32>
    %795 = vector.extract_strided_slice %794 {offsets = [0, 0], sizes = [8, 8], strides = [1, 1]} : vector<8x16xf32> to vector<8x8xf32>
    %c8_316 = arith.constant 8 : index
    %c0_317 = arith.constant 0 : index
    %796 = vector.load %arg10[%c8_316, %c0_317] : memref<64x16xf32, #tpu.memory_space<vmem>>, vector<8x8xf32>
    tpu.vector_store %arg10[%c8_316, %c0_317], %795 {strides = array<i32>} : memref<64x16xf32, #tpu.memory_space<vmem>>, vector<8x8xf32>,
    %797 = vector.extract_strided_slice %794 {offsets = [0, 8], sizes = [8, 8], strides = [1, 1]} : vector<8x16xf32> to vector<8x8xf32>
    %c48_318 = arith.constant 48 : index
    %c8_319 = arith.constant 8 : index
    %798 = vector.load %arg10[%c48_318, %c8_319] : memref<64x16xf32, #tpu.memory_space<vmem>>, vector<8x8xf32>
    tpu.vector_store %arg10[%c48_318, %c8_319], %797 {strides = array<i32>} : memref<64x16xf32, #tpu.memory_space<vmem>>, vector<8x8xf32>,
    %c16_320 = arith.constant 16 : index
    %c0_321 = arith.constant 0 : index
    %799 = vector.load %arg11[%c16_320, %c0_321] : memref<64x48xf32, #tpu.memory_space<vmem>>, vector<8x48xf32>
    %c40_322 = arith.constant 40 : index
    %c0_323 = arith.constant 0 : index
    %800 = vector.load %arg11[%c40_322, %c0_323] : memref<64x48xf32, #tpu.memory_space<vmem>>, vector<8x48xf32>
    %801 = arith.select %14, %799, %800 : vector<8x48xi1>, vector<8x48xf32>
    %cst_324 = arith.constant dense<0.000000e+00> : vector<8x48xf32>
    %802 = tpu.matmul %794, %739, %cst_324 {dimension_numbers = #tpu.dot_dimension_numbers<[1], [0], [0], [1], [0, 0, 1, 1], [], []>} : vector<8x16xf32>, vector<16x48xf32>, vector<8x48xf32> -> vector<8x48xf32>
    %803 = vector.broadcast %741 : vector<1x48xf32> to vector<8x48xf32>
    %804 = arith.addf %802, %803 : vector<8x48xf32>
    %805 = vector.extract_strided_slice %801 {offsets = [0, 0], sizes = [8, 32], strides = [1, 1]} : vector<8x48xf32> to vector<8x32xf32>
    %806 = vector.extract_strided_slice %804 {offsets = [0, 0], sizes = [8, 32], strides = [1, 1]} : vector<8x48xf32> to vector<8x32xf32>
    %807 = arith.addf %805, %806 : vector<8x32xf32>
    %808 = arith.negf %807 : vector<8x32xf32>
    %809 = math.exp %808 : vector<8x32xf32>
    %cst_325 = arith.constant 1.000000e+00 : f32
    %810 = vector.broadcast %cst_325 : f32 to vector<8x32xf32>
    %811 = arith.addf %810, %809 : vector<8x32xf32>
    %812 = arith.divf %810, %811 : vector<8x32xf32>
    %813 = vector.extract_strided_slice %812 {offsets = [0, 0], sizes = [8, 16], strides = [1, 1]} : vector<8x32xf32> to vector<8x16xf32>
    %814 = vector.extract_strided_slice %812 {offsets = [0, 16], sizes = [8, 16], strides = [1, 1]} : vector<8x32xf32> to vector<8x16xf32>
    %815 = vector.extract_strided_slice %801 {offsets = [0, 32], sizes = [8, 16], strides = [1, 1]} : vector<8x48xf32> to vector<8x16xf32>
    %816 = vector.extract_strided_slice %804 {offsets = [0, 32], sizes = [8, 16], strides = [1, 1]} : vector<8x48xf32> to vector<8x16xf32>
    %817 = arith.mulf %813, %816 : vector<8x16xf32>
    %818 = arith.addf %815, %817 : vector<8x16xf32>
    %819 = math.tanh %818 : vector<8x16xf32>
    %820 = arith.subf %794, %819 : vector<8x16xf32>
    %821 = arith.mulf %814, %820 : vector<8x16xf32>
    %822 = arith.addf %819, %821 : vector<8x16xf32>
    %823 = vector.extract_strided_slice %822 {offsets = [0, 0], sizes = [8, 8], strides = [1, 1]} : vector<8x16xf32> to vector<8x8xf32>
    %c16_326 = arith.constant 16 : index
    %c0_327 = arith.constant 0 : index
    %824 = vector.load %arg10[%c16_326, %c0_327] : memref<64x16xf32, #tpu.memory_space<vmem>>, vector<8x8xf32>
    tpu.vector_store %arg10[%c16_326, %c0_327], %823 {strides = array<i32>} : memref<64x16xf32, #tpu.memory_space<vmem>>, vector<8x8xf32>,
    %825 = vector.extract_strided_slice %822 {offsets = [0, 8], sizes = [8, 8], strides = [1, 1]} : vector<8x16xf32> to vector<8x8xf32>
    %c40_328 = arith.constant 40 : index
    %c8_329 = arith.constant 8 : index
    %826 = vector.load %arg10[%c40_328, %c8_329] : memref<64x16xf32, #tpu.memory_space<vmem>>, vector<8x8xf32>
    tpu.vector_store %arg10[%c40_328, %c8_329], %825 {strides = array<i32>} : memref<64x16xf32, #tpu.memory_space<vmem>>, vector<8x8xf32>,
    %c24_330 = arith.constant 24 : index
    %c0_331 = arith.constant 0 : index
    %827 = vector.load %arg11[%c24_330, %c0_331] : memref<64x48xf32, #tpu.memory_space<vmem>>, vector<8x48xf32>
    %c32_332 = arith.constant 32 : index
    %c0_333 = arith.constant 0 : index
    %828 = vector.load %arg11[%c32_332, %c0_333] : memref<64x48xf32, #tpu.memory_space<vmem>>, vector<8x48xf32>
    %829 = arith.select %14, %827, %828 : vector<8x48xi1>, vector<8x48xf32>
    %cst_334 = arith.constant dense<0.000000e+00> : vector<8x48xf32>
    %830 = tpu.matmul %822, %739, %cst_334 {dimension_numbers = #tpu.dot_dimension_numbers<[1], [0], [0], [1], [0, 0, 1, 1], [], []>} : vector<8x16xf32>, vector<16x48xf32>, vector<8x48xf32> -> vector<8x48xf32>
    %831 = vector.broadcast %741 : vector<1x48xf32> to vector<8x48xf32>
    %832 = arith.addf %830, %831 : vector<8x48xf32>
    %833 = vector.extract_strided_slice %829 {offsets = [0, 0], sizes = [8, 32], strides = [1, 1]} : vector<8x48xf32> to vector<8x32xf32>
    %834 = vector.extract_strided_slice %832 {offsets = [0, 0], sizes = [8, 32], strides = [1, 1]} : vector<8x48xf32> to vector<8x32xf32>
    %835 = arith.addf %833, %834 : vector<8x32xf32>
    %836 = arith.negf %835 : vector<8x32xf32>
    %837 = math.exp %836 : vector<8x32xf32>
    %cst_335 = arith.constant 1.000000e+00 : f32
    %838 = vector.broadcast %cst_335 : f32 to vector<8x32xf32>
    %839 = arith.addf %838, %837 : vector<8x32xf32>
    %840 = arith.divf %838, %839 : vector<8x32xf32>
    %841 = vector.extract_strided_slice %840 {offsets = [0, 0], sizes = [8, 16], strides = [1, 1]} : vector<8x32xf32> to vector<8x16xf32>
    %842 = vector.extract_strided_slice %840 {offsets = [0, 16], sizes = [8, 16], strides = [1, 1]} : vector<8x32xf32> to vector<8x16xf32>
    %843 = vector.extract_strided_slice %829 {offsets = [0, 32], sizes = [8, 16], strides = [1, 1]} : vector<8x48xf32> to vector<8x16xf32>
    %844 = vector.extract_strided_slice %832 {offsets = [0, 32], sizes = [8, 16], strides = [1, 1]} : vector<8x48xf32> to vector<8x16xf32>
    %845 = arith.mulf %841, %844 : vector<8x16xf32>
    %846 = arith.addf %843, %845 : vector<8x16xf32>
    %847 = math.tanh %846 : vector<8x16xf32>
    %848 = arith.subf %822, %847 : vector<8x16xf32>
    %849 = arith.mulf %842, %848 : vector<8x16xf32>
    %850 = arith.addf %847, %849 : vector<8x16xf32>
    %851 = vector.extract_strided_slice %850 {offsets = [0, 0], sizes = [8, 8], strides = [1, 1]} : vector<8x16xf32> to vector<8x8xf32>
    %c24_336 = arith.constant 24 : index
    %c0_337 = arith.constant 0 : index
    %852 = vector.load %arg10[%c24_336, %c0_337] : memref<64x16xf32, #tpu.memory_space<vmem>>, vector<8x8xf32>
    tpu.vector_store %arg10[%c24_336, %c0_337], %851 {strides = array<i32>} : memref<64x16xf32, #tpu.memory_space<vmem>>, vector<8x8xf32>,
    %853 = vector.extract_strided_slice %850 {offsets = [0, 8], sizes = [8, 8], strides = [1, 1]} : vector<8x16xf32> to vector<8x8xf32>
    %c32_338 = arith.constant 32 : index
    %c8_339 = arith.constant 8 : index
    %854 = vector.load %arg10[%c32_338, %c8_339] : memref<64x16xf32, #tpu.memory_space<vmem>>, vector<8x8xf32>
    tpu.vector_store %arg10[%c32_338, %c8_339], %853 {strides = array<i32>} : memref<64x16xf32, #tpu.memory_space<vmem>>, vector<8x8xf32>,
    %c32_340 = arith.constant 32 : index
    %c0_341 = arith.constant 0 : index
    %855 = vector.load %arg11[%c32_340, %c0_341] : memref<64x48xf32, #tpu.memory_space<vmem>>, vector<8x48xf32>
    %c24_342 = arith.constant 24 : index
    %c0_343 = arith.constant 0 : index
    %856 = vector.load %arg11[%c24_342, %c0_343] : memref<64x48xf32, #tpu.memory_space<vmem>>, vector<8x48xf32>
    %857 = arith.select %14, %855, %856 : vector<8x48xi1>, vector<8x48xf32>
    %cst_344 = arith.constant dense<0.000000e+00> : vector<8x48xf32>
    %858 = tpu.matmul %850, %739, %cst_344 {dimension_numbers = #tpu.dot_dimension_numbers<[1], [0], [0], [1], [0, 0, 1, 1], [], []>} : vector<8x16xf32>, vector<16x48xf32>, vector<8x48xf32> -> vector<8x48xf32>
    %859 = vector.broadcast %741 : vector<1x48xf32> to vector<8x48xf32>
    %860 = arith.addf %858, %859 : vector<8x48xf32>
    %861 = vector.extract_strided_slice %857 {offsets = [0, 0], sizes = [8, 32], strides = [1, 1]} : vector<8x48xf32> to vector<8x32xf32>
    %862 = vector.extract_strided_slice %860 {offsets = [0, 0], sizes = [8, 32], strides = [1, 1]} : vector<8x48xf32> to vector<8x32xf32>
    %863 = arith.addf %861, %862 : vector<8x32xf32>
    %864 = arith.negf %863 : vector<8x32xf32>
    %865 = math.exp %864 : vector<8x32xf32>
    %cst_345 = arith.constant 1.000000e+00 : f32
    %866 = vector.broadcast %cst_345 : f32 to vector<8x32xf32>
    %867 = arith.addf %866, %865 : vector<8x32xf32>
    %868 = arith.divf %866, %867 : vector<8x32xf32>
    %869 = vector.extract_strided_slice %868 {offsets = [0, 0], sizes = [8, 16], strides = [1, 1]} : vector<8x32xf32> to vector<8x16xf32>
    %870 = vector.extract_strided_slice %868 {offsets = [0, 16], sizes = [8, 16], strides = [1, 1]} : vector<8x32xf32> to vector<8x16xf32>
    %871 = vector.extract_strided_slice %857 {offsets = [0, 32], sizes = [8, 16], strides = [1, 1]} : vector<8x48xf32> to vector<8x16xf32>
    %872 = vector.extract_strided_slice %860 {offsets = [0, 32], sizes = [8, 16], strides = [1, 1]} : vector<8x48xf32> to vector<8x16xf32>
    %873 = arith.mulf %869, %872 : vector<8x16xf32>
    %874 = arith.addf %871, %873 : vector<8x16xf32>
    %875 = math.tanh %874 : vector<8x16xf32>
    %876 = arith.subf %850, %875 : vector<8x16xf32>
    %877 = arith.mulf %870, %876 : vector<8x16xf32>
    %878 = arith.addf %875, %877 : vector<8x16xf32>
    %879 = vector.extract_strided_slice %878 {offsets = [0, 0], sizes = [8, 8], strides = [1, 1]} : vector<8x16xf32> to vector<8x8xf32>
    %c32_346 = arith.constant 32 : index
    %c0_347 = arith.constant 0 : index
    %880 = vector.load %arg10[%c32_346, %c0_347] : memref<64x16xf32, #tpu.memory_space<vmem>>, vector<8x8xf32>
    tpu.vector_store %arg10[%c32_346, %c0_347], %879 {strides = array<i32>} : memref<64x16xf32, #tpu.memory_space<vmem>>, vector<8x8xf32>,
    %881 = vector.extract_strided_slice %878 {offsets = [0, 8], sizes = [8, 8], strides = [1, 1]} : vector<8x16xf32> to vector<8x8xf32>
    %c24_348 = arith.constant 24 : index
    %c8_349 = arith.constant 8 : index
    %882 = vector.load %arg10[%c24_348, %c8_349] : memref<64x16xf32, #tpu.memory_space<vmem>>, vector<8x8xf32>
    tpu.vector_store %arg10[%c24_348, %c8_349], %881 {strides = array<i32>} : memref<64x16xf32, #tpu.memory_space<vmem>>, vector<8x8xf32>,
    %c40_350 = arith.constant 40 : index
    %c0_351 = arith.constant 0 : index
    %883 = vector.load %arg11[%c40_350, %c0_351] : memref<64x48xf32, #tpu.memory_space<vmem>>, vector<8x48xf32>
    %c16_352 = arith.constant 16 : index
    %c0_353 = arith.constant 0 : index
    %884 = vector.load %arg11[%c16_352, %c0_353] : memref<64x48xf32, #tpu.memory_space<vmem>>, vector<8x48xf32>
    %885 = arith.select %14, %883, %884 : vector<8x48xi1>, vector<8x48xf32>
    %cst_354 = arith.constant dense<0.000000e+00> : vector<8x48xf32>
    %886 = tpu.matmul %878, %739, %cst_354 {dimension_numbers = #tpu.dot_dimension_numbers<[1], [0], [0], [1], [0, 0, 1, 1], [], []>} : vector<8x16xf32>, vector<16x48xf32>, vector<8x48xf32> -> vector<8x48xf32>
    %887 = vector.broadcast %741 : vector<1x48xf32> to vector<8x48xf32>
    %888 = arith.addf %886, %887 : vector<8x48xf32>
    %889 = vector.extract_strided_slice %885 {offsets = [0, 0], sizes = [8, 32], strides = [1, 1]} : vector<8x48xf32> to vector<8x32xf32>
    %890 = vector.extract_strided_slice %888 {offsets = [0, 0], sizes = [8, 32], strides = [1, 1]} : vector<8x48xf32> to vector<8x32xf32>
    %891 = arith.addf %889, %890 : vector<8x32xf32>
    %892 = arith.negf %891 : vector<8x32xf32>
    %893 = math.exp %892 : vector<8x32xf32>
    %cst_355 = arith.constant 1.000000e+00 : f32
    %894 = vector.broadcast %cst_355 : f32 to vector<8x32xf32>
    %895 = arith.addf %894, %893 : vector<8x32xf32>
    %896 = arith.divf %894, %895 : vector<8x32xf32>
    %897 = vector.extract_strided_slice %896 {offsets = [0, 0], sizes = [8, 16], strides = [1, 1]} : vector<8x32xf32> to vector<8x16xf32>
    %898 = vector.extract_strided_slice %896 {offsets = [0, 16], sizes = [8, 16], strides = [1, 1]} : vector<8x32xf32> to vector<8x16xf32>
    %899 = vector.extract_strided_slice %885 {offsets = [0, 32], sizes = [8, 16], strides = [1, 1]} : vector<8x48xf32> to vector<8x16xf32>
    %900 = vector.extract_strided_slice %888 {offsets = [0, 32], sizes = [8, 16], strides = [1, 1]} : vector<8x48xf32> to vector<8x16xf32>
    %901 = arith.mulf %897, %900 : vector<8x16xf32>
    %902 = arith.addf %899, %901 : vector<8x16xf32>
    %903 = math.tanh %902 : vector<8x16xf32>
    %904 = arith.subf %878, %903 : vector<8x16xf32>
    %905 = arith.mulf %898, %904 : vector<8x16xf32>
    %906 = arith.addf %903, %905 : vector<8x16xf32>
    %907 = vector.extract_strided_slice %906 {offsets = [0, 0], sizes = [8, 8], strides = [1, 1]} : vector<8x16xf32> to vector<8x8xf32>
    %c40_356 = arith.constant 40 : index
    %c0_357 = arith.constant 0 : index
    %908 = vector.load %arg10[%c40_356, %c0_357] : memref<64x16xf32, #tpu.memory_space<vmem>>, vector<8x8xf32>
    tpu.vector_store %arg10[%c40_356, %c0_357], %907 {strides = array<i32>} : memref<64x16xf32, #tpu.memory_space<vmem>>, vector<8x8xf32>,
    %909 = vector.extract_strided_slice %906 {offsets = [0, 8], sizes = [8, 8], strides = [1, 1]} : vector<8x16xf32> to vector<8x8xf32>
    %c16_358 = arith.constant 16 : index
    %c8_359 = arith.constant 8 : index
    %910 = vector.load %arg10[%c16_358, %c8_359] : memref<64x16xf32, #tpu.memory_space<vmem>>, vector<8x8xf32>
    tpu.vector_store %arg10[%c16_358, %c8_359], %909 {strides = array<i32>} : memref<64x16xf32, #tpu.memory_space<vmem>>, vector<8x8xf32>,
    %c48_360 = arith.constant 48 : index
    %c0_361 = arith.constant 0 : index
    %911 = vector.load %arg11[%c48_360, %c0_361] : memref<64x48xf32, #tpu.memory_space<vmem>>, vector<8x48xf32>
    %c8_362 = arith.constant 8 : index
    %c0_363 = arith.constant 0 : index
    %912 = vector.load %arg11[%c8_362, %c0_363] : memref<64x48xf32, #tpu.memory_space<vmem>>, vector<8x48xf32>
    %913 = arith.select %14, %911, %912 : vector<8x48xi1>, vector<8x48xf32>
    %cst_364 = arith.constant dense<0.000000e+00> : vector<8x48xf32>
    %914 = tpu.matmul %906, %739, %cst_364 {dimension_numbers = #tpu.dot_dimension_numbers<[1], [0], [0], [1], [0, 0, 1, 1], [], []>} : vector<8x16xf32>, vector<16x48xf32>, vector<8x48xf32> -> vector<8x48xf32>
    %915 = vector.broadcast %741 : vector<1x48xf32> to vector<8x48xf32>
    %916 = arith.addf %914, %915 : vector<8x48xf32>
    %917 = vector.extract_strided_slice %913 {offsets = [0, 0], sizes = [8, 32], strides = [1, 1]} : vector<8x48xf32> to vector<8x32xf32>
    %918 = vector.extract_strided_slice %916 {offsets = [0, 0], sizes = [8, 32], strides = [1, 1]} : vector<8x48xf32> to vector<8x32xf32>
    %919 = arith.addf %917, %918 : vector<8x32xf32>
    %920 = arith.negf %919 : vector<8x32xf32>
    %921 = math.exp %920 : vector<8x32xf32>
    %cst_365 = arith.constant 1.000000e+00 : f32
    %922 = vector.broadcast %cst_365 : f32 to vector<8x32xf32>
    %923 = arith.addf %922, %921 : vector<8x32xf32>
    %924 = arith.divf %922, %923 : vector<8x32xf32>
    %925 = vector.extract_strided_slice %924 {offsets = [0, 0], sizes = [8, 16], strides = [1, 1]} : vector<8x32xf32> to vector<8x16xf32>
    %926 = vector.extract_strided_slice %924 {offsets = [0, 16], sizes = [8, 16], strides = [1, 1]} : vector<8x32xf32> to vector<8x16xf32>
    %927 = vector.extract_strided_slice %913 {offsets = [0, 32], sizes = [8, 16], strides = [1, 1]} : vector<8x48xf32> to vector<8x16xf32>
    %928 = vector.extract_strided_slice %916 {offsets = [0, 32], sizes = [8, 16], strides = [1, 1]} : vector<8x48xf32> to vector<8x16xf32>
    %929 = arith.mulf %925, %928 : vector<8x16xf32>
    %930 = arith.addf %927, %929 : vector<8x16xf32>
    %931 = math.tanh %930 : vector<8x16xf32>
    %932 = arith.subf %906, %931 : vector<8x16xf32>
    %933 = arith.mulf %926, %932 : vector<8x16xf32>
    %934 = arith.addf %931, %933 : vector<8x16xf32>
    %935 = vector.extract_strided_slice %934 {offsets = [0, 0], sizes = [8, 8], strides = [1, 1]} : vector<8x16xf32> to vector<8x8xf32>
    %c48_366 = arith.constant 48 : index
    %c0_367 = arith.constant 0 : index
    %936 = vector.load %arg10[%c48_366, %c0_367] : memref<64x16xf32, #tpu.memory_space<vmem>>, vector<8x8xf32>
    tpu.vector_store %arg10[%c48_366, %c0_367], %935 {strides = array<i32>} : memref<64x16xf32, #tpu.memory_space<vmem>>, vector<8x8xf32>,
    %937 = vector.extract_strided_slice %934 {offsets = [0, 8], sizes = [8, 8], strides = [1, 1]} : vector<8x16xf32> to vector<8x8xf32>
    %c8_368 = arith.constant 8 : index
    %c8_369 = arith.constant 8 : index
    %938 = vector.load %arg10[%c8_368, %c8_369] : memref<64x16xf32, #tpu.memory_space<vmem>>, vector<8x8xf32>
    tpu.vector_store %arg10[%c8_368, %c8_369], %937 {strides = array<i32>} : memref<64x16xf32, #tpu.memory_space<vmem>>, vector<8x8xf32>,
    %c56_370 = arith.constant 56 : index
    %c0_371 = arith.constant 0 : index
    %939 = vector.load %arg11[%c56_370, %c0_371] : memref<64x48xf32, #tpu.memory_space<vmem>>, vector<8x48xf32>
    %c0_372 = arith.constant 0 : index
    %c0_373 = arith.constant 0 : index
    %940 = vector.load %arg11[%c0_372, %c0_373] : memref<64x48xf32, #tpu.memory_space<vmem>>, vector<8x48xf32>
    %941 = arith.select %14, %939, %940 : vector<8x48xi1>, vector<8x48xf32>
    %cst_374 = arith.constant dense<0.000000e+00> : vector<8x48xf32>
    %942 = tpu.matmul %934, %739, %cst_374 {dimension_numbers = #tpu.dot_dimension_numbers<[1], [0], [0], [1], [0, 0, 1, 1], [], []>} : vector<8x16xf32>, vector<16x48xf32>, vector<8x48xf32> -> vector<8x48xf32>
    %943 = vector.broadcast %741 : vector<1x48xf32> to vector<8x48xf32>
    %944 = arith.addf %942, %943 : vector<8x48xf32>
    %945 = vector.extract_strided_slice %941 {offsets = [0, 0], sizes = [8, 32], strides = [1, 1]} : vector<8x48xf32> to vector<8x32xf32>
    %946 = vector.extract_strided_slice %944 {offsets = [0, 0], sizes = [8, 32], strides = [1, 1]} : vector<8x48xf32> to vector<8x32xf32>
    %947 = arith.addf %945, %946 : vector<8x32xf32>
    %948 = arith.negf %947 : vector<8x32xf32>
    %949 = math.exp %948 : vector<8x32xf32>
    %cst_375 = arith.constant 1.000000e+00 : f32
    %950 = vector.broadcast %cst_375 : f32 to vector<8x32xf32>
    %951 = arith.addf %950, %949 : vector<8x32xf32>
    %952 = arith.divf %950, %951 : vector<8x32xf32>
    %953 = vector.extract_strided_slice %952 {offsets = [0, 0], sizes = [8, 16], strides = [1, 1]} : vector<8x32xf32> to vector<8x16xf32>
    %954 = vector.extract_strided_slice %952 {offsets = [0, 16], sizes = [8, 16], strides = [1, 1]} : vector<8x32xf32> to vector<8x16xf32>
    %955 = vector.extract_strided_slice %941 {offsets = [0, 32], sizes = [8, 16], strides = [1, 1]} : vector<8x48xf32> to vector<8x16xf32>
    %956 = vector.extract_strided_slice %944 {offsets = [0, 32], sizes = [8, 16], strides = [1, 1]} : vector<8x48xf32> to vector<8x16xf32>
    %957 = arith.mulf %953, %956 : vector<8x16xf32>
    %958 = arith.addf %955, %957 : vector<8x16xf32>
    %959 = math.tanh %958 : vector<8x16xf32>
    %960 = arith.subf %934, %959 : vector<8x16xf32>
    %961 = arith.mulf %954, %960 : vector<8x16xf32>
    %962 = arith.addf %959, %961 : vector<8x16xf32>
    %963 = vector.extract_strided_slice %962 {offsets = [0, 0], sizes = [8, 8], strides = [1, 1]} : vector<8x16xf32> to vector<8x8xf32>
    %c56_376 = arith.constant 56 : index
    %c0_377 = arith.constant 0 : index
    %964 = vector.load %arg10[%c56_376, %c0_377] : memref<64x16xf32, #tpu.memory_space<vmem>>, vector<8x8xf32>
    tpu.vector_store %arg10[%c56_376, %c0_377], %963 {strides = array<i32>} : memref<64x16xf32, #tpu.memory_space<vmem>>, vector<8x8xf32>,
    %965 = vector.extract_strided_slice %962 {offsets = [0, 8], sizes = [8, 8], strides = [1, 1]} : vector<8x16xf32> to vector<8x8xf32>
    %c0_378 = arith.constant 0 : index
    %c8_379 = arith.constant 8 : index
    %966 = vector.load %arg10[%c0_378, %c8_379] : memref<64x16xf32, #tpu.memory_space<vmem>>, vector<8x8xf32>
    tpu.vector_store %arg10[%c0_378, %c8_379], %965 {strides = array<i32>} : memref<64x16xf32, #tpu.memory_space<vmem>>, vector<8x8xf32>,
    %c56_380 = arith.constant 56 : index
    %c0_381 = arith.constant 0 : index
    %967 = vector.load %arg10[%c56_380, %c0_381] : memref<64x16xf32, #tpu.memory_space<vmem>>, vector<8x16xf32>
    %c0_382 = arith.constant 0 : index
    %c0_383 = arith.constant 0 : index
    %968 = vector.load %arg5[%c0_382, %c0_383] : memref<16x8xf32, #tpu.memory_space<vmem>>, vector<16x8xf32>
    %cst_384 = arith.constant dense<0.000000e+00> : vector<8x8xf32>
    %969 = tpu.matmul %967, %968, %cst_384 {dimension_numbers = #tpu.dot_dimension_numbers<[1], [0], [0], [1], [0, 0, 1, 1], [], []>} : vector<8x16xf32>, vector<16x8xf32>, vector<8x8xf32> -> vector<8x8xf32>
    %c0_385 = arith.constant 0 : index
    %c0_386 = arith.constant 0 : index
    %970 = vector.load %arg6[%c0_385, %c0_386] : memref<1x8xf32, #tpu.memory_space<vmem>>, vector<1x8xf32>
    %971 = vector.broadcast %970 : vector<1x8xf32> to vector<8x8xf32>
    %972 = arith.addf %969, %971 : vector<8x8xf32>
    %cst_387 = arith.constant 0.000000e+00 : f32
    %973 = vector.broadcast %cst_387 : f32 to vector<8x8xf32>
    %974 = arith.cmpf oge, %972, %973 : vector<8x8xf32>
    %cst_388 = arith.constant 2.000000e-01 : f32
    %975 = vector.broadcast %cst_388 : f32 to vector<8x8xf32>
    %976 = arith.mulf %975, %972 : vector<8x8xf32>
    %977 = arith.select %974, %972, %976 : vector<8x8xi1>, vector<8x8xf32>
    %c0_389 = arith.constant 0 : index
    %c0_390 = arith.constant 0 : index
    %978 = vector.load %arg7[%c0_389, %c0_390] : memref<8x8xf32, #tpu.memory_space<vmem>>, vector<8x8xf32>
    %cst_391 = arith.constant dense<0.000000e+00> : vector<8x8xf32>
    %979 = tpu.matmul %977, %978, %cst_391 {dimension_numbers = #tpu.dot_dimension_numbers<[1], [0], [0], [1], [0, 0, 1, 1], [], []>} : vector<8x8xf32>, vector<8x8xf32>, vector<8x8xf32> -> vector<8x8xf32>
    %c0_392 = arith.constant 0 : index
    %c0_393 = arith.constant 0 : index
    %980 = vector.load %arg8[%c0_392, %c0_393] : memref<1x8xf32, #tpu.memory_space<vmem>>, vector<1x8xf32>
    %981 = vector.broadcast %980 : vector<1x8xf32> to vector<8x8xf32>
    %982 = arith.addf %979, %981 : vector<8x8xf32>
    %c0_394 = arith.constant 0 : index
    %c0_395 = arith.constant 0 : index
    %983 = vector.load %arg9[%c0_394, %c0_395] : memref<8x8xf32, #tpu.memory_space<vmem>>, vector<8x8xf32>
    tpu.vector_store %arg9[%c0_394, %c0_395], %982 {strides = array<i32>} : memref<8x8xf32, #tpu.memory_space<vmem>>, vector<8x8xf32>,
    return
  }
}

</mosaic_0001>

<llo_original>
// kernel: gru_k_region_forward.1
$region0: #{gru_k_region_forward.1}
  #allocation0 [shape = 'u32[]', space=smem, size = 0x4, offset = 0x4, fixed_abs, tag = 'smem constant byte address 0x4 - core index']
  #allocation1 [shape = 'u32[144,128]{1,0:T(1,128)}', space=vmem, size = 0x12000, scoped, tag = 'internal scratch']
  #allocation2 [shape = 'f32[64,16]{1,0:T(8,128)}', space=vmem, size = 0x8000, scoped, tag = 'scratch operand']
  #allocation3 [shape = 'f32[64,48]{1,0:T(8,128)}', space=vmem, size = 0x8000, scoped, tag = 'scratch operand']
  %s0 = inlined_call_operand.vmem [shape: f32[64,16], index: 0, kind: input, shape index: {}]
  %s1 = inlined_call_operand.vmem [shape: f32[4,16,48], index: 1, kind: input, shape index: {}]
  %s2 = inlined_call_operand.vmem [shape: f32[4,1,48], index: 2, kind: input, shape index: {}]
  %s3 = inlined_call_operand.vmem [shape: f32[4,16,48], index: 3, kind: input, shape index: {}]
  %s4 = inlined_call_operand.vmem [shape: f32[4,1,48], index: 4, kind: input, shape index: {}]
  %s5 = inlined_call_operand.vmem [shape: f32[16,8], index: 5, kind: input, shape index: {}]
  %s6 = inlined_call_operand.vmem [shape: f32[1,8], index: 6, kind: input, shape index: {}]
  %s7 = inlined_call_operand.vmem [shape: f32[8,8], index: 7, kind: input, shape index: {}]
  %s8 = inlined_call_operand.vmem [shape: f32[1,8], index: 8, kind: input, shape index: {}]
  %s9 = inlined_call_operand.hbm [shape: f32[8,8], index: 9, kind: output, shape index: {}]
  %s10 = sld [smem:[#allocation0]]
  $region46: #{gru_k_region_forward.1} parent=0
    _
  %s12 = ssub.s32 1, %s10
  %s13 = scalar_select 0, %s12, %s10
  $region1: #{gru_k_region_forward.1} parent=0
    #allocation4 [shape = 'u8[4096]{0}', space=vmem, size = 0x1000, scoped, tag = 'output window, operand 0, single buffered']
    #allocation5 [shape = 's32[1]{0}', space=sflag, size = 0x4, scoped, tag = 'scoped memory for gru_k_region_forward.1']
    %14 = vsyncpa [#allocation5], 0
    // Predicated region
    $region2: #{gru_k_region_forward.1} parent=1 // pred_check
      _
    $region3: #{gru_k_region_forward.1} parent=1 // pred_check_branch
      %16 = sbr.rel (0) target = $region5
    $region4: #{gru_k_region_forward.1} parent=1 // pred_region
      _
    $region5: #{gru_k_region_forward.1} parent=1 // pred_fallthru
      _
    // Predicated region
    $region6: #{gru_k_region_forward.1} parent=1 // pred_check
      _
    $region7: #{gru_k_region_forward.1} parent=1 // pred_check_branch
      %18 = sbr.rel (0) target = $region9
    $region8: #{gru_k_region_forward.1} parent=1 // pred_region
      _
    $region9: #{gru_k_region_forward.1} parent=1 // pred_fallthru
      _
    // Predicated region
    $region10: #{gru_k_region_forward.1} parent=1 // pred_check
      _
    $region11: #{gru_k_region_forward.1} parent=1 // pred_check_branch
      %20 = sbr.rel (0) target = $region13
    $region12: #{gru_k_region_forward.1} parent=1 // pred_region
      _
    $region13: #{gru_k_region_forward.1} parent=1 // pred_fallthru
      _
    // Predicated region
    $region14: #{gru_k_region_forward.1} parent=1 // pred_check
      _
    $region15: #{gru_k_region_forward.1} parent=1 // pred_check_branch
      %22 = sbr.rel (0) target = $region17
    $region16: #{gru_k_region_forward.1} parent=1 // pred_region
      _
    $region17: #{gru_k_region_forward.1} parent=1 // pred_fallthru
      _
    // Predicated region
    $region18: #{gru_k_region_forward.1} parent=1 // pred_check
      _
    $region19: #{gru_k_region_forward.1} parent=1 // pred_check_branch
      %24 = sbr.rel (0) target = $region21
    $region20: #{gru_k_region_forward.1} parent=1 // pred_region
      _
    $region21: #{gru_k_region_forward.1} parent=1 // pred_fallthru
      _
    // Predicated region
    $region22: #{gru_k_region_forward.1} parent=1 // pred_check
      _
    $region23: #{gru_k_region_forward.1} parent=1 // pred_check_branch
      %26 = sbr.rel (0) target = $region25
    $region24: #{gru_k_region_forward.1} parent=1 // pred_region
      _
    $region25: #{gru_k_region_forward.1} parent=1 // pred_fallthru
      _
    // Predicated region
    $region26: #{gru_k_region_forward.1} parent=1 // pred_check
      _
    $region27: #{gru_k_region_forward.1} parent=1 // pred_check_branch
      %28 = sbr.rel (0) target = $region29
    $region28: #{gru_k_region_forward.1} parent=1 // pred_region
      _
    $region29: #{gru_k_region_forward.1} parent=1 // pred_fallthru
      _
    // Predicated region
    $region30: #{gru_k_region_forward.1} parent=1 // pred_check
      _
    $region31: #{gru_k_region_forward.1} parent=1 // pred_check_branch
      %30 = sbr.rel (0) target = $region33
    $region32: #{gru_k_region_forward.1} parent=1 // pred_region
      _
    $region33: #{gru_k_region_forward.1} parent=1 // pred_fallthru
      _
    // Predicated region
    $region34: #{gru_k_region_forward.1} parent=1 // pred_check
      _
    $region35: #{gru_k_region_forward.1} parent=1 // pred_check_branch
      %32 = sbr.rel (0) target = $region37
    $region36: #{gru_k_region_forward.1} parent=1 // pred_region
      _
    $region37: #{gru_k_region_forward.1} parent=1 // pred_fallthru
      _
    %v33 = vlaneseq
    %v34 = vand.u32 %v33, 127
    %vm35 = vcmp.lt.s32.totalorder %v34, 8
    %vm36 = vcmp.ge.s32.totalorder %v34, 16
    %vm37 = vcmp.lt.s32.totalorder %v34, 24
    %vm38 = vmand %vm36, %vm37
    %vm39 = vmor %vm35, %vm38
    %vm40 = vcmp.ge.s32.totalorder %v34, 32
    %vm41 = vcmp.lt.s32.totalorder %v34, 40
    %vm42 = vmand %vm40, %vm41
    %vm43 = vmor %vm39, %vm42
    %v44 = vld [vmem:[%s0] sm:$0xff]
    %v45 = vld [vmem:[%s0 + $0x8] sm:$0xff]
    %v46 = vld [vmem:[%s0 + $0x10] sm:$0xff]
    %v47 = vld [vmem:[%s0 + $0x18] sm:$0xff]
    %v48 = vld [vmem:[%s0 + $0x20] sm:$0xff]
    %v49 = vld [vmem:[%s0 + $0x28] sm:$0xff]
    %v50 = vld [vmem:[%s0 + $0x30] sm:$0xff]
    %v51 = vld [vmem:[%s0 + $0x38] sm:$0xff]
    %v52 = vld [vmem:[%s1] sm:$0xff]
    %v53 = vld [vmem:[%s1 + $0x8] sm:$0xff]
    %v54 = vld [vmem:[%s2] sm:$0x1]
    %v56 = vlaneseq
    %v57 = vshrl.u32 %v56, 7
    %v58 = vsub.s32 0, %v57
    %v59 = vrot.slane %v54, %v58
    %vm61 = vcmask 130048
    %v63 = vsel %vm61, %v44, 0
    %v66 = vsel %vm61, %v45, 0
    %v69 = vsel %vm61, %v46, 0
    %v72 = vsel %vm61, %v47, 0
    %v75 = vsel %vm61, %v48, 0
    %v78 = vsel %vm61, %v49, 0
    %v81 = vsel %vm61, %v50, 0
    %v84 = vsel %vm61, %v51, 0
    %86 = vmatprep.subr.mxu0 0.0
    %87 = vmatpush1.msra.mxu0 %v52
    %88 = vmatprep.subr.mxu0 0.0
    %89 = vmatpush1.msra.mxu0 %v53
    %90 = vmatprep.subr.mxu0 0.0
    %91 = vmatpush1.msra.mxu0 0.0
    %92 = vmatprep.subr.mxu0 0.0
    %93 = vmatpush1.msra.mxu0 0.0
    %94 = vmatprep.subr.mxu0 0.0
    %95 = vmatpush1.msra.mxu0 0.0
    %96 = vmatprep.subr.mxu0 0.0
    %97 = vmatpush1.msra.mxu0 0.0
    %98 = vmatprep.subr.mxu0 0.0
    %99 = vmatpush1.msra.mxu0 0.0
    %100 = vmatprep.subr.mxu0 0.0
    %101 = vmatpush1.msra.mxu0 0.0
    %102 = vmatprep.subr.mxu0 0.0
    %103 = vmatpush1.msra.mxu0 0.0
    %104 = vmatprep.subr.mxu0 0.0
    %105 = vmatpush1.msra.mxu0 0.0
    %106 = vmatprep.subr.mxu0 0.0
    %107 = vmatpush1.msra.mxu0 0.0
    %108 = vmatprep.subr.mxu0 0.0
    %109 = vmatpush1.msra.mxu0 0.0
    %110 = vmatprep.subr.mxu0 0.0
    %111 = vmatpush1.msra.mxu0 0.0
    %112 = vmatprep.subr.mxu0 0.0
    %113 = vmatpush1.msra.mxu0 0.0
    %114 = vmatprep.subr.mxu0 0.0
    %115 = vmatpush1.msra.mxu0 0.0
    %116 = vmatprep.subr.mxu0 0.0
    %117 = vmatpush1.msra.mxu0 0.0
    %118 = vmatprep.subr.mxu0 0.0
    %119 = vmatpush1.msra.mxu0 0.0
    %120 = vmatprep.subr.mxu0 0.0
    %121 = vmatpush1.msra.mxu0 0.0
    %122 = vmatprep.subr.mxu0 0.0
    %123 = vmatpush1.msra.mxu0 0.0
    %124 = vmatprep.subr.mxu0 0.0
    %125 = vmatpush1.msra.mxu0 0.0
    %126 = vmatprep.subr.mxu0 0.0
    %127 = vmatpush1.msra.mxu0 0.0
    %128 = vmatprep.subr.mxu0 0.0
    %129 = vmatpush1.msra.mxu0 0.0
    %130 = vmatprep.subr.mxu0 0.0
    %131 = vmatpush1.msra.mxu0 0.0
    %132 = vmatprep.subr.mxu0 0.0
    %133 = vmatpush1.msra.mxu0 0.0
    %134 = vmatprep.subr.mxu0 0.0
    %135 = vmatpush1.msra.mxu0 0.0
    %136 = vmatprep.subr.mxu0 0.0
    %137 = vmatpush1.msra.mxu0 0.0
    %138 = vmatprep.subr.mxu0 0.0
    %139 = vmatpush1.msra.mxu0 0.0
    %140 = vmatprep.subr.mxu0 0.0
    %141 = vmatpush1.msra.mxu0 0.0
    %142 = vmatprep.subr.mxu0 0.0
    %143 = vmatpush1.msra.mxu0 0.0
    %144 = vmatprep.subr.mxu0 0.0
    %145 = vmatpush1.msra.mxu0 0.0
    %146 = vmatprep.subr.mxu0 0.0
    %147 = vmatpush1.msra.mxu0 0.0
    %148 = vmatprep.subr.mxu0 0.0
    %149 = vmatpush1.msra.mxu0 0.0
    %150 = vmatprep.mubr.f32.mxu0 0.0
    %151 = vmatmul.mubr.f32.gmra.mrb[0].mxu0 %v63
    %v152 = vpop.f32.mrb[0].mxu0
    %v153 = vadd.f32 %v59, %v152
    %v154 = vpop.f32.mrb[0].mxu0
    %155 = vmatprep.mubr.f32.mxu0 0.0
    %156 = vmatmul.mubr.f32.gmra.mrb[0].mxu0 %v66
    %v157 = vpop.f32.mrb[0].mxu0
    %v158 = vadd.f32 %v59, %v157
    %v159 = vpop.f32.mrb[0].mxu0
    %160 = vmatprep.mubr.f32.mxu0 0.0
    %161 = vmatmul.mubr.f32.gmra.mrb[0].mxu0 %v69
    %v162 = vpop.f32.mrb[0].mxu0
    %v163 = vadd.f32 %v59, %v162
    %v164 = vpop.f32.mrb[0].mxu0
    %165 = vmatprep.mubr.f32.mxu0 0.0
    %166 = vmatmul.mubr.f32.gmra.mrb[0].mxu0 %v72
    %v167 = vpop.f32.mrb[0].mxu0
    %v168 = vadd.f32 %v59, %v167
    %v169 = vpop.f32.mrb[0].mxu0
    %170 = vmatprep.mubr.f32.mxu0 0.0
    %171 = vmatmul.mubr.f32.gmra.mrb[0].mxu0 %v75
    %v172 = vpop.f32.mrb[0].mxu0
    %v173 = vadd.f32 %v59, %v172
    %v174 = vpop.f32.mrb[0].mxu0
    %175 = vmatprep.mubr.f32.mxu0 0.0
    %176 = vmatmul.mubr.f32.gmra.mrb[0].mxu0 %v78
    %v177 = vpop.f32.mrb[0].mxu0
    %v178 = vadd.f32 %v59, %v177
    %v179 = vpop.f32.mrb[0].mxu0
    %180 = vmatprep.mubr.f32.mxu0 0.0
    %181 = vmatmul.mubr.f32.gmra.mrb[0].mxu0 %v81
    %v182 = vpop.f32.mrb[0].mxu0
    %v183 = vadd.f32 %v59, %v182
    %v184 = vpop.f32.mrb[0].mxu0
    %185 = vmatprep.mubr.f32.mxu0 0.0
    %186 = vmatmul.mubr.f32.gmra.mrb[0].mxu0 %v84
    %v187 = vpop.f32.mrb[0].mxu0
    %v188 = vadd.f32 %v59, %v187
    %v189 = vpop.f32.mrb[0].mxu0
    %190 = vdwg.mxu0
    %vm191 = vcmask 392192
    %192 = vst.msk [vmem:[#allocation3] sm:$0xff] %vm191, %v153
    %193 = vst.msk [vmem:[#allocation3 + $0x8] sm:$0xff] %vm191, %v158
    %194 = vst.msk [vmem:[#allocation3 + $0x10] sm:$0xff] %vm191, %v163
    %195 = vst.msk [vmem:[#allocation3 + $0x18] sm:$0xff] %vm191, %v168
    %196 = vst.msk [vmem:[#allocation3 + $0x20] sm:$0xff] %vm191, %v173
    %197 = vst.msk [vmem:[#allocation3 + $0x28] sm:$0xff] %vm191, %v178
    %198 = vst.msk [vmem:[#allocation3 + $0x30] sm:$0xff] %vm191, %v183
    %199 = vst.msk [vmem:[#allocation3 + $0x38] sm:$0xff] %vm191, %v188
    %v200 = vld [vmem:[%s3] sm:$0xff]
    %v201 = vld [vmem:[%s3 + $0x8] sm:$0xff]
    %v202 = vld [vmem:[%s4] sm:$0x1]
    %v203 = vld [vmem:[#allocation3] sm:$0xff]
    %v204 = vld [vmem:[#allocation3 + $0x38] sm:$0xff]
    %v205 = vsel %vm43, %v203, %v204
    %v207 = vlaneseq
    %v208 = vshrl.u32 %v207, 7
    %v209 = vsub.s32 0, %v208
    %v210 = vrot.slane %v202, %v209
    %v213 = vsel %vm61, 0.0, 0
    %215 = vmatprep.subr.mxu0 0.0
    %216 = vmatpush1.msra.mxu0 %v200
    %217 = vmatprep.subr.mxu0 0.0
    %218 = vmatpush1.msra.mxu0 %v201
    %219 = vmatprep.subr.mxu0 0.0
    %220 = vmatpush1.msra.mxu0 0.0
    %221 = vmatprep.subr.mxu0 0.0
    %222 = vmatpush1.msra.mxu0 0.0
    %223 = vmatprep.subr.mxu0 0.0
    %224 = vmatpush1.msra.mxu0 0.0
    %225 = vmatprep.subr.mxu0 0.0
    %226 = vmatpush1.msra.mxu0 0.0
    %227 = vmatprep.subr.mxu0 0.0
    %228 = vmatpush1.msra.mxu0 0.0
    %229 = vmatprep.subr.mxu0 0.0
    %230 = vmatpush1.msra.mxu0 0.0
    %231 = vmatprep.subr.mxu0 0.0
    %232 = vmatpush1.msra.mxu0 0.0
    %233 = vmatprep.subr.mxu0 0.0
    %234 = vmatpush1.msra.mxu0 0.0
    %235 = vmatprep.subr.mxu0 0.0
    %236 = vmatpush1.msra.mxu0 0.0
    %237 = vmatprep.subr.mxu0 0.0
    %238 = vmatpush1.msra.mxu0 0.0
    %239 = vmatprep.subr.mxu0 0.0
    %240 = vmatpush1.msra.mxu0 0.0
    %241 = vmatprep.subr.mxu0 0.0
    %242 = vmatpush1.msra.mxu0 0.0
    %243 = vmatprep.subr.mxu0 0.0
    %244 = vmatpush1.msra.mxu0 0.0
    %245 = vmatprep.subr.mxu0 0.0
    %246 = vmatpush1.msra.mxu0 0.0
    %247 = vmatprep.subr.mxu0 0.0
    %248 = vmatpush1.msra.mxu0 0.0
    %249 = vmatprep.subr.mxu0 0.0
    %250 = vmatpush1.msra.mxu0 0.0
    %251 = vmatprep.subr.mxu0 0.0
    %252 = vmatpush1.msra.mxu0 0.0
    %253 = vmatprep.subr.mxu0 0.0
    %254 = vmatpush1.msra.mxu0 0.0
    %255 = vmatprep.subr.mxu0 0.0
    %256 = vmatpush1.msra.mxu0 0.0
    %257 = vmatprep.subr.mxu0 0.0
    %258 = vmatpush1.msra.mxu0 0.0
    %259 = vmatprep.subr.mxu0 0.0
    %260 = vmatpush1.msra.mxu0 0.0
    %261 = vmatprep.subr.mxu0 0.0
    %262 = vmatpush1.msra.mxu0 0.0
    %263 = vmatprep.subr.mxu0 0.0
    %264 = vmatpush1.msra.mxu0 0.0
    %265 = vmatprep.subr.mxu0 0.0
    %266 = vmatpush1.msra.mxu0 0.0
    %267 = vmatprep.subr.mxu0 0.0
    %268 = vmatpush1.msra.mxu0 0.0
    %269 = vmatprep.subr.mxu0 0.0
    %270 = vmatpush1.msra.mxu0 0.0
    %271 = vmatprep.subr.mxu0 0.0
    %272 = vmatpush1.msra.mxu0 0.0
    %273 = vmatprep.subr.mxu0 0.0
    %274 = vmatpush1.msra.mxu0 0.0
    %275 = vmatprep.subr.mxu0 0.0
    %276 = vmatpush1.msra.mxu0 0.0
    %277 = vmatprep.subr.mxu0 0.0
    %278 = vmatpush1.msra.mxu0 0.0
    %279 = vmatprep.mubr.f32.mxu0 0.0
    %280 = vmatmul.mubr.f32.gmra.mrb[0].mxu0 %v213
    %v281 = vpop.f32.mrb[0].mxu0
    %v282 = vadd.f32 %v210, %v281
    %v283 = vpop.f32.mrb[0].mxu0
    %284 = vdwg.mxu0
    %v285 = vadd.f32 %v205, %v282
    %v286 = vxor.u32 %v285, 2147483648
    %v287 = vmul.f32 %v286, 1.442695
    %v288 = vpow.pop %v287
    %v289 = vadd.f32 %v288, 1.0
    %v290 = vrcp.pop %v289
    %v291 = vmul.f32 1.0, %v290
    %293 = vrot.lane.b32.xlu0 %v282, 96
    %v294 = vpop.permute.xlu0 %293
    %v296 = vmul.f32 %v291, %v294
    %298 = vrot.lane.b32.xlu0 %v296, 32
    %v299 = vpop.permute.xlu0 %298
    %v301 = vadd.f32 %v205, %v299
    %v302 = vtanh.pop %v301
    %v303 = vsub.f32 0.0, %v302
    %305 = vrot.lane.b32.xlu0 %v303, 112
    %v306 = vpop.permute.xlu0 %305
    %v308 = vmul.f32 %v291, %v306
    %310 = vrot.lane.b32.xlu0 %v308, 16
    %v311 = vpop.permute.xlu0 %310
    %v313 = vadd.f32 %v302, %v311
    %315 = vrot.lane.b32.xlu0 %v313, 96
    %v316 = vpop.permute.xlu0 %315
    %vm318 = vcmask 64512
    %319 = vst.msk [vmem:[#allocation2] sm:$0xff] %vm318, %v316
    %vm320 = vcmask 130112
    %321 = vst.msk [vmem:[#allocation2 + $0x38] sm:$0xff] %vm320, %v316
    %v322 = vld [vmem:[#allocation3 + $0x8] sm:$0xff]
    %v323 = vld [vmem:[#allocation3 + $0x30] sm:$0xff]
    %v324 = vsel %vm43, %v322, %v323
    %v325 = vsel %vm61, %v316, 0
    %327 = vmatprep.subr.mxu0 0.0
    %328 = vmatpush1.msra.mxu0 %v200
    %329 = vmatprep.subr.mxu0 0.0
    %330 = vmatpush1.msra.mxu0 %v201
    %331 = vmatprep.subr.mxu0 0.0
    %332 = vmatpush1.msra.mxu0 0.0
    %333 = vmatprep.subr.mxu0 0.0
    %334 = vmatpush1.msra.mxu0 0.0
    %335 = vmatprep.subr.mxu0 0.0
    %336 = vmatpush1.msra.mxu0 0.0
    %337 = vmatprep.subr.mxu0 0.0
    %338 = vmatpush1.msra.mxu0 0.0
    %339 = vmatprep.subr.mxu0 0.0
    %340 = vmatpush1.msra.mxu0 0.0
    %341 = vmatprep.subr.mxu0 0.0
    %342 = vmatpush1.msra.mxu0 0.0
    %343 = vmatprep.subr.mxu0 0.0
    %344 = vmatpush1.msra.mxu0 0.0
    %345 = vmatprep.subr.mxu0 0.0
    %346 = vmatpush1.msra.mxu0 0.0
    %347 = vmatprep.subr.mxu0 0.0
    %348 = vmatpush1.msra.mxu0 0.0
    %349 = vmatprep.subr.mxu0 0.0
    %350 = vmatpush1.msra.mxu0 0.0
    %351 = vmatprep.subr.mxu0 0.0
    %352 = vmatpush1.msra.mxu0 0.0
    %353 = vmatprep.subr.mxu0 0.0
    %354 = vmatpush1.msra.mxu0 0.0
    %355 = vmatprep.subr.mxu0 0.0
    %356 = vmatpush1.msra.mxu0 0.0
    %357 = vmatprep.subr.mxu0 0.0
    %358 = vmatpush1.msra.mxu0 0.0
    %359 = vmatprep.subr.mxu0 0.0
    %360 = vmatpush1.msra.mxu0 0.0
    %361 = vmatprep.subr.mxu0 0.0
    %362 = vmatpush1.msra.mxu0 0.0
    %363 = vmatprep.subr.mxu0 0.0
    %364 = vmatpush1.msra.mxu0 0.0
    %365 = vmatprep.subr.mxu0 0.0
    %366 = vmatpush1.msra.mxu0 0.0
    %367 = vmatprep.subr.mxu0 0.0
    %368 = vmatpush1.msra.mxu0 0.0
    %369 = vmatprep.subr.mxu0 0.0
    %370 = vmatpush1.msra.mxu0 0.0
    %371 = vmatprep.subr.mxu0 0.0
    %372 = vmatpush1.msra.mxu0 0.0
    %373 = vmatprep.subr.mxu0 0.0
    %374 = vmatpush1.msra.mxu0 0.0
    %375 = vmatprep.subr.mxu0 0.0
    %376 = vmatpush1.msra.mxu0 0.0
    %377 = vmatprep.subr.mxu0 0.0
    %378 = vmatpush1.msra.mxu0 0.0
    %379 = vmatprep.subr.mxu0 0.0
    %380 = vmatpush1.msra.mxu0 0.0
    %381 = vmatprep.subr.mxu0 0.0
    %382 = vmatpush1.msra.mxu0 0.0
    %383 = vmatprep.subr.mxu0 0.0
    %384 = vmatpush1.msra.mxu0 0.0
    %385 = vmatprep.subr.mxu0 0.0
    %386 = vmatpush1.msra.mxu0 0.0
    %387 = vmatprep.subr.mxu0 0.0
    %388 = vmatpush1.msra.mxu0 0.0
    %389 = vmatprep.subr.mxu0 0.0
    %390 = vmatpush1.msra.mxu0 0.0
    %391 = vmatprep.mubr.f32.mxu0 0.0
    %392 = vmatmul.mubr.f32.gmra.mrb[0].mxu0 %v325
    %v393 = vpop.f32.mrb[0].mxu0
    %v394 = vadd.f32 %v210, %v393
    %v395 = vpop.f32.mrb[0].mxu0
    %396 = vdwg.mxu0
    %v397 = vadd.f32 %v324, %v394
    %v398 = vxor.u32 %v397, 2147483648
    %v399 = vmul.f32 %v398, 1.442695
    %v400 = vpow.pop %v399
    %v401 = vadd.f32 %v400, 1.0
    %v402 = vrcp.pop %v401
    %v403 = vmul.f32 1.0, %v402
    %405 = vrot.lane.b32.xlu0 %v394, 96
    %v406 = vpop.permute.xlu0 %405
    %v408 = vmul.f32 %v403, %v406
    %410 = vrot.lane.b32.xlu0 %v408, 32
    %v411 = vpop.permute.xlu0 %410
    %v413 = vadd.f32 %v324, %v411
    %v414 = vtanh.pop %v413
    %v415 = vsub.f32 %v313, %v414
    %417 = vrot.lane.b32.xlu0 %v415, 112
    %v418 = vpop.permute.xlu0 %417
    %v420 = vmul.f32 %v403, %v418
    %422 = vrot.lane.b32.xlu0 %v420, 16
    %v423 = vpop.permute.xlu0 %422
    %v425 = vadd.f32 %v414, %v423
    %427 = vrot.lane.b32.xlu0 %v425, 96
    %v428 = vpop.permute.xlu0 %427
    %430 = vst.msk [vmem:[#allocation2 + $0x8] sm:$0xff] %vm318, %v428
    %431 = vst.msk [vmem:[#allocation2 + $0x30] sm:$0xff] %vm320, %v428
    %v432 = vld [vmem:[#allocation3 + $0x10] sm:$0xff]
    %v433 = vld [vmem:[#allocation3 + $0x28] sm:$0xff]
    %v434 = vsel %vm43, %v432, %v433
    %v435 = vsel %vm61, %v428, 0
    %437 = vmatprep.subr.mxu0 0.0
    %438 = vmatpush1.msra.mxu0 %v200
    %439 = vmatprep.subr.mxu0 0.0
    %440 = vmatpush1.msra.mxu0 %v201
    %441 = vmatprep.subr.mxu0 0.0
    %442 = vmatpush1.msra.mxu0 0.0
    %443 = vmatprep.subr.mxu0 0.0
    %444 = vmatpush1.msra.mxu0 0.0
    %445 = vmatprep.subr.mxu0 0.0
    %446 = vmatpush1.msra.mxu0 0.0
    %447 = vmatprep.subr.mxu0 0.0
    %448 = vmatpush1.msra.mxu0 0.0
    %449 = vmatprep.subr.mxu0 0.0
    %450 = vmatpush1.msra.mxu0 0.0
    %451 = vmatprep.subr.mxu0 0.0
    %452 = vmatpush1.msra.mxu0 0.0
    %453 = vmatprep.subr.mxu0 0.0
    %454 = vmatpush1.msra.mxu0 0.0
    %455 = vmatprep.subr.mxu0 0.0
    %456 = vmatpush1.msra.mxu0 0.0
    %457 = vmatprep.subr.mxu0 0.0
    %458 = vmatpush1.msra.mxu0 0.0
    %459 = vmatprep.subr.mxu0 0.0
    %460 = vmatpush1.msra.mxu0 0.0
    %461 = vmatprep.subr.mxu0 0.0
    %462 = vmatpush1.msra.mxu0 0.0
    %463 = vmatprep.subr.mxu0 0.0
    %464 = vmatpush1.msra.mxu0 0.0
    %465 = vmatprep.subr.mxu0 0.0
    %466 = vmatpush1.msra.mxu0 0.0
    %467 = vmatprep.subr.mxu0 0.0
    %468 = vmatpush1.msra.mxu0 0.0
    %469 = vmatprep.subr.mxu0 0.0
    %470 = vmatpush1.msra.mxu0 0.0
    %471 = vmatprep.subr.mxu0 0.0
    %472 = vmatpush1.msra.mxu0 0.0
    %473 = vmatprep.subr.mxu0 0.0
    %474 = vmatpush1.msra.mxu0 0.0
    %475 = vmatprep.subr.mxu0 0.0
    %476 = vmatpush1.msra.mxu0 0.0
    %477 = vmatprep.subr.mxu0 0.0
    %478 = vmatpush1.msra.mxu0 0.0
    %479 = vmatprep.subr.mxu0 0.0
    %480 = vmatpush1.msra.mxu0 0.0
    %481 = vmatprep.subr.mxu0 0.0
    %482 = vmatpush1.msra.mxu0 0.0
    %483 = vmatprep.subr.mxu0 0.0
    %484 = vmatpush1.msra.mxu0 0.0
    %485 = vmatprep.subr.mxu0 0.0
    %486 = vmatpush1.msra.mxu0 0.0
    %487 = vmatprep.subr.mxu0 0.0
    %488 = vmatpush1.msra.mxu0 0.0
    %489 = vmatprep.subr.mxu0 0.0
    %490 = vmatpush1.msra.mxu0 0.0
    %491 = vmatprep.subr.mxu0 0.0
    %492 = vmatpush1.msra.mxu0 0.0
    %493 = vmatprep.subr.mxu0 0.0
    %494 = vmatpush1.msra.mxu0 0.0
    %495 = vmatprep.subr.mxu0 0.0
    %496 = vmatpush1.msra.mxu0 0.0
    %497 = vmatprep.subr.mxu0 0.0
    %498 = vmatpush1.msra.mxu0 0.0
    %499 = vmatprep.subr.mxu0 0.0
    %500 = vmatpush1.msra.mxu0 0.0
    %501 = vmatprep.mubr.f32.mxu0 0.0
    %502 = vmatmul.mubr.f32.gmra.mrb[0].mxu0 %v435
    %v503 = vpop.f32.mrb[0].mxu0
    %v504 = vadd.f32 %v210, %v503
    %v505 = vpop.f32.mrb[0].mxu0
    %506 = vdwg.mxu0
    %v507 = vadd.f32 %v434, %v504
    %v508 = vxor.u32 %v507, 2147483648
    %v509 = vmul.f32 %v508, 1.442695
    %v510 = vpow.pop %v509
    %v511 = vadd.f32 %v510, 1.0
    %v512 = vrcp.pop %v511
    %v513 = vmul.f32 1.0, %v512
    %515 = vrot.lane.b32.xlu0 %v504, 96
    %v516 = vpop.permute.xlu0 %515
    %v518 = vmul.f32 %v513, %v516
    %520 = vrot.lane.b32.xlu0 %v518, 32
    %v521 = vpop.permute.xlu0 %520
    %v523 = vadd.f32 %v434, %v521
    %v524 = vtanh.pop %v523
    %v525 = vsub.f32 %v425, %v524
    %527 = vrot.lane.b32.xlu0 %v525, 112
    %v528 = vpop.permute.xlu0 %527
    %v530 = vmul.f32 %v513, %v528
    %532 = vrot.lane.b32.xlu0 %v530, 16
    %v533 = vpop.permute.xlu0 %532
    %v535 = vadd.f32 %v524, %v533
    %537 = vrot.lane.b32.xlu0 %v535, 96
    %v538 = vpop.permute.xlu0 %537
    %540 = vst.msk [vmem:[#allocation2 + $0x10] sm:$0xff] %vm318, %v538
    %541 = vst.msk [vmem:[#allocation2 + $0x28] sm:$0xff] %vm320, %v538
    %v542 = vld [vmem:[#allocation3 + $0x18] sm:$0xff]
    %v543 = vld [vmem:[#allocation3 + $0x20] sm:$0xff]
    %v544 = vsel %vm43, %v542, %v543
    %v545 = vsel %vm61, %v538, 0
    %547 = vmatprep.subr.mxu0 0.0
    %548 = vmatpush1.msra.mxu0 %v200
    %549 = vmatprep.subr.mxu0 0.0
    %550 = vmatpush1.msra.mxu0 %v201
    %551 = vmatprep.subr.mxu0 0.0
    %552 = vmatpush1.msra.mxu0 0.0
    %553 = vmatprep.subr.mxu0 0.0
    %554 = vmatpush1.msra.mxu0 0.0
    %555 = vmatprep.subr.mxu0 0.0
    %556 = vmatpush1.msra.mxu0 0.0
    %557 = vmatprep.subr.mxu0 0.0
    %558 = vmatpush1.msra.mxu0 0.0
    %559 = vmatprep.subr.mxu0 0.0
    %560 = vmatpush1.msra.mxu0 0.0
    %561 = vmatprep.subr.mxu0 0.0
    %562 = vmatpush1.msra.mxu0 0.0
    %563 = vmatprep.subr.mxu0 0.0
    %564 = vmatpush1.msra.mxu0 0.0
    %565 = vmatprep.subr.mxu0 0.0
    %566 = vmatpush1.msra.mxu0 0.0
    %567 = vmatprep.subr.mxu0 0.0
    %568 = vmatpush1.msra.mxu0 0.0
    %569 = vmatprep.subr.mxu0 0.0
    %570 = vmatpush1.msra.mxu0 0.0
    %571 = vmatprep.subr.mxu0 0.0
    %572 = vmatpush1.msra.mxu0 0.0
    %573 = vmatprep.subr.mxu0 0.0
    %574 = vmatpush1.msra.mxu0 0.0
    %575 = vmatprep.subr.mxu0 0.0
    %576 = vmatpush1.msra.mxu0 0.0
    %577 = vmatprep.subr.mxu0 0.0
    %578 = vmatpush1.msra.mxu0 0.0
    %579 = vmatprep.subr.mxu0 0.0
    %580 = vmatpush1.msra.mxu0 0.0
    %581 = vmatprep.subr.mxu0 0.0
    %582 = vmatpush1.msra.mxu0 0.0
    %583 = vmatprep.subr.mxu0 0.0
    %584 = vmatpush1.msra.mxu0 0.0
    %585 = vmatprep.subr.mxu0 0.0
    %586 = vmatpush1.msra.mxu0 0.0
    %587 = vmatprep.subr.mxu0 0.0
    %588 = vmatpush1.msra.mxu0 0.0
    %589 = vmatprep.subr.mxu0 0.0
    %590 = vmatpush1.msra.mxu0 0.0
    %591 = vmatprep.subr.mxu0 0.0
    %592 = vmatpush1.msra.mxu0 0.0
    %593 = vmatprep.subr.mxu0 0.0
    %594 = vmatpush1.msra.mxu0 0.0
    %595 = vmatprep.subr.mxu0 0.0
    %596 = vmatpush1.msra.mxu0 0.0
    %597 = vmatprep.subr.mxu0 0.0
    %598 = vmatpush1.msra.mxu0 0.0
    %599 = vmatprep.subr.mxu0 0.0
    %600 = vmatpush1.msra.mxu0 0.0
    %601 = vmatprep.subr.mxu0 0.0
    %602 = vmatpush1.msra.mxu0 0.0
    %603 = vmatprep.subr.mxu0 0.0
    %604 = vmatpush1.msra.mxu0 0.0
    %605 = vmatprep.subr.mxu0 0.0
    %606 = vmatpush1.msra.mxu0 0.0
    %607 = vmatprep.subr.mxu0 0.0
    %608 = vmatpush1.msra.mxu0 0.0
    %609 = vmatprep.subr.mxu0 0.0
    %610 = vmatpush1.msra.mxu0 0.0
    %611 = vmatprep.mubr.f32.mxu0 0.0
    %612 = vmatmul.mubr.f32.gmra.mrb[0].mxu0 %v545
    %v613 = vpop.f32.mrb[0].mxu0
    %v614 = vadd.f32 %v210, %v613
    %v615 = vpop.f32.mrb[0].mxu0
    %616 = vdwg.mxu0
    %v617 = vadd.f32 %v544, %v614
    %v618 = vxor.u32 %v617, 2147483648
    %v619 = vmul.f32 %v618, 1.442695
    %v620 = vpow.pop %v619
    %v621 = vadd.f32 %v620, 1.0
    %v622 = vrcp.pop %v621
    %v623 = vmul.f32 1.0, %v622
    %625 = vrot.lane.b32.xlu0 %v614, 96
    %v626 = vpop.permute.xlu0 %625
    %v628 = vmul.f32 %v623, %v626
    %630 = vrot.lane.b32.xlu0 %v628, 32
    %v631 = vpop.permute.xlu0 %630
    %v633 = vadd.f32 %v544, %v631
    %v634 = vtanh.pop %v633
    %v635 = vsub.f32 %v535, %v634
    %637 = vrot.lane.b32.xlu0 %v635, 112
    %v638 = vpop.permute.xlu0 %637
    %v640 = vmul.f32 %v623, %v638
    %642 = vrot.lane.b32.xlu0 %v640, 16
    %v643 = vpop.permute.xlu0 %642
    %v645 = vadd.f32 %v634, %v643
    %647 = vrot.lane.b32.xlu0 %v645, 96
    %v648 = vpop.permute.xlu0 %647
    %650 = vst.msk [vmem:[#allocation2 + $0x18] sm:$0xff] %vm318, %v648
    %651 = vst.msk [vmem:[#allocation2 + $0x20] sm:$0xff] %vm320, %v648
    %v652 = vld [vmem:[#allocation3 + $0x20] sm:$0xff]
    %v653 = vld [vmem:[#allocation3 + $0x18] sm:$0xff]
    %v654 = vsel %vm43, %v652, %v653
    %v655 = vsel %vm61, %v648, 0
    %657 = vmatprep.subr.mxu0 0.0
    %658 = vmatpush1.msra.mxu0 %v200
    %659 = vmatprep.subr.mxu0 0.0
    %660 = vmatpush1.msra.mxu0 %v201
    %661 = vmatprep.subr.mxu0 0.0
    %662 = vmatpush1.msra.mxu0 0.0
    %663 = vmatprep.subr.mxu0 0.0
    %664 = vmatpush1.msra.mxu0 0.0
    %665 = vmatprep.subr.mxu0 0.0
    %666 = vmatpush1.msra.mxu0 0.0
    %667 = vmatprep.subr.mxu0 0.0
    %668 = vmatpush1.msra.mxu0 0.0
    %669 = vmatprep.subr.mxu0 0.0
    %670 = vmatpush1.msra.mxu0 0.0
    %671 = vmatprep.subr.mxu0 0.0
    %672 = vmatpush1.msra.mxu0 0.0
    %673 = vmatprep.subr.mxu0 0.0
    %674 = vmatpush1.msra.mxu0 0.0
    %675 = vmatprep.subr.mxu0 0.0
    %676 = vmatpush1.msra.mxu0 0.0
    %677 = vmatprep.subr.mxu0 0.0
    %678 = vmatpush1.msra.mxu0 0.0
    %679 = vmatprep.subr.mxu0 0.0
    %680 = vmatpush1.msra.mxu0 0.0
    %681 = vmatprep.subr.mxu0 0.0
    %682 = vmatpush1.msra.mxu0 0.0
    %683 = vmatprep.subr.mxu0 0.0
    %684 = vmatpush1.msra.mxu0 0.0
    %685 = vmatprep.subr.mxu0 0.0
    %686 = vmatpush1.msra.mxu0 0.0
    %687 = vmatprep.subr.mxu0 0.0
    %688 = vmatpush1.msra.mxu0 0.0
    %689 = vmatprep.subr.mxu0 0.0
    %690 = vmatpush1.msra.mxu0 0.0
    %691 = vmatprep.subr.mxu0 0.0
    %692 = vmatpush1.msra.mxu0 0.0
    %693 = vmatprep.subr.mxu0 0.0
    %694 = vmatpush1.msra.mxu0 0.0
    %695 = vmatprep.subr.mxu0 0.0
    %696 = vmatpush1.msra.mxu0 0.0
    %697 = vmatprep.subr.mxu0 0.0
    %698 = vmatpush1.msra.mxu0 0.0
    %699 = vmatprep.subr.mxu0 0.0
    %700 = vmatpush1.msra.mxu0 0.0
    %701 = vmatprep.subr.mxu0 0.0
    %702 = vmatpush1.msra.mxu0 0.0
    %703 = vmatprep.subr.mxu0 0.0
    %704 = vmatpush1.msra.mxu0 0.0
    %705 = vmatprep.subr.mxu0 0.0
    %706 = vmatpush1.msra.mxu0 0.0
    %707 = vmatprep.subr.mxu0 0.0
    %708 = vmatpush1.msra.mxu0 0.0
    %709 = vmatprep.subr.mxu0 0.0
    %710 = vmatpush1.msra.mxu0 0.0
    %711 = vmatprep.subr.mxu0 0.0
    %712 = vmatpush1.msra.mxu0 0.0
    %713 = vmatprep.subr.mxu0 0.0
    %714 = vmatpush1.msra.mxu0 0.0
    %715 = vmatprep.subr.mxu0 0.0
    %716 = vmatpush1.msra.mxu0 0.0
    %717 = vmatprep.subr.mxu0 0.0
    %718 = vmatpush1.msra.mxu0 0.0
    %719 = vmatprep.subr.mxu0 0.0
    %720 = vmatpush1.msra.mxu0 0.0
    %721 = vmatprep.mubr.f32.mxu0 0.0
    %722 = vmatmul.mubr.f32.gmra.mrb[0].mxu0 %v655
    %v723 = vpop.f32.mrb[0].mxu0
    %v724 = vadd.f32 %v210, %v723
    %v725 = vpop.f32.mrb[0].mxu0
    %726 = vdwg.mxu0
    %v727 = vadd.f32 %v654, %v724
    %v728 = vxor.u32 %v727, 2147483648
    %v729 = vmul.f32 %v728, 1.442695
    %v730 = vpow.pop %v729
    %v731 = vadd.f32 %v730, 1.0
    %v732 = vrcp.pop %v731
    %v733 = vmul.f32 1.0, %v732
    %735 = vrot.lane.b32.xlu0 %v724, 96
    %v736 = vpop.permute.xlu0 %735
    %v738 = vmul.f32 %v733, %v736
    %740 = vrot.lane.b32.xlu0 %v738, 32
    %v741 = vpop.permute.xlu0 %740
    %v743 = vadd.f32 %v654, %v741
    %v744 = vtanh.pop %v743
    %v745 = vsub.f32 %v645, %v744
    %747 = vrot.lane.b32.xlu0 %v745, 112
    %v748 = vpop.permute.xlu0 %747
    %v750 = vmul.f32 %v733, %v748
    %752 = vrot.lane.b32.xlu0 %v750, 16
    %v753 = vpop.permute.xlu0 %752
    %v755 = vadd.f32 %v744, %v753
    %757 = vrot.lane.b32.xlu0 %v755, 96
    %v758 = vpop.permute.xlu0 %757
    %760 = vst.msk [vmem:[#allocation2 + $0x20] sm:$0xff] %vm318, %v758
    %761 = vst.msk [vmem:[#allocation2 + $0x18] sm:$0xff] %vm320, %v758
    %v762 = vld [vmem:[#allocation3 + $0x28] sm:$0xff]
    %v763 = vld [vmem:[#allocation3 + $0x10] sm:$0xff]
    %v764 = vsel %vm43, %v762, %v763
    %v765 = vsel %vm61, %v758, 0
    %767 = vmatprep.subr.mxu0 0.0
    %768 = vmatpush1.msra.mxu0 %v200
    %769 = vmatprep.subr.mxu0 0.0
    %770 = vmatpush1.msra.mxu0 %v201
    %771 = vmatprep.subr.mxu0 0.0
    %772 = vmatpush1.msra.mxu0 0.0
    %773 = vmatprep.subr.mxu0 0.0
    %774 = vmatpush1.msra.mxu0 0.0
    %775 = vmatprep.subr.mxu0 0.0
    %776 = vmatpush1.msra.mxu0 0.0
    %777 = vmatprep.subr.mxu0 0.0
    %778 = vmatpush1.msra.mxu0 0.0
    %779 = vmatprep.subr.mxu0 0.0
    %780 = vmatpush1.msra.mxu0 0.0
    %781 = vmatprep.subr.mxu0 0.0
    %782 = vmatpush1.msra.mxu0 0.0
    %783 = vmatprep.subr.mxu0 0.0
    %784 = vmatpush1.msra.mxu0 0.0
    %785 = vmatprep.subr.mxu0 0.0
    %786 = vmatpush1.msra.mxu0 0.0
    %787 = vmatprep.subr.mxu0 0.0
    %788 = vmatpush1.msra.mxu0 0.0
    %789 = vmatprep.subr.mxu0 0.0
    %790 = vmatpush1.msra.mxu0 0.0
    %791 = vmatprep.subr.mxu0 0.0
    %792 = vmatpush1.msra.mxu0 0.0
    %793 = vmatprep.subr.mxu0 0.0
    %794 = vmatpush1.msra.mxu0 0.0
    %795 = vmatprep.subr.mxu0 0.0
    %796 = vmatpush1.msra.mxu0 0.0
    %797 = vmatprep.subr.mxu0 0.0
    %798 = vmatpush1.msra.mxu0 0.0
    %799 = vmatprep.subr.mxu0 0.0
    %800 = vmatpush1.msra.mxu0 0.0
    %801 = vmatprep.subr.mxu0 0.0
    %802 = vmatpush1.msra.mxu0 0.0
    %803 = vmatprep.subr.mxu0 0.0
    %804 = vmatpush1.msra.mxu0 0.0
    %805 = vmatprep.subr.mxu0 0.0
    %806 = vmatpush1.msra.mxu0 0.0
    %807 = vmatprep.subr.mxu0 0.0
    %808 = vmatpush1.msra.mxu0 0.0
    %809 = vmatprep.subr.mxu0 0.0
    %810 = vmatpush1.msra.mxu0 0.0
    %811 = vmatprep.subr.mxu0 0.0
    %812 = vmatpush1.msra.mxu0 0.0
    %813 = vmatprep.subr.mxu0 0.0
    %814 = vmatpush1.msra.mxu0 0.0
    %815 = vmatprep.subr.mxu0 0.0
    %816 = vmatpush1.msra.mxu0 0.0
    %817 = vmatprep.subr.mxu0 0.0
    %818 = vmatpush1.msra.mxu0 0.0
    %819 = vmatprep.subr.mxu0 0.0
    %820 = vmatpush1.msra.mxu0 0.0
    %821 = vmatprep.subr.mxu0 0.0
    %822 = vmatpush1.msra.mxu0 0.0
    %823 = vmatprep.subr.mxu0 0.0
    %824 = vmatpush1.msra.mxu0 0.0
    %825 = vmatprep.subr.mxu0 0.0
    %826 = vmatpush1.msra.mxu0 0.0
    %827 = vmatprep.subr.mxu0 0.0
    %828 = vmatpush1.msra.mxu0 0.0
    %829 = vmatprep.subr.mxu0 0.0
    %830 = vmatpush1.msra.mxu0 0.0
    %831 = vmatprep.mubr.f32.mxu0 0.0
    %832 = vmatmul.mubr.f32.gmra.mrb[0].mxu0 %v765
    %v833 = vpop.f32.mrb[0].mxu0
    %v834 = vadd.f32 %v210, %v833
    %v835 = vpop.f32.mrb[0].mxu0
    %836 = vdwg.mxu0
    %v837 = vadd.f32 %v764, %v834
    %v838 = vxor.u32 %v837, 2147483648
    %v839 = vmul.f32 %v838, 1.442695
    %v840 = vpow.pop %v839
    %v841 = vadd.f32 %v840, 1.0
    %v842 = vrcp.pop %v841
    %v843 = vmul.f32 1.0, %v842
    %845 = vrot.lane.b32.xlu0 %v834, 96
    %v846 = vpop.permute.xlu0 %845
    %v848 = vmul.f32 %v843, %v846
    %850 = vrot.lane.b32.xlu0 %v848, 32
    %v851 = vpop.permute.xlu0 %850
    %v853 = vadd.f32 %v764, %v851
    %v854 = vtanh.pop %v853
    %v855 = vsub.f32 %v755, %v854
    %857 = vrot.lane.b32.xlu0 %v855, 112
    %v858 = vpop.permute.xlu0 %857
    %v860 = vmul.f32 %v843, %v858
    %862 = vrot.lane.b32.xlu0 %v860, 16
    %v863 = vpop.permute.xlu0 %862
    %v865 = vadd.f32 %v854, %v863
    %867 = vrot.lane.b32.xlu0 %v865, 96
    %v868 = vpop.permute.xlu0 %867
    %870 = vst.msk [vmem:[#allocation2 + $0x28] sm:$0xff] %vm318, %v868
    %871 = vst.msk [vmem:[#allocation2 + $0x10] sm:$0xff] %vm320, %v868
    %v872 = vld [vmem:[#allocation3 + $0x30] sm:$0xff]
    %v873 = vld [vmem:[#allocation3 + $0x8] sm:$0xff]
    %v874 = vsel %vm43, %v872, %v873
    %v875 = vsel %vm61, %v868, 0
    %877 = vmatprep.subr.mxu0 0.0
    %878 = vmatpush1.msra.mxu0 %v200
    %879 = vmatprep.subr.mxu0 0.0
    %880 = vmatpush1.msra.mxu0 %v201
    %881 = vmatprep.subr.mxu0 0.0
    %882 = vmatpush1.msra.mxu0 0.0
    %883 = vmatprep.subr.mxu0 0.0
    %884 = vmatpush1.msra.mxu0 0.0
    %885 = vmatprep.subr.mxu0 0.0
    %886 = vmatpush1.msra.mxu0 0.0
    %887 = vmatprep.subr.mxu0 0.0
    %888 = vmatpush1.msra.mxu0 0.0
    %889 = vmatprep.subr.mxu0 0.0
    %890 = vmatpush1.msra.mxu0 0.0
    %891 = vmatprep.subr.mxu0 0.0
    %892 = vmatpush1.msra.mxu0 0.0
    %893 = vmatprep.subr.mxu0 0.0
    %894 = vmatpush1.msra.mxu0 0.0
    %895 = vmatprep.subr.mxu0 0.0
    %896 = vmatpush1.msra.mxu0 0.0
    %897 = vmatprep.subr.mxu0 0.0
    %898 = vmatpush1.msra.mxu0 0.0
    %899 = vmatprep.subr.mxu0 0.0
    %900 = vmatpush1.msra.mxu0 0.0
    %901 = vmatprep.subr.mxu0 0.0
    %902 = vmatpush1.msra.mxu0 0.0
    %903 = vmatprep.subr.mxu0 0.0
    %904 = vmatpush1.msra.mxu0 0.0
    %905 = vmatprep.subr.mxu0 0.0
    %906 = vmatpush1.msra.mxu0 0.0
    %907 = vmatprep.subr.mxu0 0.0
    %908 = vmatpush1.msra.mxu0 0.0
    %909 = vmatprep.subr.mxu0 0.0
    %910 = vmatpush1.msra.mxu0 0.0
    %911 = vmatprep.subr.mxu0 0.0
    %912 = vmatpush1.msra.mxu0 0.0
    %913 = vmatprep.subr.mxu0 0.0
    %914 = vmatpush1.msra.mxu0 0.0
    %915 = vmatprep.subr.mxu0 0.0
    %916 = vmatpush1.msra.mxu0 0.0
    %917 = vmatprep.subr.mxu0 0.0
    %918 = vmatpush1.msra.mxu0 0.0
    %919 = vmatprep.subr.mxu0 0.0
    %920 = vmatpush1.msra.mxu0 0.0
    %921 = vmatprep.subr.mxu0 0.0
    %922 = vmatpush1.msra.mxu0 0.0
    %923 = vmatprep.subr.mxu0 0.0
    %924 = vmatpush1.msra.mxu0 0.0
    %925 = vmatprep.subr.mxu0 0.0
    %926 = vmatpush1.msra.mxu0 0.0
    %927 = vmatprep.subr.mxu0 0.0
    %928 = vmatpush1.msra.mxu0 0.0
    %929 = vmatprep.subr.mxu0 0.0
    %930 = vmatpush1.msra.mxu0 0.0
    %931 = vmatprep.subr.mxu0 0.0
    %932 = vmatpush1.msra.mxu0 0.0
    %933 = vmatprep.subr.mxu0 0.0
    %934 = vmatpush1.msra.mxu0 0.0
    %935 = vmatprep.subr.mxu0 0.0
    %936 = vmatpush1.msra.mxu0 0.0
    %937 = vmatprep.subr.mxu0 0.0
    %938 = vmatpush1.msra.mxu0 0.0
    %939 = vmatprep.subr.mxu0 0.0
    %940 = vmatpush1.msra.mxu0 0.0
    %941 = vmatprep.mubr.f32.mxu0 0.0
    %942 = vmatmul.mubr.f32.gmra.mrb[0].mxu0 %v875
    %v943 = vpop.f32.mrb[0].mxu0
    %v944 = vadd.f32 %v210, %v943
    %v945 = vpop.f32.mrb[0].mxu0
    %946 = vdwg.mxu0
    %v947 = vadd.f32 %v874, %v944
    %v948 = vxor.u32 %v947, 2147483648
    %v949 = vmul.f32 %v948, 1.442695
    %v950 = vpow.pop %v949
    %v951 = vadd.f32 %v950, 1.0
    %v952 = vrcp.pop %v951
    %v953 = vmul.f32 1.0, %v952
    %955 = vrot.lane.b32.xlu0 %v944, 96
    %v956 = vpop.permute.xlu0 %955
    %v958 = vmul.f32 %v953, %v956
    %960 = vrot.lane.b32.xlu0 %v958, 32
    %v961 = vpop.permute.xlu0 %960
    %v963 = vadd.f32 %v874, %v961
    %v964 = vtanh.pop %v963
    %v965 = vsub.f32 %v865, %v964
    %967 = vrot.lane.b32.xlu0 %v965, 112
    %v968 = vpop.permute.xlu0 %967
    %v970 = vmul.f32 %v953, %v968
    %972 = vrot.lane.b32.xlu0 %v970, 16
    %v973 = vpop.permute.xlu0 %972
    %v975 = vadd.f32 %v964, %v973
    %977 = vrot.lane.b32.xlu0 %v975, 96
    %v978 = vpop.permute.xlu0 %977
    %980 = vst.msk [vmem:[#allocation2 + $0x30] sm:$0xff] %vm318, %v978
    %981 = vst.msk [vmem:[#allocation2 + $0x8] sm:$0xff] %vm320, %v978
    %v982 = vld [vmem:[#allocation3 + $0x38] sm:$0xff]
    %v983 = vld [vmem:[#allocation3] sm:$0xff]
    %v984 = vsel %vm43, %v982, %v983
    %v985 = vsel %vm61, %v978, 0
    %987 = vmatprep.subr.mxu0 0.0
    %988 = vmatpush1.msra.mxu0 %v200
    %989 = vmatprep.subr.mxu0 0.0
    %990 = vmatpush1.msra.mxu0 %v201
    %991 = vmatprep.subr.mxu0 0.0
    %992 = vmatpush1.msra.mxu0 0.0
    %993 = vmatprep.subr.mxu0 0.0
    %994 = vmatpush1.msra.mxu0 0.0
    %995 = vmatprep.subr.mxu0 0.0
    %996 = vmatpush1.msra.mxu0 0.0
    %997 = vmatprep.subr.mxu0 0.0
    %998 = vmatpush1.msra.mxu0 0.0
    %999 = vmatprep.subr.mxu0 0.0
    %1000 = vmatpush1.msra.mxu0 0.0
    %1001 = vmatprep.subr.mxu0 0.0
    %1002 = vmatpush1.msra.mxu0 0.0
    %1003 = vmatprep.subr.mxu0 0.0
    %1004 = vmatpush1.msra.mxu0 0.0
    %1005 = vmatprep.subr.mxu0 0.0
    %1006 = vmatpush1.msra.mxu0 0.0
    %1007 = vmatprep.subr.mxu0 0.0
    %1008 = vmatpush1.msra.mxu0 0.0
    %1009 = vmatprep.subr.mxu0 0.0
    %1010 = vmatpush1.msra.mxu0 0.0
    %1011 = vmatprep.subr.mxu0 0.0
    %1012 = vmatpush1.msra.mxu0 0.0
    %1013 = vmatprep.subr.mxu0 0.0
    %1014 = vmatpush1.msra.mxu0 0.0
    %1015 = vmatprep.subr.mxu0 0.0
    %1016 = vmatpush1.msra.mxu0 0.0
    %1017 = vmatprep.subr.mxu0 0.0
    %1018 = vmatpush1.msra.mxu0 0.0
    %1019 = vmatprep.subr.mxu0 0.0
    %1020 = vmatpush1.msra.mxu0 0.0
    %1021 = vmatprep.subr.mxu0 0.0
    %1022 = vmatpush1.msra.mxu0 0.0
    %1023 = vmatprep.subr.mxu0 0.0
    %1024 = vmatpush1.msra.mxu0 0.0
    %1025 = vmatprep.subr.mxu0 0.0
    %1026 = vmatpush1.msra.mxu0 0.0
    %1027 = vmatprep.subr.mxu0 0.0
    %1028 = vmatpush1.msra.mxu0 0.0
    %1029 = vmatprep.subr.mxu0 0.0
    %1030 = vmatpush1.msra.mxu0 0.0
    %1031 = vmatprep.subr.mxu0 0.0
    %1032 = vmatpush1.msra.mxu0 0.0
    %1033 = vmatprep.subr.mxu0 0.0
    %1034 = vmatpush1.msra.mxu0 0.0
    %1035 = vmatprep.subr.mxu0 0.0
    %1036 = vmatpush1.msra.mxu0 0.0
    %1037 = vmatprep.subr.mxu0 0.0
    %1038 = vmatpush1.msra.mxu0 0.0
    %1039 = vmatprep.subr.mxu0 0.0
    %1040 = vmatpush1.msra.mxu0 0.0
    %1041 = vmatprep.subr.mxu0 0.0
    %1042 = vmatpush1.msra.mxu0 0.0
    %1043 = vmatprep.subr.mxu0 0.0
    %1044 = vmatpush1.msra.mxu0 0.0
    %1045 = vmatprep.subr.mxu0 0.0
    %1046 = vmatpush1.msra.mxu0 0.0
    %1047 = vmatprep.subr.mxu0 0.0
    %1048 = vmatpush1.msra.mxu0 0.0
    %1049 = vmatprep.subr.mxu0 0.0
    %1050 = vmatpush1.msra.mxu0 0.0
    %1051 = vmatprep.mubr.f32.mxu0 0.0
    %1052 = vmatmul.mubr.f32.gmra.mrb[0].mxu0 %v985
    %v1053 = vpop.f32.mrb[0].mxu0
    %v1054 = vadd.f32 %v210, %v1053
    %v1055 = vpop.f32.mrb[0].mxu0
    %1056 = vdwg.mxu0
    %v1057 = vadd.f32 %v984, %v1054
    %v1058 = vxor.u32 %v1057, 2147483648
    %v1059 = vmul.f32 %v1058, 1.442695
    %v1060 = vpow.pop %v1059
    %v1061 = vadd.f32 %v1060, 1.0
    %v1062 = vrcp.pop %v1061
    %v1063 = vmul.f32 1.0, %v1062
    %1065 = vrot.lane.b32.xlu0 %v1054, 96
    %v1066 = vpop.permute.xlu0 %1065
    %v1068 = vmul.f32 %v1063, %v1066
    %1070 = vrot.lane.b32.xlu0 %v1068, 32
    %v1071 = vpop.permute.xlu0 %1070
    %v1073 = vadd.f32 %v984, %v1071
    %v1074 = vtanh.pop %v1073
    %v1075 = vsub.f32 %v975, %v1074
    %1077 = vrot.lane.b32.xlu0 %v1075, 112
    %v1078 = vpop.permute.xlu0 %1077
    %v1080 = vmul.f32 %v1063, %v1078
    %1082 = vrot.lane.b32.xlu0 %v1080, 16
    %v1083 = vpop.permute.xlu0 %1082
    %v1085 = vadd.f32 %v1074, %v1083
    %1087 = vrot.lane.b32.xlu0 %v1085, 96
    %v1088 = vpop.permute.xlu0 %1087
    %1090 = vst.msk [vmem:[#allocation2 + $0x38] sm:$0xff] %vm318, %v1088
    %1091 = vst.msk [vmem:[#allocation2] sm:$0xff] %vm320, %v1088
    %v1092 = vld [vmem:[#allocation2] sm:$0xff]
    %v1093 = vld [vmem:[#allocation2 + $0x8] sm:$0xff]
    %v1094 = vld [vmem:[#allocation2 + $0x10] sm:$0xff]
    %v1095 = vld [vmem:[#allocation2 + $0x18] sm:$0xff]
    %v1096 = vld [vmem:[#allocation2 + $0x20] sm:$0xff]
    %v1097 = vld [vmem:[#allocation2 + $0x28] sm:$0xff]
    %v1098 = vld [vmem:[#allocation2 + $0x30] sm:$0xff]
    %v1099 = vld [vmem:[#allocation2 + $0x38] sm:$0xff]
    %s1100 = scalar_lea.vmem %s1, 16
    %v1101 = vld [vmem:[%s1100] sm:$0xff]
    %v1102 = vld [vmem:[%s1100 + $0x8] sm:$0xff]
    %s1103 = scalar_lea.vmem %s2, 1
    %v1104 = vld [vmem:[%s1103] sm:$0x1]
    %v1106 = vlaneseq
    %v1107 = vshrl.u32 %v1106, 7
    %v1108 = vsub.s32 0, %v1107
    %v1109 = vrot.slane %v1104, %v1108
    %v1112 = vsel %vm61, %v1092, 0
    %v1115 = vsel %vm61, %v1093, 0
    %v1118 = vsel %vm61, %v1094, 0
    %v1121 = vsel %vm61, %v1095, 0
    %v1124 = vsel %vm61, %v1096, 0
    %v1127 = vsel %vm61, %v1097, 0
    %v1130 = vsel %vm61, %v1098, 0
    %v1133 = vsel %vm61, %v1099, 0
    %1135 = vmatprep.subr.mxu0 0.0
    %1136 = vmatpush1.msra.mxu0 %v1101
    %1137 = vmatprep.subr.mxu0 0.0
    %1138 = vmatpush1.msra.mxu0 %v1102
    %1139 = vmatprep.subr.mxu0 0.0
    %1140 = vmatpush1.msra.mxu0 0.0
    %1141 = vmatprep.subr.mxu0 0.0
    %1142 = vmatpush1.msra.mxu0 0.0
    %1143 = vmatprep.subr.mxu0 0.0
    %1144 = vmatpush1.msra.mxu0 0.0
    %1145 = vmatprep.subr.mxu0 0.0
    %1146 = vmatpush1.msra.mxu0 0.0
    %1147 = vmatprep.subr.mxu0 0.0
    %1148 = vmatpush1.msra.mxu0 0.0
    %1149 = vmatprep.subr.mxu0 0.0
    %1150 = vmatpush1.msra.mxu0 0.0
    %1151 = vmatprep.subr.mxu0 0.0
    %1152 = vmatpush1.msra.mxu0 0.0
    %1153 = vmatprep.subr.mxu0 0.0
    %1154 = vmatpush1.msra.mxu0 0.0
    %1155 = vmatprep.subr.mxu0 0.0
    %1156 = vmatpush1.msra.mxu0 0.0
    %1157 = vmatprep.subr.mxu0 0.0
    %1158 = vmatpush1.msra.mxu0 0.0
    %1159 = vmatprep.subr.mxu0 0.0
    %1160 = vmatpush1.msra.mxu0 0.0
    %1161 = vmatprep.subr.mxu0 0.0
    %1162 = vmatpush1.msra.mxu0 0.0
    %1163 = vmatprep.subr.mxu0 0.0
    %1164 = vmatpush1.msra.mxu0 0.0
    %1165 = vmatprep.subr.mxu0 0.0
    %1166 = vmatpush1.msra.mxu0 0.0
    %1167 = vmatprep.subr.mxu0 0.0
    %1168 = vmatpush1.msra.mxu0 0.0
    %1169 = vmatprep.subr.mxu0 0.0
    %1170 = vmatpush1.msra.mxu0 0.0
    %1171 = vmatprep.subr.mxu0 0.0
    %1172 = vmatpush1.msra.mxu0 0.0
    %1173 = vmatprep.subr.mxu0 0.0
    %1174 = vmatpush1.msra.mxu0 0.0
    %1175 = vmatprep.subr.mxu0 0.0
    %1176 = vmatpush1.msra.mxu0 0.0
    %1177 = vmatprep.subr.mxu0 0.0
    %1178 = vmatpush1.msra.mxu0 0.0
    %1179 = vmatprep.subr.mxu0 0.0
    %1180 = vmatpush1.msra.mxu0 0.0
    %1181 = vmatprep.subr.mxu0 0.0
    %1182 = vmatpush1.msra.mxu0 0.0
    %1183 = vmatprep.subr.mxu0 0.0
    %1184 = vmatpush1.msra.mxu0 0.0
    %1185 = vmatprep.subr.mxu0 0.0
    %1186 = vmatpush1.msra.mxu0 0.0
    %1187 = vmatprep.subr.mxu0 0.0
    %1188 = vmatpush1.msra.mxu0 0.0
    %1189 = vmatprep.subr.mxu0 0.0
    %1190 = vmatpush1.msra.mxu0 0.0
    %1191 = vmatprep.subr.mxu0 0.0
    %1192 = vmatpush1.msra.mxu0 0.0
    %1193 = vmatprep.subr.mxu0 0.0
    %1194 = vmatpush1.msra.mxu0 0.0
    %1195 = vmatprep.subr.mxu0 0.0
    %1196 = vmatpush1.msra.mxu0 0.0
    %1197 = vmatprep.subr.mxu0 0.0
    %1198 = vmatpush1.msra.mxu0 0.0
    %1199 = vmatprep.mubr.f32.mxu0 0.0
    %1200 = vmatmul.mubr.f32.gmra.mrb[0].mxu0 %v1112
    %v1201 = vpop.f32.mrb[0].mxu0
    %v1202 = vadd.f32 %v1109, %v1201
    %v1203 = vpop.f32.mrb[0].mxu0
    %1204 = vmatprep.mubr.f32.mxu0 0.0
    %1205 = vmatmul.mubr.f32.gmra.mrb[0].mxu0 %v1115
    %v1206 = vpop.f32.mrb[0].mxu0
    %v1207 = vadd.f32 %v1109, %v1206
    %v1208 = vpop.f32.mrb[0].mxu0
    %1209 = vmatprep.mubr.f32.mxu0 0.0
    %1210 = vmatmul.mubr.f32.gmra.mrb[0].mxu0 %v1118
    %v1211 = vpop.f32.mrb[0].mxu0
    %v1212 = vadd.f32 %v1109, %v1211
    %v1213 = vpop.f32.mrb[0].mxu0
    %1214 = vmatprep.mubr.f32.mxu0 0.0
    %1215 = vmatmul.mubr.f32.gmra.mrb[0].mxu0 %v1121
    %v1216 = vpop.f32.mrb[0].mxu0
    %v1217 = vadd.f32 %v1109, %v1216
    %v1218 = vpop.f32.mrb[0].mxu0
    %1219 = vmatprep.mubr.f32.mxu0 0.0
    %1220 = vmatmul.mubr.f32.gmra.mrb[0].mxu0 %v1124
    %v1221 = vpop.f32.mrb[0].mxu0
    %v1222 = vadd.f32 %v1109, %v1221
    %v1223 = vpop.f32.mrb[0].mxu0
    %1224 = vmatprep.mubr.f32.mxu0 0.0
    %1225 = vmatmul.mubr.f32.gmra.mrb[0].mxu0 %v1127
    %v1226 = vpop.f32.mrb[0].mxu0
    %v1227 = vadd.f32 %v1109, %v1226
    %v1228 = vpop.f32.mrb[0].mxu0
    %1229 = vmatprep.mubr.f32.mxu0 0.0
    %1230 = vmatmul.mubr.f32.gmra.mrb[0].mxu0 %v1130
    %v1231 = vpop.f32.mrb[0].mxu0
    %v1232 = vadd.f32 %v1109, %v1231
    %v1233 = vpop.f32.mrb[0].mxu0
    %1234 = vmatprep.mubr.f32.mxu0 0.0
    %1235 = vmatmul.mubr.f32.gmra.mrb[0].mxu0 %v1133
    %v1236 = vpop.f32.mrb[0].mxu0
    %v1237 = vadd.f32 %v1109, %v1236
    %v1238 = vpop.f32.mrb[0].mxu0
    %1239 = vdwg.mxu0
    %1240 = vst.msk [vmem:[#allocation3] sm:$0xff] %vm191, %v1202
    %1241 = vst.msk [vmem:[#allocation3 + $0x8] sm:$0xff] %vm191, %v1207
    %1242 = vst.msk [vmem:[#allocation3 + $0x10] sm:$0xff] %vm191, %v1212
    %1243 = vst.msk [vmem:[#allocation3 + $0x18] sm:$0xff] %vm191, %v1217
    %1244 = vst.msk [vmem:[#allocation3 + $0x20] sm:$0xff] %vm191, %v1222
    %1245 = vst.msk [vmem:[#allocation3 + $0x28] sm:$0xff] %vm191, %v1227
    %1246 = vst.msk [vmem:[#allocation3 + $0x30] sm:$0xff] %vm191, %v1232
    %1247 = vst.msk [vmem:[#allocation3 + $0x38] sm:$0xff] %vm191, %v1237
    %s1248 = scalar_lea.vmem %s3, 16
    %v1249 = vld [vmem:[%s1248] sm:$0xff]
    %v1250 = vld [vmem:[%s1248 + $0x8] sm:$0xff]
    %s1251 = scalar_lea.vmem %s4, 1
    %v1252 = vld [vmem:[%s1251] sm:$0x1]
    %v1253 = vld [vmem:[#allocation3] sm:$0xff]
    %v1254 = vld [vmem:[#allocation3 + $0x38] sm:$0xff]
    %v1255 = vsel %vm43, %v1253, %v1254
    %v1257 = vlaneseq
    %v1258 = vshrl.u32 %v1257, 7
    %v1259 = vsub.s32 0, %v1258
    %v1260 = vrot.slane %v1252, %v1259
    %1262 = vmatprep.subr.mxu0 0.0
    %1263 = vmatpush1.msra.mxu0 %v1249
    %1264 = vmatprep.subr.mxu0 0.0
    %1265 = vmatpush1.msra.mxu0 %v1250
    %1266 = vmatprep.subr.mxu0 0.0
    %1267 = vmatpush1.msra.mxu0 0.0
    %1268 = vmatprep.subr.mxu0 0.0
    %1269 = vmatpush1.msra.mxu0 0.0
    %1270 = vmatprep.subr.mxu0 0.0
    %1271 = vmatpush1.msra.mxu0 0.0
    %1272 = vmatprep.subr.mxu0 0.0
    %1273 = vmatpush1.msra.mxu0 0.0
    %1274 = vmatprep.subr.mxu0 0.0
    %1275 = vmatpush1.msra.mxu0 0.0
    %1276 = vmatprep.subr.mxu0 0.0
    %1277 = vmatpush1.msra.mxu0 0.0
    %1278 = vmatprep.subr.mxu0 0.0
    %1279 = vmatpush1.msra.mxu0 0.0
    %1280 = vmatprep.subr.mxu0 0.0
    %1281 = vmatpush1.msra.mxu0 0.0
    %1282 = vmatprep.subr.mxu0 0.0
    %1283 = vmatpush1.msra.mxu0 0.0
    %1284 = vmatprep.subr.mxu0 0.0
    %1285 = vmatpush1.msra.mxu0 0.0
    %1286 = vmatprep.subr.mxu0 0.0
    %1287 = vmatpush1.msra.mxu0 0.0
    %1288 = vmatprep.subr.mxu0 0.0
    %1289 = vmatpush1.msra.mxu0 0.0
    %1290 = vmatprep.subr.mxu0 0.0
    %1291 = vmatpush1.msra.mxu0 0.0
    %1292 = vmatprep.subr.mxu0 0.0
    %1293 = vmatpush1.msra.mxu0 0.0
    %1294 = vmatprep.subr.mxu0 0.0
    %1295 = vmatpush1.msra.mxu0 0.0
    %1296 = vmatprep.subr.mxu0 0.0
    %1297 = vmatpush1.msra.mxu0 0.0
    %1298 = vmatprep.subr.mxu0 0.0
    %1299 = vmatpush1.msra.mxu0 0.0
    %1300 = vmatprep.subr.mxu0 0.0
    %1301 = vmatpush1.msra.mxu0 0.0
    %1302 = vmatprep.subr.mxu0 0.0
    %1303 = vmatpush1.msra.mxu0 0.0
    %1304 = vmatprep.subr.mxu0 0.0
    %1305 = vmatpush1.msra.mxu0 0.0
    %1306 = vmatprep.subr.mxu0 0.0
    %1307 = vmatpush1.msra.mxu0 0.0
    %1308 = vmatprep.subr.mxu0 0.0
    %1309 = vmatpush1.msra.mxu0 0.0
    %1310 = vmatprep.subr.mxu0 0.0
    %1311 = vmatpush1.msra.mxu0 0.0
    %1312 = vmatprep.subr.mxu0 0.0
    %1313 = vmatpush1.msra.mxu0 0.0
    %1314 = vmatprep.subr.mxu0 0.0
    %1315 = vmatpush1.msra.mxu0 0.0
    %1316 = vmatprep.subr.mxu0 0.0
    %1317 = vmatpush1.msra.mxu0 0.0
    %1318 = vmatprep.subr.mxu0 0.0
    %1319 = vmatpush1.msra.mxu0 0.0
    %1320 = vmatprep.subr.mxu0 0.0
    %1321 = vmatpush1.msra.mxu0 0.0
    %1322 = vmatprep.subr.mxu0 0.0
    %1323 = vmatpush1.msra.mxu0 0.0
    %1324 = vmatprep.subr.mxu0 0.0
    %1325 = vmatpush1.msra.mxu0 0.0
    %1326 = vmatprep.mubr.f32.mxu0 0.0
    %1327 = vmatmul.mubr.f32.gmra.mrb[0].mxu0 %v213
    %v1328 = vpop.f32.mrb[0].mxu0
    %v1329 = vadd.f32 %v1260, %v1328
    %v1330 = vpop.f32.mrb[0].mxu0
    %1331 = vdwg.mxu0
    %v1332 = vadd.f32 %v1255, %v1329
    %v1333 = vxor.u32 %v1332, 2147483648
    %v1334 = vmul.f32 %v1333, 1.442695
    %v1335 = vpow.pop %v1334
    %v1336 = vadd.f32 %v1335, 1.0
    %v1337 = vrcp.pop %v1336
    %v1338 = vmul.f32 1.0, %v1337
    %1340 = vrot.lane.b32.xlu0 %v1329, 96
    %v1341 = vpop.permute.xlu0 %1340
    %v1343 = vmul.f32 %v1338, %v1341
    %1345 = vrot.lane.b32.xlu0 %v1343, 32
    %v1346 = vpop.permute.xlu0 %1345
    %v1348 = vadd.f32 %v1255, %v1346
    %v1349 = vtanh.pop %v1348
    %v1350 = vsub.f32 0.0, %v1349
    %1352 = vrot.lane.b32.xlu0 %v1350, 112
    %v1353 = vpop.permute.xlu0 %1352
    %v1355 = vmul.f32 %v1338, %v1353
    %1357 = vrot.lane.b32.xlu0 %v1355, 16
    %v1358 = vpop.permute.xlu0 %1357
    %v1360 = vadd.f32 %v1349, %v1358
    %1362 = vrot.lane.b32.xlu0 %v1360, 96
    %v1363 = vpop.permute.xlu0 %1362
    %1365 = vst.msk [vmem:[#allocation2] sm:$0xff] %vm318, %v1363
    %1366 = vst.msk [vmem:[#allocation2 + $0x38] sm:$0xff] %vm320, %v1363
    %v1367 = vld [vmem:[#allocation3 + $0x8] sm:$0xff]
    %v1368 = vld [vmem:[#allocation3 + $0x30] sm:$0xff]
    %v1369 = vsel %vm43, %v1367, %v1368
    %v1370 = vsel %vm61, %v1363, 0
    %1372 = vmatprep.subr.mxu0 0.0
    %1373 = vmatpush1.msra.mxu0 %v1249
    %1374 = vmatprep.subr.mxu0 0.0
    %1375 = vmatpush1.msra.mxu0 %v1250
    %1376 = vmatprep.subr.mxu0 0.0
    %1377 = vmatpush1.msra.mxu0 0.0
    %1378 = vmatprep.subr.mxu0 0.0
    %1379 = vmatpush1.msra.mxu0 0.0
    %1380 = vmatprep.subr.mxu0 0.0
    %1381 = vmatpush1.msra.mxu0 0.0
    %1382 = vmatprep.subr.mxu0 0.0
    %1383 = vmatpush1.msra.mxu0 0.0
    %1384 = vmatprep.subr.mxu0 0.0
    %1385 = vmatpush1.msra.mxu0 0.0
    %1386 = vmatprep.subr.mxu0 0.0
    %1387 = vmatpush1.msra.mxu0 0.0
    %1388 = vmatprep.subr.mxu0 0.0
    %1389 = vmatpush1.msra.mxu0 0.0
    %1390 = vmatprep.subr.mxu0 0.0
    %1391 = vmatpush1.msra.mxu0 0.0
    %1392 = vmatprep.subr.mxu0 0.0
    %1393 = vmatpush1.msra.mxu0 0.0
    %1394 = vmatprep.subr.mxu0 0.0
    %1395 = vmatpush1.msra.mxu0 0.0
    %1396 = vmatprep.subr.mxu0 0.0
    %1397 = vmatpush1.msra.mxu0 0.0
    %1398 = vmatprep.subr.mxu0 0.0
    %1399 = vmatpush1.msra.mxu0 0.0
    %1400 = vmatprep.subr.mxu0 0.0
    %1401 = vmatpush1.msra.mxu0 0.0
    %1402 = vmatprep.subr.mxu0 0.0
    %1403 = vmatpush1.msra.mxu0 0.0
    %1404 = vmatprep.subr.mxu0 0.0
    %1405 = vmatpush1.msra.mxu0 0.0
    %1406 = vmatprep.subr.mxu0 0.0
    %1407 = vmatpush1.msra.mxu0 0.0
    %1408 = vmatprep.subr.mxu0 0.0
    %1409 = vmatpush1.msra.mxu0 0.0
    %1410 = vmatprep.subr.mxu0 0.0
    %1411 = vmatpush1.msra.mxu0 0.0
    %1412 = vmatprep.subr.mxu0 0.0
    %1413 = vmatpush1.msra.mxu0 0.0
    %1414 = vmatprep.subr.mxu0 0.0
    %1415 = vmatpush1.msra.mxu0 0.0
    %1416 = vmatprep.subr.mxu0 0.0
    %1417 = vmatpush1.msra.mxu0 0.0
    %1418 = vmatprep.subr.mxu0 0.0
    %1419 = vmatpush1.msra.mxu0 0.0
    %1420 = vmatprep.subr.mxu0 0.0
    %1421 = vmatpush1.msra.mxu0 0.0
    %1422 = vmatprep.subr.mxu0 0.0
    %1423 = vmatpush1.msra.mxu0 0.0
    %1424 = vmatprep.subr.mxu0 0.0
    %1425 = vmatpush1.msra.mxu0 0.0
    %1426 = vmatprep.subr.mxu0 0.0
    %1427 = vmatpush1.msra.mxu0 0.0
    %1428 = vmatprep.subr.mxu0 0.0
    %1429 = vmatpush1.msra.mxu0 0.0
    %1430 = vmatprep.subr.mxu0 0.0
    %1431 = vmatpush1.msra.mxu0 0.0
    %1432 = vmatprep.subr.mxu0 0.0
    %1433 = vmatpush1.msra.mxu0 0.0
    %1434 = vmatprep.subr.mxu0 0.0
    %1435 = vmatpush1.msra.mxu0 0.0
    %1436 = vmatprep.mubr.f32.mxu0 0.0
    %1437 = vmatmul.mubr.f32.gmra.mrb[0].mxu0 %v1370
    %v1438 = vpop.f32.mrb[0].mxu0
    %v1439 = vadd.f32 %v1260, %v1438
    %v1440 = vpop.f32.mrb[0].mxu0
    %1441 = vdwg.mxu0
    %v1442 = vadd.f32 %v1369, %v1439
    %v1443 = vxor.u32 %v1442, 2147483648
    %v1444 = vmul.f32 %v1443, 1.442695
    %v1445 = vpow.pop %v1444
    %v1446 = vadd.f32 %v1445, 1.0
    %v1447 = vrcp.pop %v1446
    %v1448 = vmul.f32 1.0, %v1447
    %1450 = vrot.lane.b32.xlu0 %v1439, 96
    %v1451 = vpop.permute.xlu0 %1450
    %v1453 = vmul.f32 %v1448, %v1451
    %1455 = vrot.lane.b32.xlu0 %v1453, 32
    %v1456 = vpop.permute.xlu0 %1455
    %v1458 = vadd.f32 %v1369, %v1456
    %v1459 = vtanh.pop %v1458
    %v1460 = vsub.f32 %v1360, %v1459
    %1462 = vrot.lane.b32.xlu0 %v1460, 112
    %v1463 = vpop.permute.xlu0 %1462
    %v1465 = vmul.f32 %v1448, %v1463
    %1467 = vrot.lane.b32.xlu0 %v1465, 16
    %v1468 = vpop.permute.xlu0 %1467
    %v1470 = vadd.f32 %v1459, %v1468
    %1472 = vrot.lane.b32.xlu0 %v1470, 96
    %v1473 = vpop.permute.xlu0 %1472
    %1475 = vst.msk [vmem:[#allocation2 + $0x8] sm:$0xff] %vm318, %v1473
    %1476 = vst.msk [vmem:[#allocation2 + $0x30] sm:$0xff] %vm320, %v1473
    %v1477 = vld [vmem:[#allocation3 + $0x10] sm:$0xff]
    %v1478 = vld [vmem:[#allocation3 + $0x28] sm:$0xff]
    %v1479 = vsel %vm43, %v1477, %v1478
    %v1480 = vsel %vm61, %v1473, 0
    %1482 = vmatprep.subr.mxu0 0.0
    %1483 = vmatpush1.msra.mxu0 %v1249
    %1484 = vmatprep.subr.mxu0 0.0
    %1485 = vmatpush1.msra.mxu0 %v1250
    %1486 = vmatprep.subr.mxu0 0.0
    %1487 = vmatpush1.msra.mxu0 0.0
    %1488 = vmatprep.subr.mxu0 0.0
    %1489 = vmatpush1.msra.mxu0 0.0
    %1490 = vmatprep.subr.mxu0 0.0
    %1491 = vmatpush1.msra.mxu0 0.0
    %1492 = vmatprep.subr.mxu0 0.0
    %1493 = vmatpush1.msra.mxu0 0.0
    %1494 = vmatprep.subr.mxu0 0.0
    %1495 = vmatpush1.msra.mxu0 0.0
    %1496 = vmatprep.subr.mxu0 0.0
    %1497 = vmatpush1.msra.mxu0 0.0
    %1498 = vmatprep.subr.mxu0 0.0
    %1499 = vmatpush1.msra.mxu0 0.0
    %1500 = vmatprep.subr.mxu0 0.0
    %1501 = vmatpush1.msra.mxu0 0.0
    %1502 = vmatprep.subr.mxu0 0.0
    %1503 = vmatpush1.msra.mxu0 0.0
    %1504 = vmatprep.subr.mxu0 0.0
    %1505 = vmatpush1.msra.mxu0 0.0
    %1506 = vmatprep.subr.mxu0 0.0
    %1507 = vmatpush1.msra.mxu0 0.0
    %1508 = vmatprep.subr.mxu0 0.0
    %1509 = vmatpush1.msra.mxu0 0.0
    %1510 = vmatprep.subr.mxu0 0.0
    %1511 = vmatpush1.msra.mxu0 0.0
    %1512 = vmatprep.subr.mxu0 0.0
    %1513 = vmatpush1.msra.mxu0 0.0
    %1514 = vmatprep.subr.mxu0 0.0
    %1515 = vmatpush1.msra.mxu0 0.0
    %1516 = vmatprep.subr.mxu0 0.0
    %1517 = vmatpush1.msra.mxu0 0.0
    %1518 = vmatprep.subr.mxu0 0.0
    %1519 = vmatpush1.msra.mxu0 0.0
    %1520 = vmatprep.subr.mxu0 0.0
    %1521 = vmatpush1.msra.mxu0 0.0
    %1522 = vmatprep.subr.mxu0 0.0
    %1523 = vmatpush1.msra.mxu0 0.0
    %1524 = vmatprep.subr.mxu0 0.0
    %1525 = vmatpush1.msra.mxu0 0.0
    %1526 = vmatprep.subr.mxu0 0.0
    %1527 = vmatpush1.msra.mxu0 0.0
    %1528 = vmatprep.subr.mxu0 0.0
    %1529 = vmatpush1.msra.mxu0 0.0
    %1530 = vmatprep.subr.mxu0 0.0
    %1531 = vmatpush1.msra.mxu0 0.0
    %1532 = vmatprep.subr.mxu0 0.0
    %1533 = vmatpush1.msra.mxu0 0.0
    %1534 = vmatprep.subr.mxu0 0.0
    %1535 = vmatpush1.msra.mxu0 0.0
    %1536 = vmatprep.subr.mxu0 0.0
    %1537 = vmatpush1.msra.mxu0 0.0
    %1538 = vmatprep.subr.mxu0 0.0
    %1539 = vmatpush1.msra.mxu0 0.0
    %1540 = vmatprep.subr.mxu0 0.0
    %1541 = vmatpush1.msra.mxu0 0.0
    %1542 = vmatprep.subr.mxu0 0.0
    %1543 = vmatpush1.msra.mxu0 0.0
    %1544 = vmatprep.subr.mxu0 0.0
    %1545 = vmatpush1.msra.mxu0 0.0
    %1546 = vmatprep.mubr.f32.mxu0 0.0
    %1547 = vmatmul.mubr.f32.gmra.mrb[0].mxu0 %v1480
    %v1548 = vpop.f32.mrb[0].mxu0
    %v1549 = vadd.f32 %v1260, %v1548
    %v1550 = vpop.f32.mrb[0].mxu0
    %1551 = vdwg.mxu0
    %v1552 = vadd.f32 %v1479, %v1549
    %v1553 = vxor.u32 %v1552, 2147483648
    %v1554 = vmul.f32 %v1553, 1.442695
    %v1555 = vpow.pop %v1554
    %v1556 = vadd.f32 %v1555, 1.0
    %v1557 = vrcp.pop %v1556
    %v1558 = vmul.f32 1.0, %v1557
    %1560 = vrot.lane.b32.xlu0 %v1549, 96
    %v1561 = vpop.permute.xlu0 %1560
    %v1563 = vmul.f32 %v1558, %v1561
    %1565 = vrot.lane.b32.xlu0 %v1563, 32
    %v1566 = vpop.permute.xlu0 %1565
    %v1568 = vadd.f32 %v1479, %v1566
    %v1569 = vtanh.pop %v1568
    %v1570 = vsub.f32 %v1470, %v1569
    %1572 = vrot.lane.b32.xlu0 %v1570, 112
    %v1573 = vpop.permute.xlu0 %1572
    %v1575 = vmul.f32 %v1558, %v1573
    %1577 = vrot.lane.b32.xlu0 %v1575, 16
    %v1578 = vpop.permute.xlu0 %1577
    %v1580 = vadd.f32 %v1569, %v1578
    %1582 = vrot.lane.b32.xlu0 %v1580, 96
    %v1583 = vpop.permute.xlu0 %1582
    %1585 = vst.msk [vmem:[#allocation2 + $0x10] sm:$0xff] %vm318, %v1583
    %1586 = vst.msk [vmem:[#allocation2 + $0x28] sm:$0xff] %vm320, %v1583
    %v1587 = vld [vmem:[#allocation3 + $0x18] sm:$0xff]
    %v1588 = vld [vmem:[#allocation3 + $0x20] sm:$0xff]
    %v1589 = vsel %vm43, %v1587, %v1588
    %v1590 = vsel %vm61, %v1583, 0
    %1592 = vmatprep.subr.mxu0 0.0
    %1593 = vmatpush1.msra.mxu0 %v1249
    %1594 = vmatprep.subr.mxu0 0.0
    %1595 = vmatpush1.msra.mxu0 %v1250
    %1596 = vmatprep.subr.mxu0 0.0
    %1597 = vmatpush1.msra.mxu0 0.0
    %1598 = vmatprep.subr.mxu0 0.0
    %1599 = vmatpush1.msra.mxu0 0.0
    %1600 = vmatprep.subr.mxu0 0.0
    %1601 = vmatpush1.msra.mxu0 0.0
    %1602 = vmatprep.subr.mxu0 0.0
    %1603 = vmatpush1.msra.mxu0 0.0
    %1604 = vmatprep.subr.mxu0 0.0
    %1605 = vmatpush1.msra.mxu0 0.0
    %1606 = vmatprep.subr.mxu0 0.0
    %1607 = vmatpush1.msra.mxu0 0.0
    %1608 = vmatprep.subr.mxu0 0.0
    %1609 = vmatpush1.msra.mxu0 0.0
    %1610 = vmatprep.subr.mxu0 0.0
    %1611 = vmatpush1.msra.mxu0 0.0
    %1612 = vmatprep.subr.mxu0 0.0
    %1613 = vmatpush1.msra.mxu0 0.0
    %1614 = vmatprep.subr.mxu0 0.0
    %1615 = vmatpush1.msra.mxu0 0.0
    %1616 = vmatprep.subr.mxu0 0.0
    %1617 = vmatpush1.msra.mxu0 0.0
    %1618 = vmatprep.subr.mxu0 0.0
    %1619 = vmatpush1.msra.mxu0 0.0
    %1620 = vmatprep.subr.mxu0 0.0
    %1621 = vmatpush1.msra.mxu0 0.0
    %1622 = vmatprep.subr.mxu0 0.0
    %1623 = vmatpush1.msra.mxu0 0.0
    %1624 = vmatprep.subr.mxu0 0.0
    %1625 = vmatpush1.msra.mxu0 0.0
    %1626 = vmatprep.subr.mxu0 0.0
    %1627 = vmatpush1.msra.mxu0 0.0
    %1628 = vmatprep.subr.mxu0 0.0
    %1629 = vmatpush1.msra.mxu0 0.0
    %1630 = vmatprep.subr.mxu0 0.0
    %1631 = vmatpush1.msra.mxu0 0.0
    %1632 = vmatprep.subr.mxu0 0.0
    %1633 = vmatpush1.msra.mxu0 0.0
    %1634 = vmatprep.subr.mxu0 0.0
    %1635 = vmatpush1.msra.mxu0 0.0
    %1636 = vmatprep.subr.mxu0 0.0
    %1637 = vmatpush1.msra.mxu0 0.0
    %1638 = vmatprep.subr.mxu0 0.0
    %1639 = vmatpush1.msra.mxu0 0.0
    %1640 = vmatprep.subr.mxu0 0.0
    %1641 = vmatpush1.msra.mxu0 0.0
    %1642 = vmatprep.subr.mxu0 0.0
    %1643 = vmatpush1.msra.mxu0 0.0
    %1644 = vmatprep.subr.mxu0 0.0
    %1645 = vmatpush1.msra.mxu0 0.0
    %1646 = vmatprep.subr.mxu0 0.0
    %1647 = vmatpush1.msra.mxu0 0.0
    %1648 = vmatprep.subr.mxu0 0.0
    %1649 = vmatpush1.msra.mxu0 0.0
    %1650 = vmatprep.subr.mxu0 0.0
    %1651 = vmatpush1.msra.mxu0 0.0
    %1652 = vmatprep.subr.mxu0 0.0
    %1653 = vmatpush1.msra.mxu0 0.0
    %1654 = vmatprep.subr.mxu0 0.0
    %1655 = vmatpush1.msra.mxu0 0.0
    %1656 = vmatprep.mubr.f32.mxu0 0.0
    %1657 = vmatmul.mubr.f32.gmra.mrb[0].mxu0 %v1590
    %v1658 = vpop.f32.mrb[0].mxu0
    %v1659 = vadd.f32 %v1260, %v1658
    %v1660 = vpop.f32.mrb[0].mxu0
    %1661 = vdwg.mxu0
    %v1662 = vadd.f32 %v1589, %v1659
    %v1663 = vxor.u32 %v1662, 2147483648
    %v1664 = vmul.f32 %v1663, 1.442695
    %v1665 = vpow.pop %v1664
    %v1666 = vadd.f32 %v1665, 1.0
    %v1667 = vrcp.pop %v1666
    %v1668 = vmul.f32 1.0, %v1667
    %1670 = vrot.lane.b32.xlu0 %v1659, 96
    %v1671 = vpop.permute.xlu0 %1670
    %v1673 = vmul.f32 %v1668, %v1671
    %1675 = vrot.lane.b32.xlu0 %v1673, 32
    %v1676 = vpop.permute.xlu0 %1675
    %v1678 = vadd.f32 %v1589, %v1676
    %v1679 = vtanh.pop %v1678
    %v1680 = vsub.f32 %v1580, %v1679
    %1682 = vrot.lane.b32.xlu0 %v1680, 112
    %v1683 = vpop.permute.xlu0 %1682
    %v1685 = vmul.f32 %v1668, %v1683
    %1687 = vrot.lane.b32.xlu0 %v1685, 16
    %v1688 = vpop.permute.xlu0 %1687
    %v1690 = vadd.f32 %v1679, %v1688
    %1692 = vrot.lane.b32.xlu0 %v1690, 96
    %v1693 = vpop.permute.xlu0 %1692
    %1695 = vst.msk [vmem:[#allocation2 + $0x18] sm:$0xff] %vm318, %v1693
    %1696 = vst.msk [vmem:[#allocation2 + $0x20] sm:$0xff] %vm320, %v1693
    %v1697 = vld [vmem:[#allocation3 + $0x20] sm:$0xff]
    %v1698 = vld [vmem:[#allocation3 + $0x18] sm:$0xff]
    %v1699 = vsel %vm43, %v1697, %v1698
    %v1700 = vsel %vm61, %v1693, 0
    %1702 = vmatprep.subr.mxu0 0.0
    %1703 = vmatpush1.msra.mxu0 %v1249
    %1704 = vmatprep.subr.mxu0 0.0
    %1705 = vmatpush1.msra.mxu0 %v1250
    %1706 = vmatprep.subr.mxu0 0.0
    %1707 = vmatpush1.msra.mxu0 0.0
    %1708 = vmatprep.subr.mxu0 0.0
    %1709 = vmatpush1.msra.mxu0 0.0
    %1710 = vmatprep.subr.mxu0 0.0
    %1711 = vmatpush1.msra.mxu0 0.0
    %1712 = vmatprep.subr.mxu0 0.0
    %1713 = vmatpush1.msra.mxu0 0.0
    %1714 = vmatprep.subr.mxu0 0.0
    %1715 = vmatpush1.msra.mxu0 0.0
    %1716 = vmatprep.subr.mxu0 0.0
    %1717 = vmatpush1.msra.mxu0 0.0
    %1718 = vmatprep.subr.mxu0 0.0
    %1719 = vmatpush1.msra.mxu0 0.0
    %1720 = vmatprep.subr.mxu0 0.0
    %1721 = vmatpush1.msra.mxu0 0.0
    %1722 = vmatprep.subr.mxu0 0.0
    %1723 = vmatpush1.msra.mxu0 0.0
    %1724 = vmatprep.subr.mxu0 0.0
    %1725 = vmatpush1.msra.mxu0 0.0
    %1726 = vmatprep.subr.mxu0 0.0
    %1727 = vmatpush1.msra.mxu0 0.0
    %1728 = vmatprep.subr.mxu0 0.0
    %1729 = vmatpush1.msra.mxu0 0.0
    %1730 = vmatprep.subr.mxu0 0.0
    %1731 = vmatpush1.msra.mxu0 0.0
    %1732 = vmatprep.subr.mxu0 0.0
    %1733 = vmatpush1.msra.mxu0 0.0
    %1734 = vmatprep.subr.mxu0 0.0
    %1735 = vmatpush1.msra.mxu0 0.0
    %1736 = vmatprep.subr.mxu0 0.0
    %1737 = vmatpush1.msra.mxu0 0.0
    %1738 = vmatprep.subr.mxu0 0.0
    %1739 = vmatpush1.msra.mxu0 0.0
    %1740 = vmatprep.subr.mxu0 0.0
    %1741 = vmatpush1.msra.mxu0 0.0
    %1742 = vmatprep.subr.mxu0 0.0
    %1743 = vmatpush1.msra.mxu0 0.0
    %1744 = vmatprep.subr.mxu0 0.0
    %1745 = vmatpush1.msra.mxu0 0.0
    %1746 = vmatprep.subr.mxu0 0.0
    %1747 = vmatpush1.msra.mxu0 0.0
    %1748 = vmatprep.subr.mxu0 0.0
    %1749 = vmatpush1.msra.mxu0 0.0
    %1750 = vmatprep.subr.mxu0 0.0
    %1751 = vmatpush1.msra.mxu0 0.0
    %1752 = vmatprep.subr.mxu0 0.0
    %1753 = vmatpush1.msra.mxu0 0.0
    %1754 = vmatprep.subr.mxu0 0.0
    %1755 = vmatpush1.msra.mxu0 0.0
    %1756 = vmatprep.subr.mxu0 0.0
    %1757 = vmatpush1.msra.mxu0 0.0
    %1758 = vmatprep.subr.mxu0 0.0
    %1759 = vmatpush1.msra.mxu0 0.0
    %1760 = vmatprep.subr.mxu0 0.0
    %1761 = vmatpush1.msra.mxu0 0.0
    %1762 = vmatprep.subr.mxu0 0.0
    %1763 = vmatpush1.msra.mxu0 0.0
    %1764 = vmatprep.subr.mxu0 0.0
    %1765 = vmatpush1.msra.mxu0 0.0
    %1766 = vmatprep.mubr.f32.mxu0 0.0
    %1767 = vmatmul.mubr.f32.gmra.mrb[0].mxu0 %v1700
    %v1768 = vpop.f32.mrb[0].mxu0
    %v1769 = vadd.f32 %v1260, %v1768
    %v1770 = vpop.f32.mrb[0].mxu0
    %1771 = vdwg.mxu0
    %v1772 = vadd.f32 %v1699, %v1769
    %v1773 = vxor.u32 %v1772, 2147483648
    %v1774 = vmul.f32 %v1773, 1.442695
    %v1775 = vpow.pop %v1774
    %v1776 = vadd.f32 %v1775, 1.0
    %v1777 = vrcp.pop %v1776
    %v1778 = vmul.f32 1.0, %v1777
    %1780 = vrot.lane.b32.xlu0 %v1769, 96
    %v1781 = vpop.permute.xlu0 %1780
    %v1783 = vmul.f32 %v1778, %v1781
    %1785 = vrot.lane.b32.xlu0 %v1783, 32
    %v1786 = vpop.permute.xlu0 %1785
    %v1788 = vadd.f32 %v1699, %v1786
    %v1789 = vtanh.pop %v1788
    %v1790 = vsub.f32 %v1690, %v1789
    %1792 = vrot.lane.b32.xlu0 %v1790, 112
    %v1793 = vpop.permute.xlu0 %1792
    %v1795 = vmul.f32 %v1778, %v1793
    %1797 = vrot.lane.b32.xlu0 %v1795, 16
    %v1798 = vpop.permute.xlu0 %1797
    %v1800 = vadd.f32 %v1789, %v1798
    %1802 = vrot.lane.b32.xlu0 %v1800, 96
    %v1803 = vpop.permute.xlu0 %1802
    %1805 = vst.msk [vmem:[#allocation2 + $0x20] sm:$0xff] %vm318, %v1803
    %1806 = vst.msk [vmem:[#allocation2 + $0x18] sm:$0xff] %vm320, %v1803
    %v1807 = vld [vmem:[#allocation3 + $0x28] sm:$0xff]
    %v1808 = vld [vmem:[#allocation3 + $0x10] sm:$0xff]
    %v1809 = vsel %vm43, %v1807, %v1808
    %v1810 = vsel %vm61, %v1803, 0
    %1812 = vmatprep.subr.mxu0 0.0
    %1813 = vmatpush1.msra.mxu0 %v1249
    %1814 = vmatprep.subr.mxu0 0.0
    %1815 = vmatpush1.msra.mxu0 %v1250
    %1816 = vmatprep.subr.mxu0 0.0
    %1817 = vmatpush1.msra.mxu0 0.0
    %1818 = vmatprep.subr.mxu0 0.0
    %1819 = vmatpush1.msra.mxu0 0.0
    %1820 = vmatprep.subr.mxu0 0.0
    %1821 = vmatpush1.msra.mxu0 0.0
    %1822 = vmatprep.subr.mxu0 0.0
    %1823 = vmatpush1.msra.mxu0 0.0
    %1824 = vmatprep.subr.mxu0 0.0
    %1825 = vmatpush1.msra.mxu0 0.0
    %1826 = vmatprep.subr.mxu0 0.0
    %1827 = vmatpush1.msra.mxu0 0.0
    %1828 = vmatprep.subr.mxu0 0.0
    %1829 = vmatpush1.msra.mxu0 0.0
    %1830 = vmatprep.subr.mxu0 0.0
    %1831 = vmatpush1.msra.mxu0 0.0
    %1832 = vmatprep.subr.mxu0 0.0
    %1833 = vmatpush1.msra.mxu0 0.0
    %1834 = vmatprep.subr.mxu0 0.0
    %1835 = vmatpush1.msra.mxu0 0.0
    %1836 = vmatprep.subr.mxu0 0.0
    %1837 = vmatpush1.msra.mxu0 0.0
    %1838 = vmatprep.subr.mxu0 0.0
    %1839 = vmatpush1.msra.mxu0 0.0
    %1840 = vmatprep.subr.mxu0 0.0
    %1841 = vmatpush1.msra.mxu0 0.0
    %1842 = vmatprep.subr.mxu0 0.0
    %1843 = vmatpush1.msra.mxu0 0.0
    %1844 = vmatprep.subr.mxu0 0.0
    %1845 = vmatpush1.msra.mxu0 0.0
    %1846 = vmatprep.subr.mxu0 0.0
    %1847 = vmatpush1.msra.mxu0 0.0
    %1848 = vmatprep.subr.mxu0 0.0
    %1849 = vmatpush1.msra.mxu0 0.0
    %1850 = vmatprep.subr.mxu0 0.0
    %1851 = vmatpush1.msra.mxu0 0.0
    %1852 = vmatprep.subr.mxu0 0.0
    %1853 = vmatpush1.msra.mxu0 0.0
    %1854 = vmatprep.subr.mxu0 0.0
    %1855 = vmatpush1.msra.mxu0 0.0
    %1856 = vmatprep.subr.mxu0 0.0
    %1857 = vmatpush1.msra.mxu0 0.0
    %1858 = vmatprep.subr.mxu0 0.0
    %1859 = vmatpush1.msra.mxu0 0.0
    %1860 = vmatprep.subr.mxu0 0.0
    %1861 = vmatpush1.msra.mxu0 0.0
    %1862 = vmatprep.subr.mxu0 0.0
    %1863 = vmatpush1.msra.mxu0 0.0
    %1864 = vmatprep.subr.mxu0 0.0
    %1865 = vmatpush1.msra.mxu0 0.0
    %1866 = vmatprep.subr.mxu0 0.0
    %1867 = vmatpush1.msra.mxu0 0.0
    %1868 = vmatprep.subr.mxu0 0.0
    %1869 = vmatpush1.msra.mxu0 0.0
    %1870 = vmatprep.subr.mxu0 0.0
    %1871 = vmatpush1.msra.mxu0 0.0
    %1872 = vmatprep.subr.mxu0 0.0
    %1873 = vmatpush1.msra.mxu0 0.0
    %1874 = vmatprep.subr.mxu0 0.0
    %1875 = vmatpush1.msra.mxu0 0.0
    %1876 = vmatprep.mubr.f32.mxu0 0.0
    %1877 = vmatmul.mubr.f32.gmra.mrb[0].mxu0 %v1810
    %v1878 = vpop.f32.mrb[0].mxu0
    %v1879 = vadd.f32 %v1260, %v1878
    %v1880 = vpop.f32.mrb[0].mxu0
    %1881 = vdwg.mxu0
    %v1882 = vadd.f32 %v1809, %v1879
    %v1883 = vxor.u32 %v1882, 2147483648
    %v1884 = vmul.f32 %v1883, 1.442695
    %v1885 = vpow.pop %v1884
    %v1886 = vadd.f32 %v1885, 1.0
    %v1887 = vrcp.pop %v1886
    %v1888 = vmul.f32 1.0, %v1887
    %1890 = vrot.lane.b32.xlu0 %v1879, 96
    %v1891 = vpop.permute.xlu0 %1890
    %v1893 = vmul.f32 %v1888, %v1891
    %1895 = vrot.lane.b32.xlu0 %v1893, 32
    %v1896 = vpop.permute.xlu0 %1895
    %v1898 = vadd.f32 %v1809, %v1896
    %v1899 = vtanh.pop %v1898
    %v1900 = vsub.f32 %v1800, %v1899
    %1902 = vrot.lane.b32.xlu0 %v1900, 112
    %v1903 = vpop.permute.xlu0 %1902
    %v1905 = vmul.f32 %v1888, %v1903
    %1907 = vrot.lane.b32.xlu0 %v1905, 16
    %v1908 = vpop.permute.xlu0 %1907
    %v1910 = vadd.f32 %v1899, %v1908
    %1912 = vrot.lane.b32.xlu0 %v1910, 96
    %v1913 = vpop.permute.xlu0 %1912
    %1915 = vst.msk [vmem:[#allocation2 + $0x28] sm:$0xff] %vm318, %v1913
    %1916 = vst.msk [vmem:[#allocation2 + $0x10] sm:$0xff] %vm320, %v1913
    %v1917 = vld [vmem:[#allocation3 + $0x30] sm:$0xff]
    %v1918 = vld [vmem:[#allocation3 + $0x8] sm:$0xff]
    %v1919 = vsel %vm43, %v1917, %v1918
    %v1920 = vsel %vm61, %v1913, 0
    %1922 = vmatprep.subr.mxu0 0.0
    %1923 = vmatpush1.msra.mxu0 %v1249
    %1924 = vmatprep.subr.mxu0 0.0
    %1925 = vmatpush1.msra.mxu0 %v1250
    %1926 = vmatprep.subr.mxu0 0.0
    %1927 = vmatpush1.msra.mxu0 0.0
    %1928 = vmatprep.subr.mxu0 0.0
    %1929 = vmatpush1.msra.mxu0 0.0
    %1930 = vmatprep.subr.mxu0 0.0
    %1931 = vmatpush1.msra.mxu0 0.0
    %1932 = vmatprep.subr.mxu0 0.0
    %1933 = vmatpush1.msra.mxu0 0.0
    %1934 = vmatprep.subr.mxu0 0.0
    %1935 = vmatpush1.msra.mxu0 0.0
    %1936 = vmatprep.subr.mxu0 0.0
    %1937 = vmatpush1.msra.mxu0 0.0
    %1938 = vmatprep.subr.mxu0 0.0
    %1939 = vmatpush1.msra.mxu0 0.0
    %1940 = vmatprep.subr.mxu0 0.0
    %1941 = vmatpush1.msra.mxu0 0.0
    %1942 = vmatprep.subr.mxu0 0.0
    %1943 = vmatpush1.msra.mxu0 0.0
    %1944 = vmatprep.subr.mxu0 0.0
    %1945 = vmatpush1.msra.mxu0 0.0
    %1946 = vmatprep.subr.mxu0 0.0
    %1947 = vmatpush1.msra.mxu0 0.0
    %1948 = vmatprep.subr.mxu0 0.0
    %1949 = vmatpush1.msra.mxu0 0.0
    %1950 = vmatprep.subr.mxu0 0.0
    %1951 = vmatpush1.msra.mxu0 0.0
    %1952 = vmatprep.subr.mxu0 0.0
    %1953 = vmatpush1.msra.mxu0 0.0
    %1954 = vmatprep.subr.mxu0 0.0
    %1955 = vmatpush1.msra.mxu0 0.0
    %1956 = vmatprep.subr.mxu0 0.0
    %1957 = vmatpush1.msra.mxu0 0.0
    %1958 = vmatprep.subr.mxu0 0.0
    %1959 = vmatpush1.msra.mxu0 0.0
    %1960 = vmatprep.subr.mxu0 0.0
    %1961 = vmatpush1.msra.mxu0 0.0
    %1962 = vmatprep.subr.mxu0 0.0
    %1963 = vmatpush1.msra.mxu0 0.0
    %1964 = vmatprep.subr.mxu0 0.0
    %1965 = vmatpush1.msra.mxu0 0.0
    %1966 = vmatprep.subr.mxu0 0.0
    %1967 = vmatpush1.msra.mxu0 0.0
    %1968 = vmatprep.subr.mxu0 0.0
    %1969 = vmatpush1.msra.mxu0 0.0
    %1970 = vmatprep.subr.mxu0 0.0
    %1971 = vmatpush1.msra.mxu0 0.0
    %1972 = vmatprep.subr.mxu0 0.0
    %1973 = vmatpush1.msra.mxu0 0.0
    %1974 = vmatprep.subr.mxu0 0.0
    %1975 = vmatpush1.msra.mxu0 0.0
    %1976 = vmatprep.subr.mxu0 0.0
    %1977 = vmatpush1.msra.mxu0 0.0
    %1978 = vmatprep.subr.mxu0 0.0
    %1979 = vmatpush1.msra.mxu0 0.0
    %1980 = vmatprep.subr.mxu0 0.0
    %1981 = vmatpush1.msra.mxu0 0.0
    %1982 = vmatprep.subr.mxu0 0.0
    %1983 = vmatpush1.msra.mxu0 0.0
    %1984 = vmatprep.subr.mxu0 0.0
    %1985 = vmatpush1.msra.mxu0 0.0
    %1986 = vmatprep.mubr.f32.mxu0 0.0
    %1987 = vmatmul.mubr.f32.gmra.mrb[0].mxu0 %v1920
    %v1988 = vpop.f32.mrb[0].mxu0
    %v1989 = vadd.f32 %v1260, %v1988
    %v1990 = vpop.f32.mrb[0].mxu0
    %1991 = vdwg.mxu0
    %v1992 = vadd.f32 %v1919, %v1989
    %v1993 = vxor.u32 %v1992, 2147483648
    %v1994 = vmul.f32 %v1993, 1.442695
    %v1995 = vpow.pop %v1994
    %v1996 = vadd.f32 %v1995, 1.0
    %v1997 = vrcp.pop %v1996
    %v1998 = vmul.f32 1.0, %v1997
    %2000 = vrot.lane.b32.xlu0 %v1989, 96
    %v2001 = vpop.permute.xlu0 %2000
    %v2003 = vmul.f32 %v1998, %v2001
    %2005 = vrot.lane.b32.xlu0 %v2003, 32
    %v2006 = vpop.permute.xlu0 %2005
    %v2008 = vadd.f32 %v1919, %v2006
    %v2009 = vtanh.pop %v2008
    %v2010 = vsub.f32 %v1910, %v2009
    %2012 = vrot.lane.b32.xlu0 %v2010, 112
    %v2013 = vpop.permute.xlu0 %2012
    %v2015 = vmul.f32 %v1998, %v2013
    %2017 = vrot.lane.b32.xlu0 %v2015, 16
    %v2018 = vpop.permute.xlu0 %2017
    %v2020 = vadd.f32 %v2009, %v2018
    %2022 = vrot.lane.b32.xlu0 %v2020, 96
    %v2023 = vpop.permute.xlu0 %2022
    %2025 = vst.msk [vmem:[#allocation2 + $0x30] sm:$0xff] %vm318, %v2023
    %2026 = vst.msk [vmem:[#allocation2 + $0x8] sm:$0xff] %vm320, %v2023
    %v2027 = vld [vmem:[#allocation3 + $0x38] sm:$0xff]
    %v2028 = vld [vmem:[#allocation3] sm:$0xff]
    %v2029 = vsel %vm43, %v2027, %v2028
    %v2030 = vsel %vm61, %v2023, 0
    %2032 = vmatprep.subr.mxu0 0.0
    %2033 = vmatpush1.msra.mxu0 %v1249
    %2034 = vmatprep.subr.mxu0 0.0
    %2035 = vmatpush1.msra.mxu0 %v1250
    %2036 = vmatprep.subr.mxu0 0.0
    %2037 = vmatpush1.msra.mxu0 0.0
    %2038 = vmatprep.subr.mxu0 0.0
    %2039 = vmatpush1.msra.mxu0 0.0
    %2040 = vmatprep.subr.mxu0 0.0
    %2041 = vmatpush1.msra.mxu0 0.0
    %2042 = vmatprep.subr.mxu0 0.0
    %2043 = vmatpush1.msra.mxu0 0.0
    %2044 = vmatprep.subr.mxu0 0.0
    %2045 = vmatpush1.msra.mxu0 0.0
    %2046 = vmatprep.subr.mxu0 0.0
    %2047 = vmatpush1.msra.mxu0 0.0
    %2048 = vmatprep.subr.mxu0 0.0
    %2049 = vmatpush1.msra.mxu0 0.0
    %2050 = vmatprep.subr.mxu0 0.0
    %2051 = vmatpush1.msra.mxu0 0.0
    %2052 = vmatprep.subr.mxu0 0.0
    %2053 = vmatpush1.msra.mxu0 0.0
    %2054 = vmatprep.subr.mxu0 0.0
    %2055 = vmatpush1.msra.mxu0 0.0
    %2056 = vmatprep.subr.mxu0 0.0
    %2057 = vmatpush1.msra.mxu0 0.0
    %2058 = vmatprep.subr.mxu0 0.0
    %2059 = vmatpush1.msra.mxu0 0.0
    %2060 = vmatprep.subr.mxu0 0.0
    %2061 = vmatpush1.msra.mxu0 0.0
    %2062 = vmatprep.subr.mxu0 0.0
    %2063 = vmatpush1.msra.mxu0 0.0
    %2064 = vmatprep.subr.mxu0 0.0
    %2065 = vmatpush1.msra.mxu0 0.0
    %2066 = vmatprep.subr.mxu0 0.0
    %2067 = vmatpush1.msra.mxu0 0.0
    %2068 = vmatprep.subr.mxu0 0.0
    %2069 = vmatpush1.msra.mxu0 0.0
    %2070 = vmatprep.subr.mxu0 0.0
    %2071 = vmatpush1.msra.mxu0 0.0
    %2072 = vmatprep.subr.mxu0 0.0
    %2073 = vmatpush1.msra.mxu0 0.0
    %2074 = vmatprep.subr.mxu0 0.0
    %2075 = vmatpush1.msra.mxu0 0.0
    %2076 = vmatprep.subr.mxu0 0.0
    %2077 = vmatpush1.msra.mxu0 0.0
    %2078 = vmatprep.subr.mxu0 0.0
    %2079 = vmatpush1.msra.mxu0 0.0
    %2080 = vmatprep.subr.mxu0 0.0
    %2081 = vmatpush1.msra.mxu0 0.0
    %2082 = vmatprep.subr.mxu0 0.0
    %2083 = vmatpush1.msra.mxu0 0.0
    %2084 = vmatprep.subr.mxu0 0.0
    %2085 = vmatpush1.msra.mxu0 0.0
    %2086 = vmatprep.subr.mxu0 0.0
    %2087 = vmatpush1.msra.mxu0 0.0
    %2088 = vmatprep.subr.mxu0 0.0
    %2089 = vmatpush1.msra.mxu0 0.0
    %2090 = vmatprep.subr.mxu0 0.0
    %2091 = vmatpush1.msra.mxu0 0.0
    %2092 = vmatprep.subr.mxu0 0.0
    %2093 = vmatpush1.msra.mxu0 0.0
    %2094 = vmatprep.subr.mxu0 0.0
    %2095 = vmatpush1.msra.mxu0 0.0
    %2096 = vmatprep.mubr.f32.mxu0 0.0
    %2097 = vmatmul.mubr.f32.gmra.mrb[0].mxu0 %v2030
    %v2098 = vpop.f32.mrb[0].mxu0
    %v2099 = vadd.f32 %v1260, %v2098
    %v2100 = vpop.f32.mrb[0].mxu0
    %2101 = vdwg.mxu0
    %v2102 = vadd.f32 %v2029, %v2099
    %v2103 = vxor.u32 %v2102, 2147483648
    %v2104 = vmul.f32 %v2103, 1.442695
    %v2105 = vpow.pop %v2104
    %v2106 = vadd.f32 %v2105, 1.0
    %v2107 = vrcp.pop %v2106
    %v2108 = vmul.f32 1.0, %v2107
    %2110 = vrot.lane.b32.xlu0 %v2099, 96
    %v2111 = vpop.permute.xlu0 %2110
    %v2113 = vmul.f32 %v2108, %v2111
    %2115 = vrot.lane.b32.xlu0 %v2113, 32
    %v2116 = vpop.permute.xlu0 %2115
    %v2118 = vadd.f32 %v2029, %v2116
    %v2119 = vtanh.pop %v2118
    %v2120 = vsub.f32 %v2020, %v2119
    %2122 = vrot.lane.b32.xlu0 %v2120, 112
    %v2123 = vpop.permute.xlu0 %2122
    %v2125 = vmul.f32 %v2108, %v2123
    %2127 = vrot.lane.b32.xlu0 %v2125, 16
    %v2128 = vpop.permute.xlu0 %2127
    %v2130 = vadd.f32 %v2119, %v2128
    %2132 = vrot.lane.b32.xlu0 %v2130, 96
    %v2133 = vpop.permute.xlu0 %2132
    %2135 = vst.msk [vmem:[#allocation2 + $0x38] sm:$0xff] %vm318, %v2133
    %2136 = vst.msk [vmem:[#allocation2] sm:$0xff] %vm320, %v2133
    %v2137 = vld [vmem:[#allocation2] sm:$0xff]
    %v2138 = vld [vmem:[#allocation2 + $0x8] sm:$0xff]
    %v2139 = vld [vmem:[#allocation2 + $0x10] sm:$0xff]
    %v2140 = vld [vmem:[#allocation2 + $0x18] sm:$0xff]
    %v2141 = vld [vmem:[#allocation2 + $0x20] sm:$0xff]
    %v2142 = vld [vmem:[#allocation2 + $0x28] sm:$0xff]
    %v2143 = vld [vmem:[#allocation2 + $0x30] sm:$0xff]
    %v2144 = vld [vmem:[#allocation2 + $0x38] sm:$0xff]
    %s2145 = scalar_lea.vmem %s1, 32
    %v2146 = vld [vmem:[%s2145] sm:$0xff]
    %v2147 = vld [vmem:[%s2145 + $0x8] sm:$0xff]
    %s2148 = scalar_lea.vmem %s2, 2
    %v2149 = vld [vmem:[%s2148] sm:$0x1]
    %v2151 = vlaneseq
    %v2152 = vshrl.u32 %v2151, 7
    %v2153 = vsub.s32 0, %v2152
    %v2154 = vrot.slane %v2149, %v2153
    %v2157 = vsel %vm61, %v2137, 0
    %v2160 = vsel %vm61, %v2138, 0
    %v2163 = vsel %vm61, %v2139, 0
    %v2166 = vsel %vm61, %v2140, 0
    %v2169 = vsel %vm61, %v2141, 0
    %v2172 = vsel %vm61, %v2142, 0
    %v2175 = vsel %vm61, %v2143, 0
    %v2178 = vsel %vm61, %v2144, 0
    %2180 = vmatprep.subr.mxu0 0.0
    %2181 = vmatpush1.msra.mxu0 %v2146
    %2182 = vmatprep.subr.mxu0 0.0
    %2183 = vmatpush1.msra.mxu0 %v2147
    %2184 = vmatprep.subr.mxu0 0.0
    %2185 = vmatpush1.msra.mxu0 0.0
    %2186 = vmatprep.subr.mxu0 0.0
    %2187 = vmatpush1.msra.mxu0 0.0
    %2188 = vmatprep.subr.mxu0 0.0
    %2189 = vmatpush1.msra.mxu0 0.0
    %2190 = vmatprep.subr.mxu0 0.0
    %2191 = vmatpush1.msra.mxu0 0.0
    %2192 = vmatprep.subr.mxu0 0.0
    %2193 = vmatpush1.msra.mxu0 0.0
    %2194 = vmatprep.subr.mxu0 0.0
    %2195 = vmatpush1.msra.mxu0 0.0
    %2196 = vmatprep.subr.mxu0 0.0
    %2197 = vmatpush1.msra.mxu0 0.0
    %2198 = vmatprep.subr.mxu0 0.0
    %2199 = vmatpush1.msra.mxu0 0.0
    %2200 = vmatprep.subr.mxu0 0.0
    %2201 = vmatpush1.msra.mxu0 0.0
    %2202 = vmatprep.subr.mxu0 0.0
    %2203 = vmatpush1.msra.mxu0 0.0
    %2204 = vmatprep.subr.mxu0 0.0
    %2205 = vmatpush1.msra.mxu0 0.0
    %2206 = vmatprep.subr.mxu0 0.0
    %2207 = vmatpush1.msra.mxu0 0.0
    %2208 = vmatprep.subr.mxu0 0.0
    %2209 = vmatpush1.msra.mxu0 0.0
    %2210 = vmatprep.subr.mxu0 0.0
    %2211 = vmatpush1.msra.mxu0 0.0
    %2212 = vmatprep.subr.mxu0 0.0
    %2213 = vmatpush1.msra.mxu0 0.0
    %2214 = vmatprep.subr.mxu0 0.0
    %2215 = vmatpush1.msra.mxu0 0.0
    %2216 = vmatprep.subr.mxu0 0.0
    %2217 = vmatpush1.msra.mxu0 0.0
    %2218 = vmatprep.subr.mxu0 0.0
    %2219 = vmatpush1.msra.mxu0 0.0
    %2220 = vmatprep.subr.mxu0 0.0
    %2221 = vmatpush1.msra.mxu0 0.0
    %2222 = vmatprep.subr.mxu0 0.0
    %2223 = vmatpush1.msra.mxu0 0.0
    %2224 = vmatprep.subr.mxu0 0.0
    %2225 = vmatpush1.msra.mxu0 0.0
    %2226 = vmatprep.subr.mxu0 0.0
    %2227 = vmatpush1.msra.mxu0 0.0
    %2228 = vmatprep.subr.mxu0 0.0
    %2229 = vmatpush1.msra.mxu0 0.0
    %2230 = vmatprep.subr.mxu0 0.0
    %2231 = vmatpush1.msra.mxu0 0.0
    %2232 = vmatprep.subr.mxu0 0.0
    %2233 = vmatpush1.msra.mxu0 0.0
    %2234 = vmatprep.subr.mxu0 0.0
    %2235 = vmatpush1.msra.mxu0 0.0
    %2236 = vmatprep.subr.mxu0 0.0
    %2237 = vmatpush1.msra.mxu0 0.0
    %2238 = vmatprep.subr.mxu0 0.0
    %2239 = vmatpush1.msra.mxu0 0.0
    %2240 = vmatprep.subr.mxu0 0.0
    %2241 = vmatpush1.msra.mxu0 0.0
    %2242 = vmatprep.subr.mxu0 0.0
    %2243 = vmatpush1.msra.mxu0 0.0
    %2244 = vmatprep.mubr.f32.mxu0 0.0
    %2245 = vmatmul.mubr.f32.gmra.mrb[0].mxu0 %v2157
    %v2246 = vpop.f32.mrb[0].mxu0
    %v2247 = vadd.f32 %v2154, %v2246
    %v2248 = vpop.f32.mrb[0].mxu0
    %2249 = vmatprep.mubr.f32.mxu0 0.0
    %2250 = vmatmul.mubr.f32.gmra.mrb[0].mxu0 %v2160
    %v2251 = vpop.f32.mrb[0].mxu0
    %v2252 = vadd.f32 %v2154, %v2251
    %v2253 = vpop.f32.mrb[0].mxu0
    %2254 = vmatprep.mubr.f32.mxu0 0.0
    %2255 = vmatmul.mubr.f32.gmra.mrb[0].mxu0 %v2163
    %v2256 = vpop.f32.mrb[0].mxu0
    %v2257 = vadd.f32 %v2154, %v2256
    %v2258 = vpop.f32.mrb[0].mxu0
    %2259 = vmatprep.mubr.f32.mxu0 0.0
    %2260 = vmatmul.mubr.f32.gmra.mrb[0].mxu0 %v2166
    %v2261 = vpop.f32.mrb[0].mxu0
    %v2262 = vadd.f32 %v2154, %v2261
    %v2263 = vpop.f32.mrb[0].mxu0
    %2264 = vmatprep.mubr.f32.mxu0 0.0
    %2265 = vmatmul.mubr.f32.gmra.mrb[0].mxu0 %v2169
    %v2266 = vpop.f32.mrb[0].mxu0
    %v2267 = vadd.f32 %v2154, %v2266
    %v2268 = vpop.f32.mrb[0].mxu0
    %2269 = vmatprep.mubr.f32.mxu0 0.0
    %2270 = vmatmul.mubr.f32.gmra.mrb[0].mxu0 %v2172
    %v2271 = vpop.f32.mrb[0].mxu0
    %v2272 = vadd.f32 %v2154, %v2271
    %v2273 = vpop.f32.mrb[0].mxu0
    %2274 = vmatprep.mubr.f32.mxu0 0.0
    %2275 = vmatmul.mubr.f32.gmra.mrb[0].mxu0 %v2175
    %v2276 = vpop.f32.mrb[0].mxu0
    %v2277 = vadd.f32 %v2154, %v2276
    %v2278 = vpop.f32.mrb[0].mxu0
    %2279 = vmatprep.mubr.f32.mxu0 0.0
    %2280 = vmatmul.mubr.f32.gmra.mrb[0].mxu0 %v2178
    %v2281 = vpop.f32.mrb[0].mxu0
    %v2282 = vadd.f32 %v2154, %v2281
    %v2283 = vpop.f32.mrb[0].mxu0
    %2284 = vdwg.mxu0
    %2285 = vst.msk [vmem:[#allocation3] sm:$0xff] %vm191, %v2247
    %2286 = vst.msk [vmem:[#allocation3 + $0x8] sm:$0xff] %vm191, %v2252
    %2287 = vst.msk [vmem:[#allocation3 + $0x10] sm:$0xff] %vm191, %v2257
    %2288 = vst.msk [vmem:[#allocation3 + $0x18] sm:$0xff] %vm191, %v2262
    %2289 = vst.msk [vmem:[#allocation3 + $0x20] sm:$0xff] %vm191, %v2267
    %2290 = vst.msk [vmem:[#allocation3 + $0x28] sm:$0xff] %vm191, %v2272
    %2291 = vst.msk [vmem:[#allocation3 + $0x30] sm:$0xff] %vm191, %v2277
    %2292 = vst.msk [vmem:[#allocation3 + $0x38] sm:$0xff] %vm191, %v2282
    %s2293 = scalar_lea.vmem %s3, 32
    %v2294 = vld [vmem:[%s2293] sm:$0xff]
    %v2295 = vld [vmem:[%s2293 + $0x8] sm:$0xff]
    %s2296 = scalar_lea.vmem %s4, 2
    %v2297 = vld [vmem:[%s2296] sm:$0x1]
    %v2298 = vld [vmem:[#allocation3] sm:$0xff]
    %v2299 = vld [vmem:[#allocation3 + $0x38] sm:$0xff]
    %v2300 = vsel %vm43, %v2298, %v2299
    %v2302 = vlaneseq
    %v2303 = vshrl.u32 %v2302, 7
    %v2304 = vsub.s32 0, %v2303
    %v2305 = vrot.slane %v2297, %v2304
    %2307 = vmatprep.subr.mxu0 0.0
    %2308 = vmatpush1.msra.mxu0 %v2294
    %2309 = vmatprep.subr.mxu0 0.0
    %2310 = vmatpush1.msra.mxu0 %v2295
    %2311 = vmatprep.subr.mxu0 0.0
    %2312 = vmatpush1.msra.mxu0 0.0
    %2313 = vmatprep.subr.mxu0 0.0
    %2314 = vmatpush1.msra.mxu0 0.0
    %2315 = vmatprep.subr.mxu0 0.0
    %2316 = vmatpush1.msra.mxu0 0.0
    %2317 = vmatprep.subr.mxu0 0.0
    %2318 = vmatpush1.msra.mxu0 0.0
    %2319 = vmatprep.subr.mxu0 0.0
    %2320 = vmatpush1.msra.mxu0 0.0
    %2321 = vmatprep.subr.mxu0 0.0
    %2322 = vmatpush1.msra.mxu0 0.0
    %2323 = vmatprep.subr.mxu0 0.0
    %2324 = vmatpush1.msra.mxu0 0.0
    %2325 = vmatprep.subr.mxu0 0.0
    %2326 = vmatpush1.msra.mxu0 0.0
    %2327 = vmatprep.subr.mxu0 0.0
    %2328 = vmatpush1.msra.mxu0 0.0
    %2329 = vmatprep.subr.mxu0 0.0
    %2330 = vmatpush1.msra.mxu0 0.0
    %2331 = vmatprep.subr.mxu0 0.0
    %2332 = vmatpush1.msra.mxu0 0.0
    %2333 = vmatprep.subr.mxu0 0.0
    %2334 = vmatpush1.msra.mxu0 0.0
    %2335 = vmatprep.subr.mxu0 0.0
    %2336 = vmatpush1.msra.mxu0 0.0
    %2337 = vmatprep.subr.mxu0 0.0
    %2338 = vmatpush1.msra.mxu0 0.0
    %2339 = vmatprep.subr.mxu0 0.0
    %2340 = vmatpush1.msra.mxu0 0.0
    %2341 = vmatprep.subr.mxu0 0.0
    %2342 = vmatpush1.msra.mxu0 0.0
    %2343 = vmatprep.subr.mxu0 0.0
    %2344 = vmatpush1.msra.mxu0 0.0
    %2345 = vmatprep.subr.mxu0 0.0
    %2346 = vmatpush1.msra.mxu0 0.0
    %2347 = vmatprep.subr.mxu0 0.0
    %2348 = vmatpush1.msra.mxu0 0.0
    %2349 = vmatprep.subr.mxu0 0.0
    %2350 = vmatpush1.msra.mxu0 0.0
    %2351 = vmatprep.subr.mxu0 0.0
    %2352 = vmatpush1.msra.mxu0 0.0
    %2353 = vmatprep.subr.mxu0 0.0
    %2354 = vmatpush1.msra.mxu0 0.0
    %2355 = vmatprep.subr.mxu0 0.0
    %2356 = vmatpush1.msra.mxu0 0.0
    %2357 = vmatprep.subr.mxu0 0.0
    %2358 = vmatpush1.msra.mxu0 0.0
    %2359 = vmatprep.subr.mxu0 0.0
    %2360 = vmatpush1.msra.mxu0 0.0
    %2361 = vmatprep.subr.mxu0 0.0
    %2362 = vmatpush1.msra.mxu0 0.0
    %2363 = vmatprep.subr.mxu0 0.0
    %2364 = vmatpush1.msra.mxu0 0.0
    %2365 = vmatprep.subr.mxu0 0.0
    %2366 = vmatpush1.msra.mxu0 0.0
    %2367 = vmatprep.subr.mxu0 0.0
    %2368 = vmatpush1.msra.mxu0 0.0
    %2369 = vmatprep.subr.mxu0 0.0
    %2370 = vmatpush1.msra.mxu0 0.0
    %2371 = vmatprep.mubr.f32.mxu0 0.0
    %2372 = vmatmul.mubr.f32.gmra.mrb[0].mxu0 %v213
    %v2373 = vpop.f32.mrb[0].mxu0
    %v2374 = vadd.f32 %v2305, %v2373
    %v2375 = vpop.f32.mrb[0].mxu0
    %2376 = vdwg.mxu0
    %v2377 = vadd.f32 %v2300, %v2374
    %v2378 = vxor.u32 %v2377, 2147483648
    %v2379 = vmul.f32 %v2378, 1.442695
    %v2380 = vpow.pop %v2379
    %v2381 = vadd.f32 %v2380, 1.0
    %v2382 = vrcp.pop %v2381
    %v2383 = vmul.f32 1.0, %v2382
    %2385 = vrot.lane.b32.xlu0 %v2374, 96
    %v2386 = vpop.permute.xlu0 %2385
    %v2388 = vmul.f32 %v2383, %v2386
    %2390 = vrot.lane.b32.xlu0 %v2388, 32
    %v2391 = vpop.permute.xlu0 %2390
    %v2393 = vadd.f32 %v2300, %v2391
    %v2394 = vtanh.pop %v2393
    %v2395 = vsub.f32 0.0, %v2394
    %2397 = vrot.lane.b32.xlu0 %v2395, 112
    %v2398 = vpop.permute.xlu0 %2397
    %v2400 = vmul.f32 %v2383, %v2398
    %2402 = vrot.lane.b32.xlu0 %v2400, 16
    %v2403 = vpop.permute.xlu0 %2402
    %v2405 = vadd.f32 %v2394, %v2403
    %2407 = vrot.lane.b32.xlu0 %v2405, 96
    %v2408 = vpop.permute.xlu0 %2407
    %2410 = vst.msk [vmem:[#allocation2] sm:$0xff] %vm318, %v2408
    %2411 = vst.msk [vmem:[#allocation2 + $0x38] sm:$0xff] %vm320, %v2408
    %v2412 = vld [vmem:[#allocation3 + $0x8] sm:$0xff]
    %v2413 = vld [vmem:[#allocation3 + $0x30] sm:$0xff]
    %v2414 = vsel %vm43, %v2412, %v2413
    %v2415 = vsel %vm61, %v2408, 0
    %2417 = vmatprep.subr.mxu0 0.0
    %2418 = vmatpush1.msra.mxu0 %v2294
    %2419 = vmatprep.subr.mxu0 0.0
    %2420 = vmatpush1.msra.mxu0 %v2295
    %2421 = vmatprep.subr.mxu0 0.0
    %2422 = vmatpush1.msra.mxu0 0.0
    %2423 = vmatprep.subr.mxu0 0.0
    %2424 = vmatpush1.msra.mxu0 0.0
    %2425 = vmatprep.subr.mxu0 0.0
    %2426 = vmatpush1.msra.mxu0 0.0
    %2427 = vmatprep.subr.mxu0 0.0
    %2428 = vmatpush1.msra.mxu0 0.0
    %2429 = vmatprep.subr.mxu0 0.0
    %2430 = vmatpush1.msra.mxu0 0.0
    %2431 = vmatprep.subr.mxu0 0.0
    %2432 = vmatpush1.msra.mxu0 0.0
    %2433 = vmatprep.subr.mxu0 0.0
    %2434 = vmatpush1.msra.mxu0 0.0
    %2435 = vmatprep.subr.mxu0 0.0
    %2436 = vmatpush1.msra.mxu0 0.0
    %2437 = vmatprep.subr.mxu0 0.0
    %2438 = vmatpush1.msra.mxu0 0.0
    %2439 = vmatprep.subr.mxu0 0.0
    %2440 = vmatpush1.msra.mxu0 0.0
    %2441 = vmatprep.subr.mxu0 0.0
    %2442 = vmatpush1.msra.mxu0 0.0
    %2443 = vmatprep.subr.mxu0 0.0
    %2444 = vmatpush1.msra.mxu0 0.0
    %2445 = vmatprep.subr.mxu0 0.0
    %2446 = vmatpush1.msra.mxu0 0.0
    %2447 = vmatprep.subr.mxu0 0.0
    %2448 = vmatpush1.msra.mxu0 0.0
    %2449 = vmatprep.subr.mxu0 0.0
    %2450 = vmatpush1.msra.mxu0 0.0
    %2451 = vmatprep.subr.mxu0 0.0
    %2452 = vmatpush1.msra.mxu0 0.0
    %2453 = vmatprep.subr.mxu0 0.0
    %2454 = vmatpush1.msra.mxu0 0.0
    %2455 = vmatprep.subr.mxu0 0.0
    %2456 = vmatpush1.msra.mxu0 0.0
    %2457 = vmatprep.subr.mxu0 0.0
    %2458 = vmatpush1.msra.mxu0 0.0
    %2459 = vmatprep.subr.mxu0 0.0
    %2460 = vmatpush1.msra.mxu0 0.0
    %2461 = vmatprep.subr.mxu0 0.0
    %2462 = vmatpush1.msra.mxu0 0.0
    %2463 = vmatprep.subr.mxu0 0.0
    %2464 = vmatpush1.msra.mxu0 0.0
    %2465 = vmatprep.subr.mxu0 0.0
    %2466 = vmatpush1.msra.mxu0 0.0
    %2467 = vmatprep.subr.mxu0 0.0
    %2468 = vmatpush1.msra.mxu0 0.0
    %2469 = vmatprep.subr.mxu0 0.0
    %2470 = vmatpush1.msra.mxu0 0.0
    %2471 = vmatprep.subr.mxu0 0.0
    %2472 = vmatpush1.msra.mxu0 0.0
    %2473 = vmatprep.subr.mxu0 0.0
    %2474 = vmatpush1.msra.mxu0 0.0
    %2475 = vmatprep.subr.mxu0 0.0
    %2476 = vmatpush1.msra.mxu0 0.0
    %2477 = vmatprep.subr.mxu0 0.0
    %2478 = vmatpush1.msra.mxu0 0.0
    %2479 = vmatprep.subr.mxu0 0.0
    %2480 = vmatpush1.msra.mxu0 0.0
    %2481 = vmatprep.mubr.f32.mxu0 0.0
    %2482 = vmatmul.mubr.f32.gmra.mrb[0].mxu0 %v2415
    %v2483 = vpop.f32.mrb[0].mxu0
    %v2484 = vadd.f32 %v2305, %v2483
    %v2485 = vpop.f32.mrb[0].mxu0
    %2486 = vdwg.mxu0
    %v2487 = vadd.f32 %v2414, %v2484
    %v2488 = vxor.u32 %v2487, 2147483648
    %v2489 = vmul.f32 %v2488, 1.442695
    %v2490 = vpow.pop %v2489
    %v2491 = vadd.f32 %v2490, 1.0
    %v2492 = vrcp.pop %v2491
    %v2493 = vmul.f32 1.0, %v2492
    %2495 = vrot.lane.b32.xlu0 %v2484, 96
    %v2496 = vpop.permute.xlu0 %2495
    %v2498 = vmul.f32 %v2493, %v2496
    %2500 = vrot.lane.b32.xlu0 %v2498, 32
    %v2501 = vpop.permute.xlu0 %2500
    %v2503 = vadd.f32 %v2414, %v2501
    %v2504 = vtanh.pop %v2503
    %v2505 = vsub.f32 %v2405, %v2504
    %2507 = vrot.lane.b32.xlu0 %v2505, 112
    %v2508 = vpop.permute.xlu0 %2507
    %v2510 = vmul.f32 %v2493, %v2508
    %2512 = vrot.lane.b32.xlu0 %v2510, 16
    %v2513 = vpop.permute.xlu0 %2512
    %v2515 = vadd.f32 %v2504, %v2513
    %2517 = vrot.lane.b32.xlu0 %v2515, 96
    %v2518 = vpop.permute.xlu0 %2517
    %2520 = vst.msk [vmem:[#allocation2 + $0x8] sm:$0xff] %vm318, %v2518
    %2521 = vst.msk [vmem:[#allocation2 + $0x30] sm:$0xff] %vm320, %v2518
    %v2522 = vld [vmem:[#allocation3 + $0x10] sm:$0xff]
    %v2523 = vld [vmem:[#allocation3 + $0x28] sm:$0xff]
    %v2524 = vsel %vm43, %v2522, %v2523
    %v2525 = vsel %vm61, %v2518, 0
    %2527 = vmatprep.subr.mxu0 0.0
    %2528 = vmatpush1.msra.mxu0 %v2294
    %2529 = vmatprep.subr.mxu0 0.0
    %2530 = vmatpush1.msra.mxu0 %v2295
    %2531 = vmatprep.subr.mxu0 0.0
    %2532 = vmatpush1.msra.mxu0 0.0
    %2533 = vmatprep.subr.mxu0 0.0
    %2534 = vmatpush1.msra.mxu0 0.0
    %2535 = vmatprep.subr.mxu0 0.0
    %2536 = vmatpush1.msra.mxu0 0.0
    %2537 = vmatprep.subr.mxu0 0.0
    %2538 = vmatpush1.msra.mxu0 0.0
    %2539 = vmatprep.subr.mxu0 0.0
    %2540 = vmatpush1.msra.mxu0 0.0
    %2541 = vmatprep.subr.mxu0 0.0
    %2542 = vmatpush1.msra.mxu0 0.0
    %2543 = vmatprep.subr.mxu0 0.0
    %2544 = vmatpush1.msra.mxu0 0.0
    %2545 = vmatprep.subr.mxu0 0.0
    %2546 = vmatpush1.msra.mxu0 0.0
    %2547 = vmatprep.subr.mxu0 0.0
    %2548 = vmatpush1.msra.mxu0 0.0
    %2549 = vmatprep.subr.mxu0 0.0
    %2550 = vmatpush1.msra.mxu0 0.0
    %2551 = vmatprep.subr.mxu0 0.0
    %2552 = vmatpush1.msra.mxu0 0.0
    %2553 = vmatprep.subr.mxu0 0.0
    %2554 = vmatpush1.msra.mxu0 0.0
    %2555 = vmatprep.subr.mxu0 0.0
    %2556 = vmatpush1.msra.mxu0 0.0
    %2557 = vmatprep.subr.mxu0 0.0
    %2558 = vmatpush1.msra.mxu0 0.0
    %2559 = vmatprep.subr.mxu0 0.0
    %2560 = vmatpush1.msra.mxu0 0.0
    %2561 = vmatprep.subr.mxu0 0.0
    %2562 = vmatpush1.msra.mxu0 0.0
    %2563 = vmatprep.subr.mxu0 0.0
    %2564 = vmatpush1.msra.mxu0 0.0
    %2565 = vmatprep.subr.mxu0 0.0
    %2566 = vmatpush1.msra.mxu0 0.0
    %2567 = vmatprep.subr.mxu0 0.0
    %2568 = vmatpush1.msra.mxu0 0.0
    %2569 = vmatprep.subr.mxu0 0.0
    %2570 = vmatpush1.msra.mxu0 0.0
    %2571 = vmatprep.subr.mxu0 0.0
    %2572 = vmatpush1.msra.mxu0 0.0
    %2573 = vmatprep.subr.mxu0 0.0
    %2574 = vmatpush1.msra.mxu0 0.0
    %2575 = vmatprep.subr.mxu0 0.0
    %2576 = vmatpush1.msra.mxu0 0.0
    %2577 = vmatprep.subr.mxu0 0.0
    %2578 = vmatpush1.msra.mxu0 0.0
    %2579 = vmatprep.subr.mxu0 0.0
    %2580 = vmatpush1.msra.mxu0 0.0
    %2581 = vmatprep.subr.mxu0 0.0
    %2582 = vmatpush1.msra.mxu0 0.0
    %2583 = vmatprep.subr.mxu0 0.0
    %2584 = vmatpush1.msra.mxu0 0.0
    %2585 = vmatprep.subr.mxu0 0.0
    %2586 = vmatpush1.msra.mxu0 0.0
    %2587 = vmatprep.subr.mxu0 0.0
    %2588 = vmatpush1.msra.mxu0 0.0
    %2589 = vmatprep.subr.mxu0 0.0
    %2590 = vmatpush1.msra.mxu0 0.0
    %2591 = vmatprep.mubr.f32.mxu0 0.0
    %2592 = vmatmul.mubr.f32.gmra.mrb[0].mxu0 %v2525
    %v2593 = vpop.f32.mrb[0].mxu0
    %v2594 = vadd.f32 %v2305, %v2593
    %v2595 = vpop.f32.mrb[0].mxu0
    %2596 = vdwg.mxu0
    %v2597 = vadd.f32 %v2524, %v2594
    %v2598 = vxor.u32 %v2597, 2147483648
    %v2599 = vmul.f32 %v2598, 1.442695
    %v2600 = vpow.pop %v2599
    %v2601 = vadd.f32 %v2600, 1.0
    %v2602 = vrcp.pop %v2601
    %v2603 = vmul.f32 1.0, %v2602
    %2605 = vrot.lane.b32.xlu0 %v2594, 96
    %v2606 = vpop.permute.xlu0 %2605
    %v2608 = vmul.f32 %v2603, %v2606
    %2610 = vrot.lane.b32.xlu0 %v2608, 32
    %v2611 = vpop.permute.xlu0 %2610
    %v2613 = vadd.f32 %v2524, %v2611
    %v2614 = vtanh.pop %v2613
    %v2615 = vsub.f32 %v2515, %v2614
    %2617 = vrot.lane.b32.xlu0 %v2615, 112
    %v2618 = vpop.permute.xlu0 %2617
    %v2620 = vmul.f32 %v2603, %v2618
    %2622 = vrot.lane.b32.xlu0 %v2620, 16
    %v2623 = vpop.permute.xlu0 %2622
    %v2625 = vadd.f32 %v2614, %v2623
    %2627 = vrot.lane.b32.xlu0 %v2625, 96
    %v2628 = vpop.permute.xlu0 %2627
    %2630 = vst.msk [vmem:[#allocation2 + $0x10] sm:$0xff] %vm318, %v2628
    %2631 = vst.msk [vmem:[#allocation2 + $0x28] sm:$0xff] %vm320, %v2628
    %v2632 = vld [vmem:[#allocation3 + $0x18] sm:$0xff]
    %v2633 = vld [vmem:[#allocation3 + $0x20] sm:$0xff]
    %v2634 = vsel %vm43, %v2632, %v2633
    %v2635 = vsel %vm61, %v2628, 0
    %2637 = vmatprep.subr.mxu0 0.0
    %2638 = vmatpush1.msra.mxu0 %v2294
    %2639 = vmatprep.subr.mxu0 0.0
    %2640 = vmatpush1.msra.mxu0 %v2295
    %2641 = vmatprep.subr.mxu0 0.0
    %2642 = vmatpush1.msra.mxu0 0.0
    %2643 = vmatprep.subr.mxu0 0.0
    %2644 = vmatpush1.msra.mxu0 0.0
    %2645 = vmatprep.subr.mxu0 0.0
    %2646 = vmatpush1.msra.mxu0 0.0
    %2647 = vmatprep.subr.mxu0 0.0
    %2648 = vmatpush1.msra.mxu0 0.0
    %2649 = vmatprep.subr.mxu0 0.0
    %2650 = vmatpush1.msra.mxu0 0.0
    %2651 = vmatprep.subr.mxu0 0.0
    %2652 = vmatpush1.msra.mxu0 0.0
    %2653 = vmatprep.subr.mxu0 0.0
    %2654 = vmatpush1.msra.mxu0 0.0
    %2655 = vmatprep.subr.mxu0 0.0
    %2656 = vmatpush1.msra.mxu0 0.0
    %2657 = vmatprep.subr.mxu0 0.0
    %2658 = vmatpush1.msra.mxu0 0.0
    %2659 = vmatprep.subr.mxu0 0.0
    %2660 = vmatpush1.msra.mxu0 0.0
    %2661 = vmatprep.subr.mxu0 0.0
    %2662 = vmatpush1.msra.mxu0 0.0
    %2663 = vmatprep.subr.mxu0 0.0
    %2664 = vmatpush1.msra.mxu0 0.0
    %2665 = vmatprep.subr.mxu0 0.0
    %2666 = vmatpush1.msra.mxu0 0.0
    %2667 = vmatprep.subr.mxu0 0.0
    %2668 = vmatpush1.msra.mxu0 0.0
    %2669 = vmatprep.subr.mxu0 0.0
    %2670 = vmatpush1.msra.mxu0 0.0
    %2671 = vmatprep.subr.mxu0 0.0
    %2672 = vmatpush1.msra.mxu0 0.0
    %2673 = vmatprep.subr.mxu0 0.0
    %2674 = vmatpush1.msra.mxu0 0.0
    %2675 = vmatprep.subr.mxu0 0.0
    %2676 = vmatpush1.msra.mxu0 0.0
    %2677 = vmatprep.subr.mxu0 0.0
    %2678 = vmatpush1.msra.mxu0 0.0
    %2679 = vmatprep.subr.mxu0 0.0
    %2680 = vmatpush1.msra.mxu0 0.0
    %2681 = vmatprep.subr.mxu0 0.0
    %2682 = vmatpush1.msra.mxu0 0.0
    %2683 = vmatprep.subr.mxu0 0.0
    %2684 = vmatpush1.msra.mxu0 0.0
    %2685 = vmatprep.subr.mxu0 0.0
    %2686 = vmatpush1.msra.mxu0 0.0
    %2687 = vmatprep.subr.mxu0 0.0
    %2688 = vmatpush1.msra.mxu0 0.0
    %2689 = vmatprep.subr.mxu0 0.0
    %2690 = vmatpush1.msra.mxu0 0.0
    %2691 = vmatprep.subr.mxu0 0.0
    %2692 = vmatpush1.msra.mxu0 0.0
    %2693 = vmatprep.subr.mxu0 0.0
    %2694 = vmatpush1.msra.mxu0 0.0
    %2695 = vmatprep.subr.mxu0 0.0
    %2696 = vmatpush1.msra.mxu0 0.0
    %2697 = vmatprep.subr.mxu0 0.0
    %2698 = vmatpush1.msra.mxu0 0.0
    %2699 = vmatprep.subr.mxu0 0.0
    %2700 = vmatpush1.msra.mxu0 0.0
    %2701 = vmatprep.mubr.f32.mxu0 0.0
    %2702 = vmatmul.mubr.f32.gmra.mrb[0].mxu0 %v2635
    %v2703 = vpop.f32.mrb[0].mxu0
    %v2704 = vadd.f32 %v2305, %v2703
    %v2705 = vpop.f32.mrb[0].mxu0
    %2706 = vdwg.mxu0
    %v2707 = vadd.f32 %v2634, %v2704
    %v2708 = vxor.u32 %v2707, 2147483648
    %v2709 = vmul.f32 %v2708, 1.442695
    %v2710 = vpow.pop %v2709
    %v2711 = vadd.f32 %v2710, 1.0
    %v2712 = vrcp.pop %v2711
    %v2713 = vmul.f32 1.0, %v2712
    %2715 = vrot.lane.b32.xlu0 %v2704, 96
    %v2716 = vpop.permute.xlu0 %2715
    %v2718 = vmul.f32 %v2713, %v2716
    %2720 = vrot.lane.b32.xlu0 %v2718, 32
    %v2721 = vpop.permute.xlu0 %2720
    %v2723 = vadd.f32 %v2634, %v2721
    %v2724 = vtanh.pop %v2723
    %v2725 = vsub.f32 %v2625, %v2724
    %2727 = vrot.lane.b32.xlu0 %v2725, 112
    %v2728 = vpop.permute.xlu0 %2727
    %v2730 = vmul.f32 %v2713, %v2728
    %2732 = vrot.lane.b32.xlu0 %v2730, 16
    %v2733 = vpop.permute.xlu0 %2732
    %v2735 = vadd.f32 %v2724, %v2733
    %2737 = vrot.lane.b32.xlu0 %v2735, 96
    %v2738 = vpop.permute.xlu0 %2737
    %2740 = vst.msk [vmem:[#allocation2 + $0x18] sm:$0xff] %vm318, %v2738
    %2741 = vst.msk [vmem:[#allocation2 + $0x20] sm:$0xff] %vm320, %v2738
    %v2742 = vld [vmem:[#allocation3 + $0x20] sm:$0xff]
    %v2743 = vld [vmem:[#allocation3 + $0x18] sm:$0xff]
    %v2744 = vsel %vm43, %v2742, %v2743
    %v2745 = vsel %vm61, %v2738, 0
    %2747 = vmatprep.subr.mxu0 0.0
    %2748 = vmatpush1.msra.mxu0 %v2294
    %2749 = vmatprep.subr.mxu0 0.0
    %2750 = vmatpush1.msra.mxu0 %v2295
    %2751 = vmatprep.subr.mxu0 0.0
    %2752 = vmatpush1.msra.mxu0 0.0
    %2753 = vmatprep.subr.mxu0 0.0
    %2754 = vmatpush1.msra.mxu0 0.0
    %2755 = vmatprep.subr.mxu0 0.0
    %2756 = vmatpush1.msra.mxu0 0.0
    %2757 = vmatprep.subr.mxu0 0.0
    %2758 = vmatpush1.msra.mxu0 0.0
    %2759 = vmatprep.subr.mxu0 0.0
    %2760 = vmatpush1.msra.mxu0 0.0
    %2761 = vmatprep.subr.mxu0 0.0
    %2762 = vmatpush1.msra.mxu0 0.0
    %2763 = vmatprep.subr.mxu0 0.0
    %2764 = vmatpush1.msra.mxu0 0.0
    %2765 = vmatprep.subr.mxu0 0.0
    %2766 = vmatpush1.msra.mxu0 0.0
    %2767 = vmatprep.subr.mxu0 0.0
    %2768 = vmatpush1.msra.mxu0 0.0
    %2769 = vmatprep.subr.mxu0 0.0
    %2770 = vmatpush1.msra.mxu0 0.0
    %2771 = vmatprep.subr.mxu0 0.0
    %2772 = vmatpush1.msra.mxu0 0.0
    %2773 = vmatprep.subr.mxu0 0.0
    %2774 = vmatpush1.msra.mxu0 0.0
    %2775 = vmatprep.subr.mxu0 0.0
    %2776 = vmatpush1.msra.mxu0 0.0
    %2777 = vmatprep.subr.mxu0 0.0
    %2778 = vmatpush1.msra.mxu0 0.0
    %2779 = vmatprep.subr.mxu0 0.0
    %2780 = vmatpush1.msra.mxu0 0.0
    %2781 = vmatprep.subr.mxu0 0.0
    %2782 = vmatpush1.msra.mxu0 0.0
    %2783 = vmatprep.subr.mxu0 0.0
    %2784 = vmatpush1.msra.mxu0 0.0
    %2785 = vmatprep.subr.mxu0 0.0
    %2786 = vmatpush1.msra.mxu0 0.0
    %2787 = vmatprep.subr.mxu0 0.0
    %2788 = vmatpush1.msra.mxu0 0.0
    %2789 = vmatprep.subr.mxu0 0.0
    %2790 = vmatpush1.msra.mxu0 0.0
    %2791 = vmatprep.subr.mxu0 0.0
    %2792 = vmatpush1.msra.mxu0 0.0
    %2793 = vmatprep.subr.mxu0 0.0
    %2794 = vmatpush1.msra.mxu0 0.0
    %2795 = vmatprep.subr.mxu0 0.0
    %2796 = vmatpush1.msra.mxu0 0.0
    %2797 = vmatprep.subr.mxu0 0.0
    %2798 = vmatpush1.msra.mxu0 0.0
    %2799 = vmatprep.subr.mxu0 0.0
    %2800 = vmatpush1.msra.mxu0 0.0
    %2801 = vmatprep.subr.mxu0 0.0
    %2802 = vmatpush1.msra.mxu0 0.0
    %2803 = vmatprep.subr.mxu0 0.0
    %2804 = vmatpush1.msra.mxu0 0.0
    %2805 = vmatprep.subr.mxu0 0.0
    %2806 = vmatpush1.msra.mxu0 0.0
    %2807 = vmatprep.subr.mxu0 0.0
    %2808 = vmatpush1.msra.mxu0 0.0
    %2809 = vmatprep.subr.mxu0 0.0
    %2810 = vmatpush1.msra.mxu0 0.0
    %2811 = vmatprep.mubr.f32.mxu0 0.0
    %2812 = vmatmul.mubr.f32.gmra.mrb[0].mxu0 %v2745
    %v2813 = vpop.f32.mrb[0].mxu0
    %v2814 = vadd.f32 %v2305, %v2813
    %v2815 = vpop.f32.mrb[0].mxu0
    %2816 = vdwg.mxu0
    %v2817 = vadd.f32 %v2744, %v2814
    %v2818 = vxor.u32 %v2817, 2147483648
    %v2819 = vmul.f32 %v2818, 1.442695
    %v2820 = vpow.pop %v2819
    %v2821 = vadd.f32 %v2820, 1.0
    %v2822 = vrcp.pop %v2821
    %v2823 = vmul.f32 1.0, %v2822
    %2825 = vrot.lane.b32.xlu0 %v2814, 96
    %v2826 = vpop.permute.xlu0 %2825
    %v2828 = vmul.f32 %v2823, %v2826
    %2830 = vrot.lane.b32.xlu0 %v2828, 32
    %v2831 = vpop.permute.xlu0 %2830
    %v2833 = vadd.f32 %v2744, %v2831
    %v2834 = vtanh.pop %v2833
    %v2835 = vsub.f32 %v2735, %v2834
    %2837 = vrot.lane.b32.xlu0 %v2835, 112
    %v2838 = vpop.permute.xlu0 %2837
    %v2840 = vmul.f32 %v2823, %v2838
    %2842 = vrot.lane.b32.xlu0 %v2840, 16
    %v2843 = vpop.permute.xlu0 %2842
    %v2845 = vadd.f32 %v2834, %v2843
    %2847 = vrot.lane.b32.xlu0 %v2845, 96
    %v2848 = vpop.permute.xlu0 %2847
    %2850 = vst.msk [vmem:[#allocation2 + $0x20] sm:$0xff] %vm318, %v2848
    %2851 = vst.msk [vmem:[#allocation2 + $0x18] sm:$0xff] %vm320, %v2848
    %v2852 = vld [vmem:[#allocation3 + $0x28] sm:$0xff]
    %v2853 = vld [vmem:[#allocation3 + $0x10] sm:$0xff]
    %v2854 = vsel %vm43, %v2852, %v2853
    %v2855 = vsel %vm61, %v2848, 0
    %2857 = vmatprep.subr.mxu0 0.0
    %2858 = vmatpush1.msra.mxu0 %v2294
    %2859 = vmatprep.subr.mxu0 0.0
    %2860 = vmatpush1.msra.mxu0 %v2295
    %2861 = vmatprep.subr.mxu0 0.0
    %2862 = vmatpush1.msra.mxu0 0.0
    %2863 = vmatprep.subr.mxu0 0.0
    %2864 = vmatpush1.msra.mxu0 0.0
    %2865 = vmatprep.subr.mxu0 0.0
    %2866 = vmatpush1.msra.mxu0 0.0
    %2867 = vmatprep.subr.mxu0 0.0
    %2868 = vmatpush1.msra.mxu0 0.0
    %2869 = vmatprep.subr.mxu0 0.0
    %2870 = vmatpush1.msra.mxu0 0.0
    %2871 = vmatprep.subr.mxu0 0.0
    %2872 = vmatpush1.msra.mxu0 0.0
    %2873 = vmatprep.subr.mxu0 0.0
    %2874 = vmatpush1.msra.mxu0 0.0
    %2875 = vmatprep.subr.mxu0 0.0
    %2876 = vmatpush1.msra.mxu0 0.0
    %2877 = vmatprep.subr.mxu0 0.0
    %2878 = vmatpush1.msra.mxu0 0.0
    %2879 = vmatprep.subr.mxu0 0.0
    %2880 = vmatpush1.msra.mxu0 0.0
    %2881 = vmatprep.subr.mxu0 0.0
    %2882 = vmatpush1.msra.mxu0 0.0
    %2883 = vmatprep.subr.mxu0 0.0
    %2884 = vmatpush1.msra.mxu0 0.0
    %2885 = vmatprep.subr.mxu0 0.0
    %2886 = vmatpush1.msra.mxu0 0.0
    %2887 = vmatprep.subr.mxu0 0.0
    %2888 = vmatpush1.msra.mxu0 0.0
    %2889 = vmatprep.subr.mxu0 0.0
    %2890 = vmatpush1.msra.mxu0 0.0
    %2891 = vmatprep.subr.mxu0 0.0
    %2892 = vmatpush1.msra.mxu0 0.0
    %2893 = vmatprep.subr.mxu0 0.0
    %2894 = vmatpush1.msra.mxu0 0.0
    %2895 = vmatprep.subr.mxu0 0.0
    %2896 = vmatpush1.msra.mxu0 0.0
    %2897 = vmatprep.subr.mxu0 0.0
    %2898 = vmatpush1.msra.mxu0 0.0
    %2899 = vmatprep.subr.mxu0 0.0
    %2900 = vmatpush1.msra.mxu0 0.0
    %2901 = vmatprep.subr.mxu0 0.0
    %2902 = vmatpush1.msra.mxu0 0.0
    %2903 = vmatprep.subr.mxu0 0.0
    %2904 = vmatpush1.msra.mxu0 0.0
    %2905 = vmatprep.subr.mxu0 0.0
    %2906 = vmatpush1.msra.mxu0 0.0
    %2907 = vmatprep.subr.mxu0 0.0
    %2908 = vmatpush1.msra.mxu0 0.0
    %2909 = vmatprep.subr.mxu0 0.0
    %2910 = vmatpush1.msra.mxu0 0.0
    %2911 = vmatprep.subr.mxu0 0.0
    %2912 = vmatpush1.msra.mxu0 0.0
    %2913 = vmatprep.subr.mxu0 0.0
    %2914 = vmatpush1.msra.mxu0 0.0
    %2915 = vmatprep.subr.mxu0 0.0
    %2916 = vmatpush1.msra.mxu0 0.0
    %2917 = vmatprep.subr.mxu0 0.0
    %2918 = vmatpush1.msra.mxu0 0.0
    %2919 = vmatprep.subr.mxu0 0.0
    %2920 = vmatpush1.msra.mxu0 0.0
    %2921 = vmatprep.mubr.f32.mxu0 0.0
    %2922 = vmatmul.mubr.f32.gmra.mrb[0].mxu0 %v2855
    %v2923 = vpop.f32.mrb[0].mxu0
    %v2924 = vadd.f32 %v2305, %v2923
    %v2925 = vpop.f32.mrb[0].mxu0
    %2926 = vdwg.mxu0
    %v2927 = vadd.f32 %v2854, %v2924
    %v2928 = vxor.u32 %v2927, 2147483648
    %v2929 = vmul.f32 %v2928, 1.442695
    %v2930 = vpow.pop %v2929
    %v2931 = vadd.f32 %v2930, 1.0
    %v2932 = vrcp.pop %v2931
    %v2933 = vmul.f32 1.0, %v2932
    %2935 = vrot.lane.b32.xlu0 %v2924, 96
    %v2936 = vpop.permute.xlu0 %2935
    %v2938 = vmul.f32 %v2933, %v2936
    %2940 = vrot.lane.b32.xlu0 %v2938, 32
    %v2941 = vpop.permute.xlu0 %2940
    %v2943 = vadd.f32 %v2854, %v2941
    %v2944 = vtanh.pop %v2943
    %v2945 = vsub.f32 %v2845, %v2944
    %2947 = vrot.lane.b32.xlu0 %v2945, 112
    %v2948 = vpop.permute.xlu0 %2947
    %v2950 = vmul.f32 %v2933, %v2948
    %2952 = vrot.lane.b32.xlu0 %v2950, 16
    %v2953 = vpop.permute.xlu0 %2952
    %v2955 = vadd.f32 %v2944, %v2953
    %2957 = vrot.lane.b32.xlu0 %v2955, 96
    %v2958 = vpop.permute.xlu0 %2957
    %2960 = vst.msk [vmem:[#allocation2 + $0x28] sm:$0xff] %vm318, %v2958
    %2961 = vst.msk [vmem:[#allocation2 + $0x10] sm:$0xff] %vm320, %v2958
    %v2962 = vld [vmem:[#allocation3 + $0x30] sm:$0xff]
    %v2963 = vld [vmem:[#allocation3 + $0x8] sm:$0xff]
    %v2964 = vsel %vm43, %v2962, %v2963
    %v2965 = vsel %vm61, %v2958, 0
    %2967 = vmatprep.subr.mxu0 0.0
    %2968 = vmatpush1.msra.mxu0 %v2294
    %2969 = vmatprep.subr.mxu0 0.0
    %2970 = vmatpush1.msra.mxu0 %v2295
    %2971 = vmatprep.subr.mxu0 0.0
    %2972 = vmatpush1.msra.mxu0 0.0
    %2973 = vmatprep.subr.mxu0 0.0
    %2974 = vmatpush1.msra.mxu0 0.0
    %2975 = vmatprep.subr.mxu0 0.0
    %2976 = vmatpush1.msra.mxu0 0.0
    %2977 = vmatprep.subr.mxu0 0.0
    %2978 = vmatpush1.msra.mxu0 0.0
    %2979 = vmatprep.subr.mxu0 0.0
    %2980 = vmatpush1.msra.mxu0 0.0
    %2981 = vmatprep.subr.mxu0 0.0
    %2982 = vmatpush1.msra.mxu0 0.0
    %2983 = vmatprep.subr.mxu0 0.0
    %2984 = vmatpush1.msra.mxu0 0.0
    %2985 = vmatprep.subr.mxu0 0.0
    %2986 = vmatpush1.msra.mxu0 0.0
    %2987 = vmatprep.subr.mxu0 0.0
    %2988 = vmatpush1.msra.mxu0 0.0
    %2989 = vmatprep.subr.mxu0 0.0
    %2990 = vmatpush1.msra.mxu0 0.0
    %2991 = vmatprep.subr.mxu0 0.0
    %2992 = vmatpush1.msra.mxu0 0.0
    %2993 = vmatprep.subr.mxu0 0.0
    %2994 = vmatpush1.msra.mxu0 0.0
    %2995 = vmatprep.subr.mxu0 0.0
    %2996 = vmatpush1.msra.mxu0 0.0
    %2997 = vmatprep.subr.mxu0 0.0
    %2998 = vmatpush1.msra.mxu0 0.0
    %2999 = vmatprep.subr.mxu0 0.0
    %3000 = vmatpush1.msra.mxu0 0.0
    %3001 = vmatprep.subr.mxu0 0.0
    %3002 = vmatpush1.msra.mxu0 0.0
    %3003 = vmatprep.subr.mxu0 0.0
    %3004 = vmatpush1.msra.mxu0 0.0
    %3005 = vmatprep.subr.mxu0 0.0
    %3006 = vmatpush1.msra.mxu0 0.0
    %3007 = vmatprep.subr.mxu0 0.0
    %3008 = vmatpush1.msra.mxu0 0.0
    %3009 = vmatprep.subr.mxu0 0.0
    %3010 = vmatpush1.msra.mxu0 0.0
    %3011 = vmatprep.subr.mxu0 0.0
    %3012 = vmatpush1.msra.mxu0 0.0
    %3013 = vmatprep.subr.mxu0 0.0
    %3014 = vmatpush1.msra.mxu0 0.0
    %3015 = vmatprep.subr.mxu0 0.0
    %3016 = vmatpush1.msra.mxu0 0.0
    %3017 = vmatprep.subr.mxu0 0.0
    %3018 = vmatpush1.msra.mxu0 0.0
    %3019 = vmatprep.subr.mxu0 0.0
    %3020 = vmatpush1.msra.mxu0 0.0
    %3021 = vmatprep.subr.mxu0 0.0
    %3022 = vmatpush1.msra.mxu0 0.0
    %3023 = vmatprep.subr.mxu0 0.0
    %3024 = vmatpush1.msra.mxu0 0.0
    %3025 = vmatprep.subr.mxu0 0.0
    %3026 = vmatpush1.msra.mxu0 0.0
    %3027 = vmatprep.subr.mxu0 0.0
    %3028 = vmatpush1.msra.mxu0 0.0
    %3029 = vmatprep.subr.mxu0 0.0
    %3030 = vmatpush1.msra.mxu0 0.0
    %3031 = vmatprep.mubr.f32.mxu0 0.0
    %3032 = vmatmul.mubr.f32.gmra.mrb[0].mxu0 %v2965
    %v3033 = vpop.f32.mrb[0].mxu0
    %v3034 = vadd.f32 %v2305, %v3033
    %v3035 = vpop.f32.mrb[0].mxu0
    %3036 = vdwg.mxu0
    %v3037 = vadd.f32 %v2964, %v3034
    %v3038 = vxor.u32 %v3037, 2147483648
    %v3039 = vmul.f32 %v3038, 1.442695
    %v3040 = vpow.pop %v3039
    %v3041 = vadd.f32 %v3040, 1.0
    %v3042 = vrcp.pop %v3041
    %v3043 = vmul.f32 1.0, %v3042
    %3045 = vrot.lane.b32.xlu0 %v3034, 96
    %v3046 = vpop.permute.xlu0 %3045
    %v3048 = vmul.f32 %v3043, %v3046
    %3050 = vrot.lane.b32.xlu0 %v3048, 32
    %v3051 = vpop.permute.xlu0 %3050
    %v3053 = vadd.f32 %v2964, %v3051
    %v3054 = vtanh.pop %v3053
    %v3055 = vsub.f32 %v2955, %v3054
    %3057 = vrot.lane.b32.xlu0 %v3055, 112
    %v3058 = vpop.permute.xlu0 %3057
    %v3060 = vmul.f32 %v3043, %v3058
    %3062 = vrot.lane.b32.xlu0 %v3060, 16
    %v3063 = vpop.permute.xlu0 %3062
    %v3065 = vadd.f32 %v3054, %v3063
    %3067 = vrot.lane.b32.xlu0 %v3065, 96
    %v3068 = vpop.permute.xlu0 %3067
    %3070 = vst.msk [vmem:[#allocation2 + $0x30] sm:$0xff] %vm318, %v3068
    %3071 = vst.msk [vmem:[#allocation2 + $0x8] sm:$0xff] %vm320, %v3068
    %v3072 = vld [vmem:[#allocation3 + $0x38] sm:$0xff]
    %v3073 = vld [vmem:[#allocation3] sm:$0xff]
    %v3074 = vsel %vm43, %v3072, %v3073
    %v3075 = vsel %vm61, %v3068, 0
    %3077 = vmatprep.subr.mxu0 0.0
    %3078 = vmatpush1.msra.mxu0 %v2294
    %3079 = vmatprep.subr.mxu0 0.0
    %3080 = vmatpush1.msra.mxu0 %v2295
    %3081 = vmatprep.subr.mxu0 0.0
    %3082 = vmatpush1.msra.mxu0 0.0
    %3083 = vmatprep.subr.mxu0 0.0
    %3084 = vmatpush1.msra.mxu0 0.0
    %3085 = vmatprep.subr.mxu0 0.0
    %3086 = vmatpush1.msra.mxu0 0.0
    %3087 = vmatprep.subr.mxu0 0.0
    %3088 = vmatpush1.msra.mxu0 0.0
    %3089 = vmatprep.subr.mxu0 0.0
    %3090 = vmatpush1.msra.mxu0 0.0
    %3091 = vmatprep.subr.mxu0 0.0
    %3092 = vmatpush1.msra.mxu0 0.0
    %3093 = vmatprep.subr.mxu0 0.0
    %3094 = vmatpush1.msra.mxu0 0.0
    %3095 = vmatprep.subr.mxu0 0.0
    %3096 = vmatpush1.msra.mxu0 0.0
    %3097 = vmatprep.subr.mxu0 0.0
    %3098 = vmatpush1.msra.mxu0 0.0
    %3099 = vmatprep.subr.mxu0 0.0
    %3100 = vmatpush1.msra.mxu0 0.0
    %3101 = vmatprep.subr.mxu0 0.0
    %3102 = vmatpush1.msra.mxu0 0.0
    %3103 = vmatprep.subr.mxu0 0.0
    %3104 = vmatpush1.msra.mxu0 0.0
    %3105 = vmatprep.subr.mxu0 0.0
    %3106 = vmatpush1.msra.mxu0 0.0
    %3107 = vmatprep.subr.mxu0 0.0
    %3108 = vmatpush1.msra.mxu0 0.0
    %3109 = vmatprep.subr.mxu0 0.0
    %3110 = vmatpush1.msra.mxu0 0.0
    %3111 = vmatprep.subr.mxu0 0.0
    %3112 = vmatpush1.msra.mxu0 0.0
    %3113 = vmatprep.subr.mxu0 0.0
    %3114 = vmatpush1.msra.mxu0 0.0
    %3115 = vmatprep.subr.mxu0 0.0
    %3116 = vmatpush1.msra.mxu0 0.0
    %3117 = vmatprep.subr.mxu0 0.0
    %3118 = vmatpush1.msra.mxu0 0.0
    %3119 = vmatprep.subr.mxu0 0.0
    %3120 = vmatpush1.msra.mxu0 0.0
    %3121 = vmatprep.subr.mxu0 0.0
    %3122 = vmatpush1.msra.mxu0 0.0
    %3123 = vmatprep.subr.mxu0 0.0
    %3124 = vmatpush1.msra.mxu0 0.0
    %3125 = vmatprep.subr.mxu0 0.0
    %3126 = vmatpush1.msra.mxu0 0.0
    %3127 = vmatprep.subr.mxu0 0.0
    %3128 = vmatpush1.msra.mxu0 0.0
    %3129 = vmatprep.subr.mxu0 0.0
    %3130 = vmatpush1.msra.mxu0 0.0
    %3131 = vmatprep.subr.mxu0 0.0
    %3132 = vmatpush1.msra.mxu0 0.0
    %3133 = vmatprep.subr.mxu0 0.0
    %3134 = vmatpush1.msra.mxu0 0.0
    %3135 = vmatprep.subr.mxu0 0.0
    %3136 = vmatpush1.msra.mxu0 0.0
    %3137 = vmatprep.subr.mxu0 0.0
    %3138 = vmatpush1.msra.mxu0 0.0
    %3139 = vmatprep.subr.mxu0 0.0
    %3140 = vmatpush1.msra.mxu0 0.0
    %3141 = vmatprep.mubr.f32.mxu0 0.0
    %3142 = vmatmul.mubr.f32.gmra.mrb[0].mxu0 %v3075
    %v3143 = vpop.f32.mrb[0].mxu0
    %v3144 = vadd.f32 %v2305, %v3143
    %v3145 = vpop.f32.mrb[0].mxu0
    %3146 = vdwg.mxu0
    %v3147 = vadd.f32 %v3074, %v3144
    %v3148 = vxor.u32 %v3147, 2147483648
    %v3149 = vmul.f32 %v3148, 1.442695
    %v3150 = vpow.pop %v3149
    %v3151 = vadd.f32 %v3150, 1.0
    %v3152 = vrcp.pop %v3151
    %v3153 = vmul.f32 1.0, %v3152
    %3155 = vrot.lane.b32.xlu0 %v3144, 96
    %v3156 = vpop.permute.xlu0 %3155
    %v3158 = vmul.f32 %v3153, %v3156
    %3160 = vrot.lane.b32.xlu0 %v3158, 32
    %v3161 = vpop.permute.xlu0 %3160
    %v3163 = vadd.f32 %v3074, %v3161
    %v3164 = vtanh.pop %v3163
    %v3165 = vsub.f32 %v3065, %v3164
    %3167 = vrot.lane.b32.xlu0 %v3165, 112
    %v3168 = vpop.permute.xlu0 %3167
    %v3170 = vmul.f32 %v3153, %v3168
    %3172 = vrot.lane.b32.xlu0 %v3170, 16
    %v3173 = vpop.permute.xlu0 %3172
    %v3175 = vadd.f32 %v3164, %v3173
    %3177 = vrot.lane.b32.xlu0 %v3175, 96
    %v3178 = vpop.permute.xlu0 %3177
    %3180 = vst.msk [vmem:[#allocation2 + $0x38] sm:$0xff] %vm318, %v3178
    %3181 = vst.msk [vmem:[#allocation2] sm:$0xff] %vm320, %v3178
    %v3182 = vld [vmem:[#allocation2] sm:$0xff]
    %v3183 = vld [vmem:[#allocation2 + $0x8] sm:$0xff]
    %v3184 = vld [vmem:[#allocation2 + $0x10] sm:$0xff]
    %v3185 = vld [vmem:[#allocation2 + $0x18] sm:$0xff]
    %v3186 = vld [vmem:[#allocation2 + $0x20] sm:$0xff]
    %v3187 = vld [vmem:[#allocation2 + $0x28] sm:$0xff]
    %v3188 = vld [vmem:[#allocation2 + $0x30] sm:$0xff]
    %v3189 = vld [vmem:[#allocation2 + $0x38] sm:$0xff]
    %s3190 = scalar_lea.vmem %s1, 48
    %v3191 = vld [vmem:[%s3190] sm:$0xff]
    %v3192 = vld [vmem:[%s3190 + $0x8] sm:$0xff]
    %s3193 = scalar_lea.vmem %s2, 3
    %v3194 = vld [vmem:[%s3193] sm:$0x1]
    %v3196 = vlaneseq
    %v3197 = vshrl.u32 %v3196, 7
    %v3198 = vsub.s32 0, %v3197
    %v3199 = vrot.slane %v3194, %v3198
    %v3202 = vsel %vm61, %v3182, 0
    %v3205 = vsel %vm61, %v3183, 0
    %v3208 = vsel %vm61, %v3184, 0
    %v3211 = vsel %vm61, %v3185, 0
    %v3214 = vsel %vm61, %v3186, 0
    %v3217 = vsel %vm61, %v3187, 0
    %v3220 = vsel %vm61, %v3188, 0
    %v3223 = vsel %vm61, %v3189, 0
    %3225 = vmatprep.subr.mxu0 0.0
    %3226 = vmatpush1.msra.mxu0 %v3191
    %3227 = vmatprep.subr.mxu0 0.0
    %3228 = vmatpush1.msra.mxu0 %v3192
    %3229 = vmatprep.subr.mxu0 0.0
    %3230 = vmatpush1.msra.mxu0 0.0
    %3231 = vmatprep.subr.mxu0 0.0
    %3232 = vmatpush1.msra.mxu0 0.0
    %3233 = vmatprep.subr.mxu0 0.0
    %3234 = vmatpush1.msra.mxu0 0.0
    %3235 = vmatprep.subr.mxu0 0.0
    %3236 = vmatpush1.msra.mxu0 0.0
    %3237 = vmatprep.subr.mxu0 0.0
    %3238 = vmatpush1.msra.mxu0 0.0
    %3239 = vmatprep.subr.mxu0 0.0
    %3240 = vmatpush1.msra.mxu0 0.0
    %3241 = vmatprep.subr.mxu0 0.0
    %3242 = vmatpush1.msra.mxu0 0.0
    %3243 = vmatprep.subr.mxu0 0.0
    %3244 = vmatpush1.msra.mxu0 0.0
    %3245 = vmatprep.subr.mxu0 0.0
    %3246 = vmatpush1.msra.mxu0 0.0
    %3247 = vmatprep.subr.mxu0 0.0
    %3248 = vmatpush1.msra.mxu0 0.0
    %3249 = vmatprep.subr.mxu0 0.0
    %3250 = vmatpush1.msra.mxu0 0.0
    %3251 = vmatprep.subr.mxu0 0.0
    %3252 = vmatpush1.msra.mxu0 0.0
    %3253 = vmatprep.subr.mxu0 0.0
    %3254 = vmatpush1.msra.mxu0 0.0
    %3255 = vmatprep.subr.mxu0 0.0
    %3256 = vmatpush1.msra.mxu0 0.0
    %3257 = vmatprep.subr.mxu0 0.0
    %3258 = vmatpush1.msra.mxu0 0.0
    %3259 = vmatprep.subr.mxu0 0.0
    %3260 = vmatpush1.msra.mxu0 0.0
    %3261 = vmatprep.subr.mxu0 0.0
    %3262 = vmatpush1.msra.mxu0 0.0
    %3263 = vmatprep.subr.mxu0 0.0
    %3264 = vmatpush1.msra.mxu0 0.0
    %3265 = vmatprep.subr.mxu0 0.0
    %3266 = vmatpush1.msra.mxu0 0.0
    %3267 = vmatprep.subr.mxu0 0.0
    %3268 = vmatpush1.msra.mxu0 0.0
    %3269 = vmatprep.subr.mxu0 0.0
    %3270 = vmatpush1.msra.mxu0 0.0
    %3271 = vmatprep.subr.mxu0 0.0
    %3272 = vmatpush1.msra.mxu0 0.0
    %3273 = vmatprep.subr.mxu0 0.0
    %3274 = vmatpush1.msra.mxu0 0.0
    %3275 = vmatprep.subr.mxu0 0.0
    %3276 = vmatpush1.msra.mxu0 0.0
    %3277 = vmatprep.subr.mxu0 0.0
    %3278 = vmatpush1.msra.mxu0 0.0
    %3279 = vmatprep.subr.mxu0 0.0
    %3280 = vmatpush1.msra.mxu0 0.0
    %3281 = vmatprep.subr.mxu0 0.0
    %3282 = vmatpush1.msra.mxu0 0.0
    %3283 = vmatprep.subr.mxu0 0.0
    %3284 = vmatpush1.msra.mxu0 0.0
    %3285 = vmatprep.subr.mxu0 0.0
    %3286 = vmatpush1.msra.mxu0 0.0
    %3287 = vmatprep.subr.mxu0 0.0
    %3288 = vmatpush1.msra.mxu0 0.0
    %3289 = vmatprep.mubr.f32.mxu0 0.0
    %3290 = vmatmul.mubr.f32.gmra.mrb[0].mxu0 %v3202
    %v3291 = vpop.f32.mrb[0].mxu0
    %v3292 = vadd.f32 %v3199, %v3291
    %v3293 = vpop.f32.mrb[0].mxu0
    %3294 = vmatprep.mubr.f32.mxu0 0.0
    %3295 = vmatmul.mubr.f32.gmra.mrb[0].mxu0 %v3205
    %v3296 = vpop.f32.mrb[0].mxu0
    %v3297 = vadd.f32 %v3199, %v3296
    %v3298 = vpop.f32.mrb[0].mxu0
    %3299 = vmatprep.mubr.f32.mxu0 0.0
    %3300 = vmatmul.mubr.f32.gmra.mrb[0].mxu0 %v3208
    %v3301 = vpop.f32.mrb[0].mxu0
    %v3302 = vadd.f32 %v3199, %v3301
    %v3303 = vpop.f32.mrb[0].mxu0
    %3304 = vmatprep.mubr.f32.mxu0 0.0
    %3305 = vmatmul.mubr.f32.gmra.mrb[0].mxu0 %v3211
    %v3306 = vpop.f32.mrb[0].mxu0
    %v3307 = vadd.f32 %v3199, %v3306
    %v3308 = vpop.f32.mrb[0].mxu0
    %3309 = vmatprep.mubr.f32.mxu0 0.0
    %3310 = vmatmul.mubr.f32.gmra.mrb[0].mxu0 %v3214
    %v3311 = vpop.f32.mrb[0].mxu0
    %v3312 = vadd.f32 %v3199, %v3311
    %v3313 = vpop.f32.mrb[0].mxu0
    %3314 = vmatprep.mubr.f32.mxu0 0.0
    %3315 = vmatmul.mubr.f32.gmra.mrb[0].mxu0 %v3217
    %v3316 = vpop.f32.mrb[0].mxu0
    %v3317 = vadd.f32 %v3199, %v3316
    %v3318 = vpop.f32.mrb[0].mxu0
    %3319 = vmatprep.mubr.f32.mxu0 0.0
    %3320 = vmatmul.mubr.f32.gmra.mrb[0].mxu0 %v3220
    %v3321 = vpop.f32.mrb[0].mxu0
    %v3322 = vadd.f32 %v3199, %v3321
    %v3323 = vpop.f32.mrb[0].mxu0
    %3324 = vmatprep.mubr.f32.mxu0 0.0
    %3325 = vmatmul.mubr.f32.gmra.mrb[0].mxu0 %v3223
    %v3326 = vpop.f32.mrb[0].mxu0
    %v3327 = vadd.f32 %v3199, %v3326
    %v3328 = vpop.f32.mrb[0].mxu0
    %3329 = vdwg.mxu0
    %3330 = vst.msk [vmem:[#allocation3] sm:$0xff] %vm191, %v3292
    %3331 = vst.msk [vmem:[#allocation3 + $0x8] sm:$0xff] %vm191, %v3297
    %3332 = vst.msk [vmem:[#allocation3 + $0x10] sm:$0xff] %vm191, %v3302
    %3333 = vst.msk [vmem:[#allocation3 + $0x18] sm:$0xff] %vm191, %v3307
    %3334 = vst.msk [vmem:[#allocation3 + $0x20] sm:$0xff] %vm191, %v3312
    %3335 = vst.msk [vmem:[#allocation3 + $0x28] sm:$0xff] %vm191, %v3317
    %3336 = vst.msk [vmem:[#allocation3 + $0x30] sm:$0xff] %vm191, %v3322
    %3337 = vst.msk [vmem:[#allocation3 + $0x38] sm:$0xff] %vm191, %v3327
    %s3338 = scalar_lea.vmem %s3, 48
    %v3339 = vld [vmem:[%s3338] sm:$0xff]
    %v3340 = vld [vmem:[%s3338 + $0x8] sm:$0xff]
    %s3341 = scalar_lea.vmem %s4, 3
    %v3342 = vld [vmem:[%s3341] sm:$0x1]
    %v3343 = vld [vmem:[#allocation3] sm:$0xff]
    %v3344 = vld [vmem:[#allocation3 + $0x38] sm:$0xff]
    %v3345 = vsel %vm43, %v3343, %v3344
    %v3347 = vlaneseq
    %v3348 = vshrl.u32 %v3347, 7
    %v3349 = vsub.s32 0, %v3348
    %v3350 = vrot.slane %v3342, %v3349
    %3352 = vmatprep.subr.mxu0 0.0
    %3353 = vmatpush1.msra.mxu0 %v3339
    %3354 = vmatprep.subr.mxu0 0.0
    %3355 = vmatpush1.msra.mxu0 %v3340
    %3356 = vmatprep.subr.mxu0 0.0
    %3357 = vmatpush1.msra.mxu0 0.0
    %3358 = vmatprep.subr.mxu0 0.0
    %3359 = vmatpush1.msra.mxu0 0.0
    %3360 = vmatprep.subr.mxu0 0.0
    %3361 = vmatpush1.msra.mxu0 0.0
    %3362 = vmatprep.subr.mxu0 0.0
    %3363 = vmatpush1.msra.mxu0 0.0
    %3364 = vmatprep.subr.mxu0 0.0
    %3365 = vmatpush1.msra.mxu0 0.0
    %3366 = vmatprep.subr.mxu0 0.0
    %3367 = vmatpush1.msra.mxu0 0.0
    %3368 = vmatprep.subr.mxu0 0.0
    %3369 = vmatpush1.msra.mxu0 0.0
    %3370 = vmatprep.subr.mxu0 0.0
    %3371 = vmatpush1.msra.mxu0 0.0
    %3372 = vmatprep.subr.mxu0 0.0
    %3373 = vmatpush1.msra.mxu0 0.0
    %3374 = vmatprep.subr.mxu0 0.0
    %3375 = vmatpush1.msra.mxu0 0.0
    %3376 = vmatprep.subr.mxu0 0.0
    %3377 = vmatpush1.msra.mxu0 0.0
    %3378 = vmatprep.subr.mxu0 0.0
    %3379 = vmatpush1.msra.mxu0 0.0
    %3380 = vmatprep.subr.mxu0 0.0
    %3381 = vmatpush1.msra.mxu0 0.0
    %3382 = vmatprep.subr.mxu0 0.0
    %3383 = vmatpush1.msra.mxu0 0.0
    %3384 = vmatprep.subr.mxu0 0.0
    %3385 = vmatpush1.msra.mxu0 0.0
    %3386 = vmatprep.subr.mxu0 0.0
    %3387 = vmatpush1.msra.mxu0 0.0
    %3388 = vmatprep.subr.mxu0 0.0
    %3389 = vmatpush1.msra.mxu0 0.0
    %3390 = vmatprep.subr.mxu0 0.0
    %3391 = vmatpush1.msra.mxu0 0.0
    %3392 = vmatprep.subr.mxu0 0.0
    %3393 = vmatpush1.msra.mxu0 0.0
    %3394 = vmatprep.subr.mxu0 0.0
    %3395 = vmatpush1.msra.mxu0 0.0
    %3396 = vmatprep.subr.mxu0 0.0
    %3397 = vmatpush1.msra.mxu0 0.0
    %3398 = vmatprep.subr.mxu0 0.0
    %3399 = vmatpush1.msra.mxu0 0.0
    %3400 = vmatprep.subr.mxu0 0.0
    %3401 = vmatpush1.msra.mxu0 0.0
    %3402 = vmatprep.subr.mxu0 0.0
    %3403 = vmatpush1.msra.mxu0 0.0
    %3404 = vmatprep.subr.mxu0 0.0
    %3405 = vmatpush1.msra.mxu0 0.0
    %3406 = vmatprep.subr.mxu0 0.0
    %3407 = vmatpush1.msra.mxu0 0.0
    %3408 = vmatprep.subr.mxu0 0.0
    %3409 = vmatpush1.msra.mxu0 0.0
    %3410 = vmatprep.subr.mxu0 0.0
    %3411 = vmatpush1.msra.mxu0 0.0
    %3412 = vmatprep.subr.mxu0 0.0
    %3413 = vmatpush1.msra.mxu0 0.0
    %3414 = vmatprep.subr.mxu0 0.0
    %3415 = vmatpush1.msra.mxu0 0.0
    %3416 = vmatprep.mubr.f32.mxu0 0.0
    %3417 = vmatmul.mubr.f32.gmra.mrb[0].mxu0 %v213
    %v3418 = vpop.f32.mrb[0].mxu0
    %v3419 = vadd.f32 %v3350, %v3418
    %v3420 = vpop.f32.mrb[0].mxu0
    %3421 = vdwg.mxu0
    %v3422 = vadd.f32 %v3345, %v3419
    %v3423 = vxor.u32 %v3422, 2147483648
    %v3424 = vmul.f32 %v3423, 1.442695
    %v3425 = vpow.pop %v3424
    %v3426 = vadd.f32 %v3425, 1.0
    %v3427 = vrcp.pop %v3426
    %v3428 = vmul.f32 1.0, %v3427
    %3430 = vrot.lane.b32.xlu0 %v3419, 96
    %v3431 = vpop.permute.xlu0 %3430
    %v3433 = vmul.f32 %v3428, %v3431
    %3435 = vrot.lane.b32.xlu0 %v3433, 32
    %v3436 = vpop.permute.xlu0 %3435
    %v3438 = vadd.f32 %v3345, %v3436
    %v3439 = vtanh.pop %v3438
    %v3440 = vsub.f32 0.0, %v3439
    %3442 = vrot.lane.b32.xlu0 %v3440, 112
    %v3443 = vpop.permute.xlu0 %3442
    %v3445 = vmul.f32 %v3428, %v3443
    %3447 = vrot.lane.b32.xlu0 %v3445, 16
    %v3448 = vpop.permute.xlu0 %3447
    %v3450 = vadd.f32 %v3439, %v3448
    %3452 = vrot.lane.b32.xlu0 %v3450, 96
    %v3453 = vpop.permute.xlu0 %3452
    %3455 = vst.msk [vmem:[#allocation2] sm:$0xff] %vm318, %v3453
    %3456 = vst.msk [vmem:[#allocation2 + $0x38] sm:$0xff] %vm320, %v3453
    %v3457 = vld [vmem:[#allocation3 + $0x8] sm:$0xff]
    %v3458 = vld [vmem:[#allocation3 + $0x30] sm:$0xff]
    %v3459 = vsel %vm43, %v3457, %v3458
    %v3460 = vsel %vm61, %v3453, 0
    %3462 = vmatprep.subr.mxu0 0.0
    %3463 = vmatpush1.msra.mxu0 %v3339
    %3464 = vmatprep.subr.mxu0 0.0
    %3465 = vmatpush1.msra.mxu0 %v3340
    %3466 = vmatprep.subr.mxu0 0.0
    %3467 = vmatpush1.msra.mxu0 0.0
    %3468 = vmatprep.subr.mxu0 0.0
    %3469 = vmatpush1.msra.mxu0 0.0
    %3470 = vmatprep.subr.mxu0 0.0
    %3471 = vmatpush1.msra.mxu0 0.0
    %3472 = vmatprep.subr.mxu0 0.0
    %3473 = vmatpush1.msra.mxu0 0.0
    %3474 = vmatprep.subr.mxu0 0.0
    %3475 = vmatpush1.msra.mxu0 0.0
    %3476 = vmatprep.subr.mxu0 0.0
    %3477 = vmatpush1.msra.mxu0 0.0
    %3478 = vmatprep.subr.mxu0 0.0
    %3479 = vmatpush1.msra.mxu0 0.0
    %3480 = vmatprep.subr.mxu0 0.0
    %3481 = vmatpush1.msra.mxu0 0.0
    %3482 = vmatprep.subr.mxu0 0.0
    %3483 = vmatpush1.msra.mxu0 0.0
    %3484 = vmatprep.subr.mxu0 0.0
    %3485 = vmatpush1.msra.mxu0 0.0
    %3486 = vmatprep.subr.mxu0 0.0
    %3487 = vmatpush1.msra.mxu0 0.0
    %3488 = vmatprep.subr.mxu0 0.0
    %3489 = vmatpush1.msra.mxu0 0.0
    %3490 = vmatprep.subr.mxu0 0.0
    %3491 = vmatpush1.msra.mxu0 0.0
    %3492 = vmatprep.subr.mxu0 0.0
    %3493 = vmatpush1.msra.mxu0 0.0
    %3494 = vmatprep.subr.mxu0 0.0
    %3495 = vmatpush1.msra.mxu0 0.0
    %3496 = vmatprep.subr.mxu0 0.0
    %3497 = vmatpush1.msra.mxu0 0.0
    %3498 = vmatprep.subr.mxu0 0.0
    %3499 = vmatpush1.msra.mxu0 0.0
    %3500 = vmatprep.subr.mxu0 0.0
    %3501 = vmatpush1.msra.mxu0 0.0
    %3502 = vmatprep.subr.mxu0 0.0
    %3503 = vmatpush1.msra.mxu0 0.0
    %3504 = vmatprep.subr.mxu0 0.0
    %3505 = vmatpush1.msra.mxu0 0.0
    %3506 = vmatprep.subr.mxu0 0.0
    %3507 = vmatpush1.msra.mxu0 0.0
    %3508 = vmatprep.subr.mxu0 0.0
    %3509 = vmatpush1.msra.mxu0 0.0
    %3510 = vmatprep.subr.mxu0 0.0
    %3511 = vmatpush1.msra.mxu0 0.0
    %3512 = vmatprep.subr.mxu0 0.0
    %3513 = vmatpush1.msra.mxu0 0.0
    %3514 = vmatprep.subr.mxu0 0.0
    %3515 = vmatpush1.msra.mxu0 0.0
    %3516 = vmatprep.subr.mxu0 0.0
    %3517 = vmatpush1.msra.mxu0 0.0
    %3518 = vmatprep.subr.mxu0 0.0
    %3519 = vmatpush1.msra.mxu0 0.0
    %3520 = vmatprep.subr.mxu0 0.0
    %3521 = vmatpush1.msra.mxu0 0.0
    %3522 = vmatprep.subr.mxu0 0.0
    %3523 = vmatpush1.msra.mxu0 0.0
    %3524 = vmatprep.subr.mxu0 0.0
    %3525 = vmatpush1.msra.mxu0 0.0
    %3526 = vmatprep.mubr.f32.mxu0 0.0
    %3527 = vmatmul.mubr.f32.gmra.mrb[0].mxu0 %v3460
    %v3528 = vpop.f32.mrb[0].mxu0
    %v3529 = vadd.f32 %v3350, %v3528
    %v3530 = vpop.f32.mrb[0].mxu0
    %3531 = vdwg.mxu0
    %v3532 = vadd.f32 %v3459, %v3529
    %v3533 = vxor.u32 %v3532, 2147483648
    %v3534 = vmul.f32 %v3533, 1.442695
    %v3535 = vpow.pop %v3534
    %v3536 = vadd.f32 %v3535, 1.0
    %v3537 = vrcp.pop %v3536
    %v3538 = vmul.f32 1.0, %v3537
    %3540 = vrot.lane.b32.xlu0 %v3529, 96
    %v3541 = vpop.permute.xlu0 %3540
    %v3543 = vmul.f32 %v3538, %v3541
    %3545 = vrot.lane.b32.xlu0 %v3543, 32
    %v3546 = vpop.permute.xlu0 %3545
    %v3548 = vadd.f32 %v3459, %v3546
    %v3549 = vtanh.pop %v3548
    %v3550 = vsub.f32 %v3450, %v3549
    %3552 = vrot.lane.b32.xlu0 %v3550, 112
    %v3553 = vpop.permute.xlu0 %3552
    %v3555 = vmul.f32 %v3538, %v3553
    %3557 = vrot.lane.b32.xlu0 %v3555, 16
    %v3558 = vpop.permute.xlu0 %3557
    %v3560 = vadd.f32 %v3549, %v3558
    %3562 = vrot.lane.b32.xlu0 %v3560, 96
    %v3563 = vpop.permute.xlu0 %3562
    %3565 = vst.msk [vmem:[#allocation2 + $0x8] sm:$0xff] %vm318, %v3563
    %3566 = vst.msk [vmem:[#allocation2 + $0x30] sm:$0xff] %vm320, %v3563
    %v3567 = vld [vmem:[#allocation3 + $0x10] sm:$0xff]
    %v3568 = vld [vmem:[#allocation3 + $0x28] sm:$0xff]
    %v3569 = vsel %vm43, %v3567, %v3568
    %v3570 = vsel %vm61, %v3563, 0
    %3572 = vmatprep.subr.mxu0 0.0
    %3573 = vmatpush1.msra.mxu0 %v3339
    %3574 = vmatprep.subr.mxu0 0.0
    %3575 = vmatpush1.msra.mxu0 %v3340
    %3576 = vmatprep.subr.mxu0 0.0
    %3577 = vmatpush1.msra.mxu0 0.0
    %3578 = vmatprep.subr.mxu0 0.0
    %3579 = vmatpush1.msra.mxu0 0.0
    %3580 = vmatprep.subr.mxu0 0.0
    %3581 = vmatpush1.msra.mxu0 0.0
    %3582 = vmatprep.subr.mxu0 0.0
    %3583 = vmatpush1.msra.mxu0 0.0
    %3584 = vmatprep.subr.mxu0 0.0
    %3585 = vmatpush1.msra.mxu0 0.0
    %3586 = vmatprep.subr.mxu0 0.0
    %3587 = vmatpush1.msra.mxu0 0.0
    %3588 = vmatprep.subr.mxu0 0.0
    %3589 = vmatpush1.msra.mxu0 0.0
    %3590 = vmatprep.subr.mxu0 0.0
    %3591 = vmatpush1.msra.mxu0 0.0
    %3592 = vmatprep.subr.mxu0 0.0
    %3593 = vmatpush1.msra.mxu0 0.0
    %3594 = vmatprep.subr.mxu0 0.0
    %3595 = vmatpush1.msra.mxu0 0.0
    %3596 = vmatprep.subr.mxu0 0.0
    %3597 = vmatpush1.msra.mxu0 0.0
    %3598 = vmatprep.subr.mxu0 0.0
    %3599 = vmatpush1.msra.mxu0 0.0
    %3600 = vmatprep.subr.mxu0 0.0
    %3601 = vmatpush1.msra.mxu0 0.0
    %3602 = vmatprep.subr.mxu0 0.0
    %3603 = vmatpush1.msra.mxu0 0.0
    %3604 = vmatprep.subr.mxu0 0.0
    %3605 = vmatpush1.msra.mxu0 0.0
    %3606 = vmatprep.subr.mxu0 0.0
    %3607 = vmatpush1.msra.mxu0 0.0
    %3608 = vmatprep.subr.mxu0 0.0
    %3609 = vmatpush1.msra.mxu0 0.0
    %3610 = vmatprep.subr.mxu0 0.0
    %3611 = vmatpush1.msra.mxu0 0.0
    %3612 = vmatprep.subr.mxu0 0.0
    %3613 = vmatpush1.msra.mxu0 0.0
    %3614 = vmatprep.subr.mxu0 0.0
    %3615 = vmatpush1.msra.mxu0 0.0
    %3616 = vmatprep.subr.mxu0 0.0
    %3617 = vmatpush1.msra.mxu0 0.0
    %3618 = vmatprep.subr.mxu0 0.0
    %3619 = vmatpush1.msra.mxu0 0.0
    %3620 = vmatprep.subr.mxu0 0.0
    %3621 = vmatpush1.msra.mxu0 0.0
    %3622 = vmatprep.subr.mxu0 0.0
    %3623 = vmatpush1.msra.mxu0 0.0
    %3624 = vmatprep.subr.mxu0 0.0
    %3625 = vmatpush1.msra.mxu0 0.0
    %3626 = vmatprep.subr.mxu0 0.0
    %3627 = vmatpush1.msra.mxu0 0.0
    %3628 = vmatprep.subr.mxu0 0.0
    %3629 = vmatpush1.msra.mxu0 0.0
    %3630 = vmatprep.subr.mxu0 0.0
    %3631 = vmatpush1.msra.mxu0 0.0
    %3632 = vmatprep.subr.mxu0 0.0
    %3633 = vmatpush1.msra.mxu0 0.0
    %3634 = vmatprep.subr.mxu0 0.0
    %3635 = vmatpush1.msra.mxu0 0.0
    %3636 = vmatprep.mubr.f32.mxu0 0.0
    %3637 = vmatmul.mubr.f32.gmra.mrb[0].mxu0 %v3570
    %v3638 = vpop.f32.mrb[0].mxu0
    %v3639 = vadd.f32 %v3350, %v3638
    %v3640 = vpop.f32.mrb[0].mxu0
    %3641 = vdwg.mxu0
    %v3642 = vadd.f32 %v3569, %v3639
    %v3643 = vxor.u32 %v3642, 2147483648
    %v3644 = vmul.f32 %v3643, 1.442695
    %v3645 = vpow.pop %v3644
    %v3646 = vadd.f32 %v3645, 1.0
    %v3647 = vrcp.pop %v3646
    %v3648 = vmul.f32 1.0, %v3647
    %3650 = vrot.lane.b32.xlu0 %v3639, 96
    %v3651 = vpop.permute.xlu0 %3650
    %v3653 = vmul.f32 %v3648, %v3651
    %3655 = vrot.lane.b32.xlu0 %v3653, 32
    %v3656 = vpop.permute.xlu0 %3655
    %v3658 = vadd.f32 %v3569, %v3656
    %v3659 = vtanh.pop %v3658
    %v3660 = vsub.f32 %v3560, %v3659
    %3662 = vrot.lane.b32.xlu0 %v3660, 112
    %v3663 = vpop.permute.xlu0 %3662
    %v3665 = vmul.f32 %v3648, %v3663
    %3667 = vrot.lane.b32.xlu0 %v3665, 16
    %v3668 = vpop.permute.xlu0 %3667
    %v3670 = vadd.f32 %v3659, %v3668
    %3672 = vrot.lane.b32.xlu0 %v3670, 96
    %v3673 = vpop.permute.xlu0 %3672
    %3675 = vst.msk [vmem:[#allocation2 + $0x10] sm:$0xff] %vm318, %v3673
    %3676 = vst.msk [vmem:[#allocation2 + $0x28] sm:$0xff] %vm320, %v3673
    %v3677 = vld [vmem:[#allocation3 + $0x18] sm:$0xff]
    %v3678 = vld [vmem:[#allocation3 + $0x20] sm:$0xff]
    %v3679 = vsel %vm43, %v3677, %v3678
    %v3680 = vsel %vm61, %v3673, 0
    %3682 = vmatprep.subr.mxu0 0.0
    %3683 = vmatpush1.msra.mxu0 %v3339
    %3684 = vmatprep.subr.mxu0 0.0
    %3685 = vmatpush1.msra.mxu0 %v3340
    %3686 = vmatprep.subr.mxu0 0.0
    %3687 = vmatpush1.msra.mxu0 0.0
    %3688 = vmatprep.subr.mxu0 0.0
    %3689 = vmatpush1.msra.mxu0 0.0
    %3690 = vmatprep.subr.mxu0 0.0
    %3691 = vmatpush1.msra.mxu0 0.0
    %3692 = vmatprep.subr.mxu0 0.0
    %3693 = vmatpush1.msra.mxu0 0.0
    %3694 = vmatprep.subr.mxu0 0.0
    %3695 = vmatpush1.msra.mxu0 0.0
    %3696 = vmatprep.subr.mxu0 0.0
    %3697 = vmatpush1.msra.mxu0 0.0
    %3698 = vmatprep.subr.mxu0 0.0
    %3699 = vmatpush1.msra.mxu0 0.0
    %3700 = vmatprep.subr.mxu0 0.0
    %3701 = vmatpush1.msra.mxu0 0.0
    %3702 = vmatprep.subr.mxu0 0.0
    %3703 = vmatpush1.msra.mxu0 0.0
    %3704 = vmatprep.subr.mxu0 0.0
    %3705 = vmatpush1.msra.mxu0 0.0
    %3706 = vmatprep.subr.mxu0 0.0
    %3707 = vmatpush1.msra.mxu0 0.0
    %3708 = vmatprep.subr.mxu0 0.0
    %3709 = vmatpush1.msra.mxu0 0.0
    %3710 = vmatprep.subr.mxu0 0.0
    %3711 = vmatpush1.msra.mxu0 0.0
    %3712 = vmatprep.subr.mxu0 0.0
    %3713 = vmatpush1.msra.mxu0 0.0
    %3714 = vmatprep.subr.mxu0 0.0
    %3715 = vmatpush1.msra.mxu0 0.0
    %3716 = vmatprep.subr.mxu0 0.0
    %3717 = vmatpush1.msra.mxu0 0.0
    %3718 = vmatprep.subr.mxu0 0.0
    %3719 = vmatpush1.msra.mxu0 0.0
    %3720 = vmatprep.subr.mxu0 0.0
    %3721 = vmatpush1.msra.mxu0 0.0
    %3722 = vmatprep.subr.mxu0 0.0
    %3723 = vmatpush1.msra.mxu0 0.0
    %3724 = vmatprep.subr.mxu0 0.0
    %3725 = vmatpush1.msra.mxu0 0.0
    %3726 = vmatprep.subr.mxu0 0.0
    %3727 = vmatpush1.msra.mxu0 0.0
    %3728 = vmatprep.subr.mxu0 0.0
    %3729 = vmatpush1.msra.mxu0 0.0
    %3730 = vmatprep.subr.mxu0 0.0
    %3731 = vmatpush1.msra.mxu0 0.0
    %3732 = vmatprep.subr.mxu0 0.0
    %3733 = vmatpush1.msra.mxu0 0.0
    %3734 = vmatprep.subr.mxu0 0.0
    %3735 = vmatpush1.msra.mxu0 0.0
    %3736 = vmatprep.subr.mxu0 0.0
    %3737 = vmatpush1.msra.mxu0 0.0
    %3738 = vmatprep.subr.mxu0 0.0
    %3739 = vmatpush1.msra.mxu0 0.0
    %3740 = vmatprep.subr.mxu0 0.0
    %3741 = vmatpush1.msra.mxu0 0.0
    %3742 = vmatprep.subr.mxu0 0.0
    %3743 = vmatpush1.msra.mxu0 0.0
    %3744 = vmatprep.subr.mxu0 0.0
    %3745 = vmatpush1.msra.mxu0 0.0
    %3746 = vmatprep.mubr.f32.mxu0 0.0
    %3747 = vmatmul.mubr.f32.gmra.mrb[0].mxu0 %v3680
    %v3748 = vpop.f32.mrb[0].mxu0
    %v3749 = vadd.f32 %v3350, %v3748
    %v3750 = vpop.f32.mrb[0].mxu0
    %3751 = vdwg.mxu0
    %v3752 = vadd.f32 %v3679, %v3749
    %v3753 = vxor.u32 %v3752, 2147483648
    %v3754 = vmul.f32 %v3753, 1.442695
    %v3755 = vpow.pop %v3754
    %v3756 = vadd.f32 %v3755, 1.0
    %v3757 = vrcp.pop %v3756
    %v3758 = vmul.f32 1.0, %v3757
    %3760 = vrot.lane.b32.xlu0 %v3749, 96
    %v3761 = vpop.permute.xlu0 %3760
    %v3763 = vmul.f32 %v3758, %v3761
    %3765 = vrot.lane.b32.xlu0 %v3763, 32
    %v3766 = vpop.permute.xlu0 %3765
    %v3768 = vadd.f32 %v3679, %v3766
    %v3769 = vtanh.pop %v3768
    %v3770 = vsub.f32 %v3670, %v3769
    %3772 = vrot.lane.b32.xlu0 %v3770, 112
    %v3773 = vpop.permute.xlu0 %3772
    %v3775 = vmul.f32 %v3758, %v3773
    %3777 = vrot.lane.b32.xlu0 %v3775, 16
    %v3778 = vpop.permute.xlu0 %3777
    %v3780 = vadd.f32 %v3769, %v3778
    %3782 = vrot.lane.b32.xlu0 %v3780, 96
    %v3783 = vpop.permute.xlu0 %3782
    %3785 = vst.msk [vmem:[#allocation2 + $0x18] sm:$0xff] %vm318, %v3783
    %3786 = vst.msk [vmem:[#allocation2 + $0x20] sm:$0xff] %vm320, %v3783
    %v3787 = vld [vmem:[#allocation3 + $0x20] sm:$0xff]
    %v3788 = vld [vmem:[#allocation3 + $0x18] sm:$0xff]
    %v3789 = vsel %vm43, %v3787, %v3788
    %v3790 = vsel %vm61, %v3783, 0
    %3792 = vmatprep.subr.mxu0 0.0
    %3793 = vmatpush1.msra.mxu0 %v3339
    %3794 = vmatprep.subr.mxu0 0.0
    %3795 = vmatpush1.msra.mxu0 %v3340
    %3796 = vmatprep.subr.mxu0 0.0
    %3797 = vmatpush1.msra.mxu0 0.0
    %3798 = vmatprep.subr.mxu0 0.0
    %3799 = vmatpush1.msra.mxu0 0.0
    %3800 = vmatprep.subr.mxu0 0.0
    %3801 = vmatpush1.msra.mxu0 0.0
    %3802 = vmatprep.subr.mxu0 0.0
    %3803 = vmatpush1.msra.mxu0 0.0
    %3804 = vmatprep.subr.mxu0 0.0
    %3805 = vmatpush1.msra.mxu0 0.0
    %3806 = vmatprep.subr.mxu0 0.0
    %3807 = vmatpush1.msra.mxu0 0.0
    %3808 = vmatprep.subr.mxu0 0.0
    %3809 = vmatpush1.msra.mxu0 0.0
    %3810 = vmatprep.subr.mxu0 0.0
    %3811 = vmatpush1.msra.mxu0 0.0
    %3812 = vmatprep.subr.mxu0 0.0
    %3813 = vmatpush1.msra.mxu0 0.0
    %3814 = vmatprep.subr.mxu0 0.0
    %3815 = vmatpush1.msra.mxu0 0.0
    %3816 = vmatprep.subr.mxu0 0.0
    %3817 = vmatpush1.msra.mxu0 0.0
    %3818 = vmatprep.subr.mxu0 0.0
    %3819 = vmatpush1.msra.mxu0 0.0
    %3820 = vmatprep.subr.mxu0 0.0
    %3821 = vmatpush1.msra.mxu0 0.0
    %3822 = vmatprep.subr.mxu0 0.0
    %3823 = vmatpush1.msra.mxu0 0.0
    %3824 = vmatprep.subr.mxu0 0.0
    %3825 = vmatpush1.msra.mxu0 0.0
    %3826 = vmatprep.subr.mxu0 0.0
    %3827 = vmatpush1.msra.mxu0 0.0
    %3828 = vmatprep.subr.mxu0 0.0
    %3829 = vmatpush1.msra.mxu0 0.0
    %3830 = vmatprep.subr.mxu0 0.0
    %3831 = vmatpush1.msra.mxu0 0.0
    %3832 = vmatprep.subr.mxu0 0.0
    %3833 = vmatpush1.msra.mxu0 0.0
    %3834 = vmatprep.subr.mxu0 0.0
    %3835 = vmatpush1.msra.mxu0 0.0
    %3836 = vmatprep.subr.mxu0 0.0
    %3837 = vmatpush1.msra.mxu0 0.0
    %3838 = vmatprep.subr.mxu0 0.0
    %3839 = vmatpush1.msra.mxu0 0.0
    %3840 = vmatprep.subr.mxu0 0.0
    %3841 = vmatpush1.msra.mxu0 0.0
    %3842 = vmatprep.subr.mxu0 0.0
    %3843 = vmatpush1.msra.mxu0 0.0
    %3844 = vmatprep.subr.mxu0 0.0
    %3845 = vmatpush1.msra.mxu0 0.0
    %3846 = vmatprep.subr.mxu0 0.0
    %3847 = vmatpush1.msra.mxu0 0.0
    %3848 = vmatprep.subr.mxu0 0.0
    %3849 = vmatpush1.msra.mxu0 0.0
    %3850 = vmatprep.subr.mxu0 0.0
    %3851 = vmatpush1.msra.mxu0 0.0
    %3852 = vmatprep.subr.mxu0 0.0
    %3853 = vmatpush1.msra.mxu0 0.0
    %3854 = vmatprep.subr.mxu0 0.0
    %3855 = vmatpush1.msra.mxu0 0.0
    %3856 = vmatprep.mubr.f32.mxu0 0.0
    %3857 = vmatmul.mubr.f32.gmra.mrb[0].mxu0 %v3790
    %v3858 = vpop.f32.mrb[0].mxu0
    %v3859 = vadd.f32 %v3350, %v3858
    %v3860 = vpop.f32.mrb[0].mxu0
    %3861 = vdwg.mxu0
    %v3862 = vadd.f32 %v3789, %v3859
    %v3863 = vxor.u32 %v3862, 2147483648
    %v3864 = vmul.f32 %v3863, 1.442695
    %v3865 = vpow.pop %v3864
    %v3866 = vadd.f32 %v3865, 1.0
    %v3867 = vrcp.pop %v3866
    %v3868 = vmul.f32 1.0, %v3867
    %3870 = vrot.lane.b32.xlu0 %v3859, 96
    %v3871 = vpop.permute.xlu0 %3870
    %v3873 = vmul.f32 %v3868, %v3871
    %3875 = vrot.lane.b32.xlu0 %v3873, 32
    %v3876 = vpop.permute.xlu0 %3875
    %v3878 = vadd.f32 %v3789, %v3876
    %v3879 = vtanh.pop %v3878
    %v3880 = vsub.f32 %v3780, %v3879
    %3882 = vrot.lane.b32.xlu0 %v3880, 112
    %v3883 = vpop.permute.xlu0 %3882
    %v3885 = vmul.f32 %v3868, %v3883
    %3887 = vrot.lane.b32.xlu0 %v3885, 16
    %v3888 = vpop.permute.xlu0 %3887
    %v3890 = vadd.f32 %v3879, %v3888
    %3892 = vrot.lane.b32.xlu0 %v3890, 96
    %v3893 = vpop.permute.xlu0 %3892
    %3895 = vst.msk [vmem:[#allocation2 + $0x20] sm:$0xff] %vm318, %v3893
    %3896 = vst.msk [vmem:[#allocation2 + $0x18] sm:$0xff] %vm320, %v3893
    %v3897 = vld [vmem:[#allocation3 + $0x28] sm:$0xff]
    %v3898 = vld [vmem:[#allocation3 + $0x10] sm:$0xff]
    %v3899 = vsel %vm43, %v3897, %v3898
    %v3900 = vsel %vm61, %v3893, 0
    %3902 = vmatprep.subr.mxu0 0.0
    %3903 = vmatpush1.msra.mxu0 %v3339
    %3904 = vmatprep.subr.mxu0 0.0
    %3905 = vmatpush1.msra.mxu0 %v3340
    %3906 = vmatprep.subr.mxu0 0.0
    %3907 = vmatpush1.msra.mxu0 0.0
    %3908 = vmatprep.subr.mxu0 0.0
    %3909 = vmatpush1.msra.mxu0 0.0
    %3910 = vmatprep.subr.mxu0 0.0
    %3911 = vmatpush1.msra.mxu0 0.0
    %3912 = vmatprep.subr.mxu0 0.0
    %3913 = vmatpush1.msra.mxu0 0.0
    %3914 = vmatprep.subr.mxu0 0.0
    %3915 = vmatpush1.msra.mxu0 0.0
    %3916 = vmatprep.subr.mxu0 0.0
    %3917 = vmatpush1.msra.mxu0 0.0
    %3918 = vmatprep.subr.mxu0 0.0
    %3919 = vmatpush1.msra.mxu0 0.0
    %3920 = vmatprep.subr.mxu0 0.0
    %3921 = vmatpush1.msra.mxu0 0.0
    %3922 = vmatprep.subr.mxu0 0.0
    %3923 = vmatpush1.msra.mxu0 0.0
    %3924 = vmatprep.subr.mxu0 0.0
    %3925 = vmatpush1.msra.mxu0 0.0
    %3926 = vmatprep.subr.mxu0 0.0
    %3927 = vmatpush1.msra.mxu0 0.0
    %3928 = vmatprep.subr.mxu0 0.0
    %3929 = vmatpush1.msra.mxu0 0.0
    %3930 = vmatprep.subr.mxu0 0.0
    %3931 = vmatpush1.msra.mxu0 0.0
    %3932 = vmatprep.subr.mxu0 0.0
    %3933 = vmatpush1.msra.mxu0 0.0
    %3934 = vmatprep.subr.mxu0 0.0
    %3935 = vmatpush1.msra.mxu0 0.0
    %3936 = vmatprep.subr.mxu0 0.0
    %3937 = vmatpush1.msra.mxu0 0.0
    %3938 = vmatprep.subr.mxu0 0.0
    %3939 = vmatpush1.msra.mxu0 0.0
    %3940 = vmatprep.subr.mxu0 0.0
    %3941 = vmatpush1.msra.mxu0 0.0
    %3942 = vmatprep.subr.mxu0 0.0
    %3943 = vmatpush1.msra.mxu0 0.0
    %3944 = vmatprep.subr.mxu0 0.0
    %3945 = vmatpush1.msra.mxu0 0.0
    %3946 = vmatprep.subr.mxu0 0.0
    %3947 = vmatpush1.msra.mxu0 0.0
    %3948 = vmatprep.subr.mxu0 0.0
    %3949 = vmatpush1.msra.mxu0 0.0
    %3950 = vmatprep.subr.mxu0 0.0
    %3951 = vmatpush1.msra.mxu0 0.0
    %3952 = vmatprep.subr.mxu0 0.0
    %3953 = vmatpush1.msra.mxu0 0.0
    %3954 = vmatprep.subr.mxu0 0.0
    %3955 = vmatpush1.msra.mxu0 0.0
    %3956 = vmatprep.subr.mxu0 0.0
    %3957 = vmatpush1.msra.mxu0 0.0
    %3958 = vmatprep.subr.mxu0 0.0
    %3959 = vmatpush1.msra.mxu0 0.0
    %3960 = vmatprep.subr.mxu0 0.0
    %3961 = vmatpush1.msra.mxu0 0.0
    %3962 = vmatprep.subr.mxu0 0.0
    %3963 = vmatpush1.msra.mxu0 0.0
    %3964 = vmatprep.subr.mxu0 0.0
    %3965 = vmatpush1.msra.mxu0 0.0
    %3966 = vmatprep.mubr.f32.mxu0 0.0
    %3967 = vmatmul.mubr.f32.gmra.mrb[0].mxu0 %v3900
    %v3968 = vpop.f32.mrb[0].mxu0
    %v3969 = vadd.f32 %v3350, %v3968
    %v3970 = vpop.f32.mrb[0].mxu0
    %3971 = vdwg.mxu0
    %v3972 = vadd.f32 %v3899, %v3969
    %v3973 = vxor.u32 %v3972, 2147483648
    %v3974 = vmul.f32 %v3973, 1.442695
    %v3975 = vpow.pop %v3974
    %v3976 = vadd.f32 %v3975, 1.0
    %v3977 = vrcp.pop %v3976
    %v3978 = vmul.f32 1.0, %v3977
    %3980 = vrot.lane.b32.xlu0 %v3969, 96
    %v3981 = vpop.permute.xlu0 %3980
    %v3983 = vmul.f32 %v3978, %v3981
    %3985 = vrot.lane.b32.xlu0 %v3983, 32
    %v3986 = vpop.permute.xlu0 %3985
    %v3988 = vadd.f32 %v3899, %v3986
    %v3989 = vtanh.pop %v3988
    %v3990 = vsub.f32 %v3890, %v3989
    %3992 = vrot.lane.b32.xlu0 %v3990, 112
    %v3993 = vpop.permute.xlu0 %3992
    %v3995 = vmul.f32 %v3978, %v3993
    %3997 = vrot.lane.b32.xlu0 %v3995, 16
    %v3998 = vpop.permute.xlu0 %3997
    %v4000 = vadd.f32 %v3989, %v3998
    %4002 = vrot.lane.b32.xlu0 %v4000, 96
    %v4003 = vpop.permute.xlu0 %4002
    %4005 = vst.msk [vmem:[#allocation2 + $0x28] sm:$0xff] %vm318, %v4003
    %4006 = vst.msk [vmem:[#allocation2 + $0x10] sm:$0xff] %vm320, %v4003
    %v4007 = vld [vmem:[#allocation3 + $0x30] sm:$0xff]
    %v4008 = vld [vmem:[#allocation3 + $0x8] sm:$0xff]
    %v4009 = vsel %vm43, %v4007, %v4008
    %v4010 = vsel %vm61, %v4003, 0
    %4012 = vmatprep.subr.mxu0 0.0
    %4013 = vmatpush1.msra.mxu0 %v3339
    %4014 = vmatprep.subr.mxu0 0.0
    %4015 = vmatpush1.msra.mxu0 %v3340
    %4016 = vmatprep.subr.mxu0 0.0
    %4017 = vmatpush1.msra.mxu0 0.0
    %4018 = vmatprep.subr.mxu0 0.0
    %4019 = vmatpush1.msra.mxu0 0.0
    %4020 = vmatprep.subr.mxu0 0.0
    %4021 = vmatpush1.msra.mxu0 0.0
    %4022 = vmatprep.subr.mxu0 0.0
    %4023 = vmatpush1.msra.mxu0 0.0
    %4024 = vmatprep.subr.mxu0 0.0
    %4025 = vmatpush1.msra.mxu0 0.0
    %4026 = vmatprep.subr.mxu0 0.0
    %4027 = vmatpush1.msra.mxu0 0.0
    %4028 = vmatprep.subr.mxu0 0.0
    %4029 = vmatpush1.msra.mxu0 0.0
    %4030 = vmatprep.subr.mxu0 0.0
    %4031 = vmatpush1.msra.mxu0 0.0
    %4032 = vmatprep.subr.mxu0 0.0
    %4033 = vmatpush1.msra.mxu0 0.0
    %4034 = vmatprep.subr.mxu0 0.0
    %4035 = vmatpush1.msra.mxu0 0.0
    %4036 = vmatprep.subr.mxu0 0.0
    %4037 = vmatpush1.msra.mxu0 0.0
    %4038 = vmatprep.subr.mxu0 0.0
    %4039 = vmatpush1.msra.mxu0 0.0
    %4040 = vmatprep.subr.mxu0 0.0
    %4041 = vmatpush1.msra.mxu0 0.0
    %4042 = vmatprep.subr.mxu0 0.0
    %4043 = vmatpush1.msra.mxu0 0.0
    %4044 = vmatprep.subr.mxu0 0.0
    %4045 = vmatpush1.msra.mxu0 0.0
    %4046 = vmatprep.subr.mxu0 0.0
    %4047 = vmatpush1.msra.mxu0 0.0
    %4048 = vmatprep.subr.mxu0 0.0
    %4049 = vmatpush1.msra.mxu0 0.0
    %4050 = vmatprep.subr.mxu0 0.0
    %4051 = vmatpush1.msra.mxu0 0.0
    %4052 = vmatprep.subr.mxu0 0.0
    %4053 = vmatpush1.msra.mxu0 0.0
    %4054 = vmatprep.subr.mxu0 0.0
    %4055 = vmatpush1.msra.mxu0 0.0
    %4056 = vmatprep.subr.mxu0 0.0
    %4057 = vmatpush1.msra.mxu0 0.0
    %4058 = vmatprep.subr.mxu0 0.0
    %4059 = vmatpush1.msra.mxu0 0.0
    %4060 = vmatprep.subr.mxu0 0.0
    %4061 = vmatpush1.msra.mxu0 0.0
    %4062 = vmatprep.subr.mxu0 0.0
    %4063 = vmatpush1.msra.mxu0 0.0
    %4064 = vmatprep.subr.mxu0 0.0
    %4065 = vmatpush1.msra.mxu0 0.0
    %4066 = vmatprep.subr.mxu0 0.0
    %4067 = vmatpush1.msra.mxu0 0.0
    %4068 = vmatprep.subr.mxu0 0.0
    %4069 = vmatpush1.msra.mxu0 0.0
    %4070 = vmatprep.subr.mxu0 0.0
    %4071 = vmatpush1.msra.mxu0 0.0
    %4072 = vmatprep.subr.mxu0 0.0
    %4073 = vmatpush1.msra.mxu0 0.0
    %4074 = vmatprep.subr.mxu0 0.0
    %4075 = vmatpush1.msra.mxu0 0.0
    %4076 = vmatprep.mubr.f32.mxu0 0.0
    %4077 = vmatmul.mubr.f32.gmra.mrb[0].mxu0 %v4010
    %v4078 = vpop.f32.mrb[0].mxu0
    %v4079 = vadd.f32 %v3350, %v4078
    %v4080 = vpop.f32.mrb[0].mxu0
    %4081 = vdwg.mxu0
    %v4082 = vadd.f32 %v4009, %v4079
    %v4083 = vxor.u32 %v4082, 2147483648
    %v4084 = vmul.f32 %v4083, 1.442695
    %v4085 = vpow.pop %v4084
    %v4086 = vadd.f32 %v4085, 1.0
    %v4087 = vrcp.pop %v4086
    %v4088 = vmul.f32 1.0, %v4087
    %4090 = vrot.lane.b32.xlu0 %v4079, 96
    %v4091 = vpop.permute.xlu0 %4090
    %v4093 = vmul.f32 %v4088, %v4091
    %4095 = vrot.lane.b32.xlu0 %v4093, 32
    %v4096 = vpop.permute.xlu0 %4095
    %v4098 = vadd.f32 %v4009, %v4096
    %v4099 = vtanh.pop %v4098
    %v4100 = vsub.f32 %v4000, %v4099
    %4102 = vrot.lane.b32.xlu0 %v4100, 112
    %v4103 = vpop.permute.xlu0 %4102
    %v4105 = vmul.f32 %v4088, %v4103
    %4107 = vrot.lane.b32.xlu0 %v4105, 16
    %v4108 = vpop.permute.xlu0 %4107
    %v4110 = vadd.f32 %v4099, %v4108
    %4112 = vrot.lane.b32.xlu0 %v4110, 96
    %v4113 = vpop.permute.xlu0 %4112
    %4115 = vst.msk [vmem:[#allocation2 + $0x30] sm:$0xff] %vm318, %v4113
    %4116 = vst.msk [vmem:[#allocation2 + $0x8] sm:$0xff] %vm320, %v4113
    %v4117 = vld [vmem:[#allocation3 + $0x38] sm:$0xff]
    %v4118 = vld [vmem:[#allocation3] sm:$0xff]
    %v4119 = vsel %vm43, %v4117, %v4118
    %v4120 = vsel %vm61, %v4113, 0
    %4122 = vmatprep.subr.mxu0 0.0
    %4123 = vmatpush1.msra.mxu0 %v3339
    %4124 = vmatprep.subr.mxu0 0.0
    %4125 = vmatpush1.msra.mxu0 %v3340
    %4126 = vmatprep.subr.mxu0 0.0
    %4127 = vmatpush1.msra.mxu0 0.0
    %4128 = vmatprep.subr.mxu0 0.0
    %4129 = vmatpush1.msra.mxu0 0.0
    %4130 = vmatprep.subr.mxu0 0.0
    %4131 = vmatpush1.msra.mxu0 0.0
    %4132 = vmatprep.subr.mxu0 0.0
    %4133 = vmatpush1.msra.mxu0 0.0
    %4134 = vmatprep.subr.mxu0 0.0
    %4135 = vmatpush1.msra.mxu0 0.0
    %4136 = vmatprep.subr.mxu0 0.0
    %4137 = vmatpush1.msra.mxu0 0.0
    %4138 = vmatprep.subr.mxu0 0.0
    %4139 = vmatpush1.msra.mxu0 0.0
    %4140 = vmatprep.subr.mxu0 0.0
    %4141 = vmatpush1.msra.mxu0 0.0
    %4142 = vmatprep.subr.mxu0 0.0
    %4143 = vmatpush1.msra.mxu0 0.0
    %4144 = vmatprep.subr.mxu0 0.0
    %4145 = vmatpush1.msra.mxu0 0.0
    %4146 = vmatprep.subr.mxu0 0.0
    %4147 = vmatpush1.msra.mxu0 0.0
    %4148 = vmatprep.subr.mxu0 0.0
    %4149 = vmatpush1.msra.mxu0 0.0
    %4150 = vmatprep.subr.mxu0 0.0
    %4151 = vmatpush1.msra.mxu0 0.0
    %4152 = vmatprep.subr.mxu0 0.0
    %4153 = vmatpush1.msra.mxu0 0.0
    %4154 = vmatprep.subr.mxu0 0.0
    %4155 = vmatpush1.msra.mxu0 0.0
    %4156 = vmatprep.subr.mxu0 0.0
    %4157 = vmatpush1.msra.mxu0 0.0
    %4158 = vmatprep.subr.mxu0 0.0
    %4159 = vmatpush1.msra.mxu0 0.0
    %4160 = vmatprep.subr.mxu0 0.0
    %4161 = vmatpush1.msra.mxu0 0.0
    %4162 = vmatprep.subr.mxu0 0.0
    %4163 = vmatpush1.msra.mxu0 0.0
    %4164 = vmatprep.subr.mxu0 0.0
    %4165 = vmatpush1.msra.mxu0 0.0
    %4166 = vmatprep.subr.mxu0 0.0
    %4167 = vmatpush1.msra.mxu0 0.0
    %4168 = vmatprep.subr.mxu0 0.0
    %4169 = vmatpush1.msra.mxu0 0.0
    %4170 = vmatprep.subr.mxu0 0.0
    %4171 = vmatpush1.msra.mxu0 0.0
    %4172 = vmatprep.subr.mxu0 0.0
    %4173 = vmatpush1.msra.mxu0 0.0
    %4174 = vmatprep.subr.mxu0 0.0
    %4175 = vmatpush1.msra.mxu0 0.0
    %4176 = vmatprep.subr.mxu0 0.0
    %4177 = vmatpush1.msra.mxu0 0.0
    %4178 = vmatprep.subr.mxu0 0.0
    %4179 = vmatpush1.msra.mxu0 0.0
    %4180 = vmatprep.subr.mxu0 0.0
    %4181 = vmatpush1.msra.mxu0 0.0
    %4182 = vmatprep.subr.mxu0 0.0
    %4183 = vmatpush1.msra.mxu0 0.0
    %4184 = vmatprep.subr.mxu0 0.0
    %4185 = vmatpush1.msra.mxu0 0.0
    %4186 = vmatprep.mubr.f32.mxu0 0.0
    %4187 = vmatmul.mubr.f32.gmra.mrb[0].mxu0 %v4120
    %v4188 = vpop.f32.mrb[0].mxu0
    %v4189 = vadd.f32 %v3350, %v4188
    %v4190 = vpop.f32.mrb[0].mxu0
    %4191 = vdwg.mxu0
    %v4192 = vadd.f32 %v4119, %v4189
    %v4193 = vxor.u32 %v4192, 2147483648
    %v4194 = vmul.f32 %v4193, 1.442695
    %v4195 = vpow.pop %v4194
    %v4196 = vadd.f32 %v4195, 1.0
    %v4197 = vrcp.pop %v4196
    %v4198 = vmul.f32 1.0, %v4197
    %4200 = vrot.lane.b32.xlu0 %v4189, 96
    %v4201 = vpop.permute.xlu0 %4200
    %v4203 = vmul.f32 %v4198, %v4201
    %4205 = vrot.lane.b32.xlu0 %v4203, 32
    %v4206 = vpop.permute.xlu0 %4205
    %v4208 = vadd.f32 %v4119, %v4206
    %v4209 = vtanh.pop %v4208
    %v4210 = vsub.f32 %v4110, %v4209
    %4212 = vrot.lane.b32.xlu0 %v4210, 112
    %v4213 = vpop.permute.xlu0 %4212
    %v4215 = vmul.f32 %v4198, %v4213
    %4217 = vrot.lane.b32.xlu0 %v4215, 16
    %v4218 = vpop.permute.xlu0 %4217
    %v4220 = vadd.f32 %v4209, %v4218
    %4222 = vrot.lane.b32.xlu0 %v4220, 96
    %v4223 = vpop.permute.xlu0 %4222
    %4225 = vst.msk [vmem:[#allocation2 + $0x38] sm:$0xff] %vm318, %v4223
    %4226 = vst.msk [vmem:[#allocation2] sm:$0xff] %vm320, %v4223
    %v4227 = vld [vmem:[#allocation2 + $0x38] sm:$0xff]
    %v4228 = vld [vmem:[%s5] sm:$0xff]
    %v4229 = vld [vmem:[%s5 + $0x8] sm:$0xff]
    %v4230 = vld [vmem:[%s6] sm:$0x1]
    %v4232 = vlaneseq
    %v4233 = vshrl.u32 %v4232, 7
    %v4234 = vsub.s32 0, %v4233
    %v4235 = vrot.slane %v4230, %v4234
    %v4238 = vsel %vm61, %v4227, 0
    %4240 = vmatprep.subr.mxu0 0.0
    %4241 = vmatpush1.msra.mxu0 %v4228
    %4242 = vmatprep.subr.mxu0 0.0
    %4243 = vmatpush1.msra.mxu0 %v4229
    %4244 = vmatprep.subr.mxu0 0.0
    %4245 = vmatpush1.msra.mxu0 0.0
    %4246 = vmatprep.subr.mxu0 0.0
    %4247 = vmatpush1.msra.mxu0 0.0
    %4248 = vmatprep.subr.mxu0 0.0
    %4249 = vmatpush1.msra.mxu0 0.0
    %4250 = vmatprep.subr.mxu0 0.0
    %4251 = vmatpush1.msra.mxu0 0.0
    %4252 = vmatprep.subr.mxu0 0.0
    %4253 = vmatpush1.msra.mxu0 0.0
    %4254 = vmatprep.subr.mxu0 0.0
    %4255 = vmatpush1.msra.mxu0 0.0
    %4256 = vmatprep.subr.mxu0 0.0
    %4257 = vmatpush1.msra.mxu0 0.0
    %4258 = vmatprep.subr.mxu0 0.0
    %4259 = vmatpush1.msra.mxu0 0.0
    %4260 = vmatprep.subr.mxu0 0.0
    %4261 = vmatpush1.msra.mxu0 0.0
    %4262 = vmatprep.subr.mxu0 0.0
    %4263 = vmatpush1.msra.mxu0 0.0
    %4264 = vmatprep.subr.mxu0 0.0
    %4265 = vmatpush1.msra.mxu0 0.0
    %4266 = vmatprep.subr.mxu0 0.0
    %4267 = vmatpush1.msra.mxu0 0.0
    %4268 = vmatprep.subr.mxu0 0.0
    %4269 = vmatpush1.msra.mxu0 0.0
    %4270 = vmatprep.subr.mxu0 0.0
    %4271 = vmatpush1.msra.mxu0 0.0
    %4272 = vmatprep.subr.mxu0 0.0
    %4273 = vmatpush1.msra.mxu0 0.0
    %4274 = vmatprep.subr.mxu0 0.0
    %4275 = vmatpush1.msra.mxu0 0.0
    %4276 = vmatprep.subr.mxu0 0.0
    %4277 = vmatpush1.msra.mxu0 0.0
    %4278 = vmatprep.subr.mxu0 0.0
    %4279 = vmatpush1.msra.mxu0 0.0
    %4280 = vmatprep.subr.mxu0 0.0
    %4281 = vmatpush1.msra.mxu0 0.0
    %4282 = vmatprep.subr.mxu0 0.0
    %4283 = vmatpush1.msra.mxu0 0.0
    %4284 = vmatprep.subr.mxu0 0.0
    %4285 = vmatpush1.msra.mxu0 0.0
    %4286 = vmatprep.subr.mxu0 0.0
    %4287 = vmatpush1.msra.mxu0 0.0
    %4288 = vmatprep.subr.mxu0 0.0
    %4289 = vmatpush1.msra.mxu0 0.0
    %4290 = vmatprep.subr.mxu0 0.0
    %4291 = vmatpush1.msra.mxu0 0.0
    %4292 = vmatprep.subr.mxu0 0.0
    %4293 = vmatpush1.msra.mxu0 0.0
    %4294 = vmatprep.subr.mxu0 0.0
    %4295 = vmatpush1.msra.mxu0 0.0
    %4296 = vmatprep.subr.mxu0 0.0
    %4297 = vmatpush1.msra.mxu0 0.0
    %4298 = vmatprep.subr.mxu0 0.0
    %4299 = vmatpush1.msra.mxu0 0.0
    %4300 = vmatprep.subr.mxu0 0.0
    %4301 = vmatpush1.msra.mxu0 0.0
    %4302 = vmatprep.subr.mxu0 0.0
    %4303 = vmatpush1.msra.mxu0 0.0
    %4304 = vmatprep.mubr.f32.mxu0 0.0
    %4305 = vmatmul.mubr.f32.gmra.mrb[0].mxu0 %v4238
    %v4306 = vpop.f32.mrb[0].mxu0
    %v4307 = vadd.f32 %v4235, %v4306
    %v4308 = vpop.f32.mrb[0].mxu0
    %4309 = vdwg.mxu0
    %vm4310 = vcmp.ge.f32.partialorder %v4307, 0.0
    %v4311 = vmul.f32 %v4307, 0.2
    %v4312 = vsel %vm4310, %v4307, %v4311
    %v4313 = vld [vmem:[%s7] sm:$0xff]
    %v4314 = vld [vmem:[%s8] sm:$0x1]
    %v4316 = vlaneseq
    %v4317 = vshrl.u32 %v4316, 7
    %v4318 = vsub.s32 0, %v4317
    %v4319 = vrot.slane %v4314, %v4318
    %v4322 = vsel %vm318, %v4312, 0
    %4324 = vmatprep.subr.mxu0 0.0
    %4325 = vmatpush1.msra.mxu0 %v4313
    %4326 = vmatprep.subr.mxu0 0.0
    %4327 = vmatpush1.msra.mxu0 0.0
    %4328 = vmatprep.subr.mxu0 0.0
    %4329 = vmatpush1.msra.mxu0 0.0
    %4330 = vmatprep.subr.mxu0 0.0
    %4331 = vmatpush1.msra.mxu0 0.0
    %4332 = vmatprep.subr.mxu0 0.0
    %4333 = vmatpush1.msra.mxu0 0.0
    %4334 = vmatprep.subr.mxu0 0.0
    %4335 = vmatpush1.msra.mxu0 0.0
    %4336 = vmatprep.subr.mxu0 0.0
    %4337 = vmatpush1.msra.mxu0 0.0
    %4338 = vmatprep.subr.mxu0 0.0
    %4339 = vmatpush1.msra.mxu0 0.0
    %4340 = vmatprep.subr.mxu0 0.0
    %4341 = vmatpush1.msra.mxu0 0.0
    %4342 = vmatprep.subr.mxu0 0.0
    %4343 = vmatpush1.msra.mxu0 0.0
    %4344 = vmatprep.subr.mxu0 0.0
    %4345 = vmatpush1.msra.mxu0 0.0
    %4346 = vmatprep.subr.mxu0 0.0
    %4347 = vmatpush1.msra.mxu0 0.0
    %4348 = vmatprep.subr.mxu0 0.0
    %4349 = vmatpush1.msra.mxu0 0.0
    %4350 = vmatprep.subr.mxu0 0.0
    %4351 = vmatpush1.msra.mxu0 0.0
    %4352 = vmatprep.subr.mxu0 0.0
    %4353 = vmatpush1.msra.mxu0 0.0
    %4354 = vmatprep.subr.mxu0 0.0
    %4355 = vmatpush1.msra.mxu0 0.0
    %4356 = vmatprep.subr.mxu0 0.0
    %4357 = vmatpush1.msra.mxu0 0.0
    %4358 = vmatprep.subr.mxu0 0.0
    %4359 = vmatpush1.msra.mxu0 0.0
    %4360 = vmatprep.subr.mxu0 0.0
    %4361 = vmatpush1.msra.mxu0 0.0
    %4362 = vmatprep.subr.mxu0 0.0
    %4363 = vmatpush1.msra.mxu0 0.0
    %4364 = vmatprep.subr.mxu0 0.0
    %4365 = vmatpush1.msra.mxu0 0.0
    %4366 = vmatprep.subr.mxu0 0.0
    %4367 = vmatpush1.msra.mxu0 0.0
    %4368 = vmatprep.subr.mxu0 0.0
    %4369 = vmatpush1.msra.mxu0 0.0
    %4370 = vmatprep.subr.mxu0 0.0
    %4371 = vmatpush1.msra.mxu0 0.0
    %4372 = vmatprep.subr.mxu0 0.0
    %4373 = vmatpush1.msra.mxu0 0.0
    %4374 = vmatprep.subr.mxu0 0.0
    %4375 = vmatpush1.msra.mxu0 0.0
    %4376 = vmatprep.subr.mxu0 0.0
    %4377 = vmatpush1.msra.mxu0 0.0
    %4378 = vmatprep.subr.mxu0 0.0
    %4379 = vmatpush1.msra.mxu0 0.0
    %4380 = vmatprep.subr.mxu0 0.0
    %4381 = vmatpush1.msra.mxu0 0.0
    %4382 = vmatprep.subr.mxu0 0.0
    %4383 = vmatpush1.msra.mxu0 0.0
    %4384 = vmatprep.subr.mxu0 0.0
    %4385 = vmatpush1.msra.mxu0 0.0
    %4386 = vmatprep.subr.mxu0 0.0
    %4387 = vmatpush1.msra.mxu0 0.0
    %4388 = vmatprep.mubr.f32.mxu0 0.0
    %4389 = vmatmul.mubr.f32.gmra.mrb[0].mxu0 %v4322
    %v4390 = vpop.f32.mrb[0].mxu0
    %v4391 = vadd.f32 %v4319, %v4390
    %v4392 = vpop.f32.mrb[0].mxu0
    %4393 = vdwg.mxu0
    %4394 = vst.msk [vmem:[#allocation4] sm:$0xff] %vm318, %v4391
    // Predicated region
    $region38: #{gru_k_region_forward.1} parent=1 // pred_check
      _
    $region39: #{gru_k_region_forward.1} parent=1 // pred_check_branch
      %4396 = sbr.rel (0) target = $region41
    $region40: #{gru_k_region_forward.1} parent=1 // pred_region
      %s4398 = ssub.s32 128, 128
      %4399 = vsyncadd [#allocation5], %s4398
      %s4401 = sshll.u32 [#allocation4], 4
      %s4402 = int_to_ptr.vmem [resolvable:$true] %s4401
      %4404 = dma.vmem_to_hbm [thread:$0]  %s4402, 128, %s9, [#allocation5]
    $region41: #{gru_k_region_forward.1} parent=1 // pred_fallthru
      _
    // Predicated region
    $region42: #{gru_k_region_forward.1} parent=1 // pred_check
      _
    $region43: #{gru_k_region_forward.1} parent=1 // pred_check_branch
      %4406 = sbr.rel (0) target = $region45
    $region44: #{gru_k_region_forward.1} parent=1 // pred_region
      %4407 = dma.done [#allocation5], 128
    $region45: #{gru_k_region_forward.1} parent=1 // pred_fallthru
      _
    %4408 = vsyncpa [#allocation5], 1

</llo_original>
